<compile_context>
chip_gen: v7x
topology: tpu7x:2x2x1
jax: 0.10.0
libtpu: 0.0.40
codegen_flags: <defaults>
</compile_context>

<pallas_src>
import numpy as np
import jax
import jax.numpy as jnp
from jax.experimental import pallas as pl
from jax.experimental.pallas import tpu as pltpu

HIDDEN = 32
INNER_MULT = 2          # _inner_mlp_mult
BN_EPS = 1e-5
PAD = 128               # lane-dense padded width for MLP intermediates/outputs
GSUB = 16               # sublane stride for the stacked gather matrix

# ----------------------------------------------------------------------------
# Synthetic graph: 6-cycle (0-1-2-3-4-5) fused with a 5-cycle (0-5-6-7-8)
# sharing edge (0,5).  10 edges, one 5-cycle, one 6-cycle.
# ----------------------------------------------------------------------------
EDGES = [(0, 1), (1, 2), (2, 3), (3, 4), (4, 5),
         (5, 0), (5, 6), (6, 7), (7, 8), (8, 0)]
CYCLES5 = [(0, 5, 6, 7, 8)]
CYCLES6 = [(0, 1, 2, 3, 4, 5)]

EDGE_DOMAINS = [list(e) for e in EDGES]           # 2 atoms per edge -> 20 rows
CYCLE5_DOMAINS = [list(c) for c in CYCLES5]       # 5 rows
CYCLE6_DOMAINS = [list(c) for c in CYCLES6]       # 6 rows
CYCLE_DOMAINS = CYCLE5_DOMAINS + CYCLE6_DOMAINS   # 11 rows (cycle5 then cycle6)

N_EDGE_ROWS = sum(len(d) for d in EDGE_DOMAINS)   # 20
N_CYCLE_ROWS = sum(len(d) for d in CYCLE_DOMAINS) # 11


def _offsets(domains):
    off, s = [], 0
    for d in domains:
        off.append(s)
        s += len(d)
    return off, s


def _gather_mats_np(src_domains, tgt_domains):
    """Dense transfer matrices of an order-1 -> order-1 ptensor gather.

    out = concat([Mb @ X, Mi @ X], -1)  (channel doubling).
    """
    src_off, n_src = _offsets(src_domains)
    tgt_off, n_tgt = _offsets(tgt_domains)
    Mb = np.zeros((n_tgt, n_src), np.float32)
    Mi = np.zeros((n_tgt, n_src), np.float32)
    for ti, Dt in enumerate(tgt_domains):
        for si, Ds in enumerate(src_domains):
            inter = [a for a in Ds if a in Dt]
            if not inter:
                continue
            for a in inter:
                r = tgt_off[ti] + Dt.index(a)
                c = src_off[si] + Ds.index(a)
                Mi[r, c] += 1.0                          # identity on intersection
                for b in inter:                          # broadcast of pooled sum
                    Mb[r, src_off[si] + Ds.index(b)] += 1.0
    return Mb, Mi


def build_graph_matrices():
    """Host-side composition of the chained gathers into two small mixers.

    Returns:
      g_stack : (64, 20)  -- G_k at sublane offset 16*k (zero rows between)
      mce     : (2, 20, 11) -- [broadcast, identity] cycle->edge mixers
      raw     : raw gather matrices for the plain-JAX reference
    """
    Mb_e5, Mi_e5 = _gather_mats_np(EDGE_DOMAINS, CYCLE5_DOMAINS)
    Mb_55, Mi_55 = _gather_mats_np(CYCLE5_DOMAINS, CYCLE5_DOMAINS)
    Mb_e6, Mi_e6 = _gather_mats_np(EDGE_DOMAINS, CYCLE6_DOMAINS)
    Mb_66, Mi_66 = _gather_mats_np(CYCLE6_DOMAINS, CYCLE6_DOMAINS)
    Mb_ce, Mi_ce = _gather_mats_np(CYCLE_DOMAINS, EDGE_DOMAINS)

    # Channel blocks of cycle_in = gather(gather(edge_rep, c5/c6), c5/c6);
    # rows stacked: cycle5 rows (5) on top, cycle6 rows (6) below.
    G4 = np.stack([
        np.vstack([Mb_55 @ Mb_e5, Mb_66 @ Mb_e6]),
        np.vstack([Mb_55 @ Mi_e5, Mb_66 @ Mi_e6]),
        np.vstack([Mi_55 @ Mb_e5, Mi_66 @ Mb_e6]),
        np.vstack([Mi_55 @ Mi_e5, Mi_66 @ Mi_e6]),
    ]).astype(np.float32)                                   # (4, 11, 20)

    # Single stacked gather matrix: one MXU op instead of four.
    g_stack = np.zeros((4 * GSUB, N_EDGE_ROWS), np.float32)  # (64, 20)
    for k in range(4):
        g_stack[k * GSUB:k * GSUB + N_CYCLE_ROWS] = G4[k]

    mce = np.stack([Mb_ce, Mi_ce]).astype(np.float32)        # (2, 20, 11)

    raw = tuple(jnp.asarray(m) for m in
                (Mb_e5, Mi_e5, Mb_55, Mi_55, Mb_e6, Mi_e6, Mb_66, Mi_66,
                 Mb_ce, Mi_ce))
    return jnp.asarray(g_stack), jnp.asarray(mce), raw


# ----------------------------------------------------------------------------
# Parameters (PyTorch-shaped raw weights + packed/padded kernel form)
# ----------------------------------------------------------------------------
def init_params(key):
    HM = HIDDEN * INNER_MULT
    k1, k2, k3, k4 = jax.random.split(key, 4)
    w1e = jax.random.normal(k1, (11 * HIDDEN, HM), jnp.float32) / np.sqrt(11 * HIDDEN)
    w2e = jax.random.normal(k2, (HM, HIDDEN), jnp.float32) / np.sqrt(HM)
    w1c = jax.random.normal(k3, (5 * HIDDEN, HM), jnp.float32) / np.sqrt(5 * HIDDEN)
    w2c = jax.random.normal(k4, (HM, HIDDEN), jnp.float32) / np.sqrt(HM)
    return w1e, w2e, w1c, w2c           # Linear layers have no bias


def pack_params(raw):
    """Pack weights into two lane-dense slabs (2 kernel args, 2 DMAs).

    w_all  : (5, 32, 384) -- per channel block k of cycle_new,
             [W1_cycle[k] | W1_edge_broadcast[k] | W1_edge_identity[k]]
    w_slab : (288, 128)   -- rows [0:32]  = W1_edge[:H]        (E part)
                             rows [32:160] = W2_cycle (padded)
                             rows [160:288] = W2_edge (padded)
    BatchNorm affine params stay at PyTorch defaults (gamma=1, beta=0) and are
    dropped from the kernel entirely.
    """
    w1e, w2e, w1c, w2c = (np.asarray(a, np.float32) for a in raw)
    H = HIDDEN

    def pad_cols(w):
        out = np.zeros((w.shape[0], PAD), np.float32)
        out[:, : w.shape[1]] = w
        return out

    def pad_both(w):
        out = np.zeros((PAD, PAD), np.float32)
        out[: w.shape[0], : w.shape[1]] = w
        return out

    w1c_blk = pad_cols(w1c).reshape(5, H, PAD)                 # (5, 32, 128)
    w1e_pad = pad_cols(w1e)                                    # (352, 128)
    w1e_E = w1e_pad[:H]                                        # (32, 128)
    w1e_b = w1e_pad[H:6 * H].reshape(5, H, PAD)                # broadcast half
    w1e_i = w1e_pad[6 * H:].reshape(5, H, PAD)                 # identity half

    w_all = np.concatenate([w1c_blk, w1e_b, w1e_i], axis=-1)   # (5, 32, 384)
    w_slab = np.concatenate([w1e_E, pad_both(w2c), pad_both(w2e)], axis=0)  # (288, 128)
    return jnp.asarray(w_all), jnp.asarray(w_slab)


# ----------------------------------------------------------------------------
# Fused Pallas kernel: all gathers + both MLPs, one graph per grid step.
# ----------------------------------------------------------------------------
def _dot(a, b):
    # Kernel is latency-bound, not MXU-bound -> HIGHEST precision is ~free and
    # keeps parity with the f32 reference tight.
    return jnp.dot(a, b, preferred_element_type=jnp.float32,
                   precision=jax.lax.Precision.HIGHEST)


def _bn_relu(h):
    # PyTorch BatchNorm1d (training-mode biased batch stats, gamma=1, beta=0).
    # mean and mean-of-squares are independent XLU reductions.
    mu = jnp.mean(h, axis=0, keepdims=True)
    ms = jnp.mean(h * h, axis=0, keepdims=True)
    var = ms - mu * mu
    return jnp.maximum((h - mu) * jax.lax.rsqrt(var + BN_EPS), 0.0)


def _edge_cycle_kernel(e_ref, c_ref, g_ref, mce_ref, w_all_ref, wslab_ref,
                       edge_o_ref, cycle_o_ref):
    E = e_ref[...]            # (20, 32)  edge ptensor rows (this graph)
    C = c_ref[...]            # (11, 32)  cycle ptensor rows (this graph)

    # All four edge->cycle->cycle gathers in ONE matmul.
    S = _dot(g_ref[...], E)                                   # (64, 32)

    # First Linear of BOTH MLPs folded across the 5 channel blocks of
    # cycle_new = [G0@E | G1@E | G2@E | G3@E | C]:
    #   [A|B] @ [Wa; Wb] == A @ Wa + B @ Wb, with the three weight groups
    #   fused along lanes -> one matmul per block instead of three.
    h_all = _dot(C, w_all_ref[4])                             # (11, 384)
    for k in range(4):
        blk = S[k * GSUB:k * GSUB + N_CYCLE_ROWS, :]          # (11, 32)
        h_all = h_all + _dot(blk, w_all_ref[k])

    h_c = h_all[:, 0:PAD]            # cycle_new @ W1_cycle            (11,128)
    t_b = h_all[:, PAD:2 * PAD]      # cycle_new @ W1_edge[broadcast]  (11,128)
    t_i = h_all[:, 2 * PAD:3 * PAD]  # cycle_new @ W1_edge[identity]   (11,128)

    # ---- cycle MLP: Linear -> BN -> ReLU -> Linear -> BN -> ReLU ----------
    h_c = _bn_relu(h_c)
    w2c = wslab_ref[HIDDEN:HIDDEN + PAD, :]
    cycle_o_ref[...] = _bn_relu(_dot(h_c, w2c))

    # ---- edge MLP (cycle->edge gather folded through Linear1) -------------
    # edge_in @ W1_edge = E@W1[:H] + Mb_ce@(CN@W1_b) + Mi_ce@(CN@W1_i)
    h_e = (_dot(E, wslab_ref[0:HIDDEN, :])
           + _dot(mce_ref[0], t_b)
           + _dot(mce_ref[1], t_i))                           # (20, 128)
    h_e = _bn_relu(h_e)
    w2e = wslab_ref[HIDDEN + PAD:HIDDEN + 2 * PAD, :]
    edge_o_ref[...] = _bn_relu(_dot(h_e, w2e))


@jax.jit
def edge_cycle_forward(edge_rep, cycle_rep, g_stack, mce, w_all, w_slab):
    """Batched Edge_Cycle.forward over B graphs of identical structure.

    edge_rep  : (B, 20, H)   cycle_rep : (B, 11, H)
    Returns lane-dense slabs (B, 20, 128) and (B, 11, 128); lanes >= H are
    exactly zero (slice them off downstream, or fold into the next layer).
    Dropout = eval-mode identity.
    """
    B = edge_rep.shape[0]
    const2 = lambda b: (0, 0)
    const3 = lambda b: (0, 0, 0)

    return pl.pallas_call(
        _edge_cycle_kernel,
        out_shape=(jax.ShapeDtypeStruct((B, N_EDGE_ROWS, PAD), jnp.float32),
                   jax.ShapeDtypeStruct((B, N_CYCLE_ROWS, PAD), jnp.float32)),
        grid=(B,),
        in_specs=[
            # per-graph activation tiles (streamed)
            pl.BlockSpec((None, N_EDGE_ROWS, HIDDEN), lambda b: (b, 0, 0)),
            pl.BlockSpec((None, N_CYCLE_ROWS, HIDDEN), lambda b: (b, 0, 0)),
            # graph mixers + weights: constant index_map -> VMEM-resident
            pl.BlockSpec((4 * GSUB, N_EDGE_ROWS), const2),
            pl.BlockSpec((2, N_EDGE_ROWS, N_CYCLE_ROWS), const3),
            pl.BlockSpec((5, HIDDEN, 3 * PAD), const3),
            pl.BlockSpec((HIDDEN + 2 * PAD, PAD), const2),
        ],
        out_specs=(
            pl.BlockSpec((None, N_EDGE_ROWS, PAD), lambda b: (b, 0, 0)),
            pl.BlockSpec((None, N_CYCLE_ROWS, PAD), lambda b: (b, 0, 0)),
        ),
        compiler_params=pltpu.CompilerParams(
            dimension_semantics=("parallel",)),   # v7x: graphs split across 2 TCs
    )(edge_rep, cycle_rep, g_stack, mce, w_all, w_slab)


# ----------------------------------------------------------------------------
# Plain-JAX reference (unfused, original gather formulation) for parity check.
# ----------------------------------------------------------------------------
def _gather1to1(x, mb, mi):
    return jnp.concatenate([mb @ x, mi @ x], axis=-1)


def _mlp_ref(x, w1, w2):
    h = x @ w1
    mu = h.mean(0, keepdims=True)
    var = ((h - mu) ** 2).mean(0, keepdims=True)
    h = jnp.maximum((h - mu) * jax.lax.rsqrt(var + BN_EPS), 0.0)
    y = h @ w2
    mu = y.mean(0, keepdims=True)
    var = ((y - mu) ** 2).mean(0, keepdims=True)
    return jnp.maximum((y - mu) * jax.lax.rsqrt(var + BN_EPS), 0.0)


def reference_forward(E, C, raw_weights, raw_gathers):
    (Mb_e5, Mi_e5, Mb_55, Mi_55, Mb_e6, Mi_e6, Mb_66, Mi_66,
     Mb_ce, Mi_ce) = raw_gathers
    w1e, w2e, w1c, w2c = raw_weights
    e2c5 = _gather1to1(_gather1to1(E, Mb_e5, Mi_e5), Mb_55, Mi_55)   # (5, 4H)
    e2c6 = _gather1to1(_gather1to1(E, Mb_e6, Mi_e6), Mb_66, Mi_66)   # (6, 4H)
    cycle_in = jnp.concatenate([e2c5, e2c6], axis=0)                 # (11, 4H)
    cycle_new = jnp.concatenate([cycle_in, C], axis=-1)              # (11, 5H)
    c2e = _gather1to1(cycle_new, Mb_ce, Mi_ce)                       # (20, 10H)
    edge_in = jnp.concatenate([E, c2e], axis=-1)                     # (20, 11H)
    return _mlp_ref(edge_in, w1e, w2e), _mlp_ref(cycle_new, w1c, w2c)


# ----------------------------------------------------------------------------
if __name__ == "__main__":
    key = jax.random.PRNGKey(0)
    k_e, k_c, k_w = jax.random.split(key, 3)

    B = 2    # batch of graphs sharing the synthetic structure
    edge_rep = jax.random.normal(k_e, (B, N_EDGE_ROWS, HIDDEN), jnp.float32)
    cycle_rep = jax.random.normal(k_c, (B, N_CYCLE_ROWS, HIDDEN), jnp.float32)

    g_stack, mce, raw_gathers = build_graph_matrices()
    raw_weights = init_params(k_w)
    w_all, w_slab = pack_params(raw_weights)

    edge_pad, cycle_pad = edge_cycle_forward(edge_rep, cycle_rep,
                                             g_stack, mce, w_all, w_slab)
    jax.block_until_ready((edge_pad, cycle_pad))

    assert edge_pad.shape == (B, N_EDGE_ROWS, PAD)
    assert cycle_pad.shape == (B, N_CYCLE_ROWS, PAD)
    assert bool(jnp.all(jnp.isfinite(edge_pad)))
    assert bool(jnp.all(jnp.isfinite(cycle_pad)))

    # Padded lanes are exactly zero by construction (zero weight cols, beta=0);
    # the HIDDEN-wide slice below is only for the parity check — consumers can
    # take the lane-dense slab directly.
    assert float(jnp.max(jnp.abs(edge_pad[..., HIDDEN:]))) == 0.0
    assert float(jnp.max(jnp.abs(cycle_pad[..., HIDDEN:]))) == 0.0
    edge_out = edge_pad[..., :HIDDEN]
    cycle_out = cycle_pad[..., :HIDDEN]

    # Parity check per graph against the unfused plain-JAX reference.
    with jax.default_matmul_precision("highest"):
        for b in range(B):
            eo_ref, co_ref = reference_forward(edge_rep[b], cycle_rep[b],
                                               raw_weights, raw_gathers)
            eo_ref, co_ref = jax.block_until_ready((eo_ref, co_ref))
            err_e = float(jnp.max(jnp.abs(edge_out[b] - eo_ref)))
            err_c = float(jnp.max(jnp.abs(cycle_out[b] - co_ref)))
            # HIGHEST-precision dots in-kernel -> errors ~1e-5; loose bound
            # still catches any structural/folding bug (O(1) mismatch).
            assert err_e < 5e-2 and err_c < 5e-2, (b, err_e, err_c)

    print("KERNEL_OK")
</pallas_src>

<mosaic_0001>
module attributes {stable_mosaic.version = 11 : i64} {
  func.func @_edge_cycle_kernel(%arg0: i32, %arg1: memref<1x20x32xf32, #tpu.memory_space<vmem>>, %arg2: memref<1x11x32xf32, #tpu.memory_space<vmem>>, %arg3: memref<64x20xf32, #tpu.memory_space<vmem>>, %arg4: memref<2x20x11xf32, #tpu.memory_space<vmem>>, %arg5: memref<5x32x384xf32, #tpu.memory_space<vmem>>, %arg6: memref<288x128xf32, #tpu.memory_space<vmem>>, %arg7: memref<1x20x128xf32, #tpu.memory_space<vmem>>, %arg8: memref<1x11x128xf32, #tpu.memory_space<vmem>>) attributes {dimension_semantics = [#tpu.dimension_semantics<parallel>], iteration_bounds = array<i64: 2>, scalar_prefetch = 0 : i64, scratch_operands = 0 : i64, tpu.core_type = #tpu.core_type<tc>, window_params = [{transform_indices = @transform_0, window_bounds = array<i64: 1, 20, 32>}, {transform_indices = @transform_1, window_bounds = array<i64: 1, 11, 32>}, {pipeline_mode = #tpu.pipeline_mode<synchronous>, transform_indices = @transform_2, window_bounds = array<i64: 64, 20>}, {pipeline_mode = #tpu.pipeline_mode<synchronous>, transform_indices = @transform_3, window_bounds = array<i64: 2, 20, 11>}, {pipeline_mode = #tpu.pipeline_mode<synchronous>, transform_indices = @transform_4, window_bounds = array<i64: 5, 32, 384>}, {pipeline_mode = #tpu.pipeline_mode<synchronous>, transform_indices = @transform_5, window_bounds = array<i64: 288, 128>}, {transform_indices = @transform_6, window_bounds = array<i64: 1, 20, 128>}, {transform_indices = @transform_7, window_bounds = array<i64: 1, 11, 128>}]} {
    %c0 = arith.constant 0 : index
    %c0_0 = arith.constant 0 : index
    %c0_1 = arith.constant 0 : index
    %0 = vector.load %arg1[%c0, %c0_0, %c0_1] : memref<1x20x32xf32, #tpu.memory_space<vmem>>, vector<1x20x32xf32>
    %1 = vector.shape_cast %0 : vector<1x20x32xf32> to vector<20x32xf32>
    %c0_2 = arith.constant 0 : index
    %c0_3 = arith.constant 0 : index
    %c0_4 = arith.constant 0 : index
    %2 = vector.load %arg2[%c0_2, %c0_3, %c0_4] : memref<1x11x32xf32, #tpu.memory_space<vmem>>, vector<1x11x32xf32>
    %3 = vector.shape_cast %2 : vector<1x11x32xf32> to vector<11x32xf32>
    %c0_5 = arith.constant 0 : index
    %c0_6 = arith.constant 0 : index
    %4 = vector.load %arg3[%c0_5, %c0_6] : memref<64x20xf32, #tpu.memory_space<vmem>>, vector<64x20xf32>
    %cst = arith.constant dense<0.000000e+00> : vector<64x32xf32>
    %5 = tpu.matmul %4, %1, %cst {dimension_numbers = #tpu.dot_dimension_numbers<[1], [0], [0], [1], [0, 0, 1, 1], [], []>, precision = #tpu.contract_precision<fp32>} : vector<64x20xf32>, vector<20x32xf32>, vector<64x32xf32> -> vector<64x32xf32>
    %c4 = arith.constant 4 : index
    %c0_7 = arith.constant 0 : index
    %c0_8 = arith.constant 0 : index
    %6 = vector.load %arg5[%c4, %c0_7, %c0_8] : memref<5x32x384xf32, #tpu.memory_space<vmem>>, vector<1x32x384xf32>
    %7 = vector.shape_cast %6 : vector<1x32x384xf32> to vector<32x384xf32>
    %cst_9 = arith.constant dense<0.000000e+00> : vector<11x384xf32>
    %8 = tpu.matmul %3, %7, %cst_9 {dimension_numbers = #tpu.dot_dimension_numbers<[1], [0], [0], [1], [0, 0, 1, 1], [], []>, precision = #tpu.contract_precision<fp32>} : vector<11x32xf32>, vector<32x384xf32>, vector<11x384xf32> -> vector<11x384xf32>
    %9 = vector.extract_strided_slice %5 {offsets = [0, 0], sizes = [11, 32], strides = [1, 1]} : vector<64x32xf32> to vector<11x32xf32>
    %c0_10 = arith.constant 0 : index
    %c0_11 = arith.constant 0 : index
    %c0_12 = arith.constant 0 : index
    %10 = vector.load %arg5[%c0_10, %c0_11, %c0_12] : memref<5x32x384xf32, #tpu.memory_space<vmem>>, vector<1x32x384xf32>
    %11 = vector.shape_cast %10 : vector<1x32x384xf32> to vector<32x384xf32>
    %cst_13 = arith.constant dense<0.000000e+00> : vector<11x384xf32>
    %12 = tpu.matmul %9, %11, %cst_13 {dimension_numbers = #tpu.dot_dimension_numbers<[1], [0], [0], [1], [0, 0, 1, 1], [], []>, precision = #tpu.contract_precision<fp32>} : vector<11x32xf32>, vector<32x384xf32>, vector<11x384xf32> -> vector<11x384xf32>
    %13 = arith.addf %8, %12 : vector<11x384xf32>
    %14 = vector.extract_strided_slice %5 {offsets = [16, 0], sizes = [11, 32], strides = [1, 1]} : vector<64x32xf32> to vector<11x32xf32>
    %c1 = arith.constant 1 : index
    %c0_14 = arith.constant 0 : index
    %c0_15 = arith.constant 0 : index
    %15 = vector.load %arg5[%c1, %c0_14, %c0_15] : memref<5x32x384xf32, #tpu.memory_space<vmem>>, vector<1x32x384xf32>
    %16 = vector.shape_cast %15 : vector<1x32x384xf32> to vector<32x384xf32>
    %cst_16 = arith.constant dense<0.000000e+00> : vector<11x384xf32>
    %17 = tpu.matmul %14, %16, %cst_16 {dimension_numbers = #tpu.dot_dimension_numbers<[1], [0], [0], [1], [0, 0, 1, 1], [], []>, precision = #tpu.contract_precision<fp32>} : vector<11x32xf32>, vector<32x384xf32>, vector<11x384xf32> -> vector<11x384xf32>
    %18 = arith.addf %13, %17 : vector<11x384xf32>
    %19 = vector.extract_strided_slice %5 {offsets = [32, 0], sizes = [11, 32], strides = [1, 1]} : vector<64x32xf32> to vector<11x32xf32>
    %c2 = arith.constant 2 : index
    %c0_17 = arith.constant 0 : index
    %c0_18 = arith.constant 0 : index
    %20 = vector.load %arg5[%c2, %c0_17, %c0_18] : memref<5x32x384xf32, #tpu.memory_space<vmem>>, vector<1x32x384xf32>
    %21 = vector.shape_cast %20 : vector<1x32x384xf32> to vector<32x384xf32>
    %cst_19 = arith.constant dense<0.000000e+00> : vector<11x384xf32>
    %22 = tpu.matmul %19, %21, %cst_19 {dimension_numbers = #tpu.dot_dimension_numbers<[1], [0], [0], [1], [0, 0, 1, 1], [], []>, precision = #tpu.contract_precision<fp32>} : vector<11x32xf32>, vector<32x384xf32>, vector<11x384xf32> -> vector<11x384xf32>
    %23 = arith.addf %18, %22 : vector<11x384xf32>
    %24 = vector.extract_strided_slice %5 {offsets = [48, 0], sizes = [11, 32], strides = [1, 1]} : vector<64x32xf32> to vector<11x32xf32>
    %c3 = arith.constant 3 : index
    %c0_20 = arith.constant 0 : index
    %c0_21 = arith.constant 0 : index
    %25 = vector.load %arg5[%c3, %c0_20, %c0_21] : memref<5x32x384xf32, #tpu.memory_space<vmem>>, vector<1x32x384xf32>
    %26 = vector.shape_cast %25 : vector<1x32x384xf32> to vector<32x384xf32>
    %cst_22 = arith.constant dense<0.000000e+00> : vector<11x384xf32>
    %27 = tpu.matmul %24, %26, %cst_22 {dimension_numbers = #tpu.dot_dimension_numbers<[1], [0], [0], [1], [0, 0, 1, 1], [], []>, precision = #tpu.contract_precision<fp32>} : vector<11x32xf32>, vector<32x384xf32>, vector<11x384xf32> -> vector<11x384xf32>
    %28 = arith.addf %23, %27 : vector<11x384xf32>
    %29 = vector.extract_strided_slice %28 {offsets = [0, 0], sizes = [11, 128], strides = [1, 1]} : vector<11x384xf32> to vector<11x128xf32>
    %30 = vector.extract_strided_slice %28 {offsets = [0, 128], sizes = [11, 128], strides = [1, 1]} : vector<11x384xf32> to vector<11x128xf32>
    %31 = vector.extract_strided_slice %28 {offsets = [0, 256], sizes = [11, 128], strides = [1, 1]} : vector<11x384xf32> to vector<11x128xf32>
    %cst_23 = arith.constant dense<0.000000e+00> : vector<128xf32>
    %32 = vector.multi_reduction <add>, %29, %cst_23 [0] : vector<11x128xf32> to vector<128xf32>
    %33 = vector.shape_cast %32 : vector<128xf32> to vector<1x128xf32>
    %cst_24 = arith.constant 1.100000e+01 : f32
    %34 = vector.broadcast %cst_24 : f32 to vector<1x128xf32>
    %35 = arith.divf %33, %34 : vector<1x128xf32>
    %36 = arith.mulf %29, %29 : vector<11x128xf32>
    %cst_25 = arith.constant dense<0.000000e+00> : vector<128xf32>
    %37 = vector.multi_reduction <add>, %36, %cst_25 [0] : vector<11x128xf32> to vector<128xf32>
    %38 = vector.shape_cast %37 : vector<128xf32> to vector<1x128xf32>
    %cst_26 = arith.constant 1.100000e+01 : f32
    %39 = vector.broadcast %cst_26 : f32 to vector<1x128xf32>
    %40 = arith.divf %38, %39 : vector<1x128xf32>
    %41 = arith.mulf %35, %35 : vector<1x128xf32>
    %42 = arith.subf %40, %41 : vector<1x128xf32>
    %43 = vector.broadcast %35 : vector<1x128xf32> to vector<11x128xf32>
    %44 = arith.subf %29, %43 : vector<11x128xf32>
    %cst_27 = arith.constant 9.99999974E-6 : f32
    %45 = vector.broadcast %cst_27 : f32 to vector<1x128xf32>
    %46 = arith.addf %42, %45 : vector<1x128xf32>
    %47 = math.rsqrt %46 : vector<1x128xf32>
    %48 = vector.broadcast %47 : vector<1x128xf32> to vector<11x128xf32>
    %49 = arith.mulf %44, %48 : vector<11x128xf32>
    %cst_28 = arith.constant 0.000000e+00 : f32
    %50 = vector.broadcast %cst_28 : f32 to vector<11x128xf32>
    %51 = arith.maximumf %49, %50 : vector<11x128xf32>
    %c32 = arith.constant 32 : index
    %c0_29 = arith.constant 0 : index
    %52 = vector.load %arg6[%c32, %c0_29] : memref<288x128xf32, #tpu.memory_space<vmem>>, vector<128x128xf32>
    %cst_30 = arith.constant dense<0.000000e+00> : vector<11x128xf32>
    %53 = tpu.matmul %51, %52, %cst_30 {dimension_numbers = #tpu.dot_dimension_numbers<[1], [0], [0], [1], [0, 0, 1, 1], [], []>, precision = #tpu.contract_precision<fp32>} : vector<11x128xf32>, vector<128x128xf32>, vector<11x128xf32> -> vector<11x128xf32>
    %cst_31 = arith.constant dense<0.000000e+00> : vector<128xf32>
    %54 = vector.multi_reduction <add>, %53, %cst_31 [0] : vector<11x128xf32> to vector<128xf32>
    %55 = vector.shape_cast %54 : vector<128xf32> to vector<1x128xf32>
    %cst_32 = arith.constant 1.100000e+01 : f32
    %56 = vector.broadcast %cst_32 : f32 to vector<1x128xf32>
    %57 = arith.divf %55, %56 : vector<1x128xf32>
    %58 = arith.mulf %53, %53 : vector<11x128xf32>
    %cst_33 = arith.constant dense<0.000000e+00> : vector<128xf32>
    %59 = vector.multi_reduction <add>, %58, %cst_33 [0] : vector<11x128xf32> to vector<128xf32>
    %60 = vector.shape_cast %59 : vector<128xf32> to vector<1x128xf32>
    %cst_34 = arith.constant 1.100000e+01 : f32
    %61 = vector.broadcast %cst_34 : f32 to vector<1x128xf32>
    %62 = arith.divf %60, %61 : vector<1x128xf32>
    %63 = arith.mulf %57, %57 : vector<1x128xf32>
    %64 = arith.subf %62, %63 : vector<1x128xf32>
    %65 = vector.broadcast %57 : vector<1x128xf32> to vector<11x128xf32>
    %66 = arith.subf %53, %65 : vector<11x128xf32>
    %cst_35 = arith.constant 9.99999974E-6 : f32
    %67 = vector.broadcast %cst_35 : f32 to vector<1x128xf32>
    %68 = arith.addf %64, %67 : vector<1x128xf32>
    %69 = math.rsqrt %68 : vector<1x128xf32>
    %70 = vector.broadcast %69 : vector<1x128xf32> to vector<11x128xf32>
    %71 = arith.mulf %66, %70 : vector<11x128xf32>
    %cst_36 = arith.constant 0.000000e+00 : f32
    %72 = vector.broadcast %cst_36 : f32 to vector<11x128xf32>
    %73 = arith.maximumf %71, %72 : vector<11x128xf32>
    %c0_37 = arith.constant 0 : index
    %c0_38 = arith.constant 0 : index
    %c0_39 = arith.constant 0 : index
    %74 = vector.load %arg8[%c0_37, %c0_38, %c0_39] : memref<1x11x128xf32, #tpu.memory_space<vmem>>, vector<1x11x128xf32>
    %75 = vector.shape_cast %74 : vector<1x11x128xf32> to vector<11x128xf32>
    %76 = vector.shape_cast %73 : vector<11x128xf32> to vector<1x11x128xf32>
    tpu.vector_store %arg8[%c0_37, %c0_38, %c0_39], %76 {strides = array<i32>} : memref<1x11x128xf32, #tpu.memory_space<vmem>>, vector<1x11x128xf32>,
    %c0_40 = arith.constant 0 : index
    %c0_41 = arith.constant 0 : index
    %77 = vector.load %arg6[%c0_40, %c0_41] : memref<288x128xf32, #tpu.memory_space<vmem>>, vector<32x128xf32>
    %cst_42 = arith.constant dense<0.000000e+00> : vector<20x128xf32>
    %78 = tpu.matmul %1, %77, %cst_42 {dimension_numbers = #tpu.dot_dimension_numbers<[1], [0], [0], [1], [0, 0, 1, 1], [], []>, precision = #tpu.contract_precision<fp32>} : vector<20x32xf32>, vector<32x128xf32>, vector<20x128xf32> -> vector<20x128xf32>
    %c0_43 = arith.constant 0 : index
    %c0_44 = arith.constant 0 : index
    %c0_45 = arith.constant 0 : index
    %79 = vector.load %arg4[%c0_43, %c0_44, %c0_45] : memref<2x20x11xf32, #tpu.memory_space<vmem>>, vector<1x20x11xf32>
    %80 = vector.shape_cast %79 : vector<1x20x11xf32> to vector<20x11xf32>
    %cst_46 = arith.constant dense<0.000000e+00> : vector<20x128xf32>
    %81 = tpu.matmul %80, %30, %cst_46 {dimension_numbers = #tpu.dot_dimension_numbers<[1], [0], [0], [1], [0, 0, 1, 1], [], []>, precision = #tpu.contract_precision<fp32>} : vector<20x11xf32>, vector<11x128xf32>, vector<20x128xf32> -> vector<20x128xf32>
    %82 = arith.addf %78, %81 : vector<20x128xf32>
    %c1_47 = arith.constant 1 : index
    %c0_48 = arith.constant 0 : index
    %c0_49 = arith.constant 0 : index
    %83 = vector.load %arg4[%c1_47, %c0_48, %c0_49] : memref<2x20x11xf32, #tpu.memory_space<vmem>>, vector<1x20x11xf32>
    %84 = vector.shape_cast %83 : vector<1x20x11xf32> to vector<20x11xf32>
    %cst_50 = arith.constant dense<0.000000e+00> : vector<20x128xf32>
    %85 = tpu.matmul %84, %31, %cst_50 {dimension_numbers = #tpu.dot_dimension_numbers<[1], [0], [0], [1], [0, 0, 1, 1], [], []>, precision = #tpu.contract_precision<fp32>} : vector<20x11xf32>, vector<11x128xf32>, vector<20x128xf32> -> vector<20x128xf32>
    %86 = arith.addf %82, %85 : vector<20x128xf32>
    %cst_51 = arith.constant dense<0.000000e+00> : vector<128xf32>
    %87 = vector.multi_reduction <add>, %86, %cst_51 [0] : vector<20x128xf32> to vector<128xf32>
    %88 = vector.shape_cast %87 : vector<128xf32> to vector<1x128xf32>
    %cst_52 = arith.constant 2.000000e+01 : f32
    %89 = vector.broadcast %cst_52 : f32 to vector<1x128xf32>
    %90 = arith.divf %88, %89 : vector<1x128xf32>
    %91 = arith.mulf %86, %86 : vector<20x128xf32>
    %cst_53 = arith.constant dense<0.000000e+00> : vector<128xf32>
    %92 = vector.multi_reduction <add>, %91, %cst_53 [0] : vector<20x128xf32> to vector<128xf32>
    %93 = vector.shape_cast %92 : vector<128xf32> to vector<1x128xf32>
    %cst_54 = arith.constant 2.000000e+01 : f32
    %94 = vector.broadcast %cst_54 : f32 to vector<1x128xf32>
    %95 = arith.divf %93, %94 : vector<1x128xf32>
    %96 = arith.mulf %90, %90 : vector<1x128xf32>
    %97 = arith.subf %95, %96 : vector<1x128xf32>
    %98 = vector.broadcast %90 : vector<1x128xf32> to vector<20x128xf32>
    %99 = arith.subf %86, %98 : vector<20x128xf32>
    %cst_55 = arith.constant 9.99999974E-6 : f32
    %100 = vector.broadcast %cst_55 : f32 to vector<1x128xf32>
    %101 = arith.addf %97, %100 : vector<1x128xf32>
    %102 = math.rsqrt %101 : vector<1x128xf32>
    %103 = vector.broadcast %102 : vector<1x128xf32> to vector<20x128xf32>
    %104 = arith.mulf %99, %103 : vector<20x128xf32>
    %cst_56 = arith.constant 0.000000e+00 : f32
    %105 = vector.broadcast %cst_56 : f32 to vector<20x128xf32>
    %106 = arith.maximumf %104, %105 : vector<20x128xf32>
    %c160 = arith.constant 160 : index
    %c0_57 = arith.constant 0 : index
    %107 = vector.load %arg6[%c160, %c0_57] : memref<288x128xf32, #tpu.memory_space<vmem>>, vector<128x128xf32>
    %cst_58 = arith.constant dense<0.000000e+00> : vector<20x128xf32>
    %108 = tpu.matmul %106, %107, %cst_58 {dimension_numbers = #tpu.dot_dimension_numbers<[1], [0], [0], [1], [0, 0, 1, 1], [], []>, precision = #tpu.contract_precision<fp32>} : vector<20x128xf32>, vector<128x128xf32>, vector<20x128xf32> -> vector<20x128xf32>
    %cst_59 = arith.constant dense<0.000000e+00> : vector<128xf32>
    %109 = vector.multi_reduction <add>, %108, %cst_59 [0] : vector<20x128xf32> to vector<128xf32>
    %110 = vector.shape_cast %109 : vector<128xf32> to vector<1x128xf32>
    %cst_60 = arith.constant 2.000000e+01 : f32
    %111 = vector.broadcast %cst_60 : f32 to vector<1x128xf32>
    %112 = arith.divf %110, %111 : vector<1x128xf32>
    %113 = arith.mulf %108, %108 : vector<20x128xf32>
    %cst_61 = arith.constant dense<0.000000e+00> : vector<128xf32>
    %114 = vector.multi_reduction <add>, %113, %cst_61 [0] : vector<20x128xf32> to vector<128xf32>
    %115 = vector.shape_cast %114 : vector<128xf32> to vector<1x128xf32>
    %cst_62 = arith.constant 2.000000e+01 : f32
    %116 = vector.broadcast %cst_62 : f32 to vector<1x128xf32>
    %117 = arith.divf %115, %116 : vector<1x128xf32>
    %118 = arith.mulf %112, %112 : vector<1x128xf32>
    %119 = arith.subf %117, %118 : vector<1x128xf32>
    %120 = vector.broadcast %112 : vector<1x128xf32> to vector<20x128xf32>
    %121 = arith.subf %108, %120 : vector<20x128xf32>
    %cst_63 = arith.constant 9.99999974E-6 : f32
    %122 = vector.broadcast %cst_63 : f32 to vector<1x128xf32>
    %123 = arith.addf %119, %122 : vector<1x128xf32>
    %124 = math.rsqrt %123 : vector<1x128xf32>
    %125 = vector.broadcast %124 : vector<1x128xf32> to vector<20x128xf32>
    %126 = arith.mulf %121, %125 : vector<20x128xf32>
    %cst_64 = arith.constant 0.000000e+00 : f32
    %127 = vector.broadcast %cst_64 : f32 to vector<20x128xf32>
    %128 = arith.maximumf %126, %127 : vector<20x128xf32>
    %c0_65 = arith.constant 0 : index
    %c0_66 = arith.constant 0 : index
    %c0_67 = arith.constant 0 : index
    %129 = vector.load %arg7[%c0_65, %c0_66, %c0_67] : memref<1x20x128xf32, #tpu.memory_space<vmem>>, vector<1x20x128xf32>
    %130 = vector.shape_cast %129 : vector<1x20x128xf32> to vector<20x128xf32>
    %131 = vector.shape_cast %128 : vector<20x128xf32> to vector<1x20x128xf32>
    tpu.vector_store %arg7[%c0_65, %c0_66, %c0_67], %131 {strides = array<i32>} : memref<1x20x128xf32, #tpu.memory_space<vmem>>, vector<1x20x128xf32>,
    return
  }
  func.func @transform_0(%arg0: i32) -> (i32, i32, i32) {
    %c0_i32 = arith.constant 0 : i32
    %c0_i32_0 = arith.constant 0 : i32
    %c0_i32_1 = arith.constant 0 : i32
    return %arg0, %c0_i32, %c0_i32_0 : i32, i32, i32
  }
  func.func @transform_1(%arg0: i32) -> (i32, i32, i32) {
    %c0_i32 = arith.constant 0 : i32
    %c0_i32_0 = arith.constant 0 : i32
    %c0_i32_1 = arith.constant 0 : i32
    return %arg0, %c0_i32, %c0_i32_0 : i32, i32, i32
  }
  func.func @transform_2(%arg0: i32) -> (i32, i32) {
    %c0_i32 = arith.constant 0 : i32
    %c0_i32_0 = arith.constant 0 : i32
    %c0_i32_1 = arith.constant 0 : i32
    return %c0_i32, %c0_i32_0 : i32, i32
  }
  func.func @transform_3(%arg0: i32) -> (i32, i32, i32) {
    %c0_i32 = arith.constant 0 : i32
    %c0_i32_0 = arith.constant 0 : i32
    %c0_i32_1 = arith.constant 0 : i32
    %c0_i32_2 = arith.constant 0 : i32
    return %c0_i32, %c0_i32_0, %c0_i32_1 : i32, i32, i32
  }
  func.func @transform_4(%arg0: i32) -> (i32, i32, i32) {
    %c0_i32 = arith.constant 0 : i32
    %c0_i32_0 = arith.constant 0 : i32
    %c0_i32_1 = arith.constant 0 : i32
    %c0_i32_2 = arith.constant 0 : i32
    return %c0_i32, %c0_i32_0, %c0_i32_1 : i32, i32, i32
  }
  func.func @transform_5(%arg0: i32) -> (i32, i32) {
    %c0_i32 = arith.constant 0 : i32
    %c0_i32_0 = arith.constant 0 : i32
    %c0_i32_1 = arith.constant 0 : i32
    return %c0_i32, %c0_i32_0 : i32, i32
  }
  func.func @transform_6(%arg0: i32) -> (i32, i32, i32) {
    %c0_i32 = arith.constant 0 : i32
    %c0_i32_0 = arith.constant 0 : i32
    %c0_i32_1 = arith.constant 0 : i32
    return %arg0, %c0_i32, %c0_i32_0 : i32, i32, i32
  }
  func.func @transform_7(%arg0: i32) -> (i32, i32, i32) {
    %c0_i32 = arith.constant 0 : i32
    %c0_i32_0 = arith.constant 0 : i32
    %c0_i32_1 = arith.constant 0 : i32
    return %arg0, %c0_i32, %c0_i32_0 : i32, i32, i32
  }
}

</mosaic_0001>

<llo_original>
// kernel: edge_cycle_forward.1
$region0: #{edge_cycle_forward.1}
  #allocation0 [shape = 'u32[]', space=smem, size = 0x4, offset = 0x4, fixed_abs, tag = 'smem constant byte address 0x4 - core index']
  #allocation1 [shape = 'u32[144,128]{1,0:T(1,128)}', space=vmem, size = 0x12000, scoped, tag = 'internal scratch']
  %s0 = inlined_call_operand.vmem [shape: f32[2,20,32], index: 0, kind: input, shape index: {}]
  %s1 = inlined_call_operand.vmem [shape: f32[2,11,32], index: 1, kind: input, shape index: {}]
  %s2 = inlined_call_operand.vmem [shape: f32[64,20], index: 2, kind: input, shape index: {}]
  %s3 = inlined_call_operand.vmem [shape: f32[2,20,11], index: 3, kind: input, shape index: {}]
  %s4 = inlined_call_operand.hbm [shape: f32[5,32,384], index: 4, kind: input, shape index: {}]
  %s5 = inlined_call_operand.vmem [shape: f32[288,128], index: 5, kind: input, shape index: {}]
  %s6 = inlined_call_operand.vmem [shape: f32[2,20,128], index: 6, kind: output, shape index: {0}]
  %s7 = inlined_call_operand.vmem [shape: f32[2,11,128], index: 7, kind: output, shape index: {1}]
  %8 = xla_tuple %s6, %s7
  %s9 = sld [smem:[#allocation0]]
  $region69: #{edge_cycle_forward.1} parent=0
    _
  %s11 = ssub.s32 1, %s9
  %s12 = scalar_select 0, %s11, %s9
  $region1: #{edge_cycle_forward.1} parent=0
    #allocation2 [shape = 'u8[245760]{0}', space=vmem, size = 0x3c000, scoped, tag = 'input window, operand 4, single buffered']
    #allocation3 [shape = 's32[2]{0}', space=sflag, size = 0x8, scoped, tag = 'scoped memory for edge_cycle_forward.1']
    %13 = vsyncpa [#allocation3], 0
    loop: start=0, step=1, limit=4
    $region2: #{edge_cycle_forward.1} parent=1 // loop_pre_header
      _
    $region3: #{edge_cycle_forward.1} parent=1 // loop_header
      %s15 = sphi 0, %s19
      %p16 = scmp.ge.s32.totalorder %s15, 4
      %s25 = sphi 0, %s27
      %s28 = sphi 0, %s25
      %s29 = sphi 0, %s28
      %s45 = sphi 0, %s29
      %s51 = sphi 0, %s53
      %s54 = sphi 0, %s51
      %s55 = sphi 0, %s54
      %s71 = sphi 0, %s55
      %s75 = sphi 0, %s75
      %s77 = sphi 0, %s75
      %s78 = sphi 0, %s77
      %s92 = sphi 0, %s78
      %s96 = sphi 0, %s96
      %s98 = sphi 0, %s96
      %s99 = sphi 0, %s98
      %s113 = sphi 0, %s99
      %s117 = sphi 0, %s117
      %s119 = sphi 0, %s117
      %s120 = sphi 0, %s119
      %s134 = sphi 0, %s120
      %s138 = sphi 0, %s138
      %s140 = sphi 0, %s138
      %s141 = sphi 0, %s140
      %s155 = sphi 0, %s141
      %s161 = sphi 0, %s163
      %s164 = sphi 0, %s161
      %s165 = sphi 0, %s164
      %s181 = sphi 0, %s165
      %s187 = sphi 0, %s189
      %s190 = sphi 0, %s187
      %s191 = sphi 0, %s190
      %s207 = sphi 0, %s191
    $region4: #{edge_cycle_forward.1} parent=1 // loop_header_branch
      %18 = sbr.rel (%p16) target = $region8
    $region5: #{edge_cycle_forward.1} parent=1 // loop_body
      %s20 = ssub.s32 %s15, 1
      %s21 = ssub.s32 %s15, 2
      %s22 = sadd.s32 %s15, 1
      %s23 = ssub.s32 %s15, %s22
      %p24 = scmp.eq.s32.totalorder %s23, 0
      %s26 = sadd.s32 %s25, 1
      %s27 = scalar_select %p24, %s25, %s26
      %p30 = pneg %p24
      %p31 = scmp.eq.s32.totalorder %s15, 1
      %p32 = por %p30, %p31
      %p33 = scmp.ne.s32.totalorder %s25, %s28
      %p34 = scmp.eq.s32.totalorder %s15, 0
      %p35 = por %p33, %p34
      %p36 = scmp.ne.s32.totalorder %s25, %s28
      %p37 = scmp.eq.s32.totalorder %s20, 1
      %p38 = por %p36, %p37
      %p39 = scmp.ne.s32.totalorder %s28, %s29
      %p40 = scmp.eq.s32.totalorder %s20, 0
      %p41 = por %p39, %p40
      %p42 = scmp.ne.s32.totalorder %s28, %s29
      %p43 = scmp.eq.s32.totalorder %s21, 1
      %p44 = por %p42, %p43
      %p46 = scmp.ne.s32.totalorder %s29, %s45
      %p47 = scmp.eq.s32.totalorder %s21, 0
      %p48 = por %p46, %p47
      %s49 = ssub.s32 %s15, %s22
      %p50 = scmp.eq.s32.totalorder %s49, 0
      %s52 = sadd.s32 %s51, 1
      %s53 = scalar_select %p50, %s51, %s52
      %p56 = pneg %p50
      %p57 = scmp.eq.s32.totalorder %s15, 1
      %p58 = por %p56, %p57
      %p59 = scmp.ne.s32.totalorder %s51, %s54
      %p60 = scmp.eq.s32.totalorder %s15, 0
      %p61 = por %p59, %p60
      %p62 = scmp.ne.s32.totalorder %s51, %s54
      %p63 = scmp.eq.s32.totalorder %s20, 1
      %p64 = por %p62, %p63
      %p65 = scmp.ne.s32.totalorder %s54, %s55
      %p66 = scmp.eq.s32.totalorder %s20, 0
      %p67 = por %p65, %p66
      %p68 = scmp.ne.s32.totalorder %s54, %s55
      %p69 = scmp.eq.s32.totalorder %s21, 1
      %p70 = por %p68, %p69
      %p72 = scmp.ne.s32.totalorder %s55, %s71
      %p73 = scmp.eq.s32.totalorder %s21, 0
      %p74 = por %p72, %p73
      %s76 = sadd.s32 %s75, 1
      %p79 = scmp.eq.s32.totalorder %s15, 1
      %p80 = scmp.ne.s32.totalorder %s75, %s77
      %p81 = scmp.eq.s32.totalorder %s15, 0
      %p82 = por %p80, %p81
      %p83 = scmp.ne.s32.totalorder %s75, %s77
      %p84 = scmp.eq.s32.totalorder %s20, 1
      %p85 = por %p83, %p84
      %p86 = scmp.ne.s32.totalorder %s77, %s78
      %p87 = scmp.eq.s32.totalorder %s20, 0
      %p88 = por %p86, %p87
      %p89 = scmp.ne.s32.totalorder %s77, %s78
      %p90 = scmp.eq.s32.totalorder %s21, 1
      %p91 = por %p89, %p90
      %p93 = scmp.ne.s32.totalorder %s78, %s92
      %p94 = scmp.eq.s32.totalorder %s21, 0
      %p95 = por %p93, %p94
      %s97 = sadd.s32 %s96, 1
      %p100 = scmp.eq.s32.totalorder %s15, 1
      %p101 = scmp.ne.s32.totalorder %s96, %s98
      %p102 = scmp.eq.s32.totalorder %s15, 0
      %p103 = por %p101, %p102
      %p104 = scmp.ne.s32.totalorder %s96, %s98
      %p105 = scmp.eq.s32.totalorder %s20, 1
      %p106 = por %p104, %p105
      %p107 = scmp.ne.s32.totalorder %s98, %s99
      %p108 = scmp.eq.s32.totalorder %s20, 0
      %p109 = por %p107, %p108
      %p110 = scmp.ne.s32.totalorder %s98, %s99
      %p111 = scmp.eq.s32.totalorder %s21, 1
      %p112 = por %p110, %p111
      %p114 = scmp.ne.s32.totalorder %s99, %s113
      %p115 = scmp.eq.s32.totalorder %s21, 0
      %p116 = por %p114, %p115
      %s118 = sadd.s32 %s117, 1
      %p121 = scmp.eq.s32.totalorder %s15, 1
      %p122 = scmp.ne.s32.totalorder %s117, %s119
      %p123 = scmp.eq.s32.totalorder %s15, 0
      %p124 = por %p122, %p123
      %p125 = scmp.ne.s32.totalorder %s117, %s119
      %p126 = scmp.eq.s32.totalorder %s20, 1
      %p127 = por %p125, %p126
      %p128 = scmp.ne.s32.totalorder %s119, %s120
      %p129 = scmp.eq.s32.totalorder %s20, 0
      %p130 = por %p128, %p129
      %p131 = scmp.ne.s32.totalorder %s119, %s120
      %p132 = scmp.eq.s32.totalorder %s21, 1
      %p133 = por %p131, %p132
      %p135 = scmp.ne.s32.totalorder %s120, %s134
      %p136 = scmp.eq.s32.totalorder %s21, 0
      %p137 = por %p135, %p136
      %s139 = sadd.s32 %s138, 1
      %p142 = scmp.eq.s32.totalorder %s15, 1
      %p143 = scmp.ne.s32.totalorder %s138, %s140
      %p144 = scmp.eq.s32.totalorder %s15, 0
      %p145 = por %p143, %p144
      %p146 = scmp.ne.s32.totalorder %s138, %s140
      %p147 = scmp.eq.s32.totalorder %s20, 1
      %p148 = por %p146, %p147
      %p149 = scmp.ne.s32.totalorder %s140, %s141
      %p150 = scmp.eq.s32.totalorder %s20, 0
      %p151 = por %p149, %p150
      %p152 = scmp.ne.s32.totalorder %s140, %s141
      %p153 = scmp.eq.s32.totalorder %s21, 1
      %p154 = por %p152, %p153
      %p156 = scmp.ne.s32.totalorder %s141, %s155
      %p157 = scmp.eq.s32.totalorder %s21, 0
      %p158 = por %p156, %p157
      %s159 = ssub.s32 %s15, %s22
      %p160 = scmp.eq.s32.totalorder %s159, 0
      %s162 = sadd.s32 %s161, 1
      %s163 = scalar_select %p160, %s161, %s162
      %p166 = pneg %p160
      %p167 = scmp.eq.s32.totalorder %s15, 1
      %p168 = por %p166, %p167
      %p169 = scmp.ne.s32.totalorder %s161, %s164
      %p170 = scmp.eq.s32.totalorder %s15, 0
      %p171 = por %p169, %p170
      %p172 = scmp.ne.s32.totalorder %s161, %s164
      %p173 = scmp.eq.s32.totalorder %s20, 1
      %p174 = por %p172, %p173
      %p175 = scmp.ne.s32.totalorder %s164, %s165
      %p176 = scmp.eq.s32.totalorder %s20, 0
      %p177 = por %p175, %p176
      %p178 = scmp.ne.s32.totalorder %s164, %s165
      %p179 = scmp.eq.s32.totalorder %s21, 1
      %p180 = por %p178, %p179
      %p182 = scmp.ne.s32.totalorder %s165, %s181
      %p183 = scmp.eq.s32.totalorder %s21, 0
      %p184 = por %p182, %p183
      %s185 = ssub.s32 %s15, %s22
      %p186 = scmp.eq.s32.totalorder %s185, 0
      %s188 = sadd.s32 %s187, 1
      %s189 = scalar_select %p186, %s187, %s188
      %p192 = pneg %p186
      %p193 = scmp.eq.s32.totalorder %s15, 1
      %p194 = por %p192, %p193
      %p195 = scmp.ne.s32.totalorder %s187, %s190
      %p196 = scmp.eq.s32.totalorder %s15, 0
      %p197 = por %p195, %p196
      %p198 = scmp.ne.s32.totalorder %s187, %s190
      %p199 = scmp.eq.s32.totalorder %s20, 1
      %p200 = por %p198, %p199
      %p201 = scmp.ne.s32.totalorder %s190, %s191
      %p202 = scmp.eq.s32.totalorder %s20, 0
      %p203 = por %p201, %p202
      %p204 = scmp.ne.s32.totalorder %s190, %s191
      %p205 = scmp.eq.s32.totalorder %s21, 1
      %p206 = por %p204, %p205
      %p208 = scmp.ne.s32.totalorder %s191, %s207
      %p209 = scmp.eq.s32.totalorder %s21, 0
      %p210 = por %p208, %p209
      %p211 = scmp.le.s32.totalorder 1, %s15
      %p212 = scmp.lt.s32.totalorder %s15, 3
      %p213 = pnand %p211, %p212
      %p214 = pneg %p213
      // Predicated region
      $region9: #{edge_cycle_forward.1} parent=5 // pred_check
        _
      $region10: #{edge_cycle_forward.1} parent=5 // pred_check_branch
        %216 = sbr.rel (%p213) target = $region12
      $region11: #{edge_cycle_forward.1} parent=5 // pred_region
        %s217 = ssub.s32 %s15, 1
        // Predicated region
        $region13: #{edge_cycle_forward.1} parent=11 // pred_check
          %p218 = pneg %p88
        $region14: #{edge_cycle_forward.1} parent=11 // pred_check_branch
          %220 = sbr.rel (%p218) target = $region16
        $region15: #{edge_cycle_forward.1} parent=11 // pred_region
          _
        $region16: #{edge_cycle_forward.1} parent=11 // pred_fallthru
          _
        // Predicated region
        $region17: #{edge_cycle_forward.1} parent=11 // pred_check
          %p221 = pneg %p109
        $region18: #{edge_cycle_forward.1} parent=11 // pred_check_branch
          %223 = sbr.rel (%p221) target = $region20
        $region19: #{edge_cycle_forward.1} parent=11 // pred_region
          _
        $region20: #{edge_cycle_forward.1} parent=11 // pred_fallthru
          _
        // Predicated region
        $region21: #{edge_cycle_forward.1} parent=11 // pred_check
          %p224 = pneg %p130
        $region22: #{edge_cycle_forward.1} parent=11 // pred_check_branch
          %226 = sbr.rel (%p224) target = $region24
        $region23: #{edge_cycle_forward.1} parent=11 // pred_region
          %s228 = ssub.s32 7680, 7680
          %229 = vsyncadd [#allocation3], %s228
          %s230 = sshll.u32 [#allocation2], 4
          %s231 = int_to_ptr.vmem [resolvable:$true] %s230
          %236 = dma.hbm_to_vmem [thread:$0]  %s4, 7680, %s231, [#allocation3], 384, 384, 24
        $region24: #{edge_cycle_forward.1} parent=11 // pred_fallthru
          _
        // Predicated region
        $region25: #{edge_cycle_forward.1} parent=11 // pred_check
          %p237 = pneg %p151
        $region26: #{edge_cycle_forward.1} parent=11 // pred_check_branch
          %239 = sbr.rel (%p237) target = $region28
        $region27: #{edge_cycle_forward.1} parent=11 // pred_region
          _
        $region28: #{edge_cycle_forward.1} parent=11 // pred_fallthru
          _
      $region12: #{edge_cycle_forward.1} parent=5 // pred_fallthru
        _
      %p240 = scmp.lt.s32.totalorder %s15, 2
      // Predicated region
      $region29: #{edge_cycle_forward.1} parent=5 // pred_check
        %p241 = pneg %p240
      $region30: #{edge_cycle_forward.1} parent=5 // pred_check_branch
        %243 = sbr.rel (%p241) target = $region32
      $region31: #{edge_cycle_forward.1} parent=5 // pred_region
        // Predicated region
        $region33: #{edge_cycle_forward.1} parent=31 // pred_check
          %p244 = pneg %p35
        $region34: #{edge_cycle_forward.1} parent=31 // pred_check_branch
          %246 = sbr.rel (%p244) target = $region36
        $region35: #{edge_cycle_forward.1} parent=31 // pred_region
          %p247 = scmp.lt.s32.totalorder %s15, 1
          %s248 = scalar_select %p247, %s15, 1
          %s249 = smul.addr %s248, 3
          %s250 = smul.addr %s249, 8
          %s251 = scalar_lea.vmem %s0, %s250
        $region36: #{edge_cycle_forward.1} parent=31 // pred_fallthru
          _
        // Predicated region
        $region37: #{edge_cycle_forward.1} parent=31 // pred_check
          %p252 = pneg %p61
        $region38: #{edge_cycle_forward.1} parent=31 // pred_check_branch
          %254 = sbr.rel (%p252) target = $region40
        $region39: #{edge_cycle_forward.1} parent=31 // pred_region
          %p255 = scmp.lt.s32.totalorder %s15, 1
          %s256 = scalar_select %p255, %s15, 1
          %s257 = smul.addr %s256, 2
          %s258 = smul.addr %s257, 8
          %s259 = scalar_lea.vmem %s1, %s258
        $region40: #{edge_cycle_forward.1} parent=31 // pred_fallthru
          _
      $region32: #{edge_cycle_forward.1} parent=5 // pred_fallthru
        _
      %p260 = scmp.le.s32.totalorder 1, %s15
      %p261 = scmp.lt.s32.totalorder %s15, 3
      %p262 = pnand %p260, %p261
      %p263 = pneg %p262
      // Predicated region
      $region41: #{edge_cycle_forward.1} parent=5 // pred_check
        _
      $region42: #{edge_cycle_forward.1} parent=5 // pred_check_branch
        %265 = sbr.rel (%p262) target = $region44
      $region43: #{edge_cycle_forward.1} parent=5 // pred_region
        %s266 = ssub.s32 %s15, 1
        // Predicated region
        $region45: #{edge_cycle_forward.1} parent=43 // pred_check
          %p267 = pneg %p130
        $region46: #{edge_cycle_forward.1} parent=43 // pred_check_branch
          %269 = sbr.rel (%p267) target = $region48
        $region47: #{edge_cycle_forward.1} parent=43 // pred_region
          %270 = dma.done [#allocation3], 7680
        $region48: #{edge_cycle_forward.1} parent=43 // pred_fallthru
          _
        %p271 = scmp.lt.s32.totalorder %s20, 1
        %s272 = scalar_select %p271, %s20, 1
        %s273 = smul.addr %s272, 3
        %s274 = smul.addr %s273, 8
        %s275 = scalar_lea.vmem %s0, %s274
        %p276 = pneg %p41
        %p277 = pneg %p38
        %p278 = scmp.lt.s32.totalorder %s20, 1
        %s279 = scalar_select %p278, %s20, 1
        %s280 = smul.addr %s279, 2
        %s281 = smul.addr %s280, 8
        %s282 = scalar_lea.vmem %s1, %s281
        %p283 = pneg %p67
        %p284 = pneg %p64
        %p285 = pneg %p88
        %p286 = pneg %p85
        %p287 = pneg %p109
        %p288 = pneg %p106
        %p289 = pneg %p130
        %p290 = pneg %p127
        %p291 = pneg %p151
        %p292 = pneg %p148
        %p293 = pneg %p177
        %p294 = pneg %p174
        %p295 = scmp.lt.s32.totalorder %s20, 1
        %s296 = scalar_select %p295, %s20, 1
        %s297 = smul.addr %s296, 3
        %s298 = smul.addr %s297, 8
        %s299 = scalar_lea.vmem %s6, %s298
        %p300 = pneg %p203
        %p301 = pneg %p200
        %p302 = scmp.lt.s32.totalorder %s20, 1
        %s303 = scalar_select %p302, %s20, 1
        %s304 = smul.addr %s303, 2
        %s305 = smul.addr %s304, 8
        %s306 = scalar_lea.vmem %s7, %s305
        %p307 = scmp.lt.s32.totalorder %s20, 1
        %s308 = scalar_select %p307, %s20, 1
        %s309 = smul.addr %s308, 3
        %s310 = smul.addr %s309, 8
        %s311 = scalar_lea.vmem %s0, %s310
        %p312 = scmp.lt.s32.totalorder %s20, 1
        %s313 = scalar_select %p312, %s20, 1
        %s314 = smul.addr %s313, 2
        %s315 = smul.addr %s314, 8
        %s316 = scalar_lea.vmem %s1, %s315
        %p317 = scmp.lt.s32.totalorder %s20, 1
        %s318 = scalar_select %p317, %s20, 1
        %s319 = smul.addr %s318, 3
        %s320 = smul.addr %s319, 8
        %s321 = scalar_lea.vmem %s6, %s320
        %p322 = scmp.lt.s32.totalorder %s20, 1
        %s323 = scalar_select %p322, %s20, 1
        %s324 = smul.addr %s323, 2
        %s325 = smul.addr %s324, 8
        %s326 = scalar_lea.vmem %s7, %s325
        %v327 = vld [vmem:[%s311] sm:$0xff]
        %v328 = vld [vmem:[%s311 + $0x8] sm:$0xff]
        %v329 = vld [vmem:[%s311 + $0x10] sm:$0xf]
        %v330 = vld [vmem:[%s316] sm:$0xff]
        %v331 = vld [vmem:[%s316 + $0x8] sm:$0x7]
        %v332 = vld [vmem:[%s2] sm:$0xff]
        %v333 = vld [vmem:[%s2 + $0x8] sm:$0xff]
        %v334 = vld [vmem:[%s2 + $0x10] sm:$0xff]
        %v335 = vld [vmem:[%s2 + $0x18] sm:$0xff]
        %v336 = vld [vmem:[%s2 + $0x20] sm:$0xff]
        %v337 = vld [vmem:[%s2 + $0x28] sm:$0xff]
        %v338 = vld [vmem:[%s2 + $0x30] sm:$0xff]
        %v339 = vld [vmem:[%s2 + $0x38] sm:$0xff]
        %vm340 = vcmask 162816
        %v342 = vsel %vm340, %v332, 0
        %v345 = vsel %vm340, %v333, 0
        %v348 = vsel %vm340, %v334, 0
        %v351 = vsel %vm340, %v335, 0
        %v354 = vsel %vm340, %v336, 0
        %v357 = vsel %vm340, %v337, 0
        %v360 = vsel %vm340, %v338, 0
        %v363 = vsel %vm340, %v339, 0
        %vm365 = vcmask 1043456
        %v367 = vsel %vm365, %v329, 0
        %369 = vmatprep.subr.mxu0 0.0
        %v370 = vand.u32 %v327, 4294901760
        %371 = vmatpush1.msra.mxu0 %v370
        %372 = vmatprep.subr.mxu0 0.0
        %v373 = vand.u32 %v328, 4294901760
        %374 = vmatpush1.msra.mxu0 %v373
        %375 = vmatprep.subr.mxu0 0.0
        %v376 = vand.u32 %v367, 4294901760
        %377 = vmatpush1.msra.mxu0 %v376
        %378 = vmatprep.subr.mxu0 0.0
        %379 = vmatpush1.msra.mxu0 0.0
        %380 = vmatprep.subr.mxu0 0.0
        %381 = vmatpush1.msra.mxu0 0.0
        %382 = vmatprep.subr.mxu0 0.0
        %383 = vmatpush1.msra.mxu0 0.0
        %384 = vmatprep.subr.mxu0 0.0
        %385 = vmatpush1.msra.mxu0 0.0
        %386 = vmatprep.subr.mxu0 0.0
        %387 = vmatpush1.msra.mxu0 0.0
        %388 = vmatprep.subr.mxu0 0.0
        %389 = vmatpush1.msra.mxu0 0.0
        %390 = vmatprep.subr.mxu0 0.0
        %391 = vmatpush1.msra.mxu0 0.0
        %392 = vmatprep.subr.mxu0 0.0
        %393 = vmatpush1.msra.mxu0 0.0
        %394 = vmatprep.subr.mxu0 0.0
        %395 = vmatpush1.msra.mxu0 0.0
        %396 = vmatprep.subr.mxu0 0.0
        %397 = vmatpush1.msra.mxu0 0.0
        %398 = vmatprep.subr.mxu0 0.0
        %399 = vmatpush1.msra.mxu0 0.0
        %400 = vmatprep.subr.mxu0 0.0
        %401 = vmatpush1.msra.mxu0 0.0
        %402 = vmatprep.subr.mxu0 0.0
        %403 = vmatpush1.msra.mxu0 0.0
        %404 = vmatprep.subr.mxu0 0.0
        %405 = vmatpush1.msra.mxu0 0.0
        %406 = vmatprep.subr.mxu0 0.0
        %407 = vmatpush1.msra.mxu0 0.0
        %408 = vmatprep.subr.mxu0 0.0
        %409 = vmatpush1.msra.mxu0 0.0
        %410 = vmatprep.subr.mxu0 0.0
        %411 = vmatpush1.msra.mxu0 0.0
        %412 = vmatprep.subr.mxu0 0.0
        %413 = vmatpush1.msra.mxu0 0.0
        %414 = vmatprep.subr.mxu0 0.0
        %415 = vmatpush1.msra.mxu0 0.0
        %416 = vmatprep.subr.mxu0 0.0
        %417 = vmatpush1.msra.mxu0 0.0
        %418 = vmatprep.subr.mxu0 0.0
        %419 = vmatpush1.msra.mxu0 0.0
        %420 = vmatprep.subr.mxu0 0.0
        %421 = vmatpush1.msra.mxu0 0.0
        %422 = vmatprep.subr.mxu0 0.0
        %423 = vmatpush1.msra.mxu0 0.0
        %424 = vmatprep.subr.mxu0 0.0
        %425 = vmatpush1.msra.mxu0 0.0
        %426 = vmatprep.subr.mxu0 0.0
        %427 = vmatpush1.msra.mxu0 0.0
        %428 = vmatprep.subr.mxu0 0.0
        %429 = vmatpush1.msra.mxu0 0.0
        %430 = vmatprep.subr.mxu0 0.0
        %431 = vmatpush1.msra.mxu0 0.0
        %432 = vmatprep.subr.mxu0 0.0
        %433 = vmatpush1.msra.mxu0 0.0
        %434 = vmatprep.subr.mxu0 0.0
        %435 = vmatpush1.msra.mxu0 0.0
        %436 = vmatprep.mubr.f32.mxu0 0.0
        %v437 = vand.u32 %v342, 4294901760
        %v438 = vsub.f32 %v342, %v437
        %v439 = vand.u32 %v438, 4294901760
        %v440 = vsub.f32 %v438, %v439
        %v441 = vand.u32 %v440, 4294901760
        %442 = vmatmul.mubr.f32.gmra.mrb[0].mxu0 %v441
        %v443 = vpop.f32.mrb[0].mxu0
        %v444 = vadd.f32 0.0, %v443
        %v445 = vpop.f32.mrb[0].mxu0
        %446 = vmatprep.mubr.f32.mxu0 0.0
        %v447 = vand.u32 %v345, 4294901760
        %v448 = vsub.f32 %v345, %v447
        %v449 = vand.u32 %v448, 4294901760
        %v450 = vsub.f32 %v448, %v449
        %v451 = vand.u32 %v450, 4294901760
        %452 = vmatmul.mubr.f32.gmra.mrb[0].mxu0 %v451
        %v453 = vpop.f32.mrb[0].mxu0
        %v454 = vadd.f32 0.0, %v453
        %v455 = vpop.f32.mrb[0].mxu0
        %456 = vmatprep.mubr.f32.mxu0 0.0
        %v457 = vand.u32 %v348, 4294901760
        %v458 = vsub.f32 %v348, %v457
        %v459 = vand.u32 %v458, 4294901760
        %v460 = vsub.f32 %v458, %v459
        %v461 = vand.u32 %v460, 4294901760
        %462 = vmatmul.mubr.f32.gmra.mrb[0].mxu0 %v461
        %v463 = vpop.f32.mrb[0].mxu0
        %v464 = vadd.f32 0.0, %v463
        %v465 = vpop.f32.mrb[0].mxu0
        %466 = vmatprep.mubr.f32.mxu0 0.0
        %v467 = vand.u32 %v351, 4294901760
        %v468 = vsub.f32 %v351, %v467
        %v469 = vand.u32 %v468, 4294901760
        %v470 = vsub.f32 %v468, %v469
        %v471 = vand.u32 %v470, 4294901760
        %472 = vmatmul.mubr.f32.gmra.mrb[0].mxu0 %v471
        %v473 = vpop.f32.mrb[0].mxu0
        %v474 = vadd.f32 0.0, %v473
        %v475 = vpop.f32.mrb[0].mxu0
        %476 = vmatprep.mubr.f32.mxu0 0.0
        %v477 = vand.u32 %v354, 4294901760
        %v478 = vsub.f32 %v354, %v477
        %v479 = vand.u32 %v478, 4294901760
        %v480 = vsub.f32 %v478, %v479
        %v481 = vand.u32 %v480, 4294901760
        %482 = vmatmul.mubr.f32.gmra.mrb[0].mxu0 %v481
        %v483 = vpop.f32.mrb[0].mxu0
        %v484 = vadd.f32 0.0, %v483
        %v485 = vpop.f32.mrb[0].mxu0
        %486 = vmatprep.mubr.f32.mxu0 0.0
        %v487 = vand.u32 %v357, 4294901760
        %v488 = vsub.f32 %v357, %v487
        %v489 = vand.u32 %v488, 4294901760
        %v490 = vsub.f32 %v488, %v489
        %v491 = vand.u32 %v490, 4294901760
        %492 = vmatmul.mubr.f32.gmra.mrb[0].mxu0 %v491
        %v493 = vpop.f32.mrb[0].mxu0
        %v494 = vadd.f32 0.0, %v493
        %v495 = vpop.f32.mrb[0].mxu0
        %496 = vmatprep.mubr.f32.mxu0 0.0
        %v497 = vand.u32 %v360, 4294901760
        %v498 = vsub.f32 %v360, %v497
        %v499 = vand.u32 %v498, 4294901760
        %v500 = vsub.f32 %v498, %v499
        %v501 = vand.u32 %v500, 4294901760
        %502 = vmatmul.mubr.f32.gmra.mrb[0].mxu0 %v501
        %v503 = vpop.f32.mrb[0].mxu0
        %v504 = vadd.f32 0.0, %v503
        %v505 = vpop.f32.mrb[0].mxu0
        %506 = vmatprep.mubr.f32.mxu0 0.0
        %v507 = vand.u32 %v363, 4294901760
        %v508 = vsub.f32 %v363, %v507
        %v509 = vand.u32 %v508, 4294901760
        %v510 = vsub.f32 %v508, %v509
        %v511 = vand.u32 %v510, 4294901760
        %512 = vmatmul.mubr.f32.gmra.mrb[0].mxu0 %v511
        %v513 = vpop.f32.mrb[0].mxu0
        %v514 = vadd.f32 0.0, %v513
        %v515 = vpop.f32.mrb[0].mxu0
        %516 = vdwg.mxu0
        %517 = vmatprep.subr.mxu0 0.0
        %v518 = vand.u32 %v327, 4294901760
        %v519 = vsub.f32 %v327, %v518
        %v520 = vand.u32 %v519, 4294901760
        %v521 = vsub.f32 %v519, %v520
        %v522 = vand.u32 %v521, 4294901760
        %523 = vmatpush1.msra.mxu0 %v522
        %524 = vmatprep.subr.mxu0 0.0
        %v525 = vand.u32 %v328, 4294901760
        %v526 = vsub.f32 %v328, %v525
        %v527 = vand.u32 %v526, 4294901760
        %v528 = vsub.f32 %v526, %v527
        %v529 = vand.u32 %v528, 4294901760
        %530 = vmatpush1.msra.mxu0 %v529
        %531 = vmatprep.subr.mxu0 0.0
        %v532 = vand.u32 %v367, 4294901760
        %v533 = vsub.f32 %v367, %v532
        %v534 = vand.u32 %v533, 4294901760
        %v535 = vsub.f32 %v533, %v534
        %v536 = vand.u32 %v535, 4294901760
        %537 = vmatpush1.msra.mxu0 %v536
        %538 = vmatprep.subr.mxu0 0.0
        %539 = vmatpush1.msra.mxu0 0.0
        %540 = vmatprep.subr.mxu0 0.0
        %541 = vmatpush1.msra.mxu0 0.0
        %542 = vmatprep.subr.mxu0 0.0
        %543 = vmatpush1.msra.mxu0 0.0
        %544 = vmatprep.subr.mxu0 0.0
        %545 = vmatpush1.msra.mxu0 0.0
        %546 = vmatprep.subr.mxu0 0.0
        %547 = vmatpush1.msra.mxu0 0.0
        %548 = vmatprep.subr.mxu0 0.0
        %549 = vmatpush1.msra.mxu0 0.0
        %550 = vmatprep.subr.mxu0 0.0
        %551 = vmatpush1.msra.mxu0 0.0
        %552 = vmatprep.subr.mxu0 0.0
        %553 = vmatpush1.msra.mxu0 0.0
        %554 = vmatprep.subr.mxu0 0.0
        %555 = vmatpush1.msra.mxu0 0.0
        %556 = vmatprep.subr.mxu0 0.0
        %557 = vmatpush1.msra.mxu0 0.0
        %558 = vmatprep.subr.mxu0 0.0
        %559 = vmatpush1.msra.mxu0 0.0
        %560 = vmatprep.subr.mxu0 0.0
        %561 = vmatpush1.msra.mxu0 0.0
        %562 = vmatprep.subr.mxu0 0.0
        %563 = vmatpush1.msra.mxu0 0.0
        %564 = vmatprep.subr.mxu0 0.0
        %565 = vmatpush1.msra.mxu0 0.0
        %566 = vmatprep.subr.mxu0 0.0
        %567 = vmatpush1.msra.mxu0 0.0
        %568 = vmatprep.subr.mxu0 0.0
        %569 = vmatpush1.msra.mxu0 0.0
        %570 = vmatprep.subr.mxu0 0.0
        %571 = vmatpush1.msra.mxu0 0.0
        %572 = vmatprep.subr.mxu0 0.0
        %573 = vmatpush1.msra.mxu0 0.0
        %574 = vmatprep.subr.mxu0 0.0
        %575 = vmatpush1.msra.mxu0 0.0
        %576 = vmatprep.subr.mxu0 0.0
        %577 = vmatpush1.msra.mxu0 0.0
        %578 = vmatprep.subr.mxu0 0.0
        %579 = vmatpush1.msra.mxu0 0.0
        %580 = vmatprep.subr.mxu0 0.0
        %581 = vmatpush1.msra.mxu0 0.0
        %582 = vmatprep.subr.mxu0 0.0
        %583 = vmatpush1.msra.mxu0 0.0
        %584 = vmatprep.subr.mxu0 0.0
        %585 = vmatpush1.msra.mxu0 0.0
        %586 = vmatprep.subr.mxu0 0.0
        %587 = vmatpush1.msra.mxu0 0.0
        %588 = vmatprep.subr.mxu0 0.0
        %589 = vmatpush1.msra.mxu0 0.0
        %590 = vmatprep.subr.mxu0 0.0
        %591 = vmatpush1.msra.mxu0 0.0
        %592 = vmatprep.subr.mxu0 0.0
        %593 = vmatpush1.msra.mxu0 0.0
        %594 = vmatprep.subr.mxu0 0.0
        %595 = vmatpush1.msra.mxu0 0.0
        %596 = vmatprep.mubr.f32.mxu0 0.0
        %v597 = vand.u32 %v342, 4294901760
        %598 = vmatmul.mubr.f32.gmra.mrb[0].mxu0 %v597
        %v599 = vpop.f32.mrb[0].mxu0
        %v600 = vadd.f32 %v444, %v599
        %v601 = vpop.f32.mrb[0].mxu0
        %602 = vmatprep.mubr.f32.mxu0 0.0
        %v603 = vand.u32 %v345, 4294901760
        %604 = vmatmul.mubr.f32.gmra.mrb[0].mxu0 %v603
        %v605 = vpop.f32.mrb[0].mxu0
        %v606 = vadd.f32 %v454, %v605
        %v607 = vpop.f32.mrb[0].mxu0
        %608 = vmatprep.mubr.f32.mxu0 0.0
        %v609 = vand.u32 %v348, 4294901760
        %610 = vmatmul.mubr.f32.gmra.mrb[0].mxu0 %v609
        %v611 = vpop.f32.mrb[0].mxu0
        %v612 = vadd.f32 %v464, %v611
        %v613 = vpop.f32.mrb[0].mxu0
        %614 = vmatprep.mubr.f32.mxu0 0.0
        %v615 = vand.u32 %v351, 4294901760
        %616 = vmatmul.mubr.f32.gmra.mrb[0].mxu0 %v615
        %v617 = vpop.f32.mrb[0].mxu0
        %v618 = vadd.f32 %v474, %v617
        %v619 = vpop.f32.mrb[0].mxu0
        %620 = vmatprep.mubr.f32.mxu0 0.0
        %v621 = vand.u32 %v354, 4294901760
        %622 = vmatmul.mubr.f32.gmra.mrb[0].mxu0 %v621
        %v623 = vpop.f32.mrb[0].mxu0
        %v624 = vadd.f32 %v484, %v623
        %v625 = vpop.f32.mrb[0].mxu0
        %626 = vmatprep.mubr.f32.mxu0 0.0
        %v627 = vand.u32 %v357, 4294901760
        %628 = vmatmul.mubr.f32.gmra.mrb[0].mxu0 %v627
        %v629 = vpop.f32.mrb[0].mxu0
        %v630 = vadd.f32 %v494, %v629
        %v631 = vpop.f32.mrb[0].mxu0
        %632 = vmatprep.mubr.f32.mxu0 0.0
        %v633 = vand.u32 %v360, 4294901760
        %634 = vmatmul.mubr.f32.gmra.mrb[0].mxu0 %v633
        %v635 = vpop.f32.mrb[0].mxu0
        %v636 = vadd.f32 %v504, %v635
        %v637 = vpop.f32.mrb[0].mxu0
        %638 = vmatprep.mubr.f32.mxu0 0.0
        %v639 = vand.u32 %v363, 4294901760
        %640 = vmatmul.mubr.f32.gmra.mrb[0].mxu0 %v639
        %v641 = vpop.f32.mrb[0].mxu0
        %v642 = vadd.f32 %v514, %v641
        %v643 = vpop.f32.mrb[0].mxu0
        %644 = vdwg.mxu0
        %645 = vmatprep.subr.mxu0 0.0
        %v646 = vand.u32 %v327, 4294901760
        %v647 = vsub.f32 %v327, %v646
        %648 = vmatpush1.msra.mxu0 %v647
        %649 = vmatprep.subr.mxu0 0.0
        %v650 = vand.u32 %v328, 4294901760
        %v651 = vsub.f32 %v328, %v650
        %652 = vmatpush1.msra.mxu0 %v651
        %653 = vmatprep.subr.mxu0 0.0
        %v654 = vand.u32 %v367, 4294901760
        %v655 = vsub.f32 %v367, %v654
        %656 = vmatpush1.msra.mxu0 %v655
        %657 = vmatprep.subr.mxu0 0.0
        %658 = vmatpush1.msra.mxu0 0.0
        %659 = vmatprep.subr.mxu0 0.0
        %660 = vmatpush1.msra.mxu0 0.0
        %661 = vmatprep.subr.mxu0 0.0
        %662 = vmatpush1.msra.mxu0 0.0
        %663 = vmatprep.subr.mxu0 0.0
        %664 = vmatpush1.msra.mxu0 0.0
        %665 = vmatprep.subr.mxu0 0.0
        %666 = vmatpush1.msra.mxu0 0.0
        %667 = vmatprep.subr.mxu0 0.0
        %668 = vmatpush1.msra.mxu0 0.0
        %669 = vmatprep.subr.mxu0 0.0
        %670 = vmatpush1.msra.mxu0 0.0
        %671 = vmatprep.subr.mxu0 0.0
        %672 = vmatpush1.msra.mxu0 0.0
        %673 = vmatprep.subr.mxu0 0.0
        %674 = vmatpush1.msra.mxu0 0.0
        %675 = vmatprep.subr.mxu0 0.0
        %676 = vmatpush1.msra.mxu0 0.0
        %677 = vmatprep.subr.mxu0 0.0
        %678 = vmatpush1.msra.mxu0 0.0
        %679 = vmatprep.subr.mxu0 0.0
        %680 = vmatpush1.msra.mxu0 0.0
        %681 = vmatprep.subr.mxu0 0.0
        %682 = vmatpush1.msra.mxu0 0.0
        %683 = vmatprep.subr.mxu0 0.0
        %684 = vmatpush1.msra.mxu0 0.0
        %685 = vmatprep.subr.mxu0 0.0
        %686 = vmatpush1.msra.mxu0 0.0
        %687 = vmatprep.subr.mxu0 0.0
        %688 = vmatpush1.msra.mxu0 0.0
        %689 = vmatprep.subr.mxu0 0.0
        %690 = vmatpush1.msra.mxu0 0.0
        %691 = vmatprep.subr.mxu0 0.0
        %692 = vmatpush1.msra.mxu0 0.0
        %693 = vmatprep.subr.mxu0 0.0
        %694 = vmatpush1.msra.mxu0 0.0
        %695 = vmatprep.subr.mxu0 0.0
        %696 = vmatpush1.msra.mxu0 0.0
        %697 = vmatprep.subr.mxu0 0.0
        %698 = vmatpush1.msra.mxu0 0.0
        %699 = vmatprep.subr.mxu0 0.0
        %700 = vmatpush1.msra.mxu0 0.0
        %701 = vmatprep.subr.mxu0 0.0
        %702 = vmatpush1.msra.mxu0 0.0
        %703 = vmatprep.subr.mxu0 0.0
        %704 = vmatpush1.msra.mxu0 0.0
        %705 = vmatprep.subr.mxu0 0.0
        %706 = vmatpush1.msra.mxu0 0.0
        %707 = vmatprep.subr.mxu0 0.0
        %708 = vmatpush1.msra.mxu0 0.0
        %709 = vmatprep.subr.mxu0 0.0
        %710 = vmatpush1.msra.mxu0 0.0
        %711 = vmatprep.subr.mxu0 0.0
        %712 = vmatpush1.msra.mxu0 0.0
        %713 = vmatprep.subr.mxu0 0.0
        %714 = vmatpush1.msra.mxu0 0.0
        %715 = vmatprep.mubr.f32.mxu0 0.0
        %v716 = vand.u32 %v342, 4294901760
        %v717 = vsub.f32 %v342, %v716
        %718 = vmatmul.mubr.f32.gmra.mrb[0].mxu0 %v717
        %v719 = vpop.f32.mrb[0].mxu0
        %v720 = vadd.f32 %v600, %v719
        %v721 = vpop.f32.mrb[0].mxu0
        %722 = vmatprep.mubr.f32.mxu0 0.0
        %v723 = vand.u32 %v345, 4294901760
        %v724 = vsub.f32 %v345, %v723
        %725 = vmatmul.mubr.f32.gmra.mrb[0].mxu0 %v724
        %v726 = vpop.f32.mrb[0].mxu0
        %v727 = vadd.f32 %v606, %v726
        %v728 = vpop.f32.mrb[0].mxu0
        %729 = vmatprep.mubr.f32.mxu0 0.0
        %v730 = vand.u32 %v348, 4294901760
        %v731 = vsub.f32 %v348, %v730
        %732 = vmatmul.mubr.f32.gmra.mrb[0].mxu0 %v731
        %v733 = vpop.f32.mrb[0].mxu0
        %v734 = vadd.f32 %v612, %v733
        %v735 = vpop.f32.mrb[0].mxu0
        %736 = vmatprep.mubr.f32.mxu0 0.0
        %v737 = vand.u32 %v351, 4294901760
        %v738 = vsub.f32 %v351, %v737
        %739 = vmatmul.mubr.f32.gmra.mrb[0].mxu0 %v738
        %v740 = vpop.f32.mrb[0].mxu0
        %v741 = vadd.f32 %v618, %v740
        %v742 = vpop.f32.mrb[0].mxu0
        %743 = vmatprep.mubr.f32.mxu0 0.0
        %v744 = vand.u32 %v354, 4294901760
        %v745 = vsub.f32 %v354, %v744
        %746 = vmatmul.mubr.f32.gmra.mrb[0].mxu0 %v745
        %v747 = vpop.f32.mrb[0].mxu0
        %v748 = vadd.f32 %v624, %v747
        %v749 = vpop.f32.mrb[0].mxu0
        %750 = vmatprep.mubr.f32.mxu0 0.0
        %v751 = vand.u32 %v357, 4294901760
        %v752 = vsub.f32 %v357, %v751
        %753 = vmatmul.mubr.f32.gmra.mrb[0].mxu0 %v752
        %v754 = vpop.f32.mrb[0].mxu0
        %v755 = vadd.f32 %v630, %v754
        %v756 = vpop.f32.mrb[0].mxu0
        %757 = vmatprep.mubr.f32.mxu0 0.0
        %v758 = vand.u32 %v360, 4294901760
        %v759 = vsub.f32 %v360, %v758
        %760 = vmatmul.mubr.f32.gmra.mrb[0].mxu0 %v759
        %v761 = vpop.f32.mrb[0].mxu0
        %v762 = vadd.f32 %v636, %v761
        %v763 = vpop.f32.mrb[0].mxu0
        %764 = vmatprep.mubr.f32.mxu0 0.0
        %v765 = vand.u32 %v363, 4294901760
        %v766 = vsub.f32 %v363, %v765
        %767 = vmatmul.mubr.f32.gmra.mrb[0].mxu0 %v766
        %v768 = vpop.f32.mrb[0].mxu0
        %v769 = vadd.f32 %v642, %v768
        %v770 = vpop.f32.mrb[0].mxu0
        %771 = vdwg.mxu0
        %772 = vmatprep.subr.mxu0 0.0
        %v773 = vand.u32 %v327, 4294901760
        %774 = vmatpush1.msra.mxu0 %v773
        %775 = vmatprep.subr.mxu0 0.0
        %v776 = vand.u32 %v328, 4294901760
        %777 = vmatpush1.msra.mxu0 %v776
        %778 = vmatprep.subr.mxu0 0.0
        %v779 = vand.u32 %v367, 4294901760
        %780 = vmatpush1.msra.mxu0 %v779
        %781 = vmatprep.subr.mxu0 0.0
        %782 = vmatpush1.msra.mxu0 0.0
        %783 = vmatprep.subr.mxu0 0.0
        %784 = vmatpush1.msra.mxu0 0.0
        %785 = vmatprep.subr.mxu0 0.0
        %786 = vmatpush1.msra.mxu0 0.0
        %787 = vmatprep.subr.mxu0 0.0
        %788 = vmatpush1.msra.mxu0 0.0
        %789 = vmatprep.subr.mxu0 0.0
        %790 = vmatpush1.msra.mxu0 0.0
        %791 = vmatprep.subr.mxu0 0.0
        %792 = vmatpush1.msra.mxu0 0.0
        %793 = vmatprep.subr.mxu0 0.0
        %794 = vmatpush1.msra.mxu0 0.0
        %795 = vmatprep.subr.mxu0 0.0
        %796 = vmatpush1.msra.mxu0 0.0
        %797 = vmatprep.subr.mxu0 0.0
        %798 = vmatpush1.msra.mxu0 0.0
        %799 = vmatprep.subr.mxu0 0.0
        %800 = vmatpush1.msra.mxu0 0.0
        %801 = vmatprep.subr.mxu0 0.0
        %802 = vmatpush1.msra.mxu0 0.0
        %803 = vmatprep.subr.mxu0 0.0
        %804 = vmatpush1.msra.mxu0 0.0
        %805 = vmatprep.subr.mxu0 0.0
        %806 = vmatpush1.msra.mxu0 0.0
        %807 = vmatprep.subr.mxu0 0.0
        %808 = vmatpush1.msra.mxu0 0.0
        %809 = vmatprep.subr.mxu0 0.0
        %810 = vmatpush1.msra.mxu0 0.0
        %811 = vmatprep.subr.mxu0 0.0
        %812 = vmatpush1.msra.mxu0 0.0
        %813 = vmatprep.subr.mxu0 0.0
        %814 = vmatpush1.msra.mxu0 0.0
        %815 = vmatprep.subr.mxu0 0.0
        %816 = vmatpush1.msra.mxu0 0.0
        %817 = vmatprep.subr.mxu0 0.0
        %818 = vmatpush1.msra.mxu0 0.0
        %819 = vmatprep.subr.mxu0 0.0
        %820 = vmatpush1.msra.mxu0 0.0
        %821 = vmatprep.subr.mxu0 0.0
        %822 = vmatpush1.msra.mxu0 0.0
        %823 = vmatprep.subr.mxu0 0.0
        %824 = vmatpush1.msra.mxu0 0.0
        %825 = vmatprep.subr.mxu0 0.0
        %826 = vmatpush1.msra.mxu0 0.0
        %827 = vmatprep.subr.mxu0 0.0
        %828 = vmatpush1.msra.mxu0 0.0
        %829 = vmatprep.subr.mxu0 0.0
        %830 = vmatpush1.msra.mxu0 0.0
        %831 = vmatprep.subr.mxu0 0.0
        %832 = vmatpush1.msra.mxu0 0.0
        %833 = vmatprep.subr.mxu0 0.0
        %834 = vmatpush1.msra.mxu0 0.0
        %835 = vmatprep.subr.mxu0 0.0
        %836 = vmatpush1.msra.mxu0 0.0
        %837 = vmatprep.subr.mxu0 0.0
        %838 = vmatpush1.msra.mxu0 0.0
        %839 = vmatprep.mubr.f32.mxu0 0.0
        %v840 = vand.u32 %v342, 4294901760
        %v841 = vsub.f32 %v342, %v840
        %v842 = vand.u32 %v841, 4294901760
        %843 = vmatmul.mubr.f32.gmra.mrb[0].mxu0 %v842
        %v844 = vpop.f32.mrb[0].mxu0
        %v845 = vadd.f32 %v720, %v844
        %v846 = vpop.f32.mrb[0].mxu0
        %847 = vmatprep.mubr.f32.mxu0 0.0
        %v848 = vand.u32 %v345, 4294901760
        %v849 = vsub.f32 %v345, %v848
        %v850 = vand.u32 %v849, 4294901760
        %851 = vmatmul.mubr.f32.gmra.mrb[0].mxu0 %v850
        %v852 = vpop.f32.mrb[0].mxu0
        %v853 = vadd.f32 %v727, %v852
        %v854 = vpop.f32.mrb[0].mxu0
        %855 = vmatprep.mubr.f32.mxu0 0.0
        %v856 = vand.u32 %v348, 4294901760
        %v857 = vsub.f32 %v348, %v856
        %v858 = vand.u32 %v857, 4294901760
        %859 = vmatmul.mubr.f32.gmra.mrb[0].mxu0 %v858
        %v860 = vpop.f32.mrb[0].mxu0
        %v861 = vadd.f32 %v734, %v860
        %v862 = vpop.f32.mrb[0].mxu0
        %863 = vmatprep.mubr.f32.mxu0 0.0
        %v864 = vand.u32 %v351, 4294901760
        %v865 = vsub.f32 %v351, %v864
        %v866 = vand.u32 %v865, 4294901760
        %867 = vmatmul.mubr.f32.gmra.mrb[0].mxu0 %v866
        %v868 = vpop.f32.mrb[0].mxu0
        %v869 = vadd.f32 %v741, %v868
        %v870 = vpop.f32.mrb[0].mxu0
        %871 = vmatprep.mubr.f32.mxu0 0.0
        %v872 = vand.u32 %v354, 4294901760
        %v873 = vsub.f32 %v354, %v872
        %v874 = vand.u32 %v873, 4294901760
        %875 = vmatmul.mubr.f32.gmra.mrb[0].mxu0 %v874
        %v876 = vpop.f32.mrb[0].mxu0
        %v877 = vadd.f32 %v748, %v876
        %v878 = vpop.f32.mrb[0].mxu0
        %879 = vmatprep.mubr.f32.mxu0 0.0
        %v880 = vand.u32 %v357, 4294901760
        %v881 = vsub.f32 %v357, %v880
        %v882 = vand.u32 %v881, 4294901760
        %883 = vmatmul.mubr.f32.gmra.mrb[0].mxu0 %v882
        %v884 = vpop.f32.mrb[0].mxu0
        %v885 = vadd.f32 %v755, %v884
        %v886 = vpop.f32.mrb[0].mxu0
        %887 = vmatprep.mubr.f32.mxu0 0.0
        %v888 = vand.u32 %v360, 4294901760
        %v889 = vsub.f32 %v360, %v888
        %v890 = vand.u32 %v889, 4294901760
        %891 = vmatmul.mubr.f32.gmra.mrb[0].mxu0 %v890
        %v892 = vpop.f32.mrb[0].mxu0
        %v893 = vadd.f32 %v762, %v892
        %v894 = vpop.f32.mrb[0].mxu0
        %895 = vmatprep.mubr.f32.mxu0 0.0
        %v896 = vand.u32 %v363, 4294901760
        %v897 = vsub.f32 %v363, %v896
        %v898 = vand.u32 %v897, 4294901760
        %899 = vmatmul.mubr.f32.gmra.mrb[0].mxu0 %v898
        %v900 = vpop.f32.mrb[0].mxu0
        %v901 = vadd.f32 %v769, %v900
        %v902 = vpop.f32.mrb[0].mxu0
        %903 = vdwg.mxu0
        %904 = vmatprep.subr.mxu0 0.0
        %v905 = vand.u32 %v327, 4294901760
        %v906 = vsub.f32 %v327, %v905
        %v907 = vand.u32 %v906, 4294901760
        %908 = vmatpush1.msra.mxu0 %v907
        %909 = vmatprep.subr.mxu0 0.0
        %v910 = vand.u32 %v328, 4294901760
        %v911 = vsub.f32 %v328, %v910
        %v912 = vand.u32 %v911, 4294901760
        %913 = vmatpush1.msra.mxu0 %v912
        %914 = vmatprep.subr.mxu0 0.0
        %v915 = vand.u32 %v367, 4294901760
        %v916 = vsub.f32 %v367, %v915
        %v917 = vand.u32 %v916, 4294901760
        %918 = vmatpush1.msra.mxu0 %v917
        %919 = vmatprep.subr.mxu0 0.0
        %920 = vmatpush1.msra.mxu0 0.0
        %921 = vmatprep.subr.mxu0 0.0
        %922 = vmatpush1.msra.mxu0 0.0
        %923 = vmatprep.subr.mxu0 0.0
        %924 = vmatpush1.msra.mxu0 0.0
        %925 = vmatprep.subr.mxu0 0.0
        %926 = vmatpush1.msra.mxu0 0.0
        %927 = vmatprep.subr.mxu0 0.0
        %928 = vmatpush1.msra.mxu0 0.0
        %929 = vmatprep.subr.mxu0 0.0
        %930 = vmatpush1.msra.mxu0 0.0
        %931 = vmatprep.subr.mxu0 0.0
        %932 = vmatpush1.msra.mxu0 0.0
        %933 = vmatprep.subr.mxu0 0.0
        %934 = vmatpush1.msra.mxu0 0.0
        %935 = vmatprep.subr.mxu0 0.0
        %936 = vmatpush1.msra.mxu0 0.0
        %937 = vmatprep.subr.mxu0 0.0
        %938 = vmatpush1.msra.mxu0 0.0
        %939 = vmatprep.subr.mxu0 0.0
        %940 = vmatpush1.msra.mxu0 0.0
        %941 = vmatprep.subr.mxu0 0.0
        %942 = vmatpush1.msra.mxu0 0.0
        %943 = vmatprep.subr.mxu0 0.0
        %944 = vmatpush1.msra.mxu0 0.0
        %945 = vmatprep.subr.mxu0 0.0
        %946 = vmatpush1.msra.mxu0 0.0
        %947 = vmatprep.subr.mxu0 0.0
        %948 = vmatpush1.msra.mxu0 0.0
        %949 = vmatprep.subr.mxu0 0.0
        %950 = vmatpush1.msra.mxu0 0.0
        %951 = vmatprep.subr.mxu0 0.0
        %952 = vmatpush1.msra.mxu0 0.0
        %953 = vmatprep.subr.mxu0 0.0
        %954 = vmatpush1.msra.mxu0 0.0
        %955 = vmatprep.subr.mxu0 0.0
        %956 = vmatpush1.msra.mxu0 0.0
        %957 = vmatprep.subr.mxu0 0.0
        %958 = vmatpush1.msra.mxu0 0.0
        %959 = vmatprep.subr.mxu0 0.0
        %960 = vmatpush1.msra.mxu0 0.0
        %961 = vmatprep.subr.mxu0 0.0
        %962 = vmatpush1.msra.mxu0 0.0
        %963 = vmatprep.subr.mxu0 0.0
        %964 = vmatpush1.msra.mxu0 0.0
        %965 = vmatprep.subr.mxu0 0.0
        %966 = vmatpush1.msra.mxu0 0.0
        %967 = vmatprep.subr.mxu0 0.0
        %968 = vmatpush1.msra.mxu0 0.0
        %969 = vmatprep.subr.mxu0 0.0
        %970 = vmatpush1.msra.mxu0 0.0
        %971 = vmatprep.subr.mxu0 0.0
        %972 = vmatpush1.msra.mxu0 0.0
        %973 = vmatprep.subr.mxu0 0.0
        %974 = vmatpush1.msra.mxu0 0.0
        %975 = vmatprep.subr.mxu0 0.0
        %976 = vmatpush1.msra.mxu0 0.0
        %977 = vmatprep.mubr.f32.mxu0 0.0
        %v978 = vand.u32 %v342, 4294901760
        %979 = vmatmul.mubr.f32.gmra.mrb[0].mxu0 %v978
        %v980 = vpop.f32.mrb[0].mxu0
        %v981 = vadd.f32 %v845, %v980
        %v982 = vpop.f32.mrb[0].mxu0
        %983 = vmatprep.mubr.f32.mxu0 0.0
        %v984 = vand.u32 %v345, 4294901760
        %985 = vmatmul.mubr.f32.gmra.mrb[0].mxu0 %v984
        %v986 = vpop.f32.mrb[0].mxu0
        %v987 = vadd.f32 %v853, %v986
        %v988 = vpop.f32.mrb[0].mxu0
        %989 = vmatprep.mubr.f32.mxu0 0.0
        %v990 = vand.u32 %v348, 4294901760
        %991 = vmatmul.mubr.f32.gmra.mrb[0].mxu0 %v990
        %v992 = vpop.f32.mrb[0].mxu0
        %v993 = vadd.f32 %v861, %v992
        %v994 = vpop.f32.mrb[0].mxu0
        %995 = vmatprep.mubr.f32.mxu0 0.0
        %v996 = vand.u32 %v351, 4294901760
        %997 = vmatmul.mubr.f32.gmra.mrb[0].mxu0 %v996
        %v998 = vpop.f32.mrb[0].mxu0
        %v999 = vadd.f32 %v869, %v998
        %v1000 = vpop.f32.mrb[0].mxu0
        %1001 = vmatprep.mubr.f32.mxu0 0.0
        %v1002 = vand.u32 %v354, 4294901760
        %1003 = vmatmul.mubr.f32.gmra.mrb[0].mxu0 %v1002
        %v1004 = vpop.f32.mrb[0].mxu0
        %v1005 = vadd.f32 %v877, %v1004
        %v1006 = vpop.f32.mrb[0].mxu0
        %1007 = vmatprep.mubr.f32.mxu0 0.0
        %v1008 = vand.u32 %v357, 4294901760
        %1009 = vmatmul.mubr.f32.gmra.mrb[0].mxu0 %v1008
        %v1010 = vpop.f32.mrb[0].mxu0
        %v1011 = vadd.f32 %v885, %v1010
        %v1012 = vpop.f32.mrb[0].mxu0
        %1013 = vmatprep.mubr.f32.mxu0 0.0
        %v1014 = vand.u32 %v360, 4294901760
        %1015 = vmatmul.mubr.f32.gmra.mrb[0].mxu0 %v1014
        %v1016 = vpop.f32.mrb[0].mxu0
        %v1017 = vadd.f32 %v893, %v1016
        %v1018 = vpop.f32.mrb[0].mxu0
        %1019 = vmatprep.mubr.f32.mxu0 0.0
        %v1020 = vand.u32 %v363, 4294901760
        %1021 = vmatmul.mubr.f32.gmra.mrb[0].mxu0 %v1020
        %v1022 = vpop.f32.mrb[0].mxu0
        %v1023 = vadd.f32 %v901, %v1022
        %v1024 = vpop.f32.mrb[0].mxu0
        %1025 = vdwg.mxu0
        %1026 = vmatprep.subr.mxu0 0.0
        %v1027 = vand.u32 %v327, 4294901760
        %1028 = vmatpush1.msra.mxu0 %v1027
        %1029 = vmatprep.subr.mxu0 0.0
        %v1030 = vand.u32 %v328, 4294901760
        %1031 = vmatpush1.msra.mxu0 %v1030
        %1032 = vmatprep.subr.mxu0 0.0
        %v1033 = vand.u32 %v367, 4294901760
        %1034 = vmatpush1.msra.mxu0 %v1033
        %1035 = vmatprep.subr.mxu0 0.0
        %1036 = vmatpush1.msra.mxu0 0.0
        %1037 = vmatprep.subr.mxu0 0.0
        %1038 = vmatpush1.msra.mxu0 0.0
        %1039 = vmatprep.subr.mxu0 0.0
        %1040 = vmatpush1.msra.mxu0 0.0
        %1041 = vmatprep.subr.mxu0 0.0
        %1042 = vmatpush1.msra.mxu0 0.0
        %1043 = vmatprep.subr.mxu0 0.0
        %1044 = vmatpush1.msra.mxu0 0.0
        %1045 = vmatprep.subr.mxu0 0.0
        %1046 = vmatpush1.msra.mxu0 0.0
        %1047 = vmatprep.subr.mxu0 0.0
        %1048 = vmatpush1.msra.mxu0 0.0
        %1049 = vmatprep.subr.mxu0 0.0
        %1050 = vmatpush1.msra.mxu0 0.0
        %1051 = vmatprep.subr.mxu0 0.0
        %1052 = vmatpush1.msra.mxu0 0.0
        %1053 = vmatprep.subr.mxu0 0.0
        %1054 = vmatpush1.msra.mxu0 0.0
        %1055 = vmatprep.subr.mxu0 0.0
        %1056 = vmatpush1.msra.mxu0 0.0
        %1057 = vmatprep.subr.mxu0 0.0
        %1058 = vmatpush1.msra.mxu0 0.0
        %1059 = vmatprep.subr.mxu0 0.0
        %1060 = vmatpush1.msra.mxu0 0.0
        %1061 = vmatprep.subr.mxu0 0.0
        %1062 = vmatpush1.msra.mxu0 0.0
        %1063 = vmatprep.subr.mxu0 0.0
        %1064 = vmatpush1.msra.mxu0 0.0
        %1065 = vmatprep.subr.mxu0 0.0
        %1066 = vmatpush1.msra.mxu0 0.0
        %1067 = vmatprep.subr.mxu0 0.0
        %1068 = vmatpush1.msra.mxu0 0.0
        %1069 = vmatprep.subr.mxu0 0.0
        %1070 = vmatpush1.msra.mxu0 0.0
        %1071 = vmatprep.subr.mxu0 0.0
        %1072 = vmatpush1.msra.mxu0 0.0
        %1073 = vmatprep.subr.mxu0 0.0
        %1074 = vmatpush1.msra.mxu0 0.0
        %1075 = vmatprep.subr.mxu0 0.0
        %1076 = vmatpush1.msra.mxu0 0.0
        %1077 = vmatprep.subr.mxu0 0.0
        %1078 = vmatpush1.msra.mxu0 0.0
        %1079 = vmatprep.subr.mxu0 0.0
        %1080 = vmatpush1.msra.mxu0 0.0
        %1081 = vmatprep.subr.mxu0 0.0
        %1082 = vmatpush1.msra.mxu0 0.0
        %1083 = vmatprep.subr.mxu0 0.0
        %1084 = vmatpush1.msra.mxu0 0.0
        %1085 = vmatprep.subr.mxu0 0.0
        %1086 = vmatpush1.msra.mxu0 0.0
        %1087 = vmatprep.subr.mxu0 0.0
        %1088 = vmatpush1.msra.mxu0 0.0
        %1089 = vmatprep.subr.mxu0 0.0
        %1090 = vmatpush1.msra.mxu0 0.0
        %1091 = vmatprep.subr.mxu0 0.0
        %1092 = vmatpush1.msra.mxu0 0.0
        %1093 = vmatprep.mubr.f32.mxu0 0.0
        %v1094 = vand.u32 %v342, 4294901760
        %1095 = vmatmul.mubr.f32.gmra.mrb[0].mxu0 %v1094
        %v1096 = vpop.f32.mrb[0].mxu0
        %v1097 = vadd.f32 %v981, %v1096
        %v1098 = vpop.f32.mrb[0].mxu0
        %1099 = vmatprep.mubr.f32.mxu0 0.0
        %v1100 = vand.u32 %v345, 4294901760
        %1101 = vmatmul.mubr.f32.gmra.mrb[0].mxu0 %v1100
        %v1102 = vpop.f32.mrb[0].mxu0
        %v1103 = vadd.f32 %v987, %v1102
        %v1104 = vpop.f32.mrb[0].mxu0
        %1105 = vmatprep.mubr.f32.mxu0 0.0
        %v1106 = vand.u32 %v348, 4294901760
        %1107 = vmatmul.mubr.f32.gmra.mrb[0].mxu0 %v1106
        %v1108 = vpop.f32.mrb[0].mxu0
        %v1109 = vadd.f32 %v993, %v1108
        %v1110 = vpop.f32.mrb[0].mxu0
        %1111 = vmatprep.mubr.f32.mxu0 0.0
        %v1112 = vand.u32 %v351, 4294901760
        %1113 = vmatmul.mubr.f32.gmra.mrb[0].mxu0 %v1112
        %v1114 = vpop.f32.mrb[0].mxu0
        %v1115 = vadd.f32 %v999, %v1114
        %v1116 = vpop.f32.mrb[0].mxu0
        %1117 = vmatprep.mubr.f32.mxu0 0.0
        %v1118 = vand.u32 %v354, 4294901760
        %1119 = vmatmul.mubr.f32.gmra.mrb[0].mxu0 %v1118
        %v1120 = vpop.f32.mrb[0].mxu0
        %v1121 = vadd.f32 %v1005, %v1120
        %v1122 = vpop.f32.mrb[0].mxu0
        %1123 = vmatprep.mubr.f32.mxu0 0.0
        %v1124 = vand.u32 %v357, 4294901760
        %1125 = vmatmul.mubr.f32.gmra.mrb[0].mxu0 %v1124
        %v1126 = vpop.f32.mrb[0].mxu0
        %v1127 = vadd.f32 %v1011, %v1126
        %v1128 = vpop.f32.mrb[0].mxu0
        %1129 = vmatprep.mubr.f32.mxu0 0.0
        %v1130 = vand.u32 %v360, 4294901760
        %1131 = vmatmul.mubr.f32.gmra.mrb[0].mxu0 %v1130
        %v1132 = vpop.f32.mrb[0].mxu0
        %v1133 = vadd.f32 %v1017, %v1132
        %v1134 = vpop.f32.mrb[0].mxu0
        %1135 = vmatprep.mubr.f32.mxu0 0.0
        %v1136 = vand.u32 %v363, 4294901760
        %1137 = vmatmul.mubr.f32.gmra.mrb[0].mxu0 %v1136
        %v1138 = vpop.f32.mrb[0].mxu0
        %v1139 = vadd.f32 %v1023, %v1138
        %v1140 = vpop.f32.mrb[0].mxu0
        %1141 = vdwg.mxu0
        %s1142 = scalar_lea.vmem [#allocation2], 384
        %v1143 = vld [vmem:[%s1142] sm:$0xff]
        %v1144 = vld [vmem:[%s1142 + $0x8] sm:$0xff]
        %v1145 = vld [vmem:[%s1142 + $0x10] sm:$0xff]
        %v1146 = vld [vmem:[%s1142 + $0x18] sm:$0xff]
        %v1147 = vld [vmem:[%s1142 + $0x20] sm:$0xff]
        %v1148 = vld [vmem:[%s1142 + $0x28] sm:$0xff]
        %v1149 = vld [vmem:[%s1142 + $0x30] sm:$0xff]
        %v1150 = vld [vmem:[%s1142 + $0x38] sm:$0xff]
        %v1151 = vld [vmem:[%s1142 + $0x40] sm:$0xff]
        %v1152 = vld [vmem:[%s1142 + $0x48] sm:$0xff]
        %v1153 = vld [vmem:[%s1142 + $0x50] sm:$0xff]
        %v1154 = vld [vmem:[%s1142 + $0x58] sm:$0xff]
        %v1155 = vld [vmem:[#allocation2] sm:$0xff]
        %v1156 = vld [vmem:[#allocation2 + $0x8] sm:$0xff]
        %v1157 = vld [vmem:[#allocation2 + $0x10] sm:$0xff]
        %v1158 = vld [vmem:[#allocation2 + $0x18] sm:$0xff]
        %v1159 = vld [vmem:[#allocation2 + $0x20] sm:$0xff]
        %v1160 = vld [vmem:[#allocation2 + $0x28] sm:$0xff]
        %v1161 = vld [vmem:[#allocation2 + $0x30] sm:$0xff]
        %v1162 = vld [vmem:[#allocation2 + $0x38] sm:$0xff]
        %v1163 = vld [vmem:[#allocation2 + $0x40] sm:$0xff]
        %v1164 = vld [vmem:[#allocation2 + $0x48] sm:$0xff]
        %v1165 = vld [vmem:[#allocation2 + $0x50] sm:$0xff]
        %v1166 = vld [vmem:[#allocation2 + $0x58] sm:$0xff]
        %vm1167 = vcmask 261120
        %v1169 = vsel %vm1167, %v1097, 0
        %v1172 = vsel %vm1167, %v1103, 0
        %v1174 = vand.u32 %v1156, 4294901760
        %1175 = vmatprep.subr.mxu0 %v1174
        %v1176 = vand.u32 %v1155, 4294901760
        %1177 = vmatpush1.msra.mxu0 %v1176
        %v1178 = vand.u32 %v1159, 4294901760
        %1179 = vmatprep.subr.mxu0 %v1178
        %v1180 = vand.u32 %v1158, 4294901760
        %1181 = vmatpush1.msra.mxu0 %v1180
        %v1182 = vand.u32 %v1162, 4294901760
        %1183 = vmatprep.subr.mxu0 %v1182
        %v1184 = vand.u32 %v1161, 4294901760
        %1185 = vmatpush1.msra.mxu0 %v1184
        %v1186 = vand.u32 %v1165, 4294901760
        %1187 = vmatprep.subr.mxu0 %v1186
        %v1188 = vand.u32 %v1164, 4294901760
        %1189 = vmatpush1.msra.mxu0 %v1188
        %1190 = vmatprep.subr.mxu0 0.0
        %1191 = vmatpush1.msra.mxu0 0.0
        %1192 = vmatprep.subr.mxu0 0.0
        %1193 = vmatpush1.msra.mxu0 0.0
        %1194 = vmatprep.subr.mxu0 0.0
        %1195 = vmatpush1.msra.mxu0 0.0
        %1196 = vmatprep.subr.mxu0 0.0
        %1197 = vmatpush1.msra.mxu0 0.0
        %1198 = vmatprep.subr.mxu0 0.0
        %1199 = vmatpush1.msra.mxu0 0.0
        %1200 = vmatprep.subr.mxu0 0.0
        %1201 = vmatpush1.msra.mxu0 0.0
        %1202 = vmatprep.subr.mxu0 0.0
        %1203 = vmatpush1.msra.mxu0 0.0
        %1204 = vmatprep.subr.mxu0 0.0
        %1205 = vmatpush1.msra.mxu0 0.0
        %1206 = vmatprep.subr.mxu0 0.0
        %1207 = vmatpush1.msra.mxu0 0.0
        %1208 = vmatprep.subr.mxu0 0.0
        %1209 = vmatpush1.msra.mxu0 0.0
        %1210 = vmatprep.subr.mxu0 0.0
        %1211 = vmatpush1.msra.mxu0 0.0
        %1212 = vmatprep.subr.mxu0 0.0
        %1213 = vmatpush1.msra.mxu0 0.0
        %1214 = vmatprep.subr.mxu0 0.0
        %1215 = vmatpush1.msra.mxu0 0.0
        %1216 = vmatprep.subr.mxu0 0.0
        %1217 = vmatpush1.msra.mxu0 0.0
        %1218 = vmatprep.subr.mxu0 0.0
        %1219 = vmatpush1.msra.mxu0 0.0
        %1220 = vmatprep.subr.mxu0 0.0
        %1221 = vmatpush1.msra.mxu0 0.0
        %1222 = vmatprep.subr.mxu0 0.0
        %1223 = vmatpush1.msra.mxu0 0.0
        %1224 = vmatprep.subr.mxu0 0.0
        %1225 = vmatpush1.msra.mxu0 0.0
        %1226 = vmatprep.subr.mxu0 0.0
        %1227 = vmatpush1.msra.mxu0 0.0
        %1228 = vmatprep.subr.mxu0 0.0
        %1229 = vmatpush1.msra.mxu0 0.0
        %1230 = vmatprep.subr.mxu0 0.0
        %1231 = vmatpush1.msra.mxu0 0.0
        %1232 = vmatprep.subr.mxu0 0.0
        %1233 = vmatpush1.msra.mxu0 0.0
        %1234 = vmatprep.subr.mxu0 0.0
        %1235 = vmatpush1.msra.mxu0 0.0
        %1236 = vmatprep.subr.mxu0 0.0
        %1237 = vmatpush1.msra.mxu0 0.0
        %1238 = vmatprep.subr.mxu0 0.0
        %1239 = vmatpush1.msra.mxu0 0.0
        %1240 = vmatprep.subr.mxu0 0.0
        %1241 = vmatpush1.msra.mxu0 0.0
        %1242 = vmatprep.subr.mxu0 0.0
        %1243 = vmatpush1.msra.mxu0 0.0
        %1244 = vmatprep.subr.mxu0 0.0
        %1245 = vmatpush1.msra.mxu0 0.0
        %1246 = vmatprep.mubr.f32.mxu0 0.0
        %v1247 = vand.u32 %v1169, 4294901760
        %v1248 = vsub.f32 %v1169, %v1247
        %v1249 = vand.u32 %v1248, 4294901760
        %v1250 = vsub.f32 %v1248, %v1249
        %v1251 = vand.u32 %v1250, 4294901760
        %1252 = vmatmul.mubr.f32.gmra.mrb[0].mxu0 %v1251
        %v1253 = vpop.f32.mrb[0].mxu0
        %v1254 = vadd.f32 0.0, %v1253
        %v1255 = vpop.f32.mrb[0].mxu0
        %v1256 = vadd.f32 0.0, %v1255
        %1257 = vmatprep.mubr.f32.mxu0 0.0
        %v1258 = vand.u32 %v1172, 4294901760
        %v1259 = vsub.f32 %v1172, %v1258
        %v1260 = vand.u32 %v1259, 4294901760
        %v1261 = vsub.f32 %v1259, %v1260
        %v1262 = vand.u32 %v1261, 4294901760
        %1263 = vmatmul.mubr.f32.gmra.mrb[0].mxu0 %v1262
        %v1264 = vpop.f32.mrb[0].mxu0
        %v1265 = vadd.f32 0.0, %v1264
        %v1266 = vpop.f32.mrb[0].mxu0
        %v1267 = vadd.f32 0.0, %v1266
        %1268 = vdwg.mxu0
        %v1269 = vand.u32 %v1156, 4294901760
        %v1270 = vsub.f32 %v1156, %v1269
        %v1271 = vand.u32 %v1270, 4294901760
        %v1272 = vsub.f32 %v1270, %v1271
        %v1273 = vand.u32 %v1272, 4294901760
        %1274 = vmatprep.subr.mxu0 %v1273
        %v1275 = vand.u32 %v1155, 4294901760
        %v1276 = vsub.f32 %v1155, %v1275
        %v1277 = vand.u32 %v1276, 4294901760
        %v1278 = vsub.f32 %v1276, %v1277
        %v1279 = vand.u32 %v1278, 4294901760
        %1280 = vmatpush1.msra.mxu0 %v1279
        %v1281 = vand.u32 %v1159, 4294901760
        %v1282 = vsub.f32 %v1159, %v1281
        %v1283 = vand.u32 %v1282, 4294901760
        %v1284 = vsub.f32 %v1282, %v1283
        %v1285 = vand.u32 %v1284, 4294901760
        %1286 = vmatprep.subr.mxu0 %v1285
        %v1287 = vand.u32 %v1158, 4294901760
        %v1288 = vsub.f32 %v1158, %v1287
        %v1289 = vand.u32 %v1288, 4294901760
        %v1290 = vsub.f32 %v1288, %v1289
        %v1291 = vand.u32 %v1290, 4294901760
        %1292 = vmatpush1.msra.mxu0 %v1291
        %v1293 = vand.u32 %v1162, 4294901760
        %v1294 = vsub.f32 %v1162, %v1293
        %v1295 = vand.u32 %v1294, 4294901760
        %v1296 = vsub.f32 %v1294, %v1295
        %v1297 = vand.u32 %v1296, 4294901760
        %1298 = vmatprep.subr.mxu0 %v1297
        %v1299 = vand.u32 %v1161, 4294901760
        %v1300 = vsub.f32 %v1161, %v1299
        %v1301 = vand.u32 %v1300, 4294901760
        %v1302 = vsub.f32 %v1300, %v1301
        %v1303 = vand.u32 %v1302, 4294901760
        %1304 = vmatpush1.msra.mxu0 %v1303
        %v1305 = vand.u32 %v1165, 4294901760
        %v1306 = vsub.f32 %v1165, %v1305
        %v1307 = vand.u32 %v1306, 4294901760
        %v1308 = vsub.f32 %v1306, %v1307
        %v1309 = vand.u32 %v1308, 4294901760
        %1310 = vmatprep.subr.mxu0 %v1309
        %v1311 = vand.u32 %v1164, 4294901760
        %v1312 = vsub.f32 %v1164, %v1311
        %v1313 = vand.u32 %v1312, 4294901760
        %v1314 = vsub.f32 %v1312, %v1313
        %v1315 = vand.u32 %v1314, 4294901760
        %1316 = vmatpush1.msra.mxu0 %v1315
        %1317 = vmatprep.subr.mxu0 0.0
        %1318 = vmatpush1.msra.mxu0 0.0
        %1319 = vmatprep.subr.mxu0 0.0
        %1320 = vmatpush1.msra.mxu0 0.0
        %1321 = vmatprep.subr.mxu0 0.0
        %1322 = vmatpush1.msra.mxu0 0.0
        %1323 = vmatprep.subr.mxu0 0.0
        %1324 = vmatpush1.msra.mxu0 0.0
        %1325 = vmatprep.subr.mxu0 0.0
        %1326 = vmatpush1.msra.mxu0 0.0
        %1327 = vmatprep.subr.mxu0 0.0
        %1328 = vmatpush1.msra.mxu0 0.0
        %1329 = vmatprep.subr.mxu0 0.0
        %1330 = vmatpush1.msra.mxu0 0.0
        %1331 = vmatprep.subr.mxu0 0.0
        %1332 = vmatpush1.msra.mxu0 0.0
        %1333 = vmatprep.subr.mxu0 0.0
        %1334 = vmatpush1.msra.mxu0 0.0
        %1335 = vmatprep.subr.mxu0 0.0
        %1336 = vmatpush1.msra.mxu0 0.0
        %1337 = vmatprep.subr.mxu0 0.0
        %1338 = vmatpush1.msra.mxu0 0.0
        %1339 = vmatprep.subr.mxu0 0.0
        %1340 = vmatpush1.msra.mxu0 0.0
        %1341 = vmatprep.subr.mxu0 0.0
        %1342 = vmatpush1.msra.mxu0 0.0
        %1343 = vmatprep.subr.mxu0 0.0
        %1344 = vmatpush1.msra.mxu0 0.0
        %1345 = vmatprep.subr.mxu0 0.0
        %1346 = vmatpush1.msra.mxu0 0.0
        %1347 = vmatprep.subr.mxu0 0.0
        %1348 = vmatpush1.msra.mxu0 0.0
        %1349 = vmatprep.subr.mxu0 0.0
        %1350 = vmatpush1.msra.mxu0 0.0
        %1351 = vmatprep.subr.mxu0 0.0
        %1352 = vmatpush1.msra.mxu0 0.0
        %1353 = vmatprep.subr.mxu0 0.0
        %1354 = vmatpush1.msra.mxu0 0.0
        %1355 = vmatprep.subr.mxu0 0.0
        %1356 = vmatpush1.msra.mxu0 0.0
        %1357 = vmatprep.subr.mxu0 0.0
        %1358 = vmatpush1.msra.mxu0 0.0
        %1359 = vmatprep.subr.mxu0 0.0
        %1360 = vmatpush1.msra.mxu0 0.0
        %1361 = vmatprep.subr.mxu0 0.0
        %1362 = vmatpush1.msra.mxu0 0.0
        %1363 = vmatprep.subr.mxu0 0.0
        %1364 = vmatpush1.msra.mxu0 0.0
        %1365 = vmatprep.subr.mxu0 0.0
        %1366 = vmatpush1.msra.mxu0 0.0
        %1367 = vmatprep.subr.mxu0 0.0
        %1368 = vmatpush1.msra.mxu0 0.0
        %1369 = vmatprep.subr.mxu0 0.0
        %1370 = vmatpush1.msra.mxu0 0.0
        %1371 = vmatprep.subr.mxu0 0.0
        %1372 = vmatpush1.msra.mxu0 0.0
        %1373 = vmatprep.mubr.f32.mxu0 0.0
        %v1374 = vand.u32 %v1169, 4294901760
        %1375 = vmatmul.mubr.f32.gmra.mrb[0].mxu0 %v1374
        %v1376 = vpop.f32.mrb[0].mxu0
        %v1377 = vadd.f32 %v1254, %v1376
        %v1378 = vpop.f32.mrb[0].mxu0
        %v1379 = vadd.f32 %v1256, %v1378
        %1380 = vmatprep.mubr.f32.mxu0 0.0
        %v1381 = vand.u32 %v1172, 4294901760
        %1382 = vmatmul.mubr.f32.gmra.mrb[0].mxu0 %v1381
        %v1383 = vpop.f32.mrb[0].mxu0
        %v1384 = vadd.f32 %v1265, %v1383
        %v1385 = vpop.f32.mrb[0].mxu0
        %v1386 = vadd.f32 %v1267, %v1385
        %1387 = vdwg.mxu0
        %v1388 = vand.u32 %v1156, 4294901760
        %v1389 = vsub.f32 %v1156, %v1388
        %1390 = vmatprep.subr.mxu0 %v1389
        %v1391 = vand.u32 %v1155, 4294901760
        %v1392 = vsub.f32 %v1155, %v1391
        %1393 = vmatpush1.msra.mxu0 %v1392
        %v1394 = vand.u32 %v1159, 4294901760
        %v1395 = vsub.f32 %v1159, %v1394
        %1396 = vmatprep.subr.mxu0 %v1395
        %v1397 = vand.u32 %v1158, 4294901760
        %v1398 = vsub.f32 %v1158, %v1397
        %1399 = vmatpush1.msra.mxu0 %v1398
        %v1400 = vand.u32 %v1162, 4294901760
        %v1401 = vsub.f32 %v1162, %v1400
        %1402 = vmatprep.subr.mxu0 %v1401
        %v1403 = vand.u32 %v1161, 4294901760
        %v1404 = vsub.f32 %v1161, %v1403
        %1405 = vmatpush1.msra.mxu0 %v1404
        %v1406 = vand.u32 %v1165, 4294901760
        %v1407 = vsub.f32 %v1165, %v1406
        %1408 = vmatprep.subr.mxu0 %v1407
        %v1409 = vand.u32 %v1164, 4294901760
        %v1410 = vsub.f32 %v1164, %v1409
        %1411 = vmatpush1.msra.mxu0 %v1410
        %1412 = vmatprep.subr.mxu0 0.0
        %1413 = vmatpush1.msra.mxu0 0.0
        %1414 = vmatprep.subr.mxu0 0.0
        %1415 = vmatpush1.msra.mxu0 0.0
        %1416 = vmatprep.subr.mxu0 0.0
        %1417 = vmatpush1.msra.mxu0 0.0
        %1418 = vmatprep.subr.mxu0 0.0
        %1419 = vmatpush1.msra.mxu0 0.0
        %1420 = vmatprep.subr.mxu0 0.0
        %1421 = vmatpush1.msra.mxu0 0.0
        %1422 = vmatprep.subr.mxu0 0.0
        %1423 = vmatpush1.msra.mxu0 0.0
        %1424 = vmatprep.subr.mxu0 0.0
        %1425 = vmatpush1.msra.mxu0 0.0
        %1426 = vmatprep.subr.mxu0 0.0
        %1427 = vmatpush1.msra.mxu0 0.0
        %1428 = vmatprep.subr.mxu0 0.0
        %1429 = vmatpush1.msra.mxu0 0.0
        %1430 = vmatprep.subr.mxu0 0.0
        %1431 = vmatpush1.msra.mxu0 0.0
        %1432 = vmatprep.subr.mxu0 0.0
        %1433 = vmatpush1.msra.mxu0 0.0
        %1434 = vmatprep.subr.mxu0 0.0
        %1435 = vmatpush1.msra.mxu0 0.0
        %1436 = vmatprep.subr.mxu0 0.0
        %1437 = vmatpush1.msra.mxu0 0.0
        %1438 = vmatprep.subr.mxu0 0.0
        %1439 = vmatpush1.msra.mxu0 0.0
        %1440 = vmatprep.subr.mxu0 0.0
        %1441 = vmatpush1.msra.mxu0 0.0
        %1442 = vmatprep.subr.mxu0 0.0
        %1443 = vmatpush1.msra.mxu0 0.0
        %1444 = vmatprep.subr.mxu0 0.0
        %1445 = vmatpush1.msra.mxu0 0.0
        %1446 = vmatprep.subr.mxu0 0.0
        %1447 = vmatpush1.msra.mxu0 0.0
        %1448 = vmatprep.subr.mxu0 0.0
        %1449 = vmatpush1.msra.mxu0 0.0
        %1450 = vmatprep.subr.mxu0 0.0
        %1451 = vmatpush1.msra.mxu0 0.0
        %1452 = vmatprep.subr.mxu0 0.0
        %1453 = vmatpush1.msra.mxu0 0.0
        %1454 = vmatprep.subr.mxu0 0.0
        %1455 = vmatpush1.msra.mxu0 0.0
        %1456 = vmatprep.subr.mxu0 0.0
        %1457 = vmatpush1.msra.mxu0 0.0
        %1458 = vmatprep.subr.mxu0 0.0
        %1459 = vmatpush1.msra.mxu0 0.0
        %1460 = vmatprep.subr.mxu0 0.0
        %1461 = vmatpush1.msra.mxu0 0.0
        %1462 = vmatprep.subr.mxu0 0.0
        %1463 = vmatpush1.msra.mxu0 0.0
        %1464 = vmatprep.subr.mxu0 0.0
        %1465 = vmatpush1.msra.mxu0 0.0
        %1466 = vmatprep.subr.mxu0 0.0
        %1467 = vmatpush1.msra.mxu0 0.0
        %1468 = vmatprep.mubr.f32.mxu0 0.0
        %v1469 = vand.u32 %v1169, 4294901760
        %v1470 = vsub.f32 %v1169, %v1469
        %1471 = vmatmul.mubr.f32.gmra.mrb[0].mxu0 %v1470
        %v1472 = vpop.f32.mrb[0].mxu0
        %v1473 = vadd.f32 %v1377, %v1472
        %v1474 = vpop.f32.mrb[0].mxu0
        %v1475 = vadd.f32 %v1379, %v1474
        %1476 = vmatprep.mubr.f32.mxu0 0.0
        %v1477 = vand.u32 %v1172, 4294901760
        %v1478 = vsub.f32 %v1172, %v1477
        %1479 = vmatmul.mubr.f32.gmra.mrb[0].mxu0 %v1478
        %v1480 = vpop.f32.mrb[0].mxu0
        %v1481 = vadd.f32 %v1384, %v1480
        %v1482 = vpop.f32.mrb[0].mxu0
        %v1483 = vadd.f32 %v1386, %v1482
        %1484 = vdwg.mxu0
        %v1485 = vand.u32 %v1156, 4294901760
        %1486 = vmatprep.subr.mxu0 %v1485
        %v1487 = vand.u32 %v1155, 4294901760
        %1488 = vmatpush1.msra.mxu0 %v1487
        %v1489 = vand.u32 %v1159, 4294901760
        %1490 = vmatprep.subr.mxu0 %v1489
        %v1491 = vand.u32 %v1158, 4294901760
        %1492 = vmatpush1.msra.mxu0 %v1491
        %v1493 = vand.u32 %v1162, 4294901760
        %1494 = vmatprep.subr.mxu0 %v1493
        %v1495 = vand.u32 %v1161, 4294901760
        %1496 = vmatpush1.msra.mxu0 %v1495
        %v1497 = vand.u32 %v1165, 4294901760
        %1498 = vmatprep.subr.mxu0 %v1497
        %v1499 = vand.u32 %v1164, 4294901760
        %1500 = vmatpush1.msra.mxu0 %v1499
        %1501 = vmatprep.subr.mxu0 0.0
        %1502 = vmatpush1.msra.mxu0 0.0
        %1503 = vmatprep.subr.mxu0 0.0
        %1504 = vmatpush1.msra.mxu0 0.0
        %1505 = vmatprep.subr.mxu0 0.0
        %1506 = vmatpush1.msra.mxu0 0.0
        %1507 = vmatprep.subr.mxu0 0.0
        %1508 = vmatpush1.msra.mxu0 0.0
        %1509 = vmatprep.subr.mxu0 0.0
        %1510 = vmatpush1.msra.mxu0 0.0
        %1511 = vmatprep.subr.mxu0 0.0
        %1512 = vmatpush1.msra.mxu0 0.0
        %1513 = vmatprep.subr.mxu0 0.0
        %1514 = vmatpush1.msra.mxu0 0.0
        %1515 = vmatprep.subr.mxu0 0.0
        %1516 = vmatpush1.msra.mxu0 0.0
        %1517 = vmatprep.subr.mxu0 0.0
        %1518 = vmatpush1.msra.mxu0 0.0
        %1519 = vmatprep.subr.mxu0 0.0
        %1520 = vmatpush1.msra.mxu0 0.0
        %1521 = vmatprep.subr.mxu0 0.0
        %1522 = vmatpush1.msra.mxu0 0.0
        %1523 = vmatprep.subr.mxu0 0.0
        %1524 = vmatpush1.msra.mxu0 0.0
        %1525 = vmatprep.subr.mxu0 0.0
        %1526 = vmatpush1.msra.mxu0 0.0
        %1527 = vmatprep.subr.mxu0 0.0
        %1528 = vmatpush1.msra.mxu0 0.0
        %1529 = vmatprep.subr.mxu0 0.0
        %1530 = vmatpush1.msra.mxu0 0.0
        %1531 = vmatprep.subr.mxu0 0.0
        %1532 = vmatpush1.msra.mxu0 0.0
        %1533 = vmatprep.subr.mxu0 0.0
        %1534 = vmatpush1.msra.mxu0 0.0
        %1535 = vmatprep.subr.mxu0 0.0
        %1536 = vmatpush1.msra.mxu0 0.0
        %1537 = vmatprep.subr.mxu0 0.0
        %1538 = vmatpush1.msra.mxu0 0.0
        %1539 = vmatprep.subr.mxu0 0.0
        %1540 = vmatpush1.msra.mxu0 0.0
        %1541 = vmatprep.subr.mxu0 0.0
        %1542 = vmatpush1.msra.mxu0 0.0
        %1543 = vmatprep.subr.mxu0 0.0
        %1544 = vmatpush1.msra.mxu0 0.0
        %1545 = vmatprep.subr.mxu0 0.0
        %1546 = vmatpush1.msra.mxu0 0.0
        %1547 = vmatprep.subr.mxu0 0.0
        %1548 = vmatpush1.msra.mxu0 0.0
        %1549 = vmatprep.subr.mxu0 0.0
        %1550 = vmatpush1.msra.mxu0 0.0
        %1551 = vmatprep.subr.mxu0 0.0
        %1552 = vmatpush1.msra.mxu0 0.0
        %1553 = vmatprep.subr.mxu0 0.0
        %1554 = vmatpush1.msra.mxu0 0.0
        %1555 = vmatprep.subr.mxu0 0.0
        %1556 = vmatpush1.msra.mxu0 0.0
        %1557 = vmatprep.mubr.f32.mxu0 0.0
        %v1558 = vand.u32 %v1169, 4294901760
        %v1559 = vsub.f32 %v1169, %v1558
        %v1560 = vand.u32 %v1559, 4294901760
        %1561 = vmatmul.mubr.f32.gmra.mrb[0].mxu0 %v1560
        %v1562 = vpop.f32.mrb[0].mxu0
        %v1563 = vadd.f32 %v1473, %v1562
        %v1564 = vpop.f32.mrb[0].mxu0
        %v1565 = vadd.f32 %v1475, %v1564
        %1566 = vmatprep.mubr.f32.mxu0 0.0
        %v1567 = vand.u32 %v1172, 4294901760
        %v1568 = vsub.f32 %v1172, %v1567
        %v1569 = vand.u32 %v1568, 4294901760
        %1570 = vmatmul.mubr.f32.gmra.mrb[0].mxu0 %v1569
        %v1571 = vpop.f32.mrb[0].mxu0
        %v1572 = vadd.f32 %v1481, %v1571
        %v1573 = vpop.f32.mrb[0].mxu0
        %v1574 = vadd.f32 %v1483, %v1573
        %1575 = vdwg.mxu0
        %v1576 = vand.u32 %v1156, 4294901760
        %v1577 = vsub.f32 %v1156, %v1576
        %v1578 = vand.u32 %v1577, 4294901760
        %1579 = vmatprep.subr.mxu0 %v1578
        %v1580 = vand.u32 %v1155, 4294901760
        %v1581 = vsub.f32 %v1155, %v1580
        %v1582 = vand.u32 %v1581, 4294901760
        %1583 = vmatpush1.msra.mxu0 %v1582
        %v1584 = vand.u32 %v1159, 4294901760
        %v1585 = vsub.f32 %v1159, %v1584
        %v1586 = vand.u32 %v1585, 4294901760
        %1587 = vmatprep.subr.mxu0 %v1586
        %v1588 = vand.u32 %v1158, 4294901760
        %v1589 = vsub.f32 %v1158, %v1588
        %v1590 = vand.u32 %v1589, 4294901760
        %1591 = vmatpush1.msra.mxu0 %v1590
        %v1592 = vand.u32 %v1162, 4294901760
        %v1593 = vsub.f32 %v1162, %v1592
        %v1594 = vand.u32 %v1593, 4294901760
        %1595 = vmatprep.subr.mxu0 %v1594
        %v1596 = vand.u32 %v1161, 4294901760
        %v1597 = vsub.f32 %v1161, %v1596
        %v1598 = vand.u32 %v1597, 4294901760
        %1599 = vmatpush1.msra.mxu0 %v1598
        %v1600 = vand.u32 %v1165, 4294901760
        %v1601 = vsub.f32 %v1165, %v1600
        %v1602 = vand.u32 %v1601, 4294901760
        %1603 = vmatprep.subr.mxu0 %v1602
        %v1604 = vand.u32 %v1164, 4294901760
        %v1605 = vsub.f32 %v1164, %v1604
        %v1606 = vand.u32 %v1605, 4294901760
        %1607 = vmatpush1.msra.mxu0 %v1606
        %1608 = vmatprep.subr.mxu0 0.0
        %1609 = vmatpush1.msra.mxu0 0.0
        %1610 = vmatprep.subr.mxu0 0.0
        %1611 = vmatpush1.msra.mxu0 0.0
        %1612 = vmatprep.subr.mxu0 0.0
        %1613 = vmatpush1.msra.mxu0 0.0
        %1614 = vmatprep.subr.mxu0 0.0
        %1615 = vmatpush1.msra.mxu0 0.0
        %1616 = vmatprep.subr.mxu0 0.0
        %1617 = vmatpush1.msra.mxu0 0.0
        %1618 = vmatprep.subr.mxu0 0.0
        %1619 = vmatpush1.msra.mxu0 0.0
        %1620 = vmatprep.subr.mxu0 0.0
        %1621 = vmatpush1.msra.mxu0 0.0
        %1622 = vmatprep.subr.mxu0 0.0
        %1623 = vmatpush1.msra.mxu0 0.0
        %1624 = vmatprep.subr.mxu0 0.0
        %1625 = vmatpush1.msra.mxu0 0.0
        %1626 = vmatprep.subr.mxu0 0.0
        %1627 = vmatpush1.msra.mxu0 0.0
        %1628 = vmatprep.subr.mxu0 0.0
        %1629 = vmatpush1.msra.mxu0 0.0
        %1630 = vmatprep.subr.mxu0 0.0
        %1631 = vmatpush1.msra.mxu0 0.0
        %1632 = vmatprep.subr.mxu0 0.0
        %1633 = vmatpush1.msra.mxu0 0.0
        %1634 = vmatprep.subr.mxu0 0.0
        %1635 = vmatpush1.msra.mxu0 0.0
        %1636 = vmatprep.subr.mxu0 0.0
        %1637 = vmatpush1.msra.mxu0 0.0
        %1638 = vmatprep.subr.mxu0 0.0
        %1639 = vmatpush1.msra.mxu0 0.0
        %1640 = vmatprep.subr.mxu0 0.0
        %1641 = vmatpush1.msra.mxu0 0.0
        %1642 = vmatprep.subr.mxu0 0.0
        %1643 = vmatpush1.msra.mxu0 0.0
        %1644 = vmatprep.subr.mxu0 0.0
        %1645 = vmatpush1.msra.mxu0 0.0
        %1646 = vmatprep.subr.mxu0 0.0
        %1647 = vmatpush1.msra.mxu0 0.0
        %1648 = vmatprep.subr.mxu0 0.0
        %1649 = vmatpush1.msra.mxu0 0.0
        %1650 = vmatprep.subr.mxu0 0.0
        %1651 = vmatpush1.msra.mxu0 0.0
        %1652 = vmatprep.subr.mxu0 0.0
        %1653 = vmatpush1.msra.mxu0 0.0
        %1654 = vmatprep.subr.mxu0 0.0
        %1655 = vmatpush1.msra.mxu0 0.0
        %1656 = vmatprep.subr.mxu0 0.0
        %1657 = vmatpush1.msra.mxu0 0.0
        %1658 = vmatprep.subr.mxu0 0.0
        %1659 = vmatpush1.msra.mxu0 0.0
        %1660 = vmatprep.subr.mxu0 0.0
        %1661 = vmatpush1.msra.mxu0 0.0
        %1662 = vmatprep.subr.mxu0 0.0
        %1663 = vmatpush1.msra.mxu0 0.0
        %1664 = vmatprep.mubr.f32.mxu0 0.0
        %v1665 = vand.u32 %v1169, 4294901760
        %1666 = vmatmul.mubr.f32.gmra.mrb[0].mxu0 %v1665
        %v1667 = vpop.f32.mrb[0].mxu0
        %v1668 = vadd.f32 %v1563, %v1667
        %v1669 = vpop.f32.mrb[0].mxu0
        %v1670 = vadd.f32 %v1565, %v1669
        %1671 = vmatprep.mubr.f32.mxu0 0.0
        %v1672 = vand.u32 %v1172, 4294901760
        %1673 = vmatmul.mubr.f32.gmra.mrb[0].mxu0 %v1672
        %v1674 = vpop.f32.mrb[0].mxu0
        %v1675 = vadd.f32 %v1572, %v1674
        %v1676 = vpop.f32.mrb[0].mxu0
        %v1677 = vadd.f32 %v1574, %v1676
        %1678 = vdwg.mxu0
        %v1679 = vand.u32 %v1156, 4294901760
        %1680 = vmatprep.subr.mxu0 %v1679
        %v1681 = vand.u32 %v1155, 4294901760
        %1682 = vmatpush1.msra.mxu0 %v1681
        %v1683 = vand.u32 %v1159, 4294901760
        %1684 = vmatprep.subr.mxu0 %v1683
        %v1685 = vand.u32 %v1158, 4294901760
        %1686 = vmatpush1.msra.mxu0 %v1685
        %v1687 = vand.u32 %v1162, 4294901760
        %1688 = vmatprep.subr.mxu0 %v1687
        %v1689 = vand.u32 %v1161, 4294901760
        %1690 = vmatpush1.msra.mxu0 %v1689
        %v1691 = vand.u32 %v1165, 4294901760
        %1692 = vmatprep.subr.mxu0 %v1691
        %v1693 = vand.u32 %v1164, 4294901760
        %1694 = vmatpush1.msra.mxu0 %v1693
        %1695 = vmatprep.subr.mxu0 0.0
        %1696 = vmatpush1.msra.mxu0 0.0
        %1697 = vmatprep.subr.mxu0 0.0
        %1698 = vmatpush1.msra.mxu0 0.0
        %1699 = vmatprep.subr.mxu0 0.0
        %1700 = vmatpush1.msra.mxu0 0.0
        %1701 = vmatprep.subr.mxu0 0.0
        %1702 = vmatpush1.msra.mxu0 0.0
        %1703 = vmatprep.subr.mxu0 0.0
        %1704 = vmatpush1.msra.mxu0 0.0
        %1705 = vmatprep.subr.mxu0 0.0
        %1706 = vmatpush1.msra.mxu0 0.0
        %1707 = vmatprep.subr.mxu0 0.0
        %1708 = vmatpush1.msra.mxu0 0.0
        %1709 = vmatprep.subr.mxu0 0.0
        %1710 = vmatpush1.msra.mxu0 0.0
        %1711 = vmatprep.subr.mxu0 0.0
        %1712 = vmatpush1.msra.mxu0 0.0
        %1713 = vmatprep.subr.mxu0 0.0
        %1714 = vmatpush1.msra.mxu0 0.0
        %1715 = vmatprep.subr.mxu0 0.0
        %1716 = vmatpush1.msra.mxu0 0.0
        %1717 = vmatprep.subr.mxu0 0.0
        %1718 = vmatpush1.msra.mxu0 0.0
        %1719 = vmatprep.subr.mxu0 0.0
        %1720 = vmatpush1.msra.mxu0 0.0
        %1721 = vmatprep.subr.mxu0 0.0
        %1722 = vmatpush1.msra.mxu0 0.0
        %1723 = vmatprep.subr.mxu0 0.0
        %1724 = vmatpush1.msra.mxu0 0.0
        %1725 = vmatprep.subr.mxu0 0.0
        %1726 = vmatpush1.msra.mxu0 0.0
        %1727 = vmatprep.subr.mxu0 0.0
        %1728 = vmatpush1.msra.mxu0 0.0
        %1729 = vmatprep.subr.mxu0 0.0
        %1730 = vmatpush1.msra.mxu0 0.0
        %1731 = vmatprep.subr.mxu0 0.0
        %1732 = vmatpush1.msra.mxu0 0.0
        %1733 = vmatprep.subr.mxu0 0.0
        %1734 = vmatpush1.msra.mxu0 0.0
        %1735 = vmatprep.subr.mxu0 0.0
        %1736 = vmatpush1.msra.mxu0 0.0
        %1737 = vmatprep.subr.mxu0 0.0
        %1738 = vmatpush1.msra.mxu0 0.0
        %1739 = vmatprep.subr.mxu0 0.0
        %1740 = vmatpush1.msra.mxu0 0.0
        %1741 = vmatprep.subr.mxu0 0.0
        %1742 = vmatpush1.msra.mxu0 0.0
        %1743 = vmatprep.subr.mxu0 0.0
        %1744 = vmatpush1.msra.mxu0 0.0
        %1745 = vmatprep.subr.mxu0 0.0
        %1746 = vmatpush1.msra.mxu0 0.0
        %1747 = vmatprep.subr.mxu0 0.0
        %1748 = vmatpush1.msra.mxu0 0.0
        %1749 = vmatprep.subr.mxu0 0.0
        %1750 = vmatpush1.msra.mxu0 0.0
        %1751 = vmatprep.mubr.f32.mxu0 0.0
        %v1752 = vand.u32 %v1169, 4294901760
        %1753 = vmatmul.mubr.f32.gmra.mrb[0].mxu0 %v1752
        %v1754 = vpop.f32.mrb[0].mxu0
        %v1755 = vadd.f32 %v1668, %v1754
        %v1756 = vpop.f32.mrb[0].mxu0
        %v1757 = vadd.f32 %v1670, %v1756
        %1758 = vmatprep.mubr.f32.mxu0 0.0
        %v1759 = vand.u32 %v1172, 4294901760
        %1760 = vmatmul.mubr.f32.gmra.mrb[0].mxu0 %v1759
        %v1761 = vpop.f32.mrb[0].mxu0
        %v1762 = vadd.f32 %v1675, %v1761
        %v1763 = vpop.f32.mrb[0].mxu0
        %v1764 = vadd.f32 %v1677, %v1763
        %1765 = vdwg.mxu0
        %1766 = vmatprep.subr.mxu0 0.0
        %v1767 = vand.u32 %v1157, 4294901760
        %1768 = vmatpush1.msra.mxu0 %v1767
        %1769 = vmatprep.subr.mxu0 0.0
        %v1770 = vand.u32 %v1160, 4294901760
        %1771 = vmatpush1.msra.mxu0 %v1770
        %1772 = vmatprep.subr.mxu0 0.0
        %v1773 = vand.u32 %v1163, 4294901760
        %1774 = vmatpush1.msra.mxu0 %v1773
        %1775 = vmatprep.subr.mxu0 0.0
        %v1776 = vand.u32 %v1166, 4294901760
        %1777 = vmatpush1.msra.mxu0 %v1776
        %1778 = vmatprep.subr.mxu0 0.0
        %1779 = vmatpush1.msra.mxu0 0.0
        %1780 = vmatprep.subr.mxu0 0.0
        %1781 = vmatpush1.msra.mxu0 0.0
        %1782 = vmatprep.subr.mxu0 0.0
        %1783 = vmatpush1.msra.mxu0 0.0
        %1784 = vmatprep.subr.mxu0 0.0
        %1785 = vmatpush1.msra.mxu0 0.0
        %1786 = vmatprep.subr.mxu0 0.0
        %1787 = vmatpush1.msra.mxu0 0.0
        %1788 = vmatprep.subr.mxu0 0.0
        %1789 = vmatpush1.msra.mxu0 0.0
        %1790 = vmatprep.subr.mxu0 0.0
        %1791 = vmatpush1.msra.mxu0 0.0
        %1792 = vmatprep.subr.mxu0 0.0
        %1793 = vmatpush1.msra.mxu0 0.0
        %1794 = vmatprep.subr.mxu0 0.0
        %1795 = vmatpush1.msra.mxu0 0.0
        %1796 = vmatprep.subr.mxu0 0.0
        %1797 = vmatpush1.msra.mxu0 0.0
        %1798 = vmatprep.subr.mxu0 0.0
        %1799 = vmatpush1.msra.mxu0 0.0
        %1800 = vmatprep.subr.mxu0 0.0
        %1801 = vmatpush1.msra.mxu0 0.0
        %1802 = vmatprep.subr.mxu0 0.0
        %1803 = vmatpush1.msra.mxu0 0.0
        %1804 = vmatprep.subr.mxu0 0.0
        %1805 = vmatpush1.msra.mxu0 0.0
        %1806 = vmatprep.subr.mxu0 0.0
        %1807 = vmatpush1.msra.mxu0 0.0
        %1808 = vmatprep.subr.mxu0 0.0
        %1809 = vmatpush1.msra.mxu0 0.0
        %1810 = vmatprep.subr.mxu0 0.0
        %1811 = vmatpush1.msra.mxu0 0.0
        %1812 = vmatprep.subr.mxu0 0.0
        %1813 = vmatpush1.msra.mxu0 0.0
        %1814 = vmatprep.subr.mxu0 0.0
        %1815 = vmatpush1.msra.mxu0 0.0
        %1816 = vmatprep.subr.mxu0 0.0
        %1817 = vmatpush1.msra.mxu0 0.0
        %1818 = vmatprep.subr.mxu0 0.0
        %1819 = vmatpush1.msra.mxu0 0.0
        %1820 = vmatprep.subr.mxu0 0.0
        %1821 = vmatpush1.msra.mxu0 0.0
        %1822 = vmatprep.subr.mxu0 0.0
        %1823 = vmatpush1.msra.mxu0 0.0
        %1824 = vmatprep.subr.mxu0 0.0
        %1825 = vmatpush1.msra.mxu0 0.0
        %1826 = vmatprep.subr.mxu0 0.0
        %1827 = vmatpush1.msra.mxu0 0.0
        %1828 = vmatprep.subr.mxu0 0.0
        %1829 = vmatpush1.msra.mxu0 0.0
        %1830 = vmatprep.subr.mxu0 0.0
        %1831 = vmatpush1.msra.mxu0 0.0
        %1832 = vmatprep.subr.mxu0 0.0
        %1833 = vmatpush1.msra.mxu0 0.0
        %1834 = vmatprep.mubr.f32.mxu0 0.0
        %v1835 = vand.u32 %v1169, 4294901760
        %v1836 = vsub.f32 %v1169, %v1835
        %v1837 = vand.u32 %v1836, 4294901760
        %v1838 = vsub.f32 %v1836, %v1837
        %v1839 = vand.u32 %v1838, 4294901760
        %1840 = vmatmul.mubr.f32.gmra.mrb[0].mxu0 %v1839
        %v1841 = vpop.f32.mrb[0].mxu0
        %v1842 = vadd.f32 0.0, %v1841
        %v1843 = vpop.f32.mrb[0].mxu0
        %1844 = vmatprep.mubr.f32.mxu0 0.0
        %v1845 = vand.u32 %v1172, 4294901760
        %v1846 = vsub.f32 %v1172, %v1845
        %v1847 = vand.u32 %v1846, 4294901760
        %v1848 = vsub.f32 %v1846, %v1847
        %v1849 = vand.u32 %v1848, 4294901760
        %1850 = vmatmul.mubr.f32.gmra.mrb[0].mxu0 %v1849
        %v1851 = vpop.f32.mrb[0].mxu0
        %v1852 = vadd.f32 0.0, %v1851
        %v1853 = vpop.f32.mrb[0].mxu0
        %1854 = vdwg.mxu0
        %1855 = vmatprep.subr.mxu0 0.0
        %v1856 = vand.u32 %v1157, 4294901760
        %v1857 = vsub.f32 %v1157, %v1856
        %v1858 = vand.u32 %v1857, 4294901760
        %v1859 = vsub.f32 %v1857, %v1858
        %v1860 = vand.u32 %v1859, 4294901760
        %1861 = vmatpush1.msra.mxu0 %v1860
        %1862 = vmatprep.subr.mxu0 0.0
        %v1863 = vand.u32 %v1160, 4294901760
        %v1864 = vsub.f32 %v1160, %v1863
        %v1865 = vand.u32 %v1864, 4294901760
        %v1866 = vsub.f32 %v1864, %v1865
        %v1867 = vand.u32 %v1866, 4294901760
        %1868 = vmatpush1.msra.mxu0 %v1867
        %1869 = vmatprep.subr.mxu0 0.0
        %v1870 = vand.u32 %v1163, 4294901760
        %v1871 = vsub.f32 %v1163, %v1870
        %v1872 = vand.u32 %v1871, 4294901760
        %v1873 = vsub.f32 %v1871, %v1872
        %v1874 = vand.u32 %v1873, 4294901760
        %1875 = vmatpush1.msra.mxu0 %v1874
        %1876 = vmatprep.subr.mxu0 0.0
        %v1877 = vand.u32 %v1166, 4294901760
        %v1878 = vsub.f32 %v1166, %v1877
        %v1879 = vand.u32 %v1878, 4294901760
        %v1880 = vsub.f32 %v1878, %v1879
        %v1881 = vand.u32 %v1880, 4294901760
        %1882 = vmatpush1.msra.mxu0 %v1881
        %1883 = vmatprep.subr.mxu0 0.0
        %1884 = vmatpush1.msra.mxu0 0.0
        %1885 = vmatprep.subr.mxu0 0.0
        %1886 = vmatpush1.msra.mxu0 0.0
        %1887 = vmatprep.subr.mxu0 0.0
        %1888 = vmatpush1.msra.mxu0 0.0
        %1889 = vmatprep.subr.mxu0 0.0
        %1890 = vmatpush1.msra.mxu0 0.0
        %1891 = vmatprep.subr.mxu0 0.0
        %1892 = vmatpush1.msra.mxu0 0.0
        %1893 = vmatprep.subr.mxu0 0.0
        %1894 = vmatpush1.msra.mxu0 0.0
        %1895 = vmatprep.subr.mxu0 0.0
        %1896 = vmatpush1.msra.mxu0 0.0
        %1897 = vmatprep.subr.mxu0 0.0
        %1898 = vmatpush1.msra.mxu0 0.0
        %1899 = vmatprep.subr.mxu0 0.0
        %1900 = vmatpush1.msra.mxu0 0.0
        %1901 = vmatprep.subr.mxu0 0.0
        %1902 = vmatpush1.msra.mxu0 0.0
        %1903 = vmatprep.subr.mxu0 0.0
        %1904 = vmatpush1.msra.mxu0 0.0
        %1905 = vmatprep.subr.mxu0 0.0
        %1906 = vmatpush1.msra.mxu0 0.0
        %1907 = vmatprep.subr.mxu0 0.0
        %1908 = vmatpush1.msra.mxu0 0.0
        %1909 = vmatprep.subr.mxu0 0.0
        %1910 = vmatpush1.msra.mxu0 0.0
        %1911 = vmatprep.subr.mxu0 0.0
        %1912 = vmatpush1.msra.mxu0 0.0
        %1913 = vmatprep.subr.mxu0 0.0
        %1914 = vmatpush1.msra.mxu0 0.0
        %1915 = vmatprep.subr.mxu0 0.0
        %1916 = vmatpush1.msra.mxu0 0.0
        %1917 = vmatprep.subr.mxu0 0.0
        %1918 = vmatpush1.msra.mxu0 0.0
        %1919 = vmatprep.subr.mxu0 0.0
        %1920 = vmatpush1.msra.mxu0 0.0
        %1921 = vmatprep.subr.mxu0 0.0
        %1922 = vmatpush1.msra.mxu0 0.0
        %1923 = vmatprep.subr.mxu0 0.0
        %1924 = vmatpush1.msra.mxu0 0.0
        %1925 = vmatprep.subr.mxu0 0.0
        %1926 = vmatpush1.msra.mxu0 0.0
        %1927 = vmatprep.subr.mxu0 0.0
        %1928 = vmatpush1.msra.mxu0 0.0
        %1929 = vmatprep.subr.mxu0 0.0
        %1930 = vmatpush1.msra.mxu0 0.0
        %1931 = vmatprep.subr.mxu0 0.0
        %1932 = vmatpush1.msra.mxu0 0.0
        %1933 = vmatprep.subr.mxu0 0.0
        %1934 = vmatpush1.msra.mxu0 0.0
        %1935 = vmatprep.subr.mxu0 0.0
        %1936 = vmatpush1.msra.mxu0 0.0
        %1937 = vmatprep.subr.mxu0 0.0
        %1938 = vmatpush1.msra.mxu0 0.0
        %1939 = vmatprep.mubr.f32.mxu0 0.0
        %v1940 = vand.u32 %v1169, 4294901760
        %1941 = vmatmul.mubr.f32.gmra.mrb[0].mxu0 %v1940
        %v1942 = vpop.f32.mrb[0].mxu0
        %v1943 = vadd.f32 %v1842, %v1942
        %v1944 = vpop.f32.mrb[0].mxu0
        %1945 = vmatprep.mubr.f32.mxu0 0.0
        %v1946 = vand.u32 %v1172, 4294901760
        %1947 = vmatmul.mubr.f32.gmra.mrb[0].mxu0 %v1946
        %v1948 = vpop.f32.mrb[0].mxu0
        %v1949 = vadd.f32 %v1852, %v1948
        %v1950 = vpop.f32.mrb[0].mxu0
        %1951 = vdwg.mxu0
        %1952 = vmatprep.subr.mxu0 0.0
        %v1953 = vand.u32 %v1157, 4294901760
        %v1954 = vsub.f32 %v1157, %v1953
        %1955 = vmatpush1.msra.mxu0 %v1954
        %1956 = vmatprep.subr.mxu0 0.0
        %v1957 = vand.u32 %v1160, 4294901760
        %v1958 = vsub.f32 %v1160, %v1957
        %1959 = vmatpush1.msra.mxu0 %v1958
        %1960 = vmatprep.subr.mxu0 0.0
        %v1961 = vand.u32 %v1163, 4294901760
        %v1962 = vsub.f32 %v1163, %v1961
        %1963 = vmatpush1.msra.mxu0 %v1962
        %1964 = vmatprep.subr.mxu0 0.0
        %v1965 = vand.u32 %v1166, 4294901760
        %v1966 = vsub.f32 %v1166, %v1965
        %1967 = vmatpush1.msra.mxu0 %v1966
        %1968 = vmatprep.subr.mxu0 0.0
        %1969 = vmatpush1.msra.mxu0 0.0
        %1970 = vmatprep.subr.mxu0 0.0
        %1971 = vmatpush1.msra.mxu0 0.0
        %1972 = vmatprep.subr.mxu0 0.0
        %1973 = vmatpush1.msra.mxu0 0.0
        %1974 = vmatprep.subr.mxu0 0.0
        %1975 = vmatpush1.msra.mxu0 0.0
        %1976 = vmatprep.subr.mxu0 0.0
        %1977 = vmatpush1.msra.mxu0 0.0
        %1978 = vmatprep.subr.mxu0 0.0
        %1979 = vmatpush1.msra.mxu0 0.0
        %1980 = vmatprep.subr.mxu0 0.0
        %1981 = vmatpush1.msra.mxu0 0.0
        %1982 = vmatprep.subr.mxu0 0.0
        %1983 = vmatpush1.msra.mxu0 0.0
        %1984 = vmatprep.subr.mxu0 0.0
        %1985 = vmatpush1.msra.mxu0 0.0
        %1986 = vmatprep.subr.mxu0 0.0
        %1987 = vmatpush1.msra.mxu0 0.0
        %1988 = vmatprep.subr.mxu0 0.0
        %1989 = vmatpush1.msra.mxu0 0.0
        %1990 = vmatprep.subr.mxu0 0.0
        %1991 = vmatpush1.msra.mxu0 0.0
        %1992 = vmatprep.subr.mxu0 0.0
        %1993 = vmatpush1.msra.mxu0 0.0
        %1994 = vmatprep.subr.mxu0 0.0
        %1995 = vmatpush1.msra.mxu0 0.0
        %1996 = vmatprep.subr.mxu0 0.0
        %1997 = vmatpush1.msra.mxu0 0.0
        %1998 = vmatprep.subr.mxu0 0.0
        %1999 = vmatpush1.msra.mxu0 0.0
        %2000 = vmatprep.subr.mxu0 0.0
        %2001 = vmatpush1.msra.mxu0 0.0
        %2002 = vmatprep.subr.mxu0 0.0
        %2003 = vmatpush1.msra.mxu0 0.0
        %2004 = vmatprep.subr.mxu0 0.0
        %2005 = vmatpush1.msra.mxu0 0.0
        %2006 = vmatprep.subr.mxu0 0.0
        %2007 = vmatpush1.msra.mxu0 0.0
        %2008 = vmatprep.subr.mxu0 0.0
        %2009 = vmatpush1.msra.mxu0 0.0
        %2010 = vmatprep.subr.mxu0 0.0
        %2011 = vmatpush1.msra.mxu0 0.0
        %2012 = vmatprep.subr.mxu0 0.0
        %2013 = vmatpush1.msra.mxu0 0.0
        %2014 = vmatprep.subr.mxu0 0.0
        %2015 = vmatpush1.msra.mxu0 0.0
        %2016 = vmatprep.subr.mxu0 0.0
        %2017 = vmatpush1.msra.mxu0 0.0
        %2018 = vmatprep.subr.mxu0 0.0
        %2019 = vmatpush1.msra.mxu0 0.0
        %2020 = vmatprep.subr.mxu0 0.0
        %2021 = vmatpush1.msra.mxu0 0.0
        %2022 = vmatprep.subr.mxu0 0.0
        %2023 = vmatpush1.msra.mxu0 0.0
        %2024 = vmatprep.mubr.f32.mxu0 0.0
        %v2025 = vand.u32 %v1169, 4294901760
        %v2026 = vsub.f32 %v1169, %v2025
        %2027 = vmatmul.mubr.f32.gmra.mrb[0].mxu0 %v2026
        %v2028 = vpop.f32.mrb[0].mxu0
        %v2029 = vadd.f32 %v1943, %v2028
        %v2030 = vpop.f32.mrb[0].mxu0
        %2031 = vmatprep.mubr.f32.mxu0 0.0
        %v2032 = vand.u32 %v1172, 4294901760
        %v2033 = vsub.f32 %v1172, %v2032
        %2034 = vmatmul.mubr.f32.gmra.mrb[0].mxu0 %v2033
        %v2035 = vpop.f32.mrb[0].mxu0
        %v2036 = vadd.f32 %v1949, %v2035
        %v2037 = vpop.f32.mrb[0].mxu0
        %2038 = vdwg.mxu0
        %2039 = vmatprep.subr.mxu0 0.0
        %v2040 = vand.u32 %v1157, 4294901760
        %2041 = vmatpush1.msra.mxu0 %v2040
        %2042 = vmatprep.subr.mxu0 0.0
        %v2043 = vand.u32 %v1160, 4294901760
        %2044 = vmatpush1.msra.mxu0 %v2043
        %2045 = vmatprep.subr.mxu0 0.0
        %v2046 = vand.u32 %v1163, 4294901760
        %2047 = vmatpush1.msra.mxu0 %v2046
        %2048 = vmatprep.subr.mxu0 0.0
        %v2049 = vand.u32 %v1166, 4294901760
        %2050 = vmatpush1.msra.mxu0 %v2049
        %2051 = vmatprep.subr.mxu0 0.0
        %2052 = vmatpush1.msra.mxu0 0.0
        %2053 = vmatprep.subr.mxu0 0.0
        %2054 = vmatpush1.msra.mxu0 0.0
        %2055 = vmatprep.subr.mxu0 0.0
        %2056 = vmatpush1.msra.mxu0 0.0
        %2057 = vmatprep.subr.mxu0 0.0
        %2058 = vmatpush1.msra.mxu0 0.0
        %2059 = vmatprep.subr.mxu0 0.0
        %2060 = vmatpush1.msra.mxu0 0.0
        %2061 = vmatprep.subr.mxu0 0.0
        %2062 = vmatpush1.msra.mxu0 0.0
        %2063 = vmatprep.subr.mxu0 0.0
        %2064 = vmatpush1.msra.mxu0 0.0
        %2065 = vmatprep.subr.mxu0 0.0
        %2066 = vmatpush1.msra.mxu0 0.0
        %2067 = vmatprep.subr.mxu0 0.0
        %2068 = vmatpush1.msra.mxu0 0.0
        %2069 = vmatprep.subr.mxu0 0.0
        %2070 = vmatpush1.msra.mxu0 0.0
        %2071 = vmatprep.subr.mxu0 0.0
        %2072 = vmatpush1.msra.mxu0 0.0
        %2073 = vmatprep.subr.mxu0 0.0
        %2074 = vmatpush1.msra.mxu0 0.0
        %2075 = vmatprep.subr.mxu0 0.0
        %2076 = vmatpush1.msra.mxu0 0.0
        %2077 = vmatprep.subr.mxu0 0.0
        %2078 = vmatpush1.msra.mxu0 0.0
        %2079 = vmatprep.subr.mxu0 0.0
        %2080 = vmatpush1.msra.mxu0 0.0
        %2081 = vmatprep.subr.mxu0 0.0
        %2082 = vmatpush1.msra.mxu0 0.0
        %2083 = vmatprep.subr.mxu0 0.0
        %2084 = vmatpush1.msra.mxu0 0.0
        %2085 = vmatprep.subr.mxu0 0.0
        %2086 = vmatpush1.msra.mxu0 0.0
        %2087 = vmatprep.subr.mxu0 0.0
        %2088 = vmatpush1.msra.mxu0 0.0
        %2089 = vmatprep.subr.mxu0 0.0
        %2090 = vmatpush1.msra.mxu0 0.0
        %2091 = vmatprep.subr.mxu0 0.0
        %2092 = vmatpush1.msra.mxu0 0.0
        %2093 = vmatprep.subr.mxu0 0.0
        %2094 = vmatpush1.msra.mxu0 0.0
        %2095 = vmatprep.subr.mxu0 0.0
        %2096 = vmatpush1.msra.mxu0 0.0
        %2097 = vmatprep.subr.mxu0 0.0
        %2098 = vmatpush1.msra.mxu0 0.0
        %2099 = vmatprep.subr.mxu0 0.0
        %2100 = vmatpush1.msra.mxu0 0.0
        %2101 = vmatprep.subr.mxu0 0.0
        %2102 = vmatpush1.msra.mxu0 0.0
        %2103 = vmatprep.subr.mxu0 0.0
        %2104 = vmatpush1.msra.mxu0 0.0
        %2105 = vmatprep.subr.mxu0 0.0
        %2106 = vmatpush1.msra.mxu0 0.0
        %2107 = vmatprep.mubr.f32.mxu0 0.0
        %v2108 = vand.u32 %v1169, 4294901760
        %v2109 = vsub.f32 %v1169, %v2108
        %v2110 = vand.u32 %v2109, 4294901760
        %2111 = vmatmul.mubr.f32.gmra.mrb[0].mxu0 %v2110
        %v2112 = vpop.f32.mrb[0].mxu0
        %v2113 = vadd.f32 %v2029, %v2112
        %v2114 = vpop.f32.mrb[0].mxu0
        %2115 = vmatprep.mubr.f32.mxu0 0.0
        %v2116 = vand.u32 %v1172, 4294901760
        %v2117 = vsub.f32 %v1172, %v2116
        %v2118 = vand.u32 %v2117, 4294901760
        %2119 = vmatmul.mubr.f32.gmra.mrb[0].mxu0 %v2118
        %v2120 = vpop.f32.mrb[0].mxu0
        %v2121 = vadd.f32 %v2036, %v2120
        %v2122 = vpop.f32.mrb[0].mxu0
        %2123 = vdwg.mxu0
        %2124 = vmatprep.subr.mxu0 0.0
        %v2125 = vand.u32 %v1157, 4294901760
        %v2126 = vsub.f32 %v1157, %v2125
        %v2127 = vand.u32 %v2126, 4294901760
        %2128 = vmatpush1.msra.mxu0 %v2127
        %2129 = vmatprep.subr.mxu0 0.0
        %v2130 = vand.u32 %v1160, 4294901760
        %v2131 = vsub.f32 %v1160, %v2130
        %v2132 = vand.u32 %v2131, 4294901760
        %2133 = vmatpush1.msra.mxu0 %v2132
        %2134 = vmatprep.subr.mxu0 0.0
        %v2135 = vand.u32 %v1163, 4294901760
        %v2136 = vsub.f32 %v1163, %v2135
        %v2137 = vand.u32 %v2136, 4294901760
        %2138 = vmatpush1.msra.mxu0 %v2137
        %2139 = vmatprep.subr.mxu0 0.0
        %v2140 = vand.u32 %v1166, 4294901760
        %v2141 = vsub.f32 %v1166, %v2140
        %v2142 = vand.u32 %v2141, 4294901760
        %2143 = vmatpush1.msra.mxu0 %v2142
        %2144 = vmatprep.subr.mxu0 0.0
        %2145 = vmatpush1.msra.mxu0 0.0
        %2146 = vmatprep.subr.mxu0 0.0
        %2147 = vmatpush1.msra.mxu0 0.0
        %2148 = vmatprep.subr.mxu0 0.0
        %2149 = vmatpush1.msra.mxu0 0.0
        %2150 = vmatprep.subr.mxu0 0.0
        %2151 = vmatpush1.msra.mxu0 0.0
        %2152 = vmatprep.subr.mxu0 0.0
        %2153 = vmatpush1.msra.mxu0 0.0
        %2154 = vmatprep.subr.mxu0 0.0
        %2155 = vmatpush1.msra.mxu0 0.0
        %2156 = vmatprep.subr.mxu0 0.0
        %2157 = vmatpush1.msra.mxu0 0.0
        %2158 = vmatprep.subr.mxu0 0.0
        %2159 = vmatpush1.msra.mxu0 0.0
        %2160 = vmatprep.subr.mxu0 0.0
        %2161 = vmatpush1.msra.mxu0 0.0
        %2162 = vmatprep.subr.mxu0 0.0
        %2163 = vmatpush1.msra.mxu0 0.0
        %2164 = vmatprep.subr.mxu0 0.0
        %2165 = vmatpush1.msra.mxu0 0.0
        %2166 = vmatprep.subr.mxu0 0.0
        %2167 = vmatpush1.msra.mxu0 0.0
        %2168 = vmatprep.subr.mxu0 0.0
        %2169 = vmatpush1.msra.mxu0 0.0
        %2170 = vmatprep.subr.mxu0 0.0
        %2171 = vmatpush1.msra.mxu0 0.0
        %2172 = vmatprep.subr.mxu0 0.0
        %2173 = vmatpush1.msra.mxu0 0.0
        %2174 = vmatprep.subr.mxu0 0.0
        %2175 = vmatpush1.msra.mxu0 0.0
        %2176 = vmatprep.subr.mxu0 0.0
        %2177 = vmatpush1.msra.mxu0 0.0
        %2178 = vmatprep.subr.mxu0 0.0
        %2179 = vmatpush1.msra.mxu0 0.0
        %2180 = vmatprep.subr.mxu0 0.0
        %2181 = vmatpush1.msra.mxu0 0.0
        %2182 = vmatprep.subr.mxu0 0.0
        %2183 = vmatpush1.msra.mxu0 0.0
        %2184 = vmatprep.subr.mxu0 0.0
        %2185 = vmatpush1.msra.mxu0 0.0
        %2186 = vmatprep.subr.mxu0 0.0
        %2187 = vmatpush1.msra.mxu0 0.0
        %2188 = vmatprep.subr.mxu0 0.0
        %2189 = vmatpush1.msra.mxu0 0.0
        %2190 = vmatprep.subr.mxu0 0.0
        %2191 = vmatpush1.msra.mxu0 0.0
        %2192 = vmatprep.subr.mxu0 0.0
        %2193 = vmatpush1.msra.mxu0 0.0
        %2194 = vmatprep.subr.mxu0 0.0
        %2195 = vmatpush1.msra.mxu0 0.0
        %2196 = vmatprep.subr.mxu0 0.0
        %2197 = vmatpush1.msra.mxu0 0.0
        %2198 = vmatprep.subr.mxu0 0.0
        %2199 = vmatpush1.msra.mxu0 0.0
        %2200 = vmatprep.mubr.f32.mxu0 0.0
        %v2201 = vand.u32 %v1169, 4294901760
        %2202 = vmatmul.mubr.f32.gmra.mrb[0].mxu0 %v2201
        %v2203 = vpop.f32.mrb[0].mxu0
        %v2204 = vadd.f32 %v2113, %v2203
        %v2205 = vpop.f32.mrb[0].mxu0
        %2206 = vmatprep.mubr.f32.mxu0 0.0
        %v2207 = vand.u32 %v1172, 4294901760
        %2208 = vmatmul.mubr.f32.gmra.mrb[0].mxu0 %v2207
        %v2209 = vpop.f32.mrb[0].mxu0
        %v2210 = vadd.f32 %v2121, %v2209
        %v2211 = vpop.f32.mrb[0].mxu0
        %2212 = vdwg.mxu0
        %2213 = vmatprep.subr.mxu0 0.0
        %v2214 = vand.u32 %v1157, 4294901760
        %2215 = vmatpush1.msra.mxu0 %v2214
        %2216 = vmatprep.subr.mxu0 0.0
        %v2217 = vand.u32 %v1160, 4294901760
        %2218 = vmatpush1.msra.mxu0 %v2217
        %2219 = vmatprep.subr.mxu0 0.0
        %v2220 = vand.u32 %v1163, 4294901760
        %2221 = vmatpush1.msra.mxu0 %v2220
        %2222 = vmatprep.subr.mxu0 0.0
        %v2223 = vand.u32 %v1166, 4294901760
        %2224 = vmatpush1.msra.mxu0 %v2223
        %2225 = vmatprep.subr.mxu0 0.0
        %2226 = vmatpush1.msra.mxu0 0.0
        %2227 = vmatprep.subr.mxu0 0.0
        %2228 = vmatpush1.msra.mxu0 0.0
        %2229 = vmatprep.subr.mxu0 0.0
        %2230 = vmatpush1.msra.mxu0 0.0
        %2231 = vmatprep.subr.mxu0 0.0
        %2232 = vmatpush1.msra.mxu0 0.0
        %2233 = vmatprep.subr.mxu0 0.0
        %2234 = vmatpush1.msra.mxu0 0.0
        %2235 = vmatprep.subr.mxu0 0.0
        %2236 = vmatpush1.msra.mxu0 0.0
        %2237 = vmatprep.subr.mxu0 0.0
        %2238 = vmatpush1.msra.mxu0 0.0
        %2239 = vmatprep.subr.mxu0 0.0
        %2240 = vmatpush1.msra.mxu0 0.0
        %2241 = vmatprep.subr.mxu0 0.0
        %2242 = vmatpush1.msra.mxu0 0.0
        %2243 = vmatprep.subr.mxu0 0.0
        %2244 = vmatpush1.msra.mxu0 0.0
        %2245 = vmatprep.subr.mxu0 0.0
        %2246 = vmatpush1.msra.mxu0 0.0
        %2247 = vmatprep.subr.mxu0 0.0
        %2248 = vmatpush1.msra.mxu0 0.0
        %2249 = vmatprep.subr.mxu0 0.0
        %2250 = vmatpush1.msra.mxu0 0.0
        %2251 = vmatprep.subr.mxu0 0.0
        %2252 = vmatpush1.msra.mxu0 0.0
        %2253 = vmatprep.subr.mxu0 0.0
        %2254 = vmatpush1.msra.mxu0 0.0
        %2255 = vmatprep.subr.mxu0 0.0
        %2256 = vmatpush1.msra.mxu0 0.0
        %2257 = vmatprep.subr.mxu0 0.0
        %2258 = vmatpush1.msra.mxu0 0.0
        %2259 = vmatprep.subr.mxu0 0.0
        %2260 = vmatpush1.msra.mxu0 0.0
        %2261 = vmatprep.subr.mxu0 0.0
        %2262 = vmatpush1.msra.mxu0 0.0
        %2263 = vmatprep.subr.mxu0 0.0
        %2264 = vmatpush1.msra.mxu0 0.0
        %2265 = vmatprep.subr.mxu0 0.0
        %2266 = vmatpush1.msra.mxu0 0.0
        %2267 = vmatprep.subr.mxu0 0.0
        %2268 = vmatpush1.msra.mxu0 0.0
        %2269 = vmatprep.subr.mxu0 0.0
        %2270 = vmatpush1.msra.mxu0 0.0
        %2271 = vmatprep.subr.mxu0 0.0
        %2272 = vmatpush1.msra.mxu0 0.0
        %2273 = vmatprep.subr.mxu0 0.0
        %2274 = vmatpush1.msra.mxu0 0.0
        %2275 = vmatprep.subr.mxu0 0.0
        %2276 = vmatpush1.msra.mxu0 0.0
        %2277 = vmatprep.subr.mxu0 0.0
        %2278 = vmatpush1.msra.mxu0 0.0
        %2279 = vmatprep.subr.mxu0 0.0
        %2280 = vmatpush1.msra.mxu0 0.0
        %2281 = vmatprep.mubr.f32.mxu0 0.0
        %v2282 = vand.u32 %v1169, 4294901760
        %2283 = vmatmul.mubr.f32.gmra.mrb[0].mxu0 %v2282
        %v2284 = vpop.f32.mrb[0].mxu0
        %v2285 = vadd.f32 %v2204, %v2284
        %v2286 = vpop.f32.mrb[0].mxu0
        %2287 = vmatprep.mubr.f32.mxu0 0.0
        %v2288 = vand.u32 %v1172, 4294901760
        %2289 = vmatmul.mubr.f32.gmra.mrb[0].mxu0 %v2288
        %v2290 = vpop.f32.mrb[0].mxu0
        %v2291 = vadd.f32 %v2210, %v2290
        %v2292 = vpop.f32.mrb[0].mxu0
        %2293 = vdwg.mxu0
        %v2295 = vsel %vm1167, %v330, 0
        %v2298 = vsel %vm1167, %v331, 0
        %v2300 = vand.u32 %v1144, 4294901760
        %2301 = vmatprep.subr.mxu0 %v2300
        %v2302 = vand.u32 %v1143, 4294901760
        %2303 = vmatpush1.msra.mxu0 %v2302
        %v2304 = vand.u32 %v1147, 4294901760
        %2305 = vmatprep.subr.mxu0 %v2304
        %v2306 = vand.u32 %v1146, 4294901760
        %2307 = vmatpush1.msra.mxu0 %v2306
        %v2308 = vand.u32 %v1150, 4294901760
        %2309 = vmatprep.subr.mxu0 %v2308
        %v2310 = vand.u32 %v1149, 4294901760
        %2311 = vmatpush1.msra.mxu0 %v2310
        %v2312 = vand.u32 %v1153, 4294901760
        %2313 = vmatprep.subr.mxu0 %v2312
        %v2314 = vand.u32 %v1152, 4294901760
        %2315 = vmatpush1.msra.mxu0 %v2314
        %2316 = vmatprep.subr.mxu0 0.0
        %2317 = vmatpush1.msra.mxu0 0.0
        %2318 = vmatprep.subr.mxu0 0.0
        %2319 = vmatpush1.msra.mxu0 0.0
        %2320 = vmatprep.subr.mxu0 0.0
        %2321 = vmatpush1.msra.mxu0 0.0
        %2322 = vmatprep.subr.mxu0 0.0
        %2323 = vmatpush1.msra.mxu0 0.0
        %2324 = vmatprep.subr.mxu0 0.0
        %2325 = vmatpush1.msra.mxu0 0.0
        %2326 = vmatprep.subr.mxu0 0.0
        %2327 = vmatpush1.msra.mxu0 0.0
        %2328 = vmatprep.subr.mxu0 0.0
        %2329 = vmatpush1.msra.mxu0 0.0
        %2330 = vmatprep.subr.mxu0 0.0
        %2331 = vmatpush1.msra.mxu0 0.0
        %2332 = vmatprep.subr.mxu0 0.0
        %2333 = vmatpush1.msra.mxu0 0.0
        %2334 = vmatprep.subr.mxu0 0.0
        %2335 = vmatpush1.msra.mxu0 0.0
        %2336 = vmatprep.subr.mxu0 0.0
        %2337 = vmatpush1.msra.mxu0 0.0
        %2338 = vmatprep.subr.mxu0 0.0
        %2339 = vmatpush1.msra.mxu0 0.0
        %2340 = vmatprep.subr.mxu0 0.0
        %2341 = vmatpush1.msra.mxu0 0.0
        %2342 = vmatprep.subr.mxu0 0.0
        %2343 = vmatpush1.msra.mxu0 0.0
        %2344 = vmatprep.subr.mxu0 0.0
        %2345 = vmatpush1.msra.mxu0 0.0
        %2346 = vmatprep.subr.mxu0 0.0
        %2347 = vmatpush1.msra.mxu0 0.0
        %2348 = vmatprep.subr.mxu0 0.0
        %2349 = vmatpush1.msra.mxu0 0.0
        %2350 = vmatprep.subr.mxu0 0.0
        %2351 = vmatpush1.msra.mxu0 0.0
        %2352 = vmatprep.subr.mxu0 0.0
        %2353 = vmatpush1.msra.mxu0 0.0
        %2354 = vmatprep.subr.mxu0 0.0
        %2355 = vmatpush1.msra.mxu0 0.0
        %2356 = vmatprep.subr.mxu0 0.0
        %2357 = vmatpush1.msra.mxu0 0.0
        %2358 = vmatprep.subr.mxu0 0.0
        %2359 = vmatpush1.msra.mxu0 0.0
        %2360 = vmatprep.subr.mxu0 0.0
        %2361 = vmatpush1.msra.mxu0 0.0
        %2362 = vmatprep.subr.mxu0 0.0
        %2363 = vmatpush1.msra.mxu0 0.0
        %2364 = vmatprep.subr.mxu0 0.0
        %2365 = vmatpush1.msra.mxu0 0.0
        %2366 = vmatprep.subr.mxu0 0.0
        %2367 = vmatpush1.msra.mxu0 0.0
        %2368 = vmatprep.subr.mxu0 0.0
        %2369 = vmatpush1.msra.mxu0 0.0
        %2370 = vmatprep.subr.mxu0 0.0
        %2371 = vmatpush1.msra.mxu0 0.0
        %2372 = vmatprep.mubr.f32.mxu0 0.0
        %v2373 = vand.u32 %v2295, 4294901760
        %v2374 = vsub.f32 %v2295, %v2373
        %v2375 = vand.u32 %v2374, 4294901760
        %v2376 = vsub.f32 %v2374, %v2375
        %v2377 = vand.u32 %v2376, 4294901760
        %2378 = vmatmul.mubr.f32.gmra.mrb[0].mxu0 %v2377
        %v2379 = vpop.f32.mrb[0].mxu0
        %v2380 = vadd.f32 %v1755, %v2379
        %v2381 = vpop.f32.mrb[0].mxu0
        %v2382 = vadd.f32 %v1757, %v2381
        %2383 = vmatprep.mubr.f32.mxu0 0.0
        %v2384 = vand.u32 %v2298, 4294901760
        %v2385 = vsub.f32 %v2298, %v2384
        %v2386 = vand.u32 %v2385, 4294901760
        %v2387 = vsub.f32 %v2385, %v2386
        %v2388 = vand.u32 %v2387, 4294901760
        %2389 = vmatmul.mubr.f32.gmra.mrb[0].mxu0 %v2388
        %v2390 = vpop.f32.mrb[0].mxu0
        %v2391 = vadd.f32 %v1762, %v2390
        %v2392 = vpop.f32.mrb[0].mxu0
        %v2393 = vadd.f32 %v1764, %v2392
        %2394 = vdwg.mxu0
        %v2395 = vand.u32 %v1144, 4294901760
        %v2396 = vsub.f32 %v1144, %v2395
        %v2397 = vand.u32 %v2396, 4294901760
        %v2398 = vsub.f32 %v2396, %v2397
        %v2399 = vand.u32 %v2398, 4294901760
        %2400 = vmatprep.subr.mxu0 %v2399
        %v2401 = vand.u32 %v1143, 4294901760
        %v2402 = vsub.f32 %v1143, %v2401
        %v2403 = vand.u32 %v2402, 4294901760
        %v2404 = vsub.f32 %v2402, %v2403
        %v2405 = vand.u32 %v2404, 4294901760
        %2406 = vmatpush1.msra.mxu0 %v2405
        %v2407 = vand.u32 %v1147, 4294901760
        %v2408 = vsub.f32 %v1147, %v2407
        %v2409 = vand.u32 %v2408, 4294901760
        %v2410 = vsub.f32 %v2408, %v2409
        %v2411 = vand.u32 %v2410, 4294901760
        %2412 = vmatprep.subr.mxu0 %v2411
        %v2413 = vand.u32 %v1146, 4294901760
        %v2414 = vsub.f32 %v1146, %v2413
        %v2415 = vand.u32 %v2414, 4294901760
        %v2416 = vsub.f32 %v2414, %v2415
        %v2417 = vand.u32 %v2416, 4294901760
        %2418 = vmatpush1.msra.mxu0 %v2417
        %v2419 = vand.u32 %v1150, 4294901760
        %v2420 = vsub.f32 %v1150, %v2419
        %v2421 = vand.u32 %v2420, 4294901760
        %v2422 = vsub.f32 %v2420, %v2421
        %v2423 = vand.u32 %v2422, 4294901760
        %2424 = vmatprep.subr.mxu0 %v2423
        %v2425 = vand.u32 %v1149, 4294901760
        %v2426 = vsub.f32 %v1149, %v2425
        %v2427 = vand.u32 %v2426, 4294901760
        %v2428 = vsub.f32 %v2426, %v2427
        %v2429 = vand.u32 %v2428, 4294901760
        %2430 = vmatpush1.msra.mxu0 %v2429
        %v2431 = vand.u32 %v1153, 4294901760
        %v2432 = vsub.f32 %v1153, %v2431
        %v2433 = vand.u32 %v2432, 4294901760
        %v2434 = vsub.f32 %v2432, %v2433
        %v2435 = vand.u32 %v2434, 4294901760
        %2436 = vmatprep.subr.mxu0 %v2435
        %v2437 = vand.u32 %v1152, 4294901760
        %v2438 = vsub.f32 %v1152, %v2437
        %v2439 = vand.u32 %v2438, 4294901760
        %v2440 = vsub.f32 %v2438, %v2439
        %v2441 = vand.u32 %v2440, 4294901760
        %2442 = vmatpush1.msra.mxu0 %v2441
        %2443 = vmatprep.subr.mxu0 0.0
        %2444 = vmatpush1.msra.mxu0 0.0
        %2445 = vmatprep.subr.mxu0 0.0
        %2446 = vmatpush1.msra.mxu0 0.0
        %2447 = vmatprep.subr.mxu0 0.0
        %2448 = vmatpush1.msra.mxu0 0.0
        %2449 = vmatprep.subr.mxu0 0.0
        %2450 = vmatpush1.msra.mxu0 0.0
        %2451 = vmatprep.subr.mxu0 0.0
        %2452 = vmatpush1.msra.mxu0 0.0
        %2453 = vmatprep.subr.mxu0 0.0
        %2454 = vmatpush1.msra.mxu0 0.0
        %2455 = vmatprep.subr.mxu0 0.0
        %2456 = vmatpush1.msra.mxu0 0.0
        %2457 = vmatprep.subr.mxu0 0.0
        %2458 = vmatpush1.msra.mxu0 0.0
        %2459 = vmatprep.subr.mxu0 0.0
        %2460 = vmatpush1.msra.mxu0 0.0
        %2461 = vmatprep.subr.mxu0 0.0
        %2462 = vmatpush1.msra.mxu0 0.0
        %2463 = vmatprep.subr.mxu0 0.0
        %2464 = vmatpush1.msra.mxu0 0.0
        %2465 = vmatprep.subr.mxu0 0.0
        %2466 = vmatpush1.msra.mxu0 0.0
        %2467 = vmatprep.subr.mxu0 0.0
        %2468 = vmatpush1.msra.mxu0 0.0
        %2469 = vmatprep.subr.mxu0 0.0
        %2470 = vmatpush1.msra.mxu0 0.0
        %2471 = vmatprep.subr.mxu0 0.0
        %2472 = vmatpush1.msra.mxu0 0.0
        %2473 = vmatprep.subr.mxu0 0.0
        %2474 = vmatpush1.msra.mxu0 0.0
        %2475 = vmatprep.subr.mxu0 0.0
        %2476 = vmatpush1.msra.mxu0 0.0
        %2477 = vmatprep.subr.mxu0 0.0
        %2478 = vmatpush1.msra.mxu0 0.0
        %2479 = vmatprep.subr.mxu0 0.0
        %2480 = vmatpush1.msra.mxu0 0.0
        %2481 = vmatprep.subr.mxu0 0.0
        %2482 = vmatpush1.msra.mxu0 0.0
        %2483 = vmatprep.subr.mxu0 0.0
        %2484 = vmatpush1.msra.mxu0 0.0
        %2485 = vmatprep.subr.mxu0 0.0
        %2486 = vmatpush1.msra.mxu0 0.0
        %2487 = vmatprep.subr.mxu0 0.0
        %2488 = vmatpush1.msra.mxu0 0.0
        %2489 = vmatprep.subr.mxu0 0.0
        %2490 = vmatpush1.msra.mxu0 0.0
        %2491 = vmatprep.subr.mxu0 0.0
        %2492 = vmatpush1.msra.mxu0 0.0
        %2493 = vmatprep.subr.mxu0 0.0
        %2494 = vmatpush1.msra.mxu0 0.0
        %2495 = vmatprep.subr.mxu0 0.0
        %2496 = vmatpush1.msra.mxu0 0.0
        %2497 = vmatprep.subr.mxu0 0.0
        %2498 = vmatpush1.msra.mxu0 0.0
        %2499 = vmatprep.mubr.f32.mxu0 0.0
        %v2500 = vand.u32 %v2295, 4294901760
        %2501 = vmatmul.mubr.f32.gmra.mrb[0].mxu0 %v2500
        %v2502 = vpop.f32.mrb[0].mxu0
        %v2503 = vadd.f32 %v2380, %v2502
        %v2504 = vpop.f32.mrb[0].mxu0
        %v2505 = vadd.f32 %v2382, %v2504
        %2506 = vmatprep.mubr.f32.mxu0 0.0
        %v2507 = vand.u32 %v2298, 4294901760
        %2508 = vmatmul.mubr.f32.gmra.mrb[0].mxu0 %v2507
        %v2509 = vpop.f32.mrb[0].mxu0
        %v2510 = vadd.f32 %v2391, %v2509
        %v2511 = vpop.f32.mrb[0].mxu0
        %v2512 = vadd.f32 %v2393, %v2511
        %2513 = vdwg.mxu0
        %v2514 = vand.u32 %v1144, 4294901760
        %v2515 = vsub.f32 %v1144, %v2514
        %2516 = vmatprep.subr.mxu0 %v2515
        %v2517 = vand.u32 %v1143, 4294901760
        %v2518 = vsub.f32 %v1143, %v2517
        %2519 = vmatpush1.msra.mxu0 %v2518
        %v2520 = vand.u32 %v1147, 4294901760
        %v2521 = vsub.f32 %v1147, %v2520
        %2522 = vmatprep.subr.mxu0 %v2521
        %v2523 = vand.u32 %v1146, 4294901760
        %v2524 = vsub.f32 %v1146, %v2523
        %2525 = vmatpush1.msra.mxu0 %v2524
        %v2526 = vand.u32 %v1150, 4294901760
        %v2527 = vsub.f32 %v1150, %v2526
        %2528 = vmatprep.subr.mxu0 %v2527
        %v2529 = vand.u32 %v1149, 4294901760
        %v2530 = vsub.f32 %v1149, %v2529
        %2531 = vmatpush1.msra.mxu0 %v2530
        %v2532 = vand.u32 %v1153, 4294901760
        %v2533 = vsub.f32 %v1153, %v2532
        %2534 = vmatprep.subr.mxu0 %v2533
        %v2535 = vand.u32 %v1152, 4294901760
        %v2536 = vsub.f32 %v1152, %v2535
        %2537 = vmatpush1.msra.mxu0 %v2536
        %2538 = vmatprep.subr.mxu0 0.0
        %2539 = vmatpush1.msra.mxu0 0.0
        %2540 = vmatprep.subr.mxu0 0.0
        %2541 = vmatpush1.msra.mxu0 0.0
        %2542 = vmatprep.subr.mxu0 0.0
        %2543 = vmatpush1.msra.mxu0 0.0
        %2544 = vmatprep.subr.mxu0 0.0
        %2545 = vmatpush1.msra.mxu0 0.0
        %2546 = vmatprep.subr.mxu0 0.0
        %2547 = vmatpush1.msra.mxu0 0.0
        %2548 = vmatprep.subr.mxu0 0.0
        %2549 = vmatpush1.msra.mxu0 0.0
        %2550 = vmatprep.subr.mxu0 0.0
        %2551 = vmatpush1.msra.mxu0 0.0
        %2552 = vmatprep.subr.mxu0 0.0
        %2553 = vmatpush1.msra.mxu0 0.0
        %2554 = vmatprep.subr.mxu0 0.0
        %2555 = vmatpush1.msra.mxu0 0.0
        %2556 = vmatprep.subr.mxu0 0.0
        %2557 = vmatpush1.msra.mxu0 0.0
        %2558 = vmatprep.subr.mxu0 0.0
        %2559 = vmatpush1.msra.mxu0 0.0
        %2560 = vmatprep.subr.mxu0 0.0
        %2561 = vmatpush1.msra.mxu0 0.0
        %2562 = vmatprep.subr.mxu0 0.0
        %2563 = vmatpush1.msra.mxu0 0.0
        %2564 = vmatprep.subr.mxu0 0.0
        %2565 = vmatpush1.msra.mxu0 0.0
        %2566 = vmatprep.subr.mxu0 0.0
        %2567 = vmatpush1.msra.mxu0 0.0
        %2568 = vmatprep.subr.mxu0 0.0
        %2569 = vmatpush1.msra.mxu0 0.0
        %2570 = vmatprep.subr.mxu0 0.0
        %2571 = vmatpush1.msra.mxu0 0.0
        %2572 = vmatprep.subr.mxu0 0.0
        %2573 = vmatpush1.msra.mxu0 0.0
        %2574 = vmatprep.subr.mxu0 0.0
        %2575 = vmatpush1.msra.mxu0 0.0
        %2576 = vmatprep.subr.mxu0 0.0
        %2577 = vmatpush1.msra.mxu0 0.0
        %2578 = vmatprep.subr.mxu0 0.0
        %2579 = vmatpush1.msra.mxu0 0.0
        %2580 = vmatprep.subr.mxu0 0.0
        %2581 = vmatpush1.msra.mxu0 0.0
        %2582 = vmatprep.subr.mxu0 0.0
        %2583 = vmatpush1.msra.mxu0 0.0
        %2584 = vmatprep.subr.mxu0 0.0
        %2585 = vmatpush1.msra.mxu0 0.0
        %2586 = vmatprep.subr.mxu0 0.0
        %2587 = vmatpush1.msra.mxu0 0.0
        %2588 = vmatprep.subr.mxu0 0.0
        %2589 = vmatpush1.msra.mxu0 0.0
        %2590 = vmatprep.subr.mxu0 0.0
        %2591 = vmatpush1.msra.mxu0 0.0
        %2592 = vmatprep.subr.mxu0 0.0
        %2593 = vmatpush1.msra.mxu0 0.0
        %2594 = vmatprep.mubr.f32.mxu0 0.0
        %v2595 = vand.u32 %v2295, 4294901760
        %v2596 = vsub.f32 %v2295, %v2595
        %2597 = vmatmul.mubr.f32.gmra.mrb[0].mxu0 %v2596
        %v2598 = vpop.f32.mrb[0].mxu0
        %v2599 = vadd.f32 %v2503, %v2598
        %v2600 = vpop.f32.mrb[0].mxu0
        %v2601 = vadd.f32 %v2505, %v2600
        %2602 = vmatprep.mubr.f32.mxu0 0.0
        %v2603 = vand.u32 %v2298, 4294901760
        %v2604 = vsub.f32 %v2298, %v2603
        %2605 = vmatmul.mubr.f32.gmra.mrb[0].mxu0 %v2604
        %v2606 = vpop.f32.mrb[0].mxu0
        %v2607 = vadd.f32 %v2510, %v2606
        %v2608 = vpop.f32.mrb[0].mxu0
        %v2609 = vadd.f32 %v2512, %v2608
        %2610 = vdwg.mxu0
        %v2611 = vand.u32 %v1144, 4294901760
        %2612 = vmatprep.subr.mxu0 %v2611
        %v2613 = vand.u32 %v1143, 4294901760
        %2614 = vmatpush1.msra.mxu0 %v2613
        %v2615 = vand.u32 %v1147, 4294901760
        %2616 = vmatprep.subr.mxu0 %v2615
        %v2617 = vand.u32 %v1146, 4294901760
        %2618 = vmatpush1.msra.mxu0 %v2617
        %v2619 = vand.u32 %v1150, 4294901760
        %2620 = vmatprep.subr.mxu0 %v2619
        %v2621 = vand.u32 %v1149, 4294901760
        %2622 = vmatpush1.msra.mxu0 %v2621
        %v2623 = vand.u32 %v1153, 4294901760
        %2624 = vmatprep.subr.mxu0 %v2623
        %v2625 = vand.u32 %v1152, 4294901760
        %2626 = vmatpush1.msra.mxu0 %v2625
        %2627 = vmatprep.subr.mxu0 0.0
        %2628 = vmatpush1.msra.mxu0 0.0
        %2629 = vmatprep.subr.mxu0 0.0
        %2630 = vmatpush1.msra.mxu0 0.0
        %2631 = vmatprep.subr.mxu0 0.0
        %2632 = vmatpush1.msra.mxu0 0.0
        %2633 = vmatprep.subr.mxu0 0.0
        %2634 = vmatpush1.msra.mxu0 0.0
        %2635 = vmatprep.subr.mxu0 0.0
        %2636 = vmatpush1.msra.mxu0 0.0
        %2637 = vmatprep.subr.mxu0 0.0
        %2638 = vmatpush1.msra.mxu0 0.0
        %2639 = vmatprep.subr.mxu0 0.0
        %2640 = vmatpush1.msra.mxu0 0.0
        %2641 = vmatprep.subr.mxu0 0.0
        %2642 = vmatpush1.msra.mxu0 0.0
        %2643 = vmatprep.subr.mxu0 0.0
        %2644 = vmatpush1.msra.mxu0 0.0
        %2645 = vmatprep.subr.mxu0 0.0
        %2646 = vmatpush1.msra.mxu0 0.0
        %2647 = vmatprep.subr.mxu0 0.0
        %2648 = vmatpush1.msra.mxu0 0.0
        %2649 = vmatprep.subr.mxu0 0.0
        %2650 = vmatpush1.msra.mxu0 0.0
        %2651 = vmatprep.subr.mxu0 0.0
        %2652 = vmatpush1.msra.mxu0 0.0
        %2653 = vmatprep.subr.mxu0 0.0
        %2654 = vmatpush1.msra.mxu0 0.0
        %2655 = vmatprep.subr.mxu0 0.0
        %2656 = vmatpush1.msra.mxu0 0.0
        %2657 = vmatprep.subr.mxu0 0.0
        %2658 = vmatpush1.msra.mxu0 0.0
        %2659 = vmatprep.subr.mxu0 0.0
        %2660 = vmatpush1.msra.mxu0 0.0
        %2661 = vmatprep.subr.mxu0 0.0
        %2662 = vmatpush1.msra.mxu0 0.0
        %2663 = vmatprep.subr.mxu0 0.0
        %2664 = vmatpush1.msra.mxu0 0.0
        %2665 = vmatprep.subr.mxu0 0.0
        %2666 = vmatpush1.msra.mxu0 0.0
        %2667 = vmatprep.subr.mxu0 0.0
        %2668 = vmatpush1.msra.mxu0 0.0
        %2669 = vmatprep.subr.mxu0 0.0
        %2670 = vmatpush1.msra.mxu0 0.0
        %2671 = vmatprep.subr.mxu0 0.0
        %2672 = vmatpush1.msra.mxu0 0.0
        %2673 = vmatprep.subr.mxu0 0.0
        %2674 = vmatpush1.msra.mxu0 0.0
        %2675 = vmatprep.subr.mxu0 0.0
        %2676 = vmatpush1.msra.mxu0 0.0
        %2677 = vmatprep.subr.mxu0 0.0
        %2678 = vmatpush1.msra.mxu0 0.0
        %2679 = vmatprep.subr.mxu0 0.0
        %2680 = vmatpush1.msra.mxu0 0.0
        %2681 = vmatprep.subr.mxu0 0.0
        %2682 = vmatpush1.msra.mxu0 0.0
        %2683 = vmatprep.mubr.f32.mxu0 0.0
        %v2684 = vand.u32 %v2295, 4294901760
        %v2685 = vsub.f32 %v2295, %v2684
        %v2686 = vand.u32 %v2685, 4294901760
        %2687 = vmatmul.mubr.f32.gmra.mrb[0].mxu0 %v2686
        %v2688 = vpop.f32.mrb[0].mxu0
        %v2689 = vadd.f32 %v2599, %v2688
        %v2690 = vpop.f32.mrb[0].mxu0
        %v2691 = vadd.f32 %v2601, %v2690
        %2692 = vmatprep.mubr.f32.mxu0 0.0
        %v2693 = vand.u32 %v2298, 4294901760
        %v2694 = vsub.f32 %v2298, %v2693
        %v2695 = vand.u32 %v2694, 4294901760
        %2696 = vmatmul.mubr.f32.gmra.mrb[0].mxu0 %v2695
        %v2697 = vpop.f32.mrb[0].mxu0
        %v2698 = vadd.f32 %v2607, %v2697
        %v2699 = vpop.f32.mrb[0].mxu0
        %v2700 = vadd.f32 %v2609, %v2699
        %2701 = vdwg.mxu0
        %v2702 = vand.u32 %v1144, 4294901760
        %v2703 = vsub.f32 %v1144, %v2702
        %v2704 = vand.u32 %v2703, 4294901760
        %2705 = vmatprep.subr.mxu0 %v2704
        %v2706 = vand.u32 %v1143, 4294901760
        %v2707 = vsub.f32 %v1143, %v2706
        %v2708 = vand.u32 %v2707, 4294901760
        %2709 = vmatpush1.msra.mxu0 %v2708
        %v2710 = vand.u32 %v1147, 4294901760
        %v2711 = vsub.f32 %v1147, %v2710
        %v2712 = vand.u32 %v2711, 4294901760
        %2713 = vmatprep.subr.mxu0 %v2712
        %v2714 = vand.u32 %v1146, 4294901760
        %v2715 = vsub.f32 %v1146, %v2714
        %v2716 = vand.u32 %v2715, 4294901760
        %2717 = vmatpush1.msra.mxu0 %v2716
        %v2718 = vand.u32 %v1150, 4294901760
        %v2719 = vsub.f32 %v1150, %v2718
        %v2720 = vand.u32 %v2719, 4294901760
        %2721 = vmatprep.subr.mxu0 %v2720
        %v2722 = vand.u32 %v1149, 4294901760
        %v2723 = vsub.f32 %v1149, %v2722
        %v2724 = vand.u32 %v2723, 4294901760
        %2725 = vmatpush1.msra.mxu0 %v2724
        %v2726 = vand.u32 %v1153, 4294901760
        %v2727 = vsub.f32 %v1153, %v2726
        %v2728 = vand.u32 %v2727, 4294901760
        %2729 = vmatprep.subr.mxu0 %v2728
        %v2730 = vand.u32 %v1152, 4294901760
        %v2731 = vsub.f32 %v1152, %v2730
        %v2732 = vand.u32 %v2731, 4294901760
        %2733 = vmatpush1.msra.mxu0 %v2732
        %2734 = vmatprep.subr.mxu0 0.0
        %2735 = vmatpush1.msra.mxu0 0.0
        %2736 = vmatprep.subr.mxu0 0.0
        %2737 = vmatpush1.msra.mxu0 0.0
        %2738 = vmatprep.subr.mxu0 0.0
        %2739 = vmatpush1.msra.mxu0 0.0
        %2740 = vmatprep.subr.mxu0 0.0
        %2741 = vmatpush1.msra.mxu0 0.0
        %2742 = vmatprep.subr.mxu0 0.0
        %2743 = vmatpush1.msra.mxu0 0.0
        %2744 = vmatprep.subr.mxu0 0.0
        %2745 = vmatpush1.msra.mxu0 0.0
        %2746 = vmatprep.subr.mxu0 0.0
        %2747 = vmatpush1.msra.mxu0 0.0
        %2748 = vmatprep.subr.mxu0 0.0
        %2749 = vmatpush1.msra.mxu0 0.0
        %2750 = vmatprep.subr.mxu0 0.0
        %2751 = vmatpush1.msra.mxu0 0.0
        %2752 = vmatprep.subr.mxu0 0.0
        %2753 = vmatpush1.msra.mxu0 0.0
        %2754 = vmatprep.subr.mxu0 0.0
        %2755 = vmatpush1.msra.mxu0 0.0
        %2756 = vmatprep.subr.mxu0 0.0
        %2757 = vmatpush1.msra.mxu0 0.0
        %2758 = vmatprep.subr.mxu0 0.0
        %2759 = vmatpush1.msra.mxu0 0.0
        %2760 = vmatprep.subr.mxu0 0.0
        %2761 = vmatpush1.msra.mxu0 0.0
        %2762 = vmatprep.subr.mxu0 0.0
        %2763 = vmatpush1.msra.mxu0 0.0
        %2764 = vmatprep.subr.mxu0 0.0
        %2765 = vmatpush1.msra.mxu0 0.0
        %2766 = vmatprep.subr.mxu0 0.0
        %2767 = vmatpush1.msra.mxu0 0.0
        %2768 = vmatprep.subr.mxu0 0.0
        %2769 = vmatpush1.msra.mxu0 0.0
        %2770 = vmatprep.subr.mxu0 0.0
        %2771 = vmatpush1.msra.mxu0 0.0
        %2772 = vmatprep.subr.mxu0 0.0
        %2773 = vmatpush1.msra.mxu0 0.0
        %2774 = vmatprep.subr.mxu0 0.0
        %2775 = vmatpush1.msra.mxu0 0.0
        %2776 = vmatprep.subr.mxu0 0.0
        %2777 = vmatpush1.msra.mxu0 0.0
        %2778 = vmatprep.subr.mxu0 0.0
        %2779 = vmatpush1.msra.mxu0 0.0
        %2780 = vmatprep.subr.mxu0 0.0
        %2781 = vmatpush1.msra.mxu0 0.0
        %2782 = vmatprep.subr.mxu0 0.0
        %2783 = vmatpush1.msra.mxu0 0.0
        %2784 = vmatprep.subr.mxu0 0.0
        %2785 = vmatpush1.msra.mxu0 0.0
        %2786 = vmatprep.subr.mxu0 0.0
        %2787 = vmatpush1.msra.mxu0 0.0
        %2788 = vmatprep.subr.mxu0 0.0
        %2789 = vmatpush1.msra.mxu0 0.0
        %2790 = vmatprep.mubr.f32.mxu0 0.0
        %v2791 = vand.u32 %v2295, 4294901760
        %2792 = vmatmul.mubr.f32.gmra.mrb[0].mxu0 %v2791
        %v2793 = vpop.f32.mrb[0].mxu0
        %v2794 = vadd.f32 %v2689, %v2793
        %v2795 = vpop.f32.mrb[0].mxu0
        %v2796 = vadd.f32 %v2691, %v2795
        %2797 = vmatprep.mubr.f32.mxu0 0.0
        %v2798 = vand.u32 %v2298, 4294901760
        %2799 = vmatmul.mubr.f32.gmra.mrb[0].mxu0 %v2798
        %v2800 = vpop.f32.mrb[0].mxu0
        %v2801 = vadd.f32 %v2698, %v2800
        %v2802 = vpop.f32.mrb[0].mxu0
        %v2803 = vadd.f32 %v2700, %v2802
        %2804 = vdwg.mxu0
        %v2805 = vand.u32 %v1144, 4294901760
        %2806 = vmatprep.subr.mxu0 %v2805
        %v2807 = vand.u32 %v1143, 4294901760
        %2808 = vmatpush1.msra.mxu0 %v2807
        %v2809 = vand.u32 %v1147, 4294901760
        %2810 = vmatprep.subr.mxu0 %v2809
        %v2811 = vand.u32 %v1146, 4294901760
        %2812 = vmatpush1.msra.mxu0 %v2811
        %v2813 = vand.u32 %v1150, 4294901760
        %2814 = vmatprep.subr.mxu0 %v2813
        %v2815 = vand.u32 %v1149, 4294901760
        %2816 = vmatpush1.msra.mxu0 %v2815
        %v2817 = vand.u32 %v1153, 4294901760
        %2818 = vmatprep.subr.mxu0 %v2817
        %v2819 = vand.u32 %v1152, 4294901760
        %2820 = vmatpush1.msra.mxu0 %v2819
        %2821 = vmatprep.subr.mxu0 0.0
        %2822 = vmatpush1.msra.mxu0 0.0
        %2823 = vmatprep.subr.mxu0 0.0
        %2824 = vmatpush1.msra.mxu0 0.0
        %2825 = vmatprep.subr.mxu0 0.0
        %2826 = vmatpush1.msra.mxu0 0.0
        %2827 = vmatprep.subr.mxu0 0.0
        %2828 = vmatpush1.msra.mxu0 0.0
        %2829 = vmatprep.subr.mxu0 0.0
        %2830 = vmatpush1.msra.mxu0 0.0
        %2831 = vmatprep.subr.mxu0 0.0
        %2832 = vmatpush1.msra.mxu0 0.0
        %2833 = vmatprep.subr.mxu0 0.0
        %2834 = vmatpush1.msra.mxu0 0.0
        %2835 = vmatprep.subr.mxu0 0.0
        %2836 = vmatpush1.msra.mxu0 0.0
        %2837 = vmatprep.subr.mxu0 0.0
        %2838 = vmatpush1.msra.mxu0 0.0
        %2839 = vmatprep.subr.mxu0 0.0
        %2840 = vmatpush1.msra.mxu0 0.0
        %2841 = vmatprep.subr.mxu0 0.0
        %2842 = vmatpush1.msra.mxu0 0.0
        %2843 = vmatprep.subr.mxu0 0.0
        %2844 = vmatpush1.msra.mxu0 0.0
        %2845 = vmatprep.subr.mxu0 0.0
        %2846 = vmatpush1.msra.mxu0 0.0
        %2847 = vmatprep.subr.mxu0 0.0
        %2848 = vmatpush1.msra.mxu0 0.0
        %2849 = vmatprep.subr.mxu0 0.0
        %2850 = vmatpush1.msra.mxu0 0.0
        %2851 = vmatprep.subr.mxu0 0.0
        %2852 = vmatpush1.msra.mxu0 0.0
        %2853 = vmatprep.subr.mxu0 0.0
        %2854 = vmatpush1.msra.mxu0 0.0
        %2855 = vmatprep.subr.mxu0 0.0
        %2856 = vmatpush1.msra.mxu0 0.0
        %2857 = vmatprep.subr.mxu0 0.0
        %2858 = vmatpush1.msra.mxu0 0.0
        %2859 = vmatprep.subr.mxu0 0.0
        %2860 = vmatpush1.msra.mxu0 0.0
        %2861 = vmatprep.subr.mxu0 0.0
        %2862 = vmatpush1.msra.mxu0 0.0
        %2863 = vmatprep.subr.mxu0 0.0
        %2864 = vmatpush1.msra.mxu0 0.0
        %2865 = vmatprep.subr.mxu0 0.0
        %2866 = vmatpush1.msra.mxu0 0.0
        %2867 = vmatprep.subr.mxu0 0.0
        %2868 = vmatpush1.msra.mxu0 0.0
        %2869 = vmatprep.subr.mxu0 0.0
        %2870 = vmatpush1.msra.mxu0 0.0
        %2871 = vmatprep.subr.mxu0 0.0
        %2872 = vmatpush1.msra.mxu0 0.0
        %2873 = vmatprep.subr.mxu0 0.0
        %2874 = vmatpush1.msra.mxu0 0.0
        %2875 = vmatprep.subr.mxu0 0.0
        %2876 = vmatpush1.msra.mxu0 0.0
        %2877 = vmatprep.mubr.f32.mxu0 0.0
        %v2878 = vand.u32 %v2295, 4294901760
        %2879 = vmatmul.mubr.f32.gmra.mrb[0].mxu0 %v2878
        %v2880 = vpop.f32.mrb[0].mxu0
        %v2881 = vadd.f32 %v2794, %v2880
        %v2882 = vpop.f32.mrb[0].mxu0
        %v2883 = vadd.f32 %v2796, %v2882
        %2884 = vmatprep.mubr.f32.mxu0 0.0
        %v2885 = vand.u32 %v2298, 4294901760
        %2886 = vmatmul.mubr.f32.gmra.mrb[0].mxu0 %v2885
        %v2887 = vpop.f32.mrb[0].mxu0
        %v2888 = vadd.f32 %v2801, %v2887
        %v2889 = vpop.f32.mrb[0].mxu0
        %v2890 = vadd.f32 %v2803, %v2889
        %2891 = vdwg.mxu0
        %2892 = vmatprep.subr.mxu0 0.0
        %v2893 = vand.u32 %v1145, 4294901760
        %2894 = vmatpush1.msra.mxu0 %v2893
        %2895 = vmatprep.subr.mxu0 0.0
        %v2896 = vand.u32 %v1148, 4294901760
        %2897 = vmatpush1.msra.mxu0 %v2896
        %2898 = vmatprep.subr.mxu0 0.0
        %v2899 = vand.u32 %v1151, 4294901760
        %2900 = vmatpush1.msra.mxu0 %v2899
        %2901 = vmatprep.subr.mxu0 0.0
        %v2902 = vand.u32 %v1154, 4294901760
        %2903 = vmatpush1.msra.mxu0 %v2902
        %2904 = vmatprep.subr.mxu0 0.0
        %2905 = vmatpush1.msra.mxu0 0.0
        %2906 = vmatprep.subr.mxu0 0.0
        %2907 = vmatpush1.msra.mxu0 0.0
        %2908 = vmatprep.subr.mxu0 0.0
        %2909 = vmatpush1.msra.mxu0 0.0
        %2910 = vmatprep.subr.mxu0 0.0
        %2911 = vmatpush1.msra.mxu0 0.0
        %2912 = vmatprep.subr.mxu0 0.0
        %2913 = vmatpush1.msra.mxu0 0.0
        %2914 = vmatprep.subr.mxu0 0.0
        %2915 = vmatpush1.msra.mxu0 0.0
        %2916 = vmatprep.subr.mxu0 0.0
        %2917 = vmatpush1.msra.mxu0 0.0
        %2918 = vmatprep.subr.mxu0 0.0
        %2919 = vmatpush1.msra.mxu0 0.0
        %2920 = vmatprep.subr.mxu0 0.0
        %2921 = vmatpush1.msra.mxu0 0.0
        %2922 = vmatprep.subr.mxu0 0.0
        %2923 = vmatpush1.msra.mxu0 0.0
        %2924 = vmatprep.subr.mxu0 0.0
        %2925 = vmatpush1.msra.mxu0 0.0
        %2926 = vmatprep.subr.mxu0 0.0
        %2927 = vmatpush1.msra.mxu0 0.0
        %2928 = vmatprep.subr.mxu0 0.0
        %2929 = vmatpush1.msra.mxu0 0.0
        %2930 = vmatprep.subr.mxu0 0.0
        %2931 = vmatpush1.msra.mxu0 0.0
        %2932 = vmatprep.subr.mxu0 0.0
        %2933 = vmatpush1.msra.mxu0 0.0
        %2934 = vmatprep.subr.mxu0 0.0
        %2935 = vmatpush1.msra.mxu0 0.0
        %2936 = vmatprep.subr.mxu0 0.0
        %2937 = vmatpush1.msra.mxu0 0.0
        %2938 = vmatprep.subr.mxu0 0.0
        %2939 = vmatpush1.msra.mxu0 0.0
        %2940 = vmatprep.subr.mxu0 0.0
        %2941 = vmatpush1.msra.mxu0 0.0
        %2942 = vmatprep.subr.mxu0 0.0
        %2943 = vmatpush1.msra.mxu0 0.0
        %2944 = vmatprep.subr.mxu0 0.0
        %2945 = vmatpush1.msra.mxu0 0.0
        %2946 = vmatprep.subr.mxu0 0.0
        %2947 = vmatpush1.msra.mxu0 0.0
        %2948 = vmatprep.subr.mxu0 0.0
        %2949 = vmatpush1.msra.mxu0 0.0
        %2950 = vmatprep.subr.mxu0 0.0
        %2951 = vmatpush1.msra.mxu0 0.0
        %2952 = vmatprep.subr.mxu0 0.0
        %2953 = vmatpush1.msra.mxu0 0.0
        %2954 = vmatprep.subr.mxu0 0.0
        %2955 = vmatpush1.msra.mxu0 0.0
        %2956 = vmatprep.subr.mxu0 0.0
        %2957 = vmatpush1.msra.mxu0 0.0
        %2958 = vmatprep.subr.mxu0 0.0
        %2959 = vmatpush1.msra.mxu0 0.0
        %2960 = vmatprep.mubr.f32.mxu0 0.0
        %v2961 = vand.u32 %v2295, 4294901760
        %v2962 = vsub.f32 %v2295, %v2961
        %v2963 = vand.u32 %v2962, 4294901760
        %v2964 = vsub.f32 %v2962, %v2963
        %v2965 = vand.u32 %v2964, 4294901760
        %2966 = vmatmul.mubr.f32.gmra.mrb[0].mxu0 %v2965
        %v2967 = vpop.f32.mrb[0].mxu0
        %v2968 = vadd.f32 %v2285, %v2967
        %v2969 = vpop.f32.mrb[0].mxu0
        %2970 = vmatprep.mubr.f32.mxu0 0.0
        %v2971 = vand.u32 %v2298, 4294901760
        %v2972 = vsub.f32 %v2298, %v2971
        %v2973 = vand.u32 %v2972, 4294901760
        %v2974 = vsub.f32 %v2972, %v2973
        %v2975 = vand.u32 %v2974, 4294901760
        %2976 = vmatmul.mubr.f32.gmra.mrb[0].mxu0 %v2975
        %v2977 = vpop.f32.mrb[0].mxu0
        %v2978 = vadd.f32 %v2291, %v2977
        %v2979 = vpop.f32.mrb[0].mxu0
        %2980 = vdwg.mxu0
        %2981 = vmatprep.subr.mxu0 0.0
        %v2982 = vand.u32 %v1145, 4294901760
        %v2983 = vsub.f32 %v1145, %v2982
        %v2984 = vand.u32 %v2983, 4294901760
        %v2985 = vsub.f32 %v2983, %v2984
        %v2986 = vand.u32 %v2985, 4294901760
        %2987 = vmatpush1.msra.mxu0 %v2986
        %2988 = vmatprep.subr.mxu0 0.0
        %v2989 = vand.u32 %v1148, 4294901760
        %v2990 = vsub.f32 %v1148, %v2989
        %v2991 = vand.u32 %v2990, 4294901760
        %v2992 = vsub.f32 %v2990, %v2991
        %v2993 = vand.u32 %v2992, 4294901760
        %2994 = vmatpush1.msra.mxu0 %v2993
        %2995 = vmatprep.subr.mxu0 0.0
        %v2996 = vand.u32 %v1151, 4294901760
        %v2997 = vsub.f32 %v1151, %v2996
        %v2998 = vand.u32 %v2997, 4294901760
        %v2999 = vsub.f32 %v2997, %v2998
        %v3000 = vand.u32 %v2999, 4294901760
        %3001 = vmatpush1.msra.mxu0 %v3000
        %3002 = vmatprep.subr.mxu0 0.0
        %v3003 = vand.u32 %v1154, 4294901760
        %v3004 = vsub.f32 %v1154, %v3003
        %v3005 = vand.u32 %v3004, 4294901760
        %v3006 = vsub.f32 %v3004, %v3005
        %v3007 = vand.u32 %v3006, 4294901760
        %3008 = vmatpush1.msra.mxu0 %v3007
        %3009 = vmatprep.subr.mxu0 0.0
        %3010 = vmatpush1.msra.mxu0 0.0
        %3011 = vmatprep.subr.mxu0 0.0
        %3012 = vmatpush1.msra.mxu0 0.0
        %3013 = vmatprep.subr.mxu0 0.0
        %3014 = vmatpush1.msra.mxu0 0.0
        %3015 = vmatprep.subr.mxu0 0.0
        %3016 = vmatpush1.msra.mxu0 0.0
        %3017 = vmatprep.subr.mxu0 0.0
        %3018 = vmatpush1.msra.mxu0 0.0
        %3019 = vmatprep.subr.mxu0 0.0
        %3020 = vmatpush1.msra.mxu0 0.0
        %3021 = vmatprep.subr.mxu0 0.0
        %3022 = vmatpush1.msra.mxu0 0.0
        %3023 = vmatprep.subr.mxu0 0.0
        %3024 = vmatpush1.msra.mxu0 0.0
        %3025 = vmatprep.subr.mxu0 0.0
        %3026 = vmatpush1.msra.mxu0 0.0
        %3027 = vmatprep.subr.mxu0 0.0
        %3028 = vmatpush1.msra.mxu0 0.0
        %3029 = vmatprep.subr.mxu0 0.0
        %3030 = vmatpush1.msra.mxu0 0.0
        %3031 = vmatprep.subr.mxu0 0.0
        %3032 = vmatpush1.msra.mxu0 0.0
        %3033 = vmatprep.subr.mxu0 0.0
        %3034 = vmatpush1.msra.mxu0 0.0
        %3035 = vmatprep.subr.mxu0 0.0
        %3036 = vmatpush1.msra.mxu0 0.0
        %3037 = vmatprep.subr.mxu0 0.0
        %3038 = vmatpush1.msra.mxu0 0.0
        %3039 = vmatprep.subr.mxu0 0.0
        %3040 = vmatpush1.msra.mxu0 0.0
        %3041 = vmatprep.subr.mxu0 0.0
        %3042 = vmatpush1.msra.mxu0 0.0
        %3043 = vmatprep.subr.mxu0 0.0
        %3044 = vmatpush1.msra.mxu0 0.0
        %3045 = vmatprep.subr.mxu0 0.0
        %3046 = vmatpush1.msra.mxu0 0.0
        %3047 = vmatprep.subr.mxu0 0.0
        %3048 = vmatpush1.msra.mxu0 0.0
        %3049 = vmatprep.subr.mxu0 0.0
        %3050 = vmatpush1.msra.mxu0 0.0
        %3051 = vmatprep.subr.mxu0 0.0
        %3052 = vmatpush1.msra.mxu0 0.0
        %3053 = vmatprep.subr.mxu0 0.0
        %3054 = vmatpush1.msra.mxu0 0.0
        %3055 = vmatprep.subr.mxu0 0.0
        %3056 = vmatpush1.msra.mxu0 0.0
        %3057 = vmatprep.subr.mxu0 0.0
        %3058 = vmatpush1.msra.mxu0 0.0
        %3059 = vmatprep.subr.mxu0 0.0
        %3060 = vmatpush1.msra.mxu0 0.0
        %3061 = vmatprep.subr.mxu0 0.0
        %3062 = vmatpush1.msra.mxu0 0.0
        %3063 = vmatprep.subr.mxu0 0.0
        %3064 = vmatpush1.msra.mxu0 0.0
        %3065 = vmatprep.mubr.f32.mxu0 0.0
        %v3066 = vand.u32 %v2295, 4294901760
        %3067 = vmatmul.mubr.f32.gmra.mrb[0].mxu0 %v3066
        %v3068 = vpop.f32.mrb[0].mxu0
        %v3069 = vadd.f32 %v2968, %v3068
        %v3070 = vpop.f32.mrb[0].mxu0
        %3071 = vmatprep.mubr.f32.mxu0 0.0
        %v3072 = vand.u32 %v2298, 4294901760
        %3073 = vmatmul.mubr.f32.gmra.mrb[0].mxu0 %v3072
        %v3074 = vpop.f32.mrb[0].mxu0
        %v3075 = vadd.f32 %v2978, %v3074
        %v3076 = vpop.f32.mrb[0].mxu0
        %3077 = vdwg.mxu0
        %3078 = vmatprep.subr.mxu0 0.0
        %v3079 = vand.u32 %v1145, 4294901760
        %v3080 = vsub.f32 %v1145, %v3079
        %3081 = vmatpush1.msra.mxu0 %v3080
        %3082 = vmatprep.subr.mxu0 0.0
        %v3083 = vand.u32 %v1148, 4294901760
        %v3084 = vsub.f32 %v1148, %v3083
        %3085 = vmatpush1.msra.mxu0 %v3084
        %3086 = vmatprep.subr.mxu0 0.0
        %v3087 = vand.u32 %v1151, 4294901760
        %v3088 = vsub.f32 %v1151, %v3087
        %3089 = vmatpush1.msra.mxu0 %v3088
        %3090 = vmatprep.subr.mxu0 0.0
        %v3091 = vand.u32 %v1154, 4294901760
        %v3092 = vsub.f32 %v1154, %v3091
        %3093 = vmatpush1.msra.mxu0 %v3092
        %3094 = vmatprep.subr.mxu0 0.0
        %3095 = vmatpush1.msra.mxu0 0.0
        %3096 = vmatprep.subr.mxu0 0.0
        %3097 = vmatpush1.msra.mxu0 0.0
        %3098 = vmatprep.subr.mxu0 0.0
        %3099 = vmatpush1.msra.mxu0 0.0
        %3100 = vmatprep.subr.mxu0 0.0
        %3101 = vmatpush1.msra.mxu0 0.0
        %3102 = vmatprep.subr.mxu0 0.0
        %3103 = vmatpush1.msra.mxu0 0.0
        %3104 = vmatprep.subr.mxu0 0.0
        %3105 = vmatpush1.msra.mxu0 0.0
        %3106 = vmatprep.subr.mxu0 0.0
        %3107 = vmatpush1.msra.mxu0 0.0
        %3108 = vmatprep.subr.mxu0 0.0
        %3109 = vmatpush1.msra.mxu0 0.0
        %3110 = vmatprep.subr.mxu0 0.0
        %3111 = vmatpush1.msra.mxu0 0.0
        %3112 = vmatprep.subr.mxu0 0.0
        %3113 = vmatpush1.msra.mxu0 0.0
        %3114 = vmatprep.subr.mxu0 0.0
        %3115 = vmatpush1.msra.mxu0 0.0
        %3116 = vmatprep.subr.mxu0 0.0
        %3117 = vmatpush1.msra.mxu0 0.0
        %3118 = vmatprep.subr.mxu0 0.0
        %3119 = vmatpush1.msra.mxu0 0.0
        %3120 = vmatprep.subr.mxu0 0.0
        %3121 = vmatpush1.msra.mxu0 0.0
        %3122 = vmatprep.subr.mxu0 0.0
        %3123 = vmatpush1.msra.mxu0 0.0
        %3124 = vmatprep.subr.mxu0 0.0
        %3125 = vmatpush1.msra.mxu0 0.0
        %3126 = vmatprep.subr.mxu0 0.0
        %3127 = vmatpush1.msra.mxu0 0.0
        %3128 = vmatprep.subr.mxu0 0.0
        %3129 = vmatpush1.msra.mxu0 0.0
        %3130 = vmatprep.subr.mxu0 0.0
        %3131 = vmatpush1.msra.mxu0 0.0
        %3132 = vmatprep.subr.mxu0 0.0
        %3133 = vmatpush1.msra.mxu0 0.0
        %3134 = vmatprep.subr.mxu0 0.0
        %3135 = vmatpush1.msra.mxu0 0.0
        %3136 = vmatprep.subr.mxu0 0.0
        %3137 = vmatpush1.msra.mxu0 0.0
        %3138 = vmatprep.subr.mxu0 0.0
        %3139 = vmatpush1.msra.mxu0 0.0
        %3140 = vmatprep.subr.mxu0 0.0
        %3141 = vmatpush1.msra.mxu0 0.0
        %3142 = vmatprep.subr.mxu0 0.0
        %3143 = vmatpush1.msra.mxu0 0.0
        %3144 = vmatprep.subr.mxu0 0.0
        %3145 = vmatpush1.msra.mxu0 0.0
        %3146 = vmatprep.subr.mxu0 0.0
        %3147 = vmatpush1.msra.mxu0 0.0
        %3148 = vmatprep.subr.mxu0 0.0
        %3149 = vmatpush1.msra.mxu0 0.0
        %3150 = vmatprep.mubr.f32.mxu0 0.0
        %v3151 = vand.u32 %v2295, 4294901760
        %v3152 = vsub.f32 %v2295, %v3151
        %3153 = vmatmul.mubr.f32.gmra.mrb[0].mxu0 %v3152
        %v3154 = vpop.f32.mrb[0].mxu0
        %v3155 = vadd.f32 %v3069, %v3154
        %v3156 = vpop.f32.mrb[0].mxu0
        %3157 = vmatprep.mubr.f32.mxu0 0.0
        %v3158 = vand.u32 %v2298, 4294901760
        %v3159 = vsub.f32 %v2298, %v3158
        %3160 = vmatmul.mubr.f32.gmra.mrb[0].mxu0 %v3159
        %v3161 = vpop.f32.mrb[0].mxu0
        %v3162 = vadd.f32 %v3075, %v3161
        %v3163 = vpop.f32.mrb[0].mxu0
        %3164 = vdwg.mxu0
        %3165 = vmatprep.subr.mxu0 0.0
        %v3166 = vand.u32 %v1145, 4294901760
        %3167 = vmatpush1.msra.mxu0 %v3166
        %3168 = vmatprep.subr.mxu0 0.0
        %v3169 = vand.u32 %v1148, 4294901760
        %3170 = vmatpush1.msra.mxu0 %v3169
        %3171 = vmatprep.subr.mxu0 0.0
        %v3172 = vand.u32 %v1151, 4294901760
        %3173 = vmatpush1.msra.mxu0 %v3172
        %3174 = vmatprep.subr.mxu0 0.0
        %v3175 = vand.u32 %v1154, 4294901760
        %3176 = vmatpush1.msra.mxu0 %v3175
        %3177 = vmatprep.subr.mxu0 0.0
        %3178 = vmatpush1.msra.mxu0 0.0
        %3179 = vmatprep.subr.mxu0 0.0
        %3180 = vmatpush1.msra.mxu0 0.0
        %3181 = vmatprep.subr.mxu0 0.0
        %3182 = vmatpush1.msra.mxu0 0.0
        %3183 = vmatprep.subr.mxu0 0.0
        %3184 = vmatpush1.msra.mxu0 0.0
        %3185 = vmatprep.subr.mxu0 0.0
        %3186 = vmatpush1.msra.mxu0 0.0
        %3187 = vmatprep.subr.mxu0 0.0
        %3188 = vmatpush1.msra.mxu0 0.0
        %3189 = vmatprep.subr.mxu0 0.0
        %3190 = vmatpush1.msra.mxu0 0.0
        %3191 = vmatprep.subr.mxu0 0.0
        %3192 = vmatpush1.msra.mxu0 0.0
        %3193 = vmatprep.subr.mxu0 0.0
        %3194 = vmatpush1.msra.mxu0 0.0
        %3195 = vmatprep.subr.mxu0 0.0
        %3196 = vmatpush1.msra.mxu0 0.0
        %3197 = vmatprep.subr.mxu0 0.0
        %3198 = vmatpush1.msra.mxu0 0.0
        %3199 = vmatprep.subr.mxu0 0.0
        %3200 = vmatpush1.msra.mxu0 0.0
        %3201 = vmatprep.subr.mxu0 0.0
        %3202 = vmatpush1.msra.mxu0 0.0
        %3203 = vmatprep.subr.mxu0 0.0
        %3204 = vmatpush1.msra.mxu0 0.0
        %3205 = vmatprep.subr.mxu0 0.0
        %3206 = vmatpush1.msra.mxu0 0.0
        %3207 = vmatprep.subr.mxu0 0.0
        %3208 = vmatpush1.msra.mxu0 0.0
        %3209 = vmatprep.subr.mxu0 0.0
        %3210 = vmatpush1.msra.mxu0 0.0
        %3211 = vmatprep.subr.mxu0 0.0
        %3212 = vmatpush1.msra.mxu0 0.0
        %3213 = vmatprep.subr.mxu0 0.0
        %3214 = vmatpush1.msra.mxu0 0.0
        %3215 = vmatprep.subr.mxu0 0.0
        %3216 = vmatpush1.msra.mxu0 0.0
        %3217 = vmatprep.subr.mxu0 0.0
        %3218 = vmatpush1.msra.mxu0 0.0
        %3219 = vmatprep.subr.mxu0 0.0
        %3220 = vmatpush1.msra.mxu0 0.0
        %3221 = vmatprep.subr.mxu0 0.0
        %3222 = vmatpush1.msra.mxu0 0.0
        %3223 = vmatprep.subr.mxu0 0.0
        %3224 = vmatpush1.msra.mxu0 0.0
        %3225 = vmatprep.subr.mxu0 0.0
        %3226 = vmatpush1.msra.mxu0 0.0
        %3227 = vmatprep.subr.mxu0 0.0
        %3228 = vmatpush1.msra.mxu0 0.0
        %3229 = vmatprep.subr.mxu0 0.0
        %3230 = vmatpush1.msra.mxu0 0.0
        %3231 = vmatprep.subr.mxu0 0.0
        %3232 = vmatpush1.msra.mxu0 0.0
        %3233 = vmatprep.mubr.f32.mxu0 0.0
        %v3234 = vand.u32 %v2295, 4294901760
        %v3235 = vsub.f32 %v2295, %v3234
        %v3236 = vand.u32 %v3235, 4294901760
        %3237 = vmatmul.mubr.f32.gmra.mrb[0].mxu0 %v3236
        %v3238 = vpop.f32.mrb[0].mxu0
        %v3239 = vadd.f32 %v3155, %v3238
        %v3240 = vpop.f32.mrb[0].mxu0
        %3241 = vmatprep.mubr.f32.mxu0 0.0
        %v3242 = vand.u32 %v2298, 4294901760
        %v3243 = vsub.f32 %v2298, %v3242
        %v3244 = vand.u32 %v3243, 4294901760
        %3245 = vmatmul.mubr.f32.gmra.mrb[0].mxu0 %v3244
        %v3246 = vpop.f32.mrb[0].mxu0
        %v3247 = vadd.f32 %v3162, %v3246
        %v3248 = vpop.f32.mrb[0].mxu0
        %3249 = vdwg.mxu0
        %3250 = vmatprep.subr.mxu0 0.0
        %v3251 = vand.u32 %v1145, 4294901760
        %v3252 = vsub.f32 %v1145, %v3251
        %v3253 = vand.u32 %v3252, 4294901760
        %3254 = vmatpush1.msra.mxu0 %v3253
        %3255 = vmatprep.subr.mxu0 0.0
        %v3256 = vand.u32 %v1148, 4294901760
        %v3257 = vsub.f32 %v1148, %v3256
        %v3258 = vand.u32 %v3257, 4294901760
        %3259 = vmatpush1.msra.mxu0 %v3258
        %3260 = vmatprep.subr.mxu0 0.0
        %v3261 = vand.u32 %v1151, 4294901760
        %v3262 = vsub.f32 %v1151, %v3261
        %v3263 = vand.u32 %v3262, 4294901760
        %3264 = vmatpush1.msra.mxu0 %v3263
        %3265 = vmatprep.subr.mxu0 0.0
        %v3266 = vand.u32 %v1154, 4294901760
        %v3267 = vsub.f32 %v1154, %v3266
        %v3268 = vand.u32 %v3267, 4294901760
        %3269 = vmatpush1.msra.mxu0 %v3268
        %3270 = vmatprep.subr.mxu0 0.0
        %3271 = vmatpush1.msra.mxu0 0.0
        %3272 = vmatprep.subr.mxu0 0.0
        %3273 = vmatpush1.msra.mxu0 0.0
        %3274 = vmatprep.subr.mxu0 0.0
        %3275 = vmatpush1.msra.mxu0 0.0
        %3276 = vmatprep.subr.mxu0 0.0
        %3277 = vmatpush1.msra.mxu0 0.0
        %3278 = vmatprep.subr.mxu0 0.0
        %3279 = vmatpush1.msra.mxu0 0.0
        %3280 = vmatprep.subr.mxu0 0.0
        %3281 = vmatpush1.msra.mxu0 0.0
        %3282 = vmatprep.subr.mxu0 0.0
        %3283 = vmatpush1.msra.mxu0 0.0
        %3284 = vmatprep.subr.mxu0 0.0
        %3285 = vmatpush1.msra.mxu0 0.0
        %3286 = vmatprep.subr.mxu0 0.0
        %3287 = vmatpush1.msra.mxu0 0.0
        %3288 = vmatprep.subr.mxu0 0.0
        %3289 = vmatpush1.msra.mxu0 0.0
        %3290 = vmatprep.subr.mxu0 0.0
        %3291 = vmatpush1.msra.mxu0 0.0
        %3292 = vmatprep.subr.mxu0 0.0
        %3293 = vmatpush1.msra.mxu0 0.0
        %3294 = vmatprep.subr.mxu0 0.0
        %3295 = vmatpush1.msra.mxu0 0.0
        %3296 = vmatprep.subr.mxu0 0.0
        %3297 = vmatpush1.msra.mxu0 0.0
        %3298 = vmatprep.subr.mxu0 0.0
        %3299 = vmatpush1.msra.mxu0 0.0
        %3300 = vmatprep.subr.mxu0 0.0
        %3301 = vmatpush1.msra.mxu0 0.0
        %3302 = vmatprep.subr.mxu0 0.0
        %3303 = vmatpush1.msra.mxu0 0.0
        %3304 = vmatprep.subr.mxu0 0.0
        %3305 = vmatpush1.msra.mxu0 0.0
        %3306 = vmatprep.subr.mxu0 0.0
        %3307 = vmatpush1.msra.mxu0 0.0
        %3308 = vmatprep.subr.mxu0 0.0
        %3309 = vmatpush1.msra.mxu0 0.0
        %3310 = vmatprep.subr.mxu0 0.0
        %3311 = vmatpush1.msra.mxu0 0.0
        %3312 = vmatprep.subr.mxu0 0.0
        %3313 = vmatpush1.msra.mxu0 0.0
        %3314 = vmatprep.subr.mxu0 0.0
        %3315 = vmatpush1.msra.mxu0 0.0
        %3316 = vmatprep.subr.mxu0 0.0
        %3317 = vmatpush1.msra.mxu0 0.0
        %3318 = vmatprep.subr.mxu0 0.0
        %3319 = vmatpush1.msra.mxu0 0.0
        %3320 = vmatprep.subr.mxu0 0.0
        %3321 = vmatpush1.msra.mxu0 0.0
        %3322 = vmatprep.subr.mxu0 0.0
        %3323 = vmatpush1.msra.mxu0 0.0
        %3324 = vmatprep.subr.mxu0 0.0
        %3325 = vmatpush1.msra.mxu0 0.0
        %3326 = vmatprep.mubr.f32.mxu0 0.0
        %v3327 = vand.u32 %v2295, 4294901760
        %3328 = vmatmul.mubr.f32.gmra.mrb[0].mxu0 %v3327
        %v3329 = vpop.f32.mrb[0].mxu0
        %v3330 = vadd.f32 %v3239, %v3329
        %v3331 = vpop.f32.mrb[0].mxu0
        %3332 = vmatprep.mubr.f32.mxu0 0.0
        %v3333 = vand.u32 %v2298, 4294901760
        %3334 = vmatmul.mubr.f32.gmra.mrb[0].mxu0 %v3333
        %v3335 = vpop.f32.mrb[0].mxu0
        %v3336 = vadd.f32 %v3247, %v3335
        %v3337 = vpop.f32.mrb[0].mxu0
        %3338 = vdwg.mxu0
        %3339 = vmatprep.subr.mxu0 0.0
        %v3340 = vand.u32 %v1145, 4294901760
        %3341 = vmatpush1.msra.mxu0 %v3340
        %3342 = vmatprep.subr.mxu0 0.0
        %v3343 = vand.u32 %v1148, 4294901760
        %3344 = vmatpush1.msra.mxu0 %v3343
        %3345 = vmatprep.subr.mxu0 0.0
        %v3346 = vand.u32 %v1151, 4294901760
        %3347 = vmatpush1.msra.mxu0 %v3346
        %3348 = vmatprep.subr.mxu0 0.0
        %v3349 = vand.u32 %v1154, 4294901760
        %3350 = vmatpush1.msra.mxu0 %v3349
        %3351 = vmatprep.subr.mxu0 0.0
        %3352 = vmatpush1.msra.mxu0 0.0
        %3353 = vmatprep.subr.mxu0 0.0
        %3354 = vmatpush1.msra.mxu0 0.0
        %3355 = vmatprep.subr.mxu0 0.0
        %3356 = vmatpush1.msra.mxu0 0.0
        %3357 = vmatprep.subr.mxu0 0.0
        %3358 = vmatpush1.msra.mxu0 0.0
        %3359 = vmatprep.subr.mxu0 0.0
        %3360 = vmatpush1.msra.mxu0 0.0
        %3361 = vmatprep.subr.mxu0 0.0
        %3362 = vmatpush1.msra.mxu0 0.0
        %3363 = vmatprep.subr.mxu0 0.0
        %3364 = vmatpush1.msra.mxu0 0.0
        %3365 = vmatprep.subr.mxu0 0.0
        %3366 = vmatpush1.msra.mxu0 0.0
        %3367 = vmatprep.subr.mxu0 0.0
        %3368 = vmatpush1.msra.mxu0 0.0
        %3369 = vmatprep.subr.mxu0 0.0
        %3370 = vmatpush1.msra.mxu0 0.0
        %3371 = vmatprep.subr.mxu0 0.0
        %3372 = vmatpush1.msra.mxu0 0.0
        %3373 = vmatprep.subr.mxu0 0.0
        %3374 = vmatpush1.msra.mxu0 0.0
        %3375 = vmatprep.subr.mxu0 0.0
        %3376 = vmatpush1.msra.mxu0 0.0
        %3377 = vmatprep.subr.mxu0 0.0
        %3378 = vmatpush1.msra.mxu0 0.0
        %3379 = vmatprep.subr.mxu0 0.0
        %3380 = vmatpush1.msra.mxu0 0.0
        %3381 = vmatprep.subr.mxu0 0.0
        %3382 = vmatpush1.msra.mxu0 0.0
        %3383 = vmatprep.subr.mxu0 0.0
        %3384 = vmatpush1.msra.mxu0 0.0
        %3385 = vmatprep.subr.mxu0 0.0
        %3386 = vmatpush1.msra.mxu0 0.0
        %3387 = vmatprep.subr.mxu0 0.0
        %3388 = vmatpush1.msra.mxu0 0.0
        %3389 = vmatprep.subr.mxu0 0.0
        %3390 = vmatpush1.msra.mxu0 0.0
        %3391 = vmatprep.subr.mxu0 0.0
        %3392 = vmatpush1.msra.mxu0 0.0
        %3393 = vmatprep.subr.mxu0 0.0
        %3394 = vmatpush1.msra.mxu0 0.0
        %3395 = vmatprep.subr.mxu0 0.0
        %3396 = vmatpush1.msra.mxu0 0.0
        %3397 = vmatprep.subr.mxu0 0.0
        %3398 = vmatpush1.msra.mxu0 0.0
        %3399 = vmatprep.subr.mxu0 0.0
        %3400 = vmatpush1.msra.mxu0 0.0
        %3401 = vmatprep.subr.mxu0 0.0
        %3402 = vmatpush1.msra.mxu0 0.0
        %3403 = vmatprep.subr.mxu0 0.0
        %3404 = vmatpush1.msra.mxu0 0.0
        %3405 = vmatprep.subr.mxu0 0.0
        %3406 = vmatpush1.msra.mxu0 0.0
        %3407 = vmatprep.mubr.f32.mxu0 0.0
        %v3408 = vand.u32 %v2295, 4294901760
        %3409 = vmatmul.mubr.f32.gmra.mrb[0].mxu0 %v3408
        %v3410 = vpop.f32.mrb[0].mxu0
        %v3411 = vadd.f32 %v3330, %v3410
        %v3412 = vpop.f32.mrb[0].mxu0
        %3413 = vmatprep.mubr.f32.mxu0 0.0
        %v3414 = vand.u32 %v2298, 4294901760
        %3415 = vmatmul.mubr.f32.gmra.mrb[0].mxu0 %v3414
        %v3416 = vpop.f32.mrb[0].mxu0
        %v3417 = vadd.f32 %v3336, %v3416
        %v3418 = vpop.f32.mrb[0].mxu0
        %3419 = vdwg.mxu0
        %s3420 = scalar_lea.vmem [#allocation2], 96
        %v3421 = vld [vmem:[%s3420] sm:$0xff]
        %v3422 = vld [vmem:[%s3420 + $0x8] sm:$0xff]
        %v3423 = vld [vmem:[%s3420 + $0x10] sm:$0xff]
        %v3424 = vld [vmem:[%s3420 + $0x18] sm:$0xff]
        %v3425 = vld [vmem:[%s3420 + $0x20] sm:$0xff]
        %v3426 = vld [vmem:[%s3420 + $0x28] sm:$0xff]
        %v3427 = vld [vmem:[%s3420 + $0x30] sm:$0xff]
        %v3428 = vld [vmem:[%s3420 + $0x38] sm:$0xff]
        %v3429 = vld [vmem:[%s3420 + $0x40] sm:$0xff]
        %v3430 = vld [vmem:[%s3420 + $0x48] sm:$0xff]
        %v3431 = vld [vmem:[%s3420 + $0x50] sm:$0xff]
        %v3432 = vld [vmem:[%s3420 + $0x58] sm:$0xff]
        %v3434 = vsel %vm1167, %v1109, 0
        %v3437 = vsel %vm1167, %v1115, 0
        %v3439 = vand.u32 %v3422, 4294901760
        %3440 = vmatprep.subr.mxu0 %v3439
        %v3441 = vand.u32 %v3421, 4294901760
        %3442 = vmatpush1.msra.mxu0 %v3441
        %v3443 = vand.u32 %v3425, 4294901760
        %3444 = vmatprep.subr.mxu0 %v3443
        %v3445 = vand.u32 %v3424, 4294901760
        %3446 = vmatpush1.msra.mxu0 %v3445
        %v3447 = vand.u32 %v3428, 4294901760
        %3448 = vmatprep.subr.mxu0 %v3447
        %v3449 = vand.u32 %v3427, 4294901760
        %3450 = vmatpush1.msra.mxu0 %v3449
        %v3451 = vand.u32 %v3431, 4294901760
        %3452 = vmatprep.subr.mxu0 %v3451
        %v3453 = vand.u32 %v3430, 4294901760
        %3454 = vmatpush1.msra.mxu0 %v3453
        %3455 = vmatprep.subr.mxu0 0.0
        %3456 = vmatpush1.msra.mxu0 0.0
        %3457 = vmatprep.subr.mxu0 0.0
        %3458 = vmatpush1.msra.mxu0 0.0
        %3459 = vmatprep.subr.mxu0 0.0
        %3460 = vmatpush1.msra.mxu0 0.0
        %3461 = vmatprep.subr.mxu0 0.0
        %3462 = vmatpush1.msra.mxu0 0.0
        %3463 = vmatprep.subr.mxu0 0.0
        %3464 = vmatpush1.msra.mxu0 0.0
        %3465 = vmatprep.subr.mxu0 0.0
        %3466 = vmatpush1.msra.mxu0 0.0
        %3467 = vmatprep.subr.mxu0 0.0
        %3468 = vmatpush1.msra.mxu0 0.0
        %3469 = vmatprep.subr.mxu0 0.0
        %3470 = vmatpush1.msra.mxu0 0.0
        %3471 = vmatprep.subr.mxu0 0.0
        %3472 = vmatpush1.msra.mxu0 0.0
        %3473 = vmatprep.subr.mxu0 0.0
        %3474 = vmatpush1.msra.mxu0 0.0
        %3475 = vmatprep.subr.mxu0 0.0
        %3476 = vmatpush1.msra.mxu0 0.0
        %3477 = vmatprep.subr.mxu0 0.0
        %3478 = vmatpush1.msra.mxu0 0.0
        %3479 = vmatprep.subr.mxu0 0.0
        %3480 = vmatpush1.msra.mxu0 0.0
        %3481 = vmatprep.subr.mxu0 0.0
        %3482 = vmatpush1.msra.mxu0 0.0
        %3483 = vmatprep.subr.mxu0 0.0
        %3484 = vmatpush1.msra.mxu0 0.0
        %3485 = vmatprep.subr.mxu0 0.0
        %3486 = vmatpush1.msra.mxu0 0.0
        %3487 = vmatprep.subr.mxu0 0.0
        %3488 = vmatpush1.msra.mxu0 0.0
        %3489 = vmatprep.subr.mxu0 0.0
        %3490 = vmatpush1.msra.mxu0 0.0
        %3491 = vmatprep.subr.mxu0 0.0
        %3492 = vmatpush1.msra.mxu0 0.0
        %3493 = vmatprep.subr.mxu0 0.0
        %3494 = vmatpush1.msra.mxu0 0.0
        %3495 = vmatprep.subr.mxu0 0.0
        %3496 = vmatpush1.msra.mxu0 0.0
        %3497 = vmatprep.subr.mxu0 0.0
        %3498 = vmatpush1.msra.mxu0 0.0
        %3499 = vmatprep.subr.mxu0 0.0
        %3500 = vmatpush1.msra.mxu0 0.0
        %3501 = vmatprep.subr.mxu0 0.0
        %3502 = vmatpush1.msra.mxu0 0.0
        %3503 = vmatprep.subr.mxu0 0.0
        %3504 = vmatpush1.msra.mxu0 0.0
        %3505 = vmatprep.subr.mxu0 0.0
        %3506 = vmatpush1.msra.mxu0 0.0
        %3507 = vmatprep.subr.mxu0 0.0
        %3508 = vmatpush1.msra.mxu0 0.0
        %3509 = vmatprep.subr.mxu0 0.0
        %3510 = vmatpush1.msra.mxu0 0.0
        %3511 = vmatprep.mubr.f32.mxu0 0.0
        %v3512 = vand.u32 %v3434, 4294901760
        %v3513 = vsub.f32 %v3434, %v3512
        %v3514 = vand.u32 %v3513, 4294901760
        %v3515 = vsub.f32 %v3513, %v3514
        %v3516 = vand.u32 %v3515, 4294901760
        %3517 = vmatmul.mubr.f32.gmra.mrb[0].mxu0 %v3516
        %v3518 = vpop.f32.mrb[0].mxu0
        %v3519 = vadd.f32 0.0, %v3518
        %v3520 = vpop.f32.mrb[0].mxu0
        %v3521 = vadd.f32 0.0, %v3520
        %3522 = vmatprep.mubr.f32.mxu0 0.0
        %v3523 = vand.u32 %v3437, 4294901760
        %v3524 = vsub.f32 %v3437, %v3523
        %v3525 = vand.u32 %v3524, 4294901760
        %v3526 = vsub.f32 %v3524, %v3525
        %v3527 = vand.u32 %v3526, 4294901760
        %3528 = vmatmul.mubr.f32.gmra.mrb[0].mxu0 %v3527
        %v3529 = vpop.f32.mrb[0].mxu0
        %v3530 = vadd.f32 0.0, %v3529
        %v3531 = vpop.f32.mrb[0].mxu0
        %v3532 = vadd.f32 0.0, %v3531
        %3533 = vdwg.mxu0
        %v3534 = vand.u32 %v3422, 4294901760
        %v3535 = vsub.f32 %v3422, %v3534
        %v3536 = vand.u32 %v3535, 4294901760
        %v3537 = vsub.f32 %v3535, %v3536
        %v3538 = vand.u32 %v3537, 4294901760
        %3539 = vmatprep.subr.mxu0 %v3538
        %v3540 = vand.u32 %v3421, 4294901760
        %v3541 = vsub.f32 %v3421, %v3540
        %v3542 = vand.u32 %v3541, 4294901760
        %v3543 = vsub.f32 %v3541, %v3542
        %v3544 = vand.u32 %v3543, 4294901760
        %3545 = vmatpush1.msra.mxu0 %v3544
        %v3546 = vand.u32 %v3425, 4294901760
        %v3547 = vsub.f32 %v3425, %v3546
        %v3548 = vand.u32 %v3547, 4294901760
        %v3549 = vsub.f32 %v3547, %v3548
        %v3550 = vand.u32 %v3549, 4294901760
        %3551 = vmatprep.subr.mxu0 %v3550
        %v3552 = vand.u32 %v3424, 4294901760
        %v3553 = vsub.f32 %v3424, %v3552
        %v3554 = vand.u32 %v3553, 4294901760
        %v3555 = vsub.f32 %v3553, %v3554
        %v3556 = vand.u32 %v3555, 4294901760
        %3557 = vmatpush1.msra.mxu0 %v3556
        %v3558 = vand.u32 %v3428, 4294901760
        %v3559 = vsub.f32 %v3428, %v3558
        %v3560 = vand.u32 %v3559, 4294901760
        %v3561 = vsub.f32 %v3559, %v3560
        %v3562 = vand.u32 %v3561, 4294901760
        %3563 = vmatprep.subr.mxu0 %v3562
        %v3564 = vand.u32 %v3427, 4294901760
        %v3565 = vsub.f32 %v3427, %v3564
        %v3566 = vand.u32 %v3565, 4294901760
        %v3567 = vsub.f32 %v3565, %v3566
        %v3568 = vand.u32 %v3567, 4294901760
        %3569 = vmatpush1.msra.mxu0 %v3568
        %v3570 = vand.u32 %v3431, 4294901760
        %v3571 = vsub.f32 %v3431, %v3570
        %v3572 = vand.u32 %v3571, 4294901760
        %v3573 = vsub.f32 %v3571, %v3572
        %v3574 = vand.u32 %v3573, 4294901760
        %3575 = vmatprep.subr.mxu0 %v3574
        %v3576 = vand.u32 %v3430, 4294901760
        %v3577 = vsub.f32 %v3430, %v3576
        %v3578 = vand.u32 %v3577, 4294901760
        %v3579 = vsub.f32 %v3577, %v3578
        %v3580 = vand.u32 %v3579, 4294901760
        %3581 = vmatpush1.msra.mxu0 %v3580
        %3582 = vmatprep.subr.mxu0 0.0
        %3583 = vmatpush1.msra.mxu0 0.0
        %3584 = vmatprep.subr.mxu0 0.0
        %3585 = vmatpush1.msra.mxu0 0.0
        %3586 = vmatprep.subr.mxu0 0.0
        %3587 = vmatpush1.msra.mxu0 0.0
        %3588 = vmatprep.subr.mxu0 0.0
        %3589 = vmatpush1.msra.mxu0 0.0
        %3590 = vmatprep.subr.mxu0 0.0
        %3591 = vmatpush1.msra.mxu0 0.0
        %3592 = vmatprep.subr.mxu0 0.0
        %3593 = vmatpush1.msra.mxu0 0.0
        %3594 = vmatprep.subr.mxu0 0.0
        %3595 = vmatpush1.msra.mxu0 0.0
        %3596 = vmatprep.subr.mxu0 0.0
        %3597 = vmatpush1.msra.mxu0 0.0
        %3598 = vmatprep.subr.mxu0 0.0
        %3599 = vmatpush1.msra.mxu0 0.0
        %3600 = vmatprep.subr.mxu0 0.0
        %3601 = vmatpush1.msra.mxu0 0.0
        %3602 = vmatprep.subr.mxu0 0.0
        %3603 = vmatpush1.msra.mxu0 0.0
        %3604 = vmatprep.subr.mxu0 0.0
        %3605 = vmatpush1.msra.mxu0 0.0
        %3606 = vmatprep.subr.mxu0 0.0
        %3607 = vmatpush1.msra.mxu0 0.0
        %3608 = vmatprep.subr.mxu0 0.0
        %3609 = vmatpush1.msra.mxu0 0.0
        %3610 = vmatprep.subr.mxu0 0.0
        %3611 = vmatpush1.msra.mxu0 0.0
        %3612 = vmatprep.subr.mxu0 0.0
        %3613 = vmatpush1.msra.mxu0 0.0
        %3614 = vmatprep.subr.mxu0 0.0
        %3615 = vmatpush1.msra.mxu0 0.0
        %3616 = vmatprep.subr.mxu0 0.0
        %3617 = vmatpush1.msra.mxu0 0.0
        %3618 = vmatprep.subr.mxu0 0.0
        %3619 = vmatpush1.msra.mxu0 0.0
        %3620 = vmatprep.subr.mxu0 0.0
        %3621 = vmatpush1.msra.mxu0 0.0
        %3622 = vmatprep.subr.mxu0 0.0
        %3623 = vmatpush1.msra.mxu0 0.0
        %3624 = vmatprep.subr.mxu0 0.0
        %3625 = vmatpush1.msra.mxu0 0.0
        %3626 = vmatprep.subr.mxu0 0.0
        %3627 = vmatpush1.msra.mxu0 0.0
        %3628 = vmatprep.subr.mxu0 0.0
        %3629 = vmatpush1.msra.mxu0 0.0
        %3630 = vmatprep.subr.mxu0 0.0
        %3631 = vmatpush1.msra.mxu0 0.0
        %3632 = vmatprep.subr.mxu0 0.0
        %3633 = vmatpush1.msra.mxu0 0.0
        %3634 = vmatprep.subr.mxu0 0.0
        %3635 = vmatpush1.msra.mxu0 0.0
        %3636 = vmatprep.subr.mxu0 0.0
        %3637 = vmatpush1.msra.mxu0 0.0
        %3638 = vmatprep.mubr.f32.mxu0 0.0
        %v3639 = vand.u32 %v3434, 4294901760
        %3640 = vmatmul.mubr.f32.gmra.mrb[0].mxu0 %v3639
        %v3641 = vpop.f32.mrb[0].mxu0
        %v3642 = vadd.f32 %v3519, %v3641
        %v3643 = vpop.f32.mrb[0].mxu0
        %v3644 = vadd.f32 %v3521, %v3643
        %3645 = vmatprep.mubr.f32.mxu0 0.0
        %v3646 = vand.u32 %v3437, 4294901760
        %3647 = vmatmul.mubr.f32.gmra.mrb[0].mxu0 %v3646
        %v3648 = vpop.f32.mrb[0].mxu0
        %v3649 = vadd.f32 %v3530, %v3648
        %v3650 = vpop.f32.mrb[0].mxu0
        %v3651 = vadd.f32 %v3532, %v3650
        %3652 = vdwg.mxu0
        %v3653 = vand.u32 %v3422, 4294901760
        %v3654 = vsub.f32 %v3422, %v3653
        %3655 = vmatprep.subr.mxu0 %v3654
        %v3656 = vand.u32 %v3421, 4294901760
        %v3657 = vsub.f32 %v3421, %v3656
        %3658 = vmatpush1.msra.mxu0 %v3657
        %v3659 = vand.u32 %v3425, 4294901760
        %v3660 = vsub.f32 %v3425, %v3659
        %3661 = vmatprep.subr.mxu0 %v3660
        %v3662 = vand.u32 %v3424, 4294901760
        %v3663 = vsub.f32 %v3424, %v3662
        %3664 = vmatpush1.msra.mxu0 %v3663
        %v3665 = vand.u32 %v3428, 4294901760
        %v3666 = vsub.f32 %v3428, %v3665
        %3667 = vmatprep.subr.mxu0 %v3666
        %v3668 = vand.u32 %v3427, 4294901760
        %v3669 = vsub.f32 %v3427, %v3668
        %3670 = vmatpush1.msra.mxu0 %v3669
        %v3671 = vand.u32 %v3431, 4294901760
        %v3672 = vsub.f32 %v3431, %v3671
        %3673 = vmatprep.subr.mxu0 %v3672
        %v3674 = vand.u32 %v3430, 4294901760
        %v3675 = vsub.f32 %v3430, %v3674
        %3676 = vmatpush1.msra.mxu0 %v3675
        %3677 = vmatprep.subr.mxu0 0.0
        %3678 = vmatpush1.msra.mxu0 0.0
        %3679 = vmatprep.subr.mxu0 0.0
        %3680 = vmatpush1.msra.mxu0 0.0
        %3681 = vmatprep.subr.mxu0 0.0
        %3682 = vmatpush1.msra.mxu0 0.0
        %3683 = vmatprep.subr.mxu0 0.0
        %3684 = vmatpush1.msra.mxu0 0.0
        %3685 = vmatprep.subr.mxu0 0.0
        %3686 = vmatpush1.msra.mxu0 0.0
        %3687 = vmatprep.subr.mxu0 0.0
        %3688 = vmatpush1.msra.mxu0 0.0
        %3689 = vmatprep.subr.mxu0 0.0
        %3690 = vmatpush1.msra.mxu0 0.0
        %3691 = vmatprep.subr.mxu0 0.0
        %3692 = vmatpush1.msra.mxu0 0.0
        %3693 = vmatprep.subr.mxu0 0.0
        %3694 = vmatpush1.msra.mxu0 0.0
        %3695 = vmatprep.subr.mxu0 0.0
        %3696 = vmatpush1.msra.mxu0 0.0
        %3697 = vmatprep.subr.mxu0 0.0
        %3698 = vmatpush1.msra.mxu0 0.0
        %3699 = vmatprep.subr.mxu0 0.0
        %3700 = vmatpush1.msra.mxu0 0.0
        %3701 = vmatprep.subr.mxu0 0.0
        %3702 = vmatpush1.msra.mxu0 0.0
        %3703 = vmatprep.subr.mxu0 0.0
        %3704 = vmatpush1.msra.mxu0 0.0
        %3705 = vmatprep.subr.mxu0 0.0
        %3706 = vmatpush1.msra.mxu0 0.0
        %3707 = vmatprep.subr.mxu0 0.0
        %3708 = vmatpush1.msra.mxu0 0.0
        %3709 = vmatprep.subr.mxu0 0.0
        %3710 = vmatpush1.msra.mxu0 0.0
        %3711 = vmatprep.subr.mxu0 0.0
        %3712 = vmatpush1.msra.mxu0 0.0
        %3713 = vmatprep.subr.mxu0 0.0
        %3714 = vmatpush1.msra.mxu0 0.0
        %3715 = vmatprep.subr.mxu0 0.0
        %3716 = vmatpush1.msra.mxu0 0.0
        %3717 = vmatprep.subr.mxu0 0.0
        %3718 = vmatpush1.msra.mxu0 0.0
        %3719 = vmatprep.subr.mxu0 0.0
        %3720 = vmatpush1.msra.mxu0 0.0
        %3721 = vmatprep.subr.mxu0 0.0
        %3722 = vmatpush1.msra.mxu0 0.0
        %3723 = vmatprep.subr.mxu0 0.0
        %3724 = vmatpush1.msra.mxu0 0.0
        %3725 = vmatprep.subr.mxu0 0.0
        %3726 = vmatpush1.msra.mxu0 0.0
        %3727 = vmatprep.subr.mxu0 0.0
        %3728 = vmatpush1.msra.mxu0 0.0
        %3729 = vmatprep.subr.mxu0 0.0
        %3730 = vmatpush1.msra.mxu0 0.0
        %3731 = vmatprep.subr.mxu0 0.0
        %3732 = vmatpush1.msra.mxu0 0.0
        %3733 = vmatprep.mubr.f32.mxu0 0.0
        %v3734 = vand.u32 %v3434, 4294901760
        %v3735 = vsub.f32 %v3434, %v3734
        %3736 = vmatmul.mubr.f32.gmra.mrb[0].mxu0 %v3735
        %v3737 = vpop.f32.mrb[0].mxu0
        %v3738 = vadd.f32 %v3642, %v3737
        %v3739 = vpop.f32.mrb[0].mxu0
        %v3740 = vadd.f32 %v3644, %v3739
        %3741 = vmatprep.mubr.f32.mxu0 0.0
        %v3742 = vand.u32 %v3437, 4294901760
        %v3743 = vsub.f32 %v3437, %v3742
        %3744 = vmatmul.mubr.f32.gmra.mrb[0].mxu0 %v3743
        %v3745 = vpop.f32.mrb[0].mxu0
        %v3746 = vadd.f32 %v3649, %v3745
        %v3747 = vpop.f32.mrb[0].mxu0
        %v3748 = vadd.f32 %v3651, %v3747
        %3749 = vdwg.mxu0
        %v3750 = vand.u32 %v3422, 4294901760
        %3751 = vmatprep.subr.mxu0 %v3750
        %v3752 = vand.u32 %v3421, 4294901760
        %3753 = vmatpush1.msra.mxu0 %v3752
        %v3754 = vand.u32 %v3425, 4294901760
        %3755 = vmatprep.subr.mxu0 %v3754
        %v3756 = vand.u32 %v3424, 4294901760
        %3757 = vmatpush1.msra.mxu0 %v3756
        %v3758 = vand.u32 %v3428, 4294901760
        %3759 = vmatprep.subr.mxu0 %v3758
        %v3760 = vand.u32 %v3427, 4294901760
        %3761 = vmatpush1.msra.mxu0 %v3760
        %v3762 = vand.u32 %v3431, 4294901760
        %3763 = vmatprep.subr.mxu0 %v3762
        %v3764 = vand.u32 %v3430, 4294901760
        %3765 = vmatpush1.msra.mxu0 %v3764
        %3766 = vmatprep.subr.mxu0 0.0
        %3767 = vmatpush1.msra.mxu0 0.0
        %3768 = vmatprep.subr.mxu0 0.0
        %3769 = vmatpush1.msra.mxu0 0.0
        %3770 = vmatprep.subr.mxu0 0.0
        %3771 = vmatpush1.msra.mxu0 0.0
        %3772 = vmatprep.subr.mxu0 0.0
        %3773 = vmatpush1.msra.mxu0 0.0
        %3774 = vmatprep.subr.mxu0 0.0
        %3775 = vmatpush1.msra.mxu0 0.0
        %3776 = vmatprep.subr.mxu0 0.0
        %3777 = vmatpush1.msra.mxu0 0.0
        %3778 = vmatprep.subr.mxu0 0.0
        %3779 = vmatpush1.msra.mxu0 0.0
        %3780 = vmatprep.subr.mxu0 0.0
        %3781 = vmatpush1.msra.mxu0 0.0
        %3782 = vmatprep.subr.mxu0 0.0
        %3783 = vmatpush1.msra.mxu0 0.0
        %3784 = vmatprep.subr.mxu0 0.0
        %3785 = vmatpush1.msra.mxu0 0.0
        %3786 = vmatprep.subr.mxu0 0.0
        %3787 = vmatpush1.msra.mxu0 0.0
        %3788 = vmatprep.subr.mxu0 0.0
        %3789 = vmatpush1.msra.mxu0 0.0
        %3790 = vmatprep.subr.mxu0 0.0
        %3791 = vmatpush1.msra.mxu0 0.0
        %3792 = vmatprep.subr.mxu0 0.0
        %3793 = vmatpush1.msra.mxu0 0.0
        %3794 = vmatprep.subr.mxu0 0.0
        %3795 = vmatpush1.msra.mxu0 0.0
        %3796 = vmatprep.subr.mxu0 0.0
        %3797 = vmatpush1.msra.mxu0 0.0
        %3798 = vmatprep.subr.mxu0 0.0
        %3799 = vmatpush1.msra.mxu0 0.0
        %3800 = vmatprep.subr.mxu0 0.0
        %3801 = vmatpush1.msra.mxu0 0.0
        %3802 = vmatprep.subr.mxu0 0.0
        %3803 = vmatpush1.msra.mxu0 0.0
        %3804 = vmatprep.subr.mxu0 0.0
        %3805 = vmatpush1.msra.mxu0 0.0
        %3806 = vmatprep.subr.mxu0 0.0
        %3807 = vmatpush1.msra.mxu0 0.0
        %3808 = vmatprep.subr.mxu0 0.0
        %3809 = vmatpush1.msra.mxu0 0.0
        %3810 = vmatprep.subr.mxu0 0.0
        %3811 = vmatpush1.msra.mxu0 0.0
        %3812 = vmatprep.subr.mxu0 0.0
        %3813 = vmatpush1.msra.mxu0 0.0
        %3814 = vmatprep.subr.mxu0 0.0
        %3815 = vmatpush1.msra.mxu0 0.0
        %3816 = vmatprep.subr.mxu0 0.0
        %3817 = vmatpush1.msra.mxu0 0.0
        %3818 = vmatprep.subr.mxu0 0.0
        %3819 = vmatpush1.msra.mxu0 0.0
        %3820 = vmatprep.subr.mxu0 0.0
        %3821 = vmatpush1.msra.mxu0 0.0
        %3822 = vmatprep.mubr.f32.mxu0 0.0
        %v3823 = vand.u32 %v3434, 4294901760
        %v3824 = vsub.f32 %v3434, %v3823
        %v3825 = vand.u32 %v3824, 4294901760
        %3826 = vmatmul.mubr.f32.gmra.mrb[0].mxu0 %v3825
        %v3827 = vpop.f32.mrb[0].mxu0
        %v3828 = vadd.f32 %v3738, %v3827
        %v3829 = vpop.f32.mrb[0].mxu0
        %v3830 = vadd.f32 %v3740, %v3829
        %3831 = vmatprep.mubr.f32.mxu0 0.0
        %v3832 = vand.u32 %v3437, 4294901760
        %v3833 = vsub.f32 %v3437, %v3832
        %v3834 = vand.u32 %v3833, 4294901760
        %3835 = vmatmul.mubr.f32.gmra.mrb[0].mxu0 %v3834
        %v3836 = vpop.f32.mrb[0].mxu0
        %v3837 = vadd.f32 %v3746, %v3836
        %v3838 = vpop.f32.mrb[0].mxu0
        %v3839 = vadd.f32 %v3748, %v3838
        %3840 = vdwg.mxu0
        %v3841 = vand.u32 %v3422, 4294901760
        %v3842 = vsub.f32 %v3422, %v3841
        %v3843 = vand.u32 %v3842, 4294901760
        %3844 = vmatprep.subr.mxu0 %v3843
        %v3845 = vand.u32 %v3421, 4294901760
        %v3846 = vsub.f32 %v3421, %v3845
        %v3847 = vand.u32 %v3846, 4294901760
        %3848 = vmatpush1.msra.mxu0 %v3847
        %v3849 = vand.u32 %v3425, 4294901760
        %v3850 = vsub.f32 %v3425, %v3849
        %v3851 = vand.u32 %v3850, 4294901760
        %3852 = vmatprep.subr.mxu0 %v3851
        %v3853 = vand.u32 %v3424, 4294901760
        %v3854 = vsub.f32 %v3424, %v3853
        %v3855 = vand.u32 %v3854, 4294901760
        %3856 = vmatpush1.msra.mxu0 %v3855
        %v3857 = vand.u32 %v3428, 4294901760
        %v3858 = vsub.f32 %v3428, %v3857
        %v3859 = vand.u32 %v3858, 4294901760
        %3860 = vmatprep.subr.mxu0 %v3859
        %v3861 = vand.u32 %v3427, 4294901760
        %v3862 = vsub.f32 %v3427, %v3861
        %v3863 = vand.u32 %v3862, 4294901760
        %3864 = vmatpush1.msra.mxu0 %v3863
        %v3865 = vand.u32 %v3431, 4294901760
        %v3866 = vsub.f32 %v3431, %v3865
        %v3867 = vand.u32 %v3866, 4294901760
        %3868 = vmatprep.subr.mxu0 %v3867
        %v3869 = vand.u32 %v3430, 4294901760
        %v3870 = vsub.f32 %v3430, %v3869
        %v3871 = vand.u32 %v3870, 4294901760
        %3872 = vmatpush1.msra.mxu0 %v3871
        %3873 = vmatprep.subr.mxu0 0.0
        %3874 = vmatpush1.msra.mxu0 0.0
        %3875 = vmatprep.subr.mxu0 0.0
        %3876 = vmatpush1.msra.mxu0 0.0
        %3877 = vmatprep.subr.mxu0 0.0
        %3878 = vmatpush1.msra.mxu0 0.0
        %3879 = vmatprep.subr.mxu0 0.0
        %3880 = vmatpush1.msra.mxu0 0.0
        %3881 = vmatprep.subr.mxu0 0.0
        %3882 = vmatpush1.msra.mxu0 0.0
        %3883 = vmatprep.subr.mxu0 0.0
        %3884 = vmatpush1.msra.mxu0 0.0
        %3885 = vmatprep.subr.mxu0 0.0
        %3886 = vmatpush1.msra.mxu0 0.0
        %3887 = vmatprep.subr.mxu0 0.0
        %3888 = vmatpush1.msra.mxu0 0.0
        %3889 = vmatprep.subr.mxu0 0.0
        %3890 = vmatpush1.msra.mxu0 0.0
        %3891 = vmatprep.subr.mxu0 0.0
        %3892 = vmatpush1.msra.mxu0 0.0
        %3893 = vmatprep.subr.mxu0 0.0
        %3894 = vmatpush1.msra.mxu0 0.0
        %3895 = vmatprep.subr.mxu0 0.0
        %3896 = vmatpush1.msra.mxu0 0.0
        %3897 = vmatprep.subr.mxu0 0.0
        %3898 = vmatpush1.msra.mxu0 0.0
        %3899 = vmatprep.subr.mxu0 0.0
        %3900 = vmatpush1.msra.mxu0 0.0
        %3901 = vmatprep.subr.mxu0 0.0
        %3902 = vmatpush1.msra.mxu0 0.0
        %3903 = vmatprep.subr.mxu0 0.0
        %3904 = vmatpush1.msra.mxu0 0.0
        %3905 = vmatprep.subr.mxu0 0.0
        %3906 = vmatpush1.msra.mxu0 0.0
        %3907 = vmatprep.subr.mxu0 0.0
        %3908 = vmatpush1.msra.mxu0 0.0
        %3909 = vmatprep.subr.mxu0 0.0
        %3910 = vmatpush1.msra.mxu0 0.0
        %3911 = vmatprep.subr.mxu0 0.0
        %3912 = vmatpush1.msra.mxu0 0.0
        %3913 = vmatprep.subr.mxu0 0.0
        %3914 = vmatpush1.msra.mxu0 0.0
        %3915 = vmatprep.subr.mxu0 0.0
        %3916 = vmatpush1.msra.mxu0 0.0
        %3917 = vmatprep.subr.mxu0 0.0
        %3918 = vmatpush1.msra.mxu0 0.0
        %3919 = vmatprep.subr.mxu0 0.0
        %3920 = vmatpush1.msra.mxu0 0.0
        %3921 = vmatprep.subr.mxu0 0.0
        %3922 = vmatpush1.msra.mxu0 0.0
        %3923 = vmatprep.subr.mxu0 0.0
        %3924 = vmatpush1.msra.mxu0 0.0
        %3925 = vmatprep.subr.mxu0 0.0
        %3926 = vmatpush1.msra.mxu0 0.0
        %3927 = vmatprep.subr.mxu0 0.0
        %3928 = vmatpush1.msra.mxu0 0.0
        %3929 = vmatprep.mubr.f32.mxu0 0.0
        %v3930 = vand.u32 %v3434, 4294901760
        %3931 = vmatmul.mubr.f32.gmra.mrb[0].mxu0 %v3930
        %v3932 = vpop.f32.mrb[0].mxu0
        %v3933 = vadd.f32 %v3828, %v3932
        %v3934 = vpop.f32.mrb[0].mxu0
        %v3935 = vadd.f32 %v3830, %v3934
        %3936 = vmatprep.mubr.f32.mxu0 0.0
        %v3937 = vand.u32 %v3437, 4294901760
        %3938 = vmatmul.mubr.f32.gmra.mrb[0].mxu0 %v3937
        %v3939 = vpop.f32.mrb[0].mxu0
        %v3940 = vadd.f32 %v3837, %v3939
        %v3941 = vpop.f32.mrb[0].mxu0
        %v3942 = vadd.f32 %v3839, %v3941
        %3943 = vdwg.mxu0
        %v3944 = vand.u32 %v3422, 4294901760
        %3945 = vmatprep.subr.mxu0 %v3944
        %v3946 = vand.u32 %v3421, 4294901760
        %3947 = vmatpush1.msra.mxu0 %v3946
        %v3948 = vand.u32 %v3425, 4294901760
        %3949 = vmatprep.subr.mxu0 %v3948
        %v3950 = vand.u32 %v3424, 4294901760
        %3951 = vmatpush1.msra.mxu0 %v3950
        %v3952 = vand.u32 %v3428, 4294901760
        %3953 = vmatprep.subr.mxu0 %v3952
        %v3954 = vand.u32 %v3427, 4294901760
        %3955 = vmatpush1.msra.mxu0 %v3954
        %v3956 = vand.u32 %v3431, 4294901760
        %3957 = vmatprep.subr.mxu0 %v3956
        %v3958 = vand.u32 %v3430, 4294901760
        %3959 = vmatpush1.msra.mxu0 %v3958
        %3960 = vmatprep.subr.mxu0 0.0
        %3961 = vmatpush1.msra.mxu0 0.0
        %3962 = vmatprep.subr.mxu0 0.0
        %3963 = vmatpush1.msra.mxu0 0.0
        %3964 = vmatprep.subr.mxu0 0.0
        %3965 = vmatpush1.msra.mxu0 0.0
        %3966 = vmatprep.subr.mxu0 0.0
        %3967 = vmatpush1.msra.mxu0 0.0
        %3968 = vmatprep.subr.mxu0 0.0
        %3969 = vmatpush1.msra.mxu0 0.0
        %3970 = vmatprep.subr.mxu0 0.0
        %3971 = vmatpush1.msra.mxu0 0.0
        %3972 = vmatprep.subr.mxu0 0.0
        %3973 = vmatpush1.msra.mxu0 0.0
        %3974 = vmatprep.subr.mxu0 0.0
        %3975 = vmatpush1.msra.mxu0 0.0
        %3976 = vmatprep.subr.mxu0 0.0
        %3977 = vmatpush1.msra.mxu0 0.0
        %3978 = vmatprep.subr.mxu0 0.0
        %3979 = vmatpush1.msra.mxu0 0.0
        %3980 = vmatprep.subr.mxu0 0.0
        %3981 = vmatpush1.msra.mxu0 0.0
        %3982 = vmatprep.subr.mxu0 0.0
        %3983 = vmatpush1.msra.mxu0 0.0
        %3984 = vmatprep.subr.mxu0 0.0
        %3985 = vmatpush1.msra.mxu0 0.0
        %3986 = vmatprep.subr.mxu0 0.0
        %3987 = vmatpush1.msra.mxu0 0.0
        %3988 = vmatprep.subr.mxu0 0.0
        %3989 = vmatpush1.msra.mxu0 0.0
        %3990 = vmatprep.subr.mxu0 0.0
        %3991 = vmatpush1.msra.mxu0 0.0
        %3992 = vmatprep.subr.mxu0 0.0
        %3993 = vmatpush1.msra.mxu0 0.0
        %3994 = vmatprep.subr.mxu0 0.0
        %3995 = vmatpush1.msra.mxu0 0.0
        %3996 = vmatprep.subr.mxu0 0.0
        %3997 = vmatpush1.msra.mxu0 0.0
        %3998 = vmatprep.subr.mxu0 0.0
        %3999 = vmatpush1.msra.mxu0 0.0
        %4000 = vmatprep.subr.mxu0 0.0
        %4001 = vmatpush1.msra.mxu0 0.0
        %4002 = vmatprep.subr.mxu0 0.0
        %4003 = vmatpush1.msra.mxu0 0.0
        %4004 = vmatprep.subr.mxu0 0.0
        %4005 = vmatpush1.msra.mxu0 0.0
        %4006 = vmatprep.subr.mxu0 0.0
        %4007 = vmatpush1.msra.mxu0 0.0
        %4008 = vmatprep.subr.mxu0 0.0
        %4009 = vmatpush1.msra.mxu0 0.0
        %4010 = vmatprep.subr.mxu0 0.0
        %4011 = vmatpush1.msra.mxu0 0.0
        %4012 = vmatprep.subr.mxu0 0.0
        %4013 = vmatpush1.msra.mxu0 0.0
        %4014 = vmatprep.subr.mxu0 0.0
        %4015 = vmatpush1.msra.mxu0 0.0
        %4016 = vmatprep.mubr.f32.mxu0 0.0
        %v4017 = vand.u32 %v3434, 4294901760
        %4018 = vmatmul.mubr.f32.gmra.mrb[0].mxu0 %v4017
        %v4019 = vpop.f32.mrb[0].mxu0
        %v4020 = vadd.f32 %v3933, %v4019
        %v4021 = vpop.f32.mrb[0].mxu0
        %v4022 = vadd.f32 %v3935, %v4021
        %4023 = vmatprep.mubr.f32.mxu0 0.0
        %v4024 = vand.u32 %v3437, 4294901760
        %4025 = vmatmul.mubr.f32.gmra.mrb[0].mxu0 %v4024
        %v4026 = vpop.f32.mrb[0].mxu0
        %v4027 = vadd.f32 %v3940, %v4026
        %v4028 = vpop.f32.mrb[0].mxu0
        %v4029 = vadd.f32 %v3942, %v4028
        %4030 = vdwg.mxu0
        %4031 = vmatprep.subr.mxu0 0.0
        %v4032 = vand.u32 %v3423, 4294901760
        %4033 = vmatpush1.msra.mxu0 %v4032
        %4034 = vmatprep.subr.mxu0 0.0
        %v4035 = vand.u32 %v3426, 4294901760
        %4036 = vmatpush1.msra.mxu0 %v4035
        %4037 = vmatprep.subr.mxu0 0.0
        %v4038 = vand.u32 %v3429, 4294901760
        %4039 = vmatpush1.msra.mxu0 %v4038
        %4040 = vmatprep.subr.mxu0 0.0
        %v4041 = vand.u32 %v3432, 4294901760
        %4042 = vmatpush1.msra.mxu0 %v4041
        %4043 = vmatprep.subr.mxu0 0.0
        %4044 = vmatpush1.msra.mxu0 0.0
        %4045 = vmatprep.subr.mxu0 0.0
        %4046 = vmatpush1.msra.mxu0 0.0
        %4047 = vmatprep.subr.mxu0 0.0
        %4048 = vmatpush1.msra.mxu0 0.0
        %4049 = vmatprep.subr.mxu0 0.0
        %4050 = vmatpush1.msra.mxu0 0.0
        %4051 = vmatprep.subr.mxu0 0.0
        %4052 = vmatpush1.msra.mxu0 0.0
        %4053 = vmatprep.subr.mxu0 0.0
        %4054 = vmatpush1.msra.mxu0 0.0
        %4055 = vmatprep.subr.mxu0 0.0
        %4056 = vmatpush1.msra.mxu0 0.0
        %4057 = vmatprep.subr.mxu0 0.0
        %4058 = vmatpush1.msra.mxu0 0.0
        %4059 = vmatprep.subr.mxu0 0.0
        %4060 = vmatpush1.msra.mxu0 0.0
        %4061 = vmatprep.subr.mxu0 0.0
        %4062 = vmatpush1.msra.mxu0 0.0
        %4063 = vmatprep.subr.mxu0 0.0
        %4064 = vmatpush1.msra.mxu0 0.0
        %4065 = vmatprep.subr.mxu0 0.0
        %4066 = vmatpush1.msra.mxu0 0.0
        %4067 = vmatprep.subr.mxu0 0.0
        %4068 = vmatpush1.msra.mxu0 0.0
        %4069 = vmatprep.subr.mxu0 0.0
        %4070 = vmatpush1.msra.mxu0 0.0
        %4071 = vmatprep.subr.mxu0 0.0
        %4072 = vmatpush1.msra.mxu0 0.0
        %4073 = vmatprep.subr.mxu0 0.0
        %4074 = vmatpush1.msra.mxu0 0.0
        %4075 = vmatprep.subr.mxu0 0.0
        %4076 = vmatpush1.msra.mxu0 0.0
        %4077 = vmatprep.subr.mxu0 0.0
        %4078 = vmatpush1.msra.mxu0 0.0
        %4079 = vmatprep.subr.mxu0 0.0
        %4080 = vmatpush1.msra.mxu0 0.0
        %4081 = vmatprep.subr.mxu0 0.0
        %4082 = vmatpush1.msra.mxu0 0.0
        %4083 = vmatprep.subr.mxu0 0.0
        %4084 = vmatpush1.msra.mxu0 0.0
        %4085 = vmatprep.subr.mxu0 0.0
        %4086 = vmatpush1.msra.mxu0 0.0
        %4087 = vmatprep.subr.mxu0 0.0
        %4088 = vmatpush1.msra.mxu0 0.0
        %4089 = vmatprep.subr.mxu0 0.0
        %4090 = vmatpush1.msra.mxu0 0.0
        %4091 = vmatprep.subr.mxu0 0.0
        %4092 = vmatpush1.msra.mxu0 0.0
        %4093 = vmatprep.subr.mxu0 0.0
        %4094 = vmatpush1.msra.mxu0 0.0
        %4095 = vmatprep.subr.mxu0 0.0
        %4096 = vmatpush1.msra.mxu0 0.0
        %4097 = vmatprep.subr.mxu0 0.0
        %4098 = vmatpush1.msra.mxu0 0.0
        %4099 = vmatprep.mubr.f32.mxu0 0.0
        %v4100 = vand.u32 %v3434, 4294901760
        %v4101 = vsub.f32 %v3434, %v4100
        %v4102 = vand.u32 %v4101, 4294901760
        %v4103 = vsub.f32 %v4101, %v4102
        %v4104 = vand.u32 %v4103, 4294901760
        %4105 = vmatmul.mubr.f32.gmra.mrb[0].mxu0 %v4104
        %v4106 = vpop.f32.mrb[0].mxu0
        %v4107 = vadd.f32 0.0, %v4106
        %v4108 = vpop.f32.mrb[0].mxu0
        %4109 = vmatprep.mubr.f32.mxu0 0.0
        %v4110 = vand.u32 %v3437, 4294901760
        %v4111 = vsub.f32 %v3437, %v4110
        %v4112 = vand.u32 %v4111, 4294901760
        %v4113 = vsub.f32 %v4111, %v4112
        %v4114 = vand.u32 %v4113, 4294901760
        %4115 = vmatmul.mubr.f32.gmra.mrb[0].mxu0 %v4114
        %v4116 = vpop.f32.mrb[0].mxu0
        %v4117 = vadd.f32 0.0, %v4116
        %v4118 = vpop.f32.mrb[0].mxu0
        %4119 = vdwg.mxu0
        %4120 = vmatprep.subr.mxu0 0.0
        %v4121 = vand.u32 %v3423, 4294901760
        %v4122 = vsub.f32 %v3423, %v4121
        %v4123 = vand.u32 %v4122, 4294901760
        %v4124 = vsub.f32 %v4122, %v4123
        %v4125 = vand.u32 %v4124, 4294901760
        %4126 = vmatpush1.msra.mxu0 %v4125
        %4127 = vmatprep.subr.mxu0 0.0
        %v4128 = vand.u32 %v3426, 4294901760
        %v4129 = vsub.f32 %v3426, %v4128
        %v4130 = vand.u32 %v4129, 4294901760
        %v4131 = vsub.f32 %v4129, %v4130
        %v4132 = vand.u32 %v4131, 4294901760
        %4133 = vmatpush1.msra.mxu0 %v4132
        %4134 = vmatprep.subr.mxu0 0.0
        %v4135 = vand.u32 %v3429, 4294901760
        %v4136 = vsub.f32 %v3429, %v4135
        %v4137 = vand.u32 %v4136, 4294901760
        %v4138 = vsub.f32 %v4136, %v4137
        %v4139 = vand.u32 %v4138, 4294901760
        %4140 = vmatpush1.msra.mxu0 %v4139
        %4141 = vmatprep.subr.mxu0 0.0
        %v4142 = vand.u32 %v3432, 4294901760
        %v4143 = vsub.f32 %v3432, %v4142
        %v4144 = vand.u32 %v4143, 4294901760
        %v4145 = vsub.f32 %v4143, %v4144
        %v4146 = vand.u32 %v4145, 4294901760
        %4147 = vmatpush1.msra.mxu0 %v4146
        %4148 = vmatprep.subr.mxu0 0.0
        %4149 = vmatpush1.msra.mxu0 0.0
        %4150 = vmatprep.subr.mxu0 0.0
        %4151 = vmatpush1.msra.mxu0 0.0
        %4152 = vmatprep.subr.mxu0 0.0
        %4153 = vmatpush1.msra.mxu0 0.0
        %4154 = vmatprep.subr.mxu0 0.0
        %4155 = vmatpush1.msra.mxu0 0.0
        %4156 = vmatprep.subr.mxu0 0.0
        %4157 = vmatpush1.msra.mxu0 0.0
        %4158 = vmatprep.subr.mxu0 0.0
        %4159 = vmatpush1.msra.mxu0 0.0
        %4160 = vmatprep.subr.mxu0 0.0
        %4161 = vmatpush1.msra.mxu0 0.0
        %4162 = vmatprep.subr.mxu0 0.0
        %4163 = vmatpush1.msra.mxu0 0.0
        %4164 = vmatprep.subr.mxu0 0.0
        %4165 = vmatpush1.msra.mxu0 0.0
        %4166 = vmatprep.subr.mxu0 0.0
        %4167 = vmatpush1.msra.mxu0 0.0
        %4168 = vmatprep.subr.mxu0 0.0
        %4169 = vmatpush1.msra.mxu0 0.0
        %4170 = vmatprep.subr.mxu0 0.0
        %4171 = vmatpush1.msra.mxu0 0.0
        %4172 = vmatprep.subr.mxu0 0.0
        %4173 = vmatpush1.msra.mxu0 0.0
        %4174 = vmatprep.subr.mxu0 0.0
        %4175 = vmatpush1.msra.mxu0 0.0
        %4176 = vmatprep.subr.mxu0 0.0
        %4177 = vmatpush1.msra.mxu0 0.0
        %4178 = vmatprep.subr.mxu0 0.0
        %4179 = vmatpush1.msra.mxu0 0.0
        %4180 = vmatprep.subr.mxu0 0.0
        %4181 = vmatpush1.msra.mxu0 0.0
        %4182 = vmatprep.subr.mxu0 0.0
        %4183 = vmatpush1.msra.mxu0 0.0
        %4184 = vmatprep.subr.mxu0 0.0
        %4185 = vmatpush1.msra.mxu0 0.0
        %4186 = vmatprep.subr.mxu0 0.0
        %4187 = vmatpush1.msra.mxu0 0.0
        %4188 = vmatprep.subr.mxu0 0.0
        %4189 = vmatpush1.msra.mxu0 0.0
        %4190 = vmatprep.subr.mxu0 0.0
        %4191 = vmatpush1.msra.mxu0 0.0
        %4192 = vmatprep.subr.mxu0 0.0
        %4193 = vmatpush1.msra.mxu0 0.0
        %4194 = vmatprep.subr.mxu0 0.0
        %4195 = vmatpush1.msra.mxu0 0.0
        %4196 = vmatprep.subr.mxu0 0.0
        %4197 = vmatpush1.msra.mxu0 0.0
        %4198 = vmatprep.subr.mxu0 0.0
        %4199 = vmatpush1.msra.mxu0 0.0
        %4200 = vmatprep.subr.mxu0 0.0
        %4201 = vmatpush1.msra.mxu0 0.0
        %4202 = vmatprep.subr.mxu0 0.0
        %4203 = vmatpush1.msra.mxu0 0.0
        %4204 = vmatprep.mubr.f32.mxu0 0.0
        %v4205 = vand.u32 %v3434, 4294901760
        %4206 = vmatmul.mubr.f32.gmra.mrb[0].mxu0 %v4205
        %v4207 = vpop.f32.mrb[0].mxu0
        %v4208 = vadd.f32 %v4107, %v4207
        %v4209 = vpop.f32.mrb[0].mxu0
        %4210 = vmatprep.mubr.f32.mxu0 0.0
        %v4211 = vand.u32 %v3437, 4294901760
        %4212 = vmatmul.mubr.f32.gmra.mrb[0].mxu0 %v4211
        %v4213 = vpop.f32.mrb[0].mxu0
        %v4214 = vadd.f32 %v4117, %v4213
        %v4215 = vpop.f32.mrb[0].mxu0
        %4216 = vdwg.mxu0
        %4217 = vmatprep.subr.mxu0 0.0
        %v4218 = vand.u32 %v3423, 4294901760
        %v4219 = vsub.f32 %v3423, %v4218
        %4220 = vmatpush1.msra.mxu0 %v4219
        %4221 = vmatprep.subr.mxu0 0.0
        %v4222 = vand.u32 %v3426, 4294901760
        %v4223 = vsub.f32 %v3426, %v4222
        %4224 = vmatpush1.msra.mxu0 %v4223
        %4225 = vmatprep.subr.mxu0 0.0
        %v4226 = vand.u32 %v3429, 4294901760
        %v4227 = vsub.f32 %v3429, %v4226
        %4228 = vmatpush1.msra.mxu0 %v4227
        %4229 = vmatprep.subr.mxu0 0.0
        %v4230 = vand.u32 %v3432, 4294901760
        %v4231 = vsub.f32 %v3432, %v4230
        %4232 = vmatpush1.msra.mxu0 %v4231
        %4233 = vmatprep.subr.mxu0 0.0
        %4234 = vmatpush1.msra.mxu0 0.0
        %4235 = vmatprep.subr.mxu0 0.0
        %4236 = vmatpush1.msra.mxu0 0.0
        %4237 = vmatprep.subr.mxu0 0.0
        %4238 = vmatpush1.msra.mxu0 0.0
        %4239 = vmatprep.subr.mxu0 0.0
        %4240 = vmatpush1.msra.mxu0 0.0
        %4241 = vmatprep.subr.mxu0 0.0
        %4242 = vmatpush1.msra.mxu0 0.0
        %4243 = vmatprep.subr.mxu0 0.0
        %4244 = vmatpush1.msra.mxu0 0.0
        %4245 = vmatprep.subr.mxu0 0.0
        %4246 = vmatpush1.msra.mxu0 0.0
        %4247 = vmatprep.subr.mxu0 0.0
        %4248 = vmatpush1.msra.mxu0 0.0
        %4249 = vmatprep.subr.mxu0 0.0
        %4250 = vmatpush1.msra.mxu0 0.0
        %4251 = vmatprep.subr.mxu0 0.0
        %4252 = vmatpush1.msra.mxu0 0.0
        %4253 = vmatprep.subr.mxu0 0.0
        %4254 = vmatpush1.msra.mxu0 0.0
        %4255 = vmatprep.subr.mxu0 0.0
        %4256 = vmatpush1.msra.mxu0 0.0
        %4257 = vmatprep.subr.mxu0 0.0
        %4258 = vmatpush1.msra.mxu0 0.0
        %4259 = vmatprep.subr.mxu0 0.0
        %4260 = vmatpush1.msra.mxu0 0.0
        %4261 = vmatprep.subr.mxu0 0.0
        %4262 = vmatpush1.msra.mxu0 0.0
        %4263 = vmatprep.subr.mxu0 0.0
        %4264 = vmatpush1.msra.mxu0 0.0
        %4265 = vmatprep.subr.mxu0 0.0
        %4266 = vmatpush1.msra.mxu0 0.0
        %4267 = vmatprep.subr.mxu0 0.0
        %4268 = vmatpush1.msra.mxu0 0.0
        %4269 = vmatprep.subr.mxu0 0.0
        %4270 = vmatpush1.msra.mxu0 0.0
        %4271 = vmatprep.subr.mxu0 0.0
        %4272 = vmatpush1.msra.mxu0 0.0
        %4273 = vmatprep.subr.mxu0 0.0
        %4274 = vmatpush1.msra.mxu0 0.0
        %4275 = vmatprep.subr.mxu0 0.0
        %4276 = vmatpush1.msra.mxu0 0.0
        %4277 = vmatprep.subr.mxu0 0.0
        %4278 = vmatpush1.msra.mxu0 0.0
        %4279 = vmatprep.subr.mxu0 0.0
        %4280 = vmatpush1.msra.mxu0 0.0
        %4281 = vmatprep.subr.mxu0 0.0
        %4282 = vmatpush1.msra.mxu0 0.0
        %4283 = vmatprep.subr.mxu0 0.0
        %4284 = vmatpush1.msra.mxu0 0.0
        %4285 = vmatprep.subr.mxu0 0.0
        %4286 = vmatpush1.msra.mxu0 0.0
        %4287 = vmatprep.subr.mxu0 0.0
        %4288 = vmatpush1.msra.mxu0 0.0
        %4289 = vmatprep.mubr.f32.mxu0 0.0
        %v4290 = vand.u32 %v3434, 4294901760
        %v4291 = vsub.f32 %v3434, %v4290
        %4292 = vmatmul.mubr.f32.gmra.mrb[0].mxu0 %v4291
        %v4293 = vpop.f32.mrb[0].mxu0
        %v4294 = vadd.f32 %v4208, %v4293
        %v4295 = vpop.f32.mrb[0].mxu0
        %4296 = vmatprep.mubr.f32.mxu0 0.0
        %v4297 = vand.u32 %v3437, 4294901760
        %v4298 = vsub.f32 %v3437, %v4297
        %4299 = vmatmul.mubr.f32.gmra.mrb[0].mxu0 %v4298
        %v4300 = vpop.f32.mrb[0].mxu0
        %v4301 = vadd.f32 %v4214, %v4300
        %v4302 = vpop.f32.mrb[0].mxu0
        %4303 = vdwg.mxu0
        %4304 = vmatprep.subr.mxu0 0.0
        %v4305 = vand.u32 %v3423, 4294901760
        %4306 = vmatpush1.msra.mxu0 %v4305
        %4307 = vmatprep.subr.mxu0 0.0
        %v4308 = vand.u32 %v3426, 4294901760
        %4309 = vmatpush1.msra.mxu0 %v4308
        %4310 = vmatprep.subr.mxu0 0.0
        %v4311 = vand.u32 %v3429, 4294901760
        %4312 = vmatpush1.msra.mxu0 %v4311
        %4313 = vmatprep.subr.mxu0 0.0
        %v4314 = vand.u32 %v3432, 4294901760
        %4315 = vmatpush1.msra.mxu0 %v4314
        %4316 = vmatprep.subr.mxu0 0.0
        %4317 = vmatpush1.msra.mxu0 0.0
        %4318 = vmatprep.subr.mxu0 0.0
        %4319 = vmatpush1.msra.mxu0 0.0
        %4320 = vmatprep.subr.mxu0 0.0
        %4321 = vmatpush1.msra.mxu0 0.0
        %4322 = vmatprep.subr.mxu0 0.0
        %4323 = vmatpush1.msra.mxu0 0.0
        %4324 = vmatprep.subr.mxu0 0.0
        %4325 = vmatpush1.msra.mxu0 0.0
        %4326 = vmatprep.subr.mxu0 0.0
        %4327 = vmatpush1.msra.mxu0 0.0
        %4328 = vmatprep.subr.mxu0 0.0
        %4329 = vmatpush1.msra.mxu0 0.0
        %4330 = vmatprep.subr.mxu0 0.0
        %4331 = vmatpush1.msra.mxu0 0.0
        %4332 = vmatprep.subr.mxu0 0.0
        %4333 = vmatpush1.msra.mxu0 0.0
        %4334 = vmatprep.subr.mxu0 0.0
        %4335 = vmatpush1.msra.mxu0 0.0
        %4336 = vmatprep.subr.mxu0 0.0
        %4337 = vmatpush1.msra.mxu0 0.0
        %4338 = vmatprep.subr.mxu0 0.0
        %4339 = vmatpush1.msra.mxu0 0.0
        %4340 = vmatprep.subr.mxu0 0.0
        %4341 = vmatpush1.msra.mxu0 0.0
        %4342 = vmatprep.subr.mxu0 0.0
        %4343 = vmatpush1.msra.mxu0 0.0
        %4344 = vmatprep.subr.mxu0 0.0
        %4345 = vmatpush1.msra.mxu0 0.0
        %4346 = vmatprep.subr.mxu0 0.0
        %4347 = vmatpush1.msra.mxu0 0.0
        %4348 = vmatprep.subr.mxu0 0.0
        %4349 = vmatpush1.msra.mxu0 0.0
        %4350 = vmatprep.subr.mxu0 0.0
        %4351 = vmatpush1.msra.mxu0 0.0
        %4352 = vmatprep.subr.mxu0 0.0
        %4353 = vmatpush1.msra.mxu0 0.0
        %4354 = vmatprep.subr.mxu0 0.0
        %4355 = vmatpush1.msra.mxu0 0.0
        %4356 = vmatprep.subr.mxu0 0.0
        %4357 = vmatpush1.msra.mxu0 0.0
        %4358 = vmatprep.subr.mxu0 0.0
        %4359 = vmatpush1.msra.mxu0 0.0
        %4360 = vmatprep.subr.mxu0 0.0
        %4361 = vmatpush1.msra.mxu0 0.0
        %4362 = vmatprep.subr.mxu0 0.0
        %4363 = vmatpush1.msra.mxu0 0.0
        %4364 = vmatprep.subr.mxu0 0.0
        %4365 = vmatpush1.msra.mxu0 0.0
        %4366 = vmatprep.subr.mxu0 0.0
        %4367 = vmatpush1.msra.mxu0 0.0
        %4368 = vmatprep.subr.mxu0 0.0
        %4369 = vmatpush1.msra.mxu0 0.0
        %4370 = vmatprep.subr.mxu0 0.0
        %4371 = vmatpush1.msra.mxu0 0.0
        %4372 = vmatprep.mubr.f32.mxu0 0.0
        %v4373 = vand.u32 %v3434, 4294901760
        %v4374 = vsub.f32 %v3434, %v4373
        %v4375 = vand.u32 %v4374, 4294901760
        %4376 = vmatmul.mubr.f32.gmra.mrb[0].mxu0 %v4375
        %v4377 = vpop.f32.mrb[0].mxu0
        %v4378 = vadd.f32 %v4294, %v4377
        %v4379 = vpop.f32.mrb[0].mxu0
        %4380 = vmatprep.mubr.f32.mxu0 0.0
        %v4381 = vand.u32 %v3437, 4294901760
        %v4382 = vsub.f32 %v3437, %v4381
        %v4383 = vand.u32 %v4382, 4294901760
        %4384 = vmatmul.mubr.f32.gmra.mrb[0].mxu0 %v4383
        %v4385 = vpop.f32.mrb[0].mxu0
        %v4386 = vadd.f32 %v4301, %v4385
        %v4387 = vpop.f32.mrb[0].mxu0
        %4388 = vdwg.mxu0
        %4389 = vmatprep.subr.mxu0 0.0
        %v4390 = vand.u32 %v3423, 4294901760
        %v4391 = vsub.f32 %v3423, %v4390
        %v4392 = vand.u32 %v4391, 4294901760
        %4393 = vmatpush1.msra.mxu0 %v4392
        %4394 = vmatprep.subr.mxu0 0.0
        %v4395 = vand.u32 %v3426, 4294901760
        %v4396 = vsub.f32 %v3426, %v4395
        %v4397 = vand.u32 %v4396, 4294901760
        %4398 = vmatpush1.msra.mxu0 %v4397
        %4399 = vmatprep.subr.mxu0 0.0
        %v4400 = vand.u32 %v3429, 4294901760
        %v4401 = vsub.f32 %v3429, %v4400
        %v4402 = vand.u32 %v4401, 4294901760
        %4403 = vmatpush1.msra.mxu0 %v4402
        %4404 = vmatprep.subr.mxu0 0.0
        %v4405 = vand.u32 %v3432, 4294901760
        %v4406 = vsub.f32 %v3432, %v4405
        %v4407 = vand.u32 %v4406, 4294901760
        %4408 = vmatpush1.msra.mxu0 %v4407
        %4409 = vmatprep.subr.mxu0 0.0
        %4410 = vmatpush1.msra.mxu0 0.0
        %4411 = vmatprep.subr.mxu0 0.0
        %4412 = vmatpush1.msra.mxu0 0.0
        %4413 = vmatprep.subr.mxu0 0.0
        %4414 = vmatpush1.msra.mxu0 0.0
        %4415 = vmatprep.subr.mxu0 0.0
        %4416 = vmatpush1.msra.mxu0 0.0
        %4417 = vmatprep.subr.mxu0 0.0
        %4418 = vmatpush1.msra.mxu0 0.0
        %4419 = vmatprep.subr.mxu0 0.0
        %4420 = vmatpush1.msra.mxu0 0.0
        %4421 = vmatprep.subr.mxu0 0.0
        %4422 = vmatpush1.msra.mxu0 0.0
        %4423 = vmatprep.subr.mxu0 0.0
        %4424 = vmatpush1.msra.mxu0 0.0
        %4425 = vmatprep.subr.mxu0 0.0
        %4426 = vmatpush1.msra.mxu0 0.0
        %4427 = vmatprep.subr.mxu0 0.0
        %4428 = vmatpush1.msra.mxu0 0.0
        %4429 = vmatprep.subr.mxu0 0.0
        %4430 = vmatpush1.msra.mxu0 0.0
        %4431 = vmatprep.subr.mxu0 0.0
        %4432 = vmatpush1.msra.mxu0 0.0
        %4433 = vmatprep.subr.mxu0 0.0
        %4434 = vmatpush1.msra.mxu0 0.0
        %4435 = vmatprep.subr.mxu0 0.0
        %4436 = vmatpush1.msra.mxu0 0.0
        %4437 = vmatprep.subr.mxu0 0.0
        %4438 = vmatpush1.msra.mxu0 0.0
        %4439 = vmatprep.subr.mxu0 0.0
        %4440 = vmatpush1.msra.mxu0 0.0
        %4441 = vmatprep.subr.mxu0 0.0
        %4442 = vmatpush1.msra.mxu0 0.0
        %4443 = vmatprep.subr.mxu0 0.0
        %4444 = vmatpush1.msra.mxu0 0.0
        %4445 = vmatprep.subr.mxu0 0.0
        %4446 = vmatpush1.msra.mxu0 0.0
        %4447 = vmatprep.subr.mxu0 0.0
        %4448 = vmatpush1.msra.mxu0 0.0
        %4449 = vmatprep.subr.mxu0 0.0
        %4450 = vmatpush1.msra.mxu0 0.0
        %4451 = vmatprep.subr.mxu0 0.0
        %4452 = vmatpush1.msra.mxu0 0.0
        %4453 = vmatprep.subr.mxu0 0.0
        %4454 = vmatpush1.msra.mxu0 0.0
        %4455 = vmatprep.subr.mxu0 0.0
        %4456 = vmatpush1.msra.mxu0 0.0
        %4457 = vmatprep.subr.mxu0 0.0
        %4458 = vmatpush1.msra.mxu0 0.0
        %4459 = vmatprep.subr.mxu0 0.0
        %4460 = vmatpush1.msra.mxu0 0.0
        %4461 = vmatprep.subr.mxu0 0.0
        %4462 = vmatpush1.msra.mxu0 0.0
        %4463 = vmatprep.subr.mxu0 0.0
        %4464 = vmatpush1.msra.mxu0 0.0
        %4465 = vmatprep.mubr.f32.mxu0 0.0
        %v4466 = vand.u32 %v3434, 4294901760
        %4467 = vmatmul.mubr.f32.gmra.mrb[0].mxu0 %v4466
        %v4468 = vpop.f32.mrb[0].mxu0
        %v4469 = vadd.f32 %v4378, %v4468
        %v4470 = vpop.f32.mrb[0].mxu0
        %4471 = vmatprep.mubr.f32.mxu0 0.0
        %v4472 = vand.u32 %v3437, 4294901760
        %4473 = vmatmul.mubr.f32.gmra.mrb[0].mxu0 %v4472
        %v4474 = vpop.f32.mrb[0].mxu0
        %v4475 = vadd.f32 %v4386, %v4474
        %v4476 = vpop.f32.mrb[0].mxu0
        %4477 = vdwg.mxu0
        %4478 = vmatprep.subr.mxu0 0.0
        %v4479 = vand.u32 %v3423, 4294901760
        %4480 = vmatpush1.msra.mxu0 %v4479
        %4481 = vmatprep.subr.mxu0 0.0
        %v4482 = vand.u32 %v3426, 4294901760
        %4483 = vmatpush1.msra.mxu0 %v4482
        %4484 = vmatprep.subr.mxu0 0.0
        %v4485 = vand.u32 %v3429, 4294901760
        %4486 = vmatpush1.msra.mxu0 %v4485
        %4487 = vmatprep.subr.mxu0 0.0
        %v4488 = vand.u32 %v3432, 4294901760
        %4489 = vmatpush1.msra.mxu0 %v4488
        %4490 = vmatprep.subr.mxu0 0.0
        %4491 = vmatpush1.msra.mxu0 0.0
        %4492 = vmatprep.subr.mxu0 0.0
        %4493 = vmatpush1.msra.mxu0 0.0
        %4494 = vmatprep.subr.mxu0 0.0
        %4495 = vmatpush1.msra.mxu0 0.0
        %4496 = vmatprep.subr.mxu0 0.0
        %4497 = vmatpush1.msra.mxu0 0.0
        %4498 = vmatprep.subr.mxu0 0.0
        %4499 = vmatpush1.msra.mxu0 0.0
        %4500 = vmatprep.subr.mxu0 0.0
        %4501 = vmatpush1.msra.mxu0 0.0
        %4502 = vmatprep.subr.mxu0 0.0
        %4503 = vmatpush1.msra.mxu0 0.0
        %4504 = vmatprep.subr.mxu0 0.0
        %4505 = vmatpush1.msra.mxu0 0.0
        %4506 = vmatprep.subr.mxu0 0.0
        %4507 = vmatpush1.msra.mxu0 0.0
        %4508 = vmatprep.subr.mxu0 0.0
        %4509 = vmatpush1.msra.mxu0 0.0
        %4510 = vmatprep.subr.mxu0 0.0
        %4511 = vmatpush1.msra.mxu0 0.0
        %4512 = vmatprep.subr.mxu0 0.0
        %4513 = vmatpush1.msra.mxu0 0.0
        %4514 = vmatprep.subr.mxu0 0.0
        %4515 = vmatpush1.msra.mxu0 0.0
        %4516 = vmatprep.subr.mxu0 0.0
        %4517 = vmatpush1.msra.mxu0 0.0
        %4518 = vmatprep.subr.mxu0 0.0
        %4519 = vmatpush1.msra.mxu0 0.0
        %4520 = vmatprep.subr.mxu0 0.0
        %4521 = vmatpush1.msra.mxu0 0.0
        %4522 = vmatprep.subr.mxu0 0.0
        %4523 = vmatpush1.msra.mxu0 0.0
        %4524 = vmatprep.subr.mxu0 0.0
        %4525 = vmatpush1.msra.mxu0 0.0
        %4526 = vmatprep.subr.mxu0 0.0
        %4527 = vmatpush1.msra.mxu0 0.0
        %4528 = vmatprep.subr.mxu0 0.0
        %4529 = vmatpush1.msra.mxu0 0.0
        %4530 = vmatprep.subr.mxu0 0.0
        %4531 = vmatpush1.msra.mxu0 0.0
        %4532 = vmatprep.subr.mxu0 0.0
        %4533 = vmatpush1.msra.mxu0 0.0
        %4534 = vmatprep.subr.mxu0 0.0
        %4535 = vmatpush1.msra.mxu0 0.0
        %4536 = vmatprep.subr.mxu0 0.0
        %4537 = vmatpush1.msra.mxu0 0.0
        %4538 = vmatprep.subr.mxu0 0.0
        %4539 = vmatpush1.msra.mxu0 0.0
        %4540 = vmatprep.subr.mxu0 0.0
        %4541 = vmatpush1.msra.mxu0 0.0
        %4542 = vmatprep.subr.mxu0 0.0
        %4543 = vmatpush1.msra.mxu0 0.0
        %4544 = vmatprep.subr.mxu0 0.0
        %4545 = vmatpush1.msra.mxu0 0.0
        %4546 = vmatprep.mubr.f32.mxu0 0.0
        %v4547 = vand.u32 %v3434, 4294901760
        %4548 = vmatmul.mubr.f32.gmra.mrb[0].mxu0 %v4547
        %v4549 = vpop.f32.mrb[0].mxu0
        %v4550 = vadd.f32 %v4469, %v4549
        %v4551 = vpop.f32.mrb[0].mxu0
        %4552 = vmatprep.mubr.f32.mxu0 0.0
        %v4553 = vand.u32 %v3437, 4294901760
        %4554 = vmatmul.mubr.f32.gmra.mrb[0].mxu0 %v4553
        %v4555 = vpop.f32.mrb[0].mxu0
        %v4556 = vadd.f32 %v4475, %v4555
        %v4557 = vpop.f32.mrb[0].mxu0
        %4558 = vdwg.mxu0
        %v4559 = vadd.f32 %v2881, %v4020
        %v4560 = vadd.f32 %v2883, %v4022
        %v4561 = vadd.f32 %v3411, %v4550
        %v4562 = vadd.f32 %v2888, %v4027
        %v4563 = vadd.f32 %v2890, %v4029
        %v4564 = vadd.f32 %v3417, %v4556
        %s4565 = scalar_lea.vmem [#allocation2], 192
        %v4566 = vld [vmem:[%s4565] sm:$0xff]
        %v4567 = vld [vmem:[%s4565 + $0x8] sm:$0xff]
        %v4568 = vld [vmem:[%s4565 + $0x10] sm:$0xff]
        %v4569 = vld [vmem:[%s4565 + $0x18] sm:$0xff]
        %v4570 = vld [vmem:[%s4565 + $0x20] sm:$0xff]
        %v4571 = vld [vmem:[%s4565 + $0x28] sm:$0xff]
        %v4572 = vld [vmem:[%s4565 + $0x30] sm:$0xff]
        %v4573 = vld [vmem:[%s4565 + $0x38] sm:$0xff]
        %v4574 = vld [vmem:[%s4565 + $0x40] sm:$0xff]
        %v4575 = vld [vmem:[%s4565 + $0x48] sm:$0xff]
        %v4576 = vld [vmem:[%s4565 + $0x50] sm:$0xff]
        %v4577 = vld [vmem:[%s4565 + $0x58] sm:$0xff]
        %v4579 = vsel %vm1167, %v1121, 0
        %v4582 = vsel %vm1167, %v1127, 0
        %v4584 = vand.u32 %v4567, 4294901760
        %4585 = vmatprep.subr.mxu0 %v4584
        %v4586 = vand.u32 %v4566, 4294901760
        %4587 = vmatpush1.msra.mxu0 %v4586
        %v4588 = vand.u32 %v4570, 4294901760
        %4589 = vmatprep.subr.mxu0 %v4588
        %v4590 = vand.u32 %v4569, 4294901760
        %4591 = vmatpush1.msra.mxu0 %v4590
        %v4592 = vand.u32 %v4573, 4294901760
        %4593 = vmatprep.subr.mxu0 %v4592
        %v4594 = vand.u32 %v4572, 4294901760
        %4595 = vmatpush1.msra.mxu0 %v4594
        %v4596 = vand.u32 %v4576, 4294901760
        %4597 = vmatprep.subr.mxu0 %v4596
        %v4598 = vand.u32 %v4575, 4294901760
        %4599 = vmatpush1.msra.mxu0 %v4598
        %4600 = vmatprep.subr.mxu0 0.0
        %4601 = vmatpush1.msra.mxu0 0.0
        %4602 = vmatprep.subr.mxu0 0.0
        %4603 = vmatpush1.msra.mxu0 0.0
        %4604 = vmatprep.subr.mxu0 0.0
        %4605 = vmatpush1.msra.mxu0 0.0
        %4606 = vmatprep.subr.mxu0 0.0
        %4607 = vmatpush1.msra.mxu0 0.0
        %4608 = vmatprep.subr.mxu0 0.0
        %4609 = vmatpush1.msra.mxu0 0.0
        %4610 = vmatprep.subr.mxu0 0.0
        %4611 = vmatpush1.msra.mxu0 0.0
        %4612 = vmatprep.subr.mxu0 0.0
        %4613 = vmatpush1.msra.mxu0 0.0
        %4614 = vmatprep.subr.mxu0 0.0
        %4615 = vmatpush1.msra.mxu0 0.0
        %4616 = vmatprep.subr.mxu0 0.0
        %4617 = vmatpush1.msra.mxu0 0.0
        %4618 = vmatprep.subr.mxu0 0.0
        %4619 = vmatpush1.msra.mxu0 0.0
        %4620 = vmatprep.subr.mxu0 0.0
        %4621 = vmatpush1.msra.mxu0 0.0
        %4622 = vmatprep.subr.mxu0 0.0
        %4623 = vmatpush1.msra.mxu0 0.0
        %4624 = vmatprep.subr.mxu0 0.0
        %4625 = vmatpush1.msra.mxu0 0.0
        %4626 = vmatprep.subr.mxu0 0.0
        %4627 = vmatpush1.msra.mxu0 0.0
        %4628 = vmatprep.subr.mxu0 0.0
        %4629 = vmatpush1.msra.mxu0 0.0
        %4630 = vmatprep.subr.mxu0 0.0
        %4631 = vmatpush1.msra.mxu0 0.0
        %4632 = vmatprep.subr.mxu0 0.0
        %4633 = vmatpush1.msra.mxu0 0.0
        %4634 = vmatprep.subr.mxu0 0.0
        %4635 = vmatpush1.msra.mxu0 0.0
        %4636 = vmatprep.subr.mxu0 0.0
        %4637 = vmatpush1.msra.mxu0 0.0
        %4638 = vmatprep.subr.mxu0 0.0
        %4639 = vmatpush1.msra.mxu0 0.0
        %4640 = vmatprep.subr.mxu0 0.0
        %4641 = vmatpush1.msra.mxu0 0.0
        %4642 = vmatprep.subr.mxu0 0.0
        %4643 = vmatpush1.msra.mxu0 0.0
        %4644 = vmatprep.subr.mxu0 0.0
        %4645 = vmatpush1.msra.mxu0 0.0
        %4646 = vmatprep.subr.mxu0 0.0
        %4647 = vmatpush1.msra.mxu0 0.0
        %4648 = vmatprep.subr.mxu0 0.0
        %4649 = vmatpush1.msra.mxu0 0.0
        %4650 = vmatprep.subr.mxu0 0.0
        %4651 = vmatpush1.msra.mxu0 0.0
        %4652 = vmatprep.subr.mxu0 0.0
        %4653 = vmatpush1.msra.mxu0 0.0
        %4654 = vmatprep.subr.mxu0 0.0
        %4655 = vmatpush1.msra.mxu0 0.0
        %4656 = vmatprep.mubr.f32.mxu0 0.0
        %v4657 = vand.u32 %v4579, 4294901760
        %v4658 = vsub.f32 %v4579, %v4657
        %v4659 = vand.u32 %v4658, 4294901760
        %v4660 = vsub.f32 %v4658, %v4659
        %v4661 = vand.u32 %v4660, 4294901760
        %4662 = vmatmul.mubr.f32.gmra.mrb[0].mxu0 %v4661
        %v4663 = vpop.f32.mrb[0].mxu0
        %v4664 = vadd.f32 0.0, %v4663
        %v4665 = vpop.f32.mrb[0].mxu0
        %v4666 = vadd.f32 0.0, %v4665
        %4667 = vmatprep.mubr.f32.mxu0 0.0
        %v4668 = vand.u32 %v4582, 4294901760
        %v4669 = vsub.f32 %v4582, %v4668
        %v4670 = vand.u32 %v4669, 4294901760
        %v4671 = vsub.f32 %v4669, %v4670
        %v4672 = vand.u32 %v4671, 4294901760
        %4673 = vmatmul.mubr.f32.gmra.mrb[0].mxu0 %v4672
        %v4674 = vpop.f32.mrb[0].mxu0
        %v4675 = vadd.f32 0.0, %v4674
        %v4676 = vpop.f32.mrb[0].mxu0
        %v4677 = vadd.f32 0.0, %v4676
        %4678 = vdwg.mxu0
        %v4679 = vand.u32 %v4567, 4294901760
        %v4680 = vsub.f32 %v4567, %v4679
        %v4681 = vand.u32 %v4680, 4294901760
        %v4682 = vsub.f32 %v4680, %v4681
        %v4683 = vand.u32 %v4682, 4294901760
        %4684 = vmatprep.subr.mxu0 %v4683
        %v4685 = vand.u32 %v4566, 4294901760
        %v4686 = vsub.f32 %v4566, %v4685
        %v4687 = vand.u32 %v4686, 4294901760
        %v4688 = vsub.f32 %v4686, %v4687
        %v4689 = vand.u32 %v4688, 4294901760
        %4690 = vmatpush1.msra.mxu0 %v4689
        %v4691 = vand.u32 %v4570, 4294901760
        %v4692 = vsub.f32 %v4570, %v4691
        %v4693 = vand.u32 %v4692, 4294901760
        %v4694 = vsub.f32 %v4692, %v4693
        %v4695 = vand.u32 %v4694, 4294901760
        %4696 = vmatprep.subr.mxu0 %v4695
        %v4697 = vand.u32 %v4569, 4294901760
        %v4698 = vsub.f32 %v4569, %v4697
        %v4699 = vand.u32 %v4698, 4294901760
        %v4700 = vsub.f32 %v4698, %v4699
        %v4701 = vand.u32 %v4700, 4294901760
        %4702 = vmatpush1.msra.mxu0 %v4701
        %v4703 = vand.u32 %v4573, 4294901760
        %v4704 = vsub.f32 %v4573, %v4703
        %v4705 = vand.u32 %v4704, 4294901760
        %v4706 = vsub.f32 %v4704, %v4705
        %v4707 = vand.u32 %v4706, 4294901760
        %4708 = vmatprep.subr.mxu0 %v4707
        %v4709 = vand.u32 %v4572, 4294901760
        %v4710 = vsub.f32 %v4572, %v4709
        %v4711 = vand.u32 %v4710, 4294901760
        %v4712 = vsub.f32 %v4710, %v4711
        %v4713 = vand.u32 %v4712, 4294901760
        %4714 = vmatpush1.msra.mxu0 %v4713
        %v4715 = vand.u32 %v4576, 4294901760
        %v4716 = vsub.f32 %v4576, %v4715
        %v4717 = vand.u32 %v4716, 4294901760
        %v4718 = vsub.f32 %v4716, %v4717
        %v4719 = vand.u32 %v4718, 4294901760
        %4720 = vmatprep.subr.mxu0 %v4719
        %v4721 = vand.u32 %v4575, 4294901760
        %v4722 = vsub.f32 %v4575, %v4721
        %v4723 = vand.u32 %v4722, 4294901760
        %v4724 = vsub.f32 %v4722, %v4723
        %v4725 = vand.u32 %v4724, 4294901760
        %4726 = vmatpush1.msra.mxu0 %v4725
        %4727 = vmatprep.subr.mxu0 0.0
        %4728 = vmatpush1.msra.mxu0 0.0
        %4729 = vmatprep.subr.mxu0 0.0
        %4730 = vmatpush1.msra.mxu0 0.0
        %4731 = vmatprep.subr.mxu0 0.0
        %4732 = vmatpush1.msra.mxu0 0.0
        %4733 = vmatprep.subr.mxu0 0.0
        %4734 = vmatpush1.msra.mxu0 0.0
        %4735 = vmatprep.subr.mxu0 0.0
        %4736 = vmatpush1.msra.mxu0 0.0
        %4737 = vmatprep.subr.mxu0 0.0
        %4738 = vmatpush1.msra.mxu0 0.0
        %4739 = vmatprep.subr.mxu0 0.0
        %4740 = vmatpush1.msra.mxu0 0.0
        %4741 = vmatprep.subr.mxu0 0.0
        %4742 = vmatpush1.msra.mxu0 0.0
        %4743 = vmatprep.subr.mxu0 0.0
        %4744 = vmatpush1.msra.mxu0 0.0
        %4745 = vmatprep.subr.mxu0 0.0
        %4746 = vmatpush1.msra.mxu0 0.0
        %4747 = vmatprep.subr.mxu0 0.0
        %4748 = vmatpush1.msra.mxu0 0.0
        %4749 = vmatprep.subr.mxu0 0.0
        %4750 = vmatpush1.msra.mxu0 0.0
        %4751 = vmatprep.subr.mxu0 0.0
        %4752 = vmatpush1.msra.mxu0 0.0
        %4753 = vmatprep.subr.mxu0 0.0
        %4754 = vmatpush1.msra.mxu0 0.0
        %4755 = vmatprep.subr.mxu0 0.0
        %4756 = vmatpush1.msra.mxu0 0.0
        %4757 = vmatprep.subr.mxu0 0.0
        %4758 = vmatpush1.msra.mxu0 0.0
        %4759 = vmatprep.subr.mxu0 0.0
        %4760 = vmatpush1.msra.mxu0 0.0
        %4761 = vmatprep.subr.mxu0 0.0
        %4762 = vmatpush1.msra.mxu0 0.0
        %4763 = vmatprep.subr.mxu0 0.0
        %4764 = vmatpush1.msra.mxu0 0.0
        %4765 = vmatprep.subr.mxu0 0.0
        %4766 = vmatpush1.msra.mxu0 0.0
        %4767 = vmatprep.subr.mxu0 0.0
        %4768 = vmatpush1.msra.mxu0 0.0
        %4769 = vmatprep.subr.mxu0 0.0
        %4770 = vmatpush1.msra.mxu0 0.0
        %4771 = vmatprep.subr.mxu0 0.0
        %4772 = vmatpush1.msra.mxu0 0.0
        %4773 = vmatprep.subr.mxu0 0.0
        %4774 = vmatpush1.msra.mxu0 0.0
        %4775 = vmatprep.subr.mxu0 0.0
        %4776 = vmatpush1.msra.mxu0 0.0
        %4777 = vmatprep.subr.mxu0 0.0
        %4778 = vmatpush1.msra.mxu0 0.0
        %4779 = vmatprep.subr.mxu0 0.0
        %4780 = vmatpush1.msra.mxu0 0.0
        %4781 = vmatprep.subr.mxu0 0.0
        %4782 = vmatpush1.msra.mxu0 0.0
        %4783 = vmatprep.mubr.f32.mxu0 0.0
        %v4784 = vand.u32 %v4579, 4294901760
        %4785 = vmatmul.mubr.f32.gmra.mrb[0].mxu0 %v4784
        %v4786 = vpop.f32.mrb[0].mxu0
        %v4787 = vadd.f32 %v4664, %v4786
        %v4788 = vpop.f32.mrb[0].mxu0
        %v4789 = vadd.f32 %v4666, %v4788
        %4790 = vmatprep.mubr.f32.mxu0 0.0
        %v4791 = vand.u32 %v4582, 4294901760
        %4792 = vmatmul.mubr.f32.gmra.mrb[0].mxu0 %v4791
        %v4793 = vpop.f32.mrb[0].mxu0
        %v4794 = vadd.f32 %v4675, %v4793
        %v4795 = vpop.f32.mrb[0].mxu0
        %v4796 = vadd.f32 %v4677, %v4795
        %4797 = vdwg.mxu0
        %v4798 = vand.u32 %v4567, 4294901760
        %v4799 = vsub.f32 %v4567, %v4798
        %4800 = vmatprep.subr.mxu0 %v4799
        %v4801 = vand.u32 %v4566, 4294901760
        %v4802 = vsub.f32 %v4566, %v4801
        %4803 = vmatpush1.msra.mxu0 %v4802
        %v4804 = vand.u32 %v4570, 4294901760
        %v4805 = vsub.f32 %v4570, %v4804
        %4806 = vmatprep.subr.mxu0 %v4805
        %v4807 = vand.u32 %v4569, 4294901760
        %v4808 = vsub.f32 %v4569, %v4807
        %4809 = vmatpush1.msra.mxu0 %v4808
        %v4810 = vand.u32 %v4573, 4294901760
        %v4811 = vsub.f32 %v4573, %v4810
        %4812 = vmatprep.subr.mxu0 %v4811
        %v4813 = vand.u32 %v4572, 4294901760
        %v4814 = vsub.f32 %v4572, %v4813
        %4815 = vmatpush1.msra.mxu0 %v4814
        %v4816 = vand.u32 %v4576, 4294901760
        %v4817 = vsub.f32 %v4576, %v4816
        %4818 = vmatprep.subr.mxu0 %v4817
        %v4819 = vand.u32 %v4575, 4294901760
        %v4820 = vsub.f32 %v4575, %v4819
        %4821 = vmatpush1.msra.mxu0 %v4820
        %4822 = vmatprep.subr.mxu0 0.0
        %4823 = vmatpush1.msra.mxu0 0.0
        %4824 = vmatprep.subr.mxu0 0.0
        %4825 = vmatpush1.msra.mxu0 0.0
        %4826 = vmatprep.subr.mxu0 0.0
        %4827 = vmatpush1.msra.mxu0 0.0
        %4828 = vmatprep.subr.mxu0 0.0
        %4829 = vmatpush1.msra.mxu0 0.0
        %4830 = vmatprep.subr.mxu0 0.0
        %4831 = vmatpush1.msra.mxu0 0.0
        %4832 = vmatprep.subr.mxu0 0.0
        %4833 = vmatpush1.msra.mxu0 0.0
        %4834 = vmatprep.subr.mxu0 0.0
        %4835 = vmatpush1.msra.mxu0 0.0
        %4836 = vmatprep.subr.mxu0 0.0
        %4837 = vmatpush1.msra.mxu0 0.0
        %4838 = vmatprep.subr.mxu0 0.0
        %4839 = vmatpush1.msra.mxu0 0.0
        %4840 = vmatprep.subr.mxu0 0.0
        %4841 = vmatpush1.msra.mxu0 0.0
        %4842 = vmatprep.subr.mxu0 0.0
        %4843 = vmatpush1.msra.mxu0 0.0
        %4844 = vmatprep.subr.mxu0 0.0
        %4845 = vmatpush1.msra.mxu0 0.0
        %4846 = vmatprep.subr.mxu0 0.0
        %4847 = vmatpush1.msra.mxu0 0.0
        %4848 = vmatprep.subr.mxu0 0.0
        %4849 = vmatpush1.msra.mxu0 0.0
        %4850 = vmatprep.subr.mxu0 0.0
        %4851 = vmatpush1.msra.mxu0 0.0
        %4852 = vmatprep.subr.mxu0 0.0
        %4853 = vmatpush1.msra.mxu0 0.0
        %4854 = vmatprep.subr.mxu0 0.0
        %4855 = vmatpush1.msra.mxu0 0.0
        %4856 = vmatprep.subr.mxu0 0.0
        %4857 = vmatpush1.msra.mxu0 0.0
        %4858 = vmatprep.subr.mxu0 0.0
        %4859 = vmatpush1.msra.mxu0 0.0
        %4860 = vmatprep.subr.mxu0 0.0
        %4861 = vmatpush1.msra.mxu0 0.0
        %4862 = vmatprep.subr.mxu0 0.0
        %4863 = vmatpush1.msra.mxu0 0.0
        %4864 = vmatprep.subr.mxu0 0.0
        %4865 = vmatpush1.msra.mxu0 0.0
        %4866 = vmatprep.subr.mxu0 0.0
        %4867 = vmatpush1.msra.mxu0 0.0
        %4868 = vmatprep.subr.mxu0 0.0
        %4869 = vmatpush1.msra.mxu0 0.0
        %4870 = vmatprep.subr.mxu0 0.0
        %4871 = vmatpush1.msra.mxu0 0.0
        %4872 = vmatprep.subr.mxu0 0.0
        %4873 = vmatpush1.msra.mxu0 0.0
        %4874 = vmatprep.subr.mxu0 0.0
        %4875 = vmatpush1.msra.mxu0 0.0
        %4876 = vmatprep.subr.mxu0 0.0
        %4877 = vmatpush1.msra.mxu0 0.0
        %4878 = vmatprep.mubr.f32.mxu0 0.0
        %v4879 = vand.u32 %v4579, 4294901760
        %v4880 = vsub.f32 %v4579, %v4879
        %4881 = vmatmul.mubr.f32.gmra.mrb[0].mxu0 %v4880
        %v4882 = vpop.f32.mrb[0].mxu0
        %v4883 = vadd.f32 %v4787, %v4882
        %v4884 = vpop.f32.mrb[0].mxu0
        %v4885 = vadd.f32 %v4789, %v4884
        %4886 = vmatprep.mubr.f32.mxu0 0.0
        %v4887 = vand.u32 %v4582, 4294901760
        %v4888 = vsub.f32 %v4582, %v4887
        %4889 = vmatmul.mubr.f32.gmra.mrb[0].mxu0 %v4888
        %v4890 = vpop.f32.mrb[0].mxu0
        %v4891 = vadd.f32 %v4794, %v4890
        %v4892 = vpop.f32.mrb[0].mxu0
        %v4893 = vadd.f32 %v4796, %v4892
        %4894 = vdwg.mxu0
        %v4895 = vand.u32 %v4567, 4294901760
        %4896 = vmatprep.subr.mxu0 %v4895
        %v4897 = vand.u32 %v4566, 4294901760
        %4898 = vmatpush1.msra.mxu0 %v4897
        %v4899 = vand.u32 %v4570, 4294901760
        %4900 = vmatprep.subr.mxu0 %v4899
        %v4901 = vand.u32 %v4569, 4294901760
        %4902 = vmatpush1.msra.mxu0 %v4901
        %v4903 = vand.u32 %v4573, 4294901760
        %4904 = vmatprep.subr.mxu0 %v4903
        %v4905 = vand.u32 %v4572, 4294901760
        %4906 = vmatpush1.msra.mxu0 %v4905
        %v4907 = vand.u32 %v4576, 4294901760
        %4908 = vmatprep.subr.mxu0 %v4907
        %v4909 = vand.u32 %v4575, 4294901760
        %4910 = vmatpush1.msra.mxu0 %v4909
        %4911 = vmatprep.subr.mxu0 0.0
        %4912 = vmatpush1.msra.mxu0 0.0
        %4913 = vmatprep.subr.mxu0 0.0
        %4914 = vmatpush1.msra.mxu0 0.0
        %4915 = vmatprep.subr.mxu0 0.0
        %4916 = vmatpush1.msra.mxu0 0.0
        %4917 = vmatprep.subr.mxu0 0.0
        %4918 = vmatpush1.msra.mxu0 0.0
        %4919 = vmatprep.subr.mxu0 0.0
        %4920 = vmatpush1.msra.mxu0 0.0
        %4921 = vmatprep.subr.mxu0 0.0
        %4922 = vmatpush1.msra.mxu0 0.0
        %4923 = vmatprep.subr.mxu0 0.0
        %4924 = vmatpush1.msra.mxu0 0.0
        %4925 = vmatprep.subr.mxu0 0.0
        %4926 = vmatpush1.msra.mxu0 0.0
        %4927 = vmatprep.subr.mxu0 0.0
        %4928 = vmatpush1.msra.mxu0 0.0
        %4929 = vmatprep.subr.mxu0 0.0
        %4930 = vmatpush1.msra.mxu0 0.0
        %4931 = vmatprep.subr.mxu0 0.0
        %4932 = vmatpush1.msra.mxu0 0.0
        %4933 = vmatprep.subr.mxu0 0.0
        %4934 = vmatpush1.msra.mxu0 0.0
        %4935 = vmatprep.subr.mxu0 0.0
        %4936 = vmatpush1.msra.mxu0 0.0
        %4937 = vmatprep.subr.mxu0 0.0
        %4938 = vmatpush1.msra.mxu0 0.0
        %4939 = vmatprep.subr.mxu0 0.0
        %4940 = vmatpush1.msra.mxu0 0.0
        %4941 = vmatprep.subr.mxu0 0.0
        %4942 = vmatpush1.msra.mxu0 0.0
        %4943 = vmatprep.subr.mxu0 0.0
        %4944 = vmatpush1.msra.mxu0 0.0
        %4945 = vmatprep.subr.mxu0 0.0
        %4946 = vmatpush1.msra.mxu0 0.0
        %4947 = vmatprep.subr.mxu0 0.0
        %4948 = vmatpush1.msra.mxu0 0.0
        %4949 = vmatprep.subr.mxu0 0.0
        %4950 = vmatpush1.msra.mxu0 0.0
        %4951 = vmatprep.subr.mxu0 0.0
        %4952 = vmatpush1.msra.mxu0 0.0
        %4953 = vmatprep.subr.mxu0 0.0
        %4954 = vmatpush1.msra.mxu0 0.0
        %4955 = vmatprep.subr.mxu0 0.0
        %4956 = vmatpush1.msra.mxu0 0.0
        %4957 = vmatprep.subr.mxu0 0.0
        %4958 = vmatpush1.msra.mxu0 0.0
        %4959 = vmatprep.subr.mxu0 0.0
        %4960 = vmatpush1.msra.mxu0 0.0
        %4961 = vmatprep.subr.mxu0 0.0
        %4962 = vmatpush1.msra.mxu0 0.0
        %4963 = vmatprep.subr.mxu0 0.0
        %4964 = vmatpush1.msra.mxu0 0.0
        %4965 = vmatprep.subr.mxu0 0.0
        %4966 = vmatpush1.msra.mxu0 0.0
        %4967 = vmatprep.mubr.f32.mxu0 0.0
        %v4968 = vand.u32 %v4579, 4294901760
        %v4969 = vsub.f32 %v4579, %v4968
        %v4970 = vand.u32 %v4969, 4294901760
        %4971 = vmatmul.mubr.f32.gmra.mrb[0].mxu0 %v4970
        %v4972 = vpop.f32.mrb[0].mxu0
        %v4973 = vadd.f32 %v4883, %v4972
        %v4974 = vpop.f32.mrb[0].mxu0
        %v4975 = vadd.f32 %v4885, %v4974
        %4976 = vmatprep.mubr.f32.mxu0 0.0
        %v4977 = vand.u32 %v4582, 4294901760
        %v4978 = vsub.f32 %v4582, %v4977
        %v4979 = vand.u32 %v4978, 4294901760
        %4980 = vmatmul.mubr.f32.gmra.mrb[0].mxu0 %v4979
        %v4981 = vpop.f32.mrb[0].mxu0
        %v4982 = vadd.f32 %v4891, %v4981
        %v4983 = vpop.f32.mrb[0].mxu0
        %v4984 = vadd.f32 %v4893, %v4983
        %4985 = vdwg.mxu0
        %v4986 = vand.u32 %v4567, 4294901760
        %v4987 = vsub.f32 %v4567, %v4986
        %v4988 = vand.u32 %v4987, 4294901760
        %4989 = vmatprep.subr.mxu0 %v4988
        %v4990 = vand.u32 %v4566, 4294901760
        %v4991 = vsub.f32 %v4566, %v4990
        %v4992 = vand.u32 %v4991, 4294901760
        %4993 = vmatpush1.msra.mxu0 %v4992
        %v4994 = vand.u32 %v4570, 4294901760
        %v4995 = vsub.f32 %v4570, %v4994
        %v4996 = vand.u32 %v4995, 4294901760
        %4997 = vmatprep.subr.mxu0 %v4996
        %v4998 = vand.u32 %v4569, 4294901760
        %v4999 = vsub.f32 %v4569, %v4998
        %v5000 = vand.u32 %v4999, 4294901760
        %5001 = vmatpush1.msra.mxu0 %v5000
        %v5002 = vand.u32 %v4573, 4294901760
        %v5003 = vsub.f32 %v4573, %v5002
        %v5004 = vand.u32 %v5003, 4294901760
        %5005 = vmatprep.subr.mxu0 %v5004
        %v5006 = vand.u32 %v4572, 4294901760
        %v5007 = vsub.f32 %v4572, %v5006
        %v5008 = vand.u32 %v5007, 4294901760
        %5009 = vmatpush1.msra.mxu0 %v5008
        %v5010 = vand.u32 %v4576, 4294901760
        %v5011 = vsub.f32 %v4576, %v5010
        %v5012 = vand.u32 %v5011, 4294901760
        %5013 = vmatprep.subr.mxu0 %v5012
        %v5014 = vand.u32 %v4575, 4294901760
        %v5015 = vsub.f32 %v4575, %v5014
        %v5016 = vand.u32 %v5015, 4294901760
        %5017 = vmatpush1.msra.mxu0 %v5016
        %5018 = vmatprep.subr.mxu0 0.0
        %5019 = vmatpush1.msra.mxu0 0.0
        %5020 = vmatprep.subr.mxu0 0.0
        %5021 = vmatpush1.msra.mxu0 0.0
        %5022 = vmatprep.subr.mxu0 0.0
        %5023 = vmatpush1.msra.mxu0 0.0
        %5024 = vmatprep.subr.mxu0 0.0
        %5025 = vmatpush1.msra.mxu0 0.0
        %5026 = vmatprep.subr.mxu0 0.0
        %5027 = vmatpush1.msra.mxu0 0.0
        %5028 = vmatprep.subr.mxu0 0.0
        %5029 = vmatpush1.msra.mxu0 0.0
        %5030 = vmatprep.subr.mxu0 0.0
        %5031 = vmatpush1.msra.mxu0 0.0
        %5032 = vmatprep.subr.mxu0 0.0
        %5033 = vmatpush1.msra.mxu0 0.0
        %5034 = vmatprep.subr.mxu0 0.0
        %5035 = vmatpush1.msra.mxu0 0.0
        %5036 = vmatprep.subr.mxu0 0.0
        %5037 = vmatpush1.msra.mxu0 0.0
        %5038 = vmatprep.subr.mxu0 0.0
        %5039 = vmatpush1.msra.mxu0 0.0
        %5040 = vmatprep.subr.mxu0 0.0
        %5041 = vmatpush1.msra.mxu0 0.0
        %5042 = vmatprep.subr.mxu0 0.0
        %5043 = vmatpush1.msra.mxu0 0.0
        %5044 = vmatprep.subr.mxu0 0.0
        %5045 = vmatpush1.msra.mxu0 0.0
        %5046 = vmatprep.subr.mxu0 0.0
        %5047 = vmatpush1.msra.mxu0 0.0
        %5048 = vmatprep.subr.mxu0 0.0
        %5049 = vmatpush1.msra.mxu0 0.0
        %5050 = vmatprep.subr.mxu0 0.0
        %5051 = vmatpush1.msra.mxu0 0.0
        %5052 = vmatprep.subr.mxu0 0.0
        %5053 = vmatpush1.msra.mxu0 0.0
        %5054 = vmatprep.subr.mxu0 0.0
        %5055 = vmatpush1.msra.mxu0 0.0
        %5056 = vmatprep.subr.mxu0 0.0
        %5057 = vmatpush1.msra.mxu0 0.0
        %5058 = vmatprep.subr.mxu0 0.0
        %5059 = vmatpush1.msra.mxu0 0.0
        %5060 = vmatprep.subr.mxu0 0.0
        %5061 = vmatpush1.msra.mxu0 0.0
        %5062 = vmatprep.subr.mxu0 0.0
        %5063 = vmatpush1.msra.mxu0 0.0
        %5064 = vmatprep.subr.mxu0 0.0
        %5065 = vmatpush1.msra.mxu0 0.0
        %5066 = vmatprep.subr.mxu0 0.0
        %5067 = vmatpush1.msra.mxu0 0.0
        %5068 = vmatprep.subr.mxu0 0.0
        %5069 = vmatpush1.msra.mxu0 0.0
        %5070 = vmatprep.subr.mxu0 0.0
        %5071 = vmatpush1.msra.mxu0 0.0
        %5072 = vmatprep.subr.mxu0 0.0
        %5073 = vmatpush1.msra.mxu0 0.0
        %5074 = vmatprep.mubr.f32.mxu0 0.0
        %v5075 = vand.u32 %v4579, 4294901760
        %5076 = vmatmul.mubr.f32.gmra.mrb[0].mxu0 %v5075
        %v5077 = vpop.f32.mrb[0].mxu0
        %v5078 = vadd.f32 %v4973, %v5077
        %v5079 = vpop.f32.mrb[0].mxu0
        %v5080 = vadd.f32 %v4975, %v5079
        %5081 = vmatprep.mubr.f32.mxu0 0.0
        %v5082 = vand.u32 %v4582, 4294901760
        %5083 = vmatmul.mubr.f32.gmra.mrb[0].mxu0 %v5082
        %v5084 = vpop.f32.mrb[0].mxu0
        %v5085 = vadd.f32 %v4982, %v5084
        %v5086 = vpop.f32.mrb[0].mxu0
        %v5087 = vadd.f32 %v4984, %v5086
        %5088 = vdwg.mxu0
        %v5089 = vand.u32 %v4567, 4294901760
        %5090 = vmatprep.subr.mxu0 %v5089
        %v5091 = vand.u32 %v4566, 4294901760
        %5092 = vmatpush1.msra.mxu0 %v5091
        %v5093 = vand.u32 %v4570, 4294901760
        %5094 = vmatprep.subr.mxu0 %v5093
        %v5095 = vand.u32 %v4569, 4294901760
        %5096 = vmatpush1.msra.mxu0 %v5095
        %v5097 = vand.u32 %v4573, 4294901760
        %5098 = vmatprep.subr.mxu0 %v5097
        %v5099 = vand.u32 %v4572, 4294901760
        %5100 = vmatpush1.msra.mxu0 %v5099
        %v5101 = vand.u32 %v4576, 4294901760
        %5102 = vmatprep.subr.mxu0 %v5101
        %v5103 = vand.u32 %v4575, 4294901760
        %5104 = vmatpush1.msra.mxu0 %v5103
        %5105 = vmatprep.subr.mxu0 0.0
        %5106 = vmatpush1.msra.mxu0 0.0
        %5107 = vmatprep.subr.mxu0 0.0
        %5108 = vmatpush1.msra.mxu0 0.0
        %5109 = vmatprep.subr.mxu0 0.0
        %5110 = vmatpush1.msra.mxu0 0.0
        %5111 = vmatprep.subr.mxu0 0.0
        %5112 = vmatpush1.msra.mxu0 0.0
        %5113 = vmatprep.subr.mxu0 0.0
        %5114 = vmatpush1.msra.mxu0 0.0
        %5115 = vmatprep.subr.mxu0 0.0
        %5116 = vmatpush1.msra.mxu0 0.0
        %5117 = vmatprep.subr.mxu0 0.0
        %5118 = vmatpush1.msra.mxu0 0.0
        %5119 = vmatprep.subr.mxu0 0.0
        %5120 = vmatpush1.msra.mxu0 0.0
        %5121 = vmatprep.subr.mxu0 0.0
        %5122 = vmatpush1.msra.mxu0 0.0
        %5123 = vmatprep.subr.mxu0 0.0
        %5124 = vmatpush1.msra.mxu0 0.0
        %5125 = vmatprep.subr.mxu0 0.0
        %5126 = vmatpush1.msra.mxu0 0.0
        %5127 = vmatprep.subr.mxu0 0.0
        %5128 = vmatpush1.msra.mxu0 0.0
        %5129 = vmatprep.subr.mxu0 0.0
        %5130 = vmatpush1.msra.mxu0 0.0
        %5131 = vmatprep.subr.mxu0 0.0
        %5132 = vmatpush1.msra.mxu0 0.0
        %5133 = vmatprep.subr.mxu0 0.0
        %5134 = vmatpush1.msra.mxu0 0.0
        %5135 = vmatprep.subr.mxu0 0.0
        %5136 = vmatpush1.msra.mxu0 0.0
        %5137 = vmatprep.subr.mxu0 0.0
        %5138 = vmatpush1.msra.mxu0 0.0
        %5139 = vmatprep.subr.mxu0 0.0
        %5140 = vmatpush1.msra.mxu0 0.0
        %5141 = vmatprep.subr.mxu0 0.0
        %5142 = vmatpush1.msra.mxu0 0.0
        %5143 = vmatprep.subr.mxu0 0.0
        %5144 = vmatpush1.msra.mxu0 0.0
        %5145 = vmatprep.subr.mxu0 0.0
        %5146 = vmatpush1.msra.mxu0 0.0
        %5147 = vmatprep.subr.mxu0 0.0
        %5148 = vmatpush1.msra.mxu0 0.0
        %5149 = vmatprep.subr.mxu0 0.0
        %5150 = vmatpush1.msra.mxu0 0.0
        %5151 = vmatprep.subr.mxu0 0.0
        %5152 = vmatpush1.msra.mxu0 0.0
        %5153 = vmatprep.subr.mxu0 0.0
        %5154 = vmatpush1.msra.mxu0 0.0
        %5155 = vmatprep.subr.mxu0 0.0
        %5156 = vmatpush1.msra.mxu0 0.0
        %5157 = vmatprep.subr.mxu0 0.0
        %5158 = vmatpush1.msra.mxu0 0.0
        %5159 = vmatprep.subr.mxu0 0.0
        %5160 = vmatpush1.msra.mxu0 0.0
        %5161 = vmatprep.mubr.f32.mxu0 0.0
        %v5162 = vand.u32 %v4579, 4294901760
        %5163 = vmatmul.mubr.f32.gmra.mrb[0].mxu0 %v5162
        %v5164 = vpop.f32.mrb[0].mxu0
        %v5165 = vadd.f32 %v5078, %v5164
        %v5166 = vpop.f32.mrb[0].mxu0
        %v5167 = vadd.f32 %v5080, %v5166
        %5168 = vmatprep.mubr.f32.mxu0 0.0
        %v5169 = vand.u32 %v4582, 4294901760
        %5170 = vmatmul.mubr.f32.gmra.mrb[0].mxu0 %v5169
        %v5171 = vpop.f32.mrb[0].mxu0
        %v5172 = vadd.f32 %v5085, %v5171
        %v5173 = vpop.f32.mrb[0].mxu0
        %v5174 = vadd.f32 %v5087, %v5173
        %5175 = vdwg.mxu0
        %5176 = vmatprep.subr.mxu0 0.0
        %v5177 = vand.u32 %v4568, 4294901760
        %5178 = vmatpush1.msra.mxu0 %v5177
        %5179 = vmatprep.subr.mxu0 0.0
        %v5180 = vand.u32 %v4571, 4294901760
        %5181 = vmatpush1.msra.mxu0 %v5180
        %5182 = vmatprep.subr.mxu0 0.0
        %v5183 = vand.u32 %v4574, 4294901760
        %5184 = vmatpush1.msra.mxu0 %v5183
        %5185 = vmatprep.subr.mxu0 0.0
        %v5186 = vand.u32 %v4577, 4294901760
        %5187 = vmatpush1.msra.mxu0 %v5186
        %5188 = vmatprep.subr.mxu0 0.0
        %5189 = vmatpush1.msra.mxu0 0.0
        %5190 = vmatprep.subr.mxu0 0.0
        %5191 = vmatpush1.msra.mxu0 0.0
        %5192 = vmatprep.subr.mxu0 0.0
        %5193 = vmatpush1.msra.mxu0 0.0
        %5194 = vmatprep.subr.mxu0 0.0
        %5195 = vmatpush1.msra.mxu0 0.0
        %5196 = vmatprep.subr.mxu0 0.0
        %5197 = vmatpush1.msra.mxu0 0.0
        %5198 = vmatprep.subr.mxu0 0.0
        %5199 = vmatpush1.msra.mxu0 0.0
        %5200 = vmatprep.subr.mxu0 0.0
        %5201 = vmatpush1.msra.mxu0 0.0
        %5202 = vmatprep.subr.mxu0 0.0
        %5203 = vmatpush1.msra.mxu0 0.0
        %5204 = vmatprep.subr.mxu0 0.0
        %5205 = vmatpush1.msra.mxu0 0.0
        %5206 = vmatprep.subr.mxu0 0.0
        %5207 = vmatpush1.msra.mxu0 0.0
        %5208 = vmatprep.subr.mxu0 0.0
        %5209 = vmatpush1.msra.mxu0 0.0
        %5210 = vmatprep.subr.mxu0 0.0
        %5211 = vmatpush1.msra.mxu0 0.0
        %5212 = vmatprep.subr.mxu0 0.0
        %5213 = vmatpush1.msra.mxu0 0.0
        %5214 = vmatprep.subr.mxu0 0.0
        %5215 = vmatpush1.msra.mxu0 0.0
        %5216 = vmatprep.subr.mxu0 0.0
        %5217 = vmatpush1.msra.mxu0 0.0
        %5218 = vmatprep.subr.mxu0 0.0
        %5219 = vmatpush1.msra.mxu0 0.0
        %5220 = vmatprep.subr.mxu0 0.0
        %5221 = vmatpush1.msra.mxu0 0.0
        %5222 = vmatprep.subr.mxu0 0.0
        %5223 = vmatpush1.msra.mxu0 0.0
        %5224 = vmatprep.subr.mxu0 0.0
        %5225 = vmatpush1.msra.mxu0 0.0
        %5226 = vmatprep.subr.mxu0 0.0
        %5227 = vmatpush1.msra.mxu0 0.0
        %5228 = vmatprep.subr.mxu0 0.0
        %5229 = vmatpush1.msra.mxu0 0.0
        %5230 = vmatprep.subr.mxu0 0.0
        %5231 = vmatpush1.msra.mxu0 0.0
        %5232 = vmatprep.subr.mxu0 0.0
        %5233 = vmatpush1.msra.mxu0 0.0
        %5234 = vmatprep.subr.mxu0 0.0
        %5235 = vmatpush1.msra.mxu0 0.0
        %5236 = vmatprep.subr.mxu0 0.0
        %5237 = vmatpush1.msra.mxu0 0.0
        %5238 = vmatprep.subr.mxu0 0.0
        %5239 = vmatpush1.msra.mxu0 0.0
        %5240 = vmatprep.subr.mxu0 0.0
        %5241 = vmatpush1.msra.mxu0 0.0
        %5242 = vmatprep.subr.mxu0 0.0
        %5243 = vmatpush1.msra.mxu0 0.0
        %5244 = vmatprep.mubr.f32.mxu0 0.0
        %v5245 = vand.u32 %v4579, 4294901760
        %v5246 = vsub.f32 %v4579, %v5245
        %v5247 = vand.u32 %v5246, 4294901760
        %v5248 = vsub.f32 %v5246, %v5247
        %v5249 = vand.u32 %v5248, 4294901760
        %5250 = vmatmul.mubr.f32.gmra.mrb[0].mxu0 %v5249
        %v5251 = vpop.f32.mrb[0].mxu0
        %v5252 = vadd.f32 0.0, %v5251
        %v5253 = vpop.f32.mrb[0].mxu0
        %5254 = vmatprep.mubr.f32.mxu0 0.0
        %v5255 = vand.u32 %v4582, 4294901760
        %v5256 = vsub.f32 %v4582, %v5255
        %v5257 = vand.u32 %v5256, 4294901760
        %v5258 = vsub.f32 %v5256, %v5257
        %v5259 = vand.u32 %v5258, 4294901760
        %5260 = vmatmul.mubr.f32.gmra.mrb[0].mxu0 %v5259
        %v5261 = vpop.f32.mrb[0].mxu0
        %v5262 = vadd.f32 0.0, %v5261
        %v5263 = vpop.f32.mrb[0].mxu0
        %5264 = vdwg.mxu0
        %5265 = vmatprep.subr.mxu0 0.0
        %v5266 = vand.u32 %v4568, 4294901760
        %v5267 = vsub.f32 %v4568, %v5266
        %v5268 = vand.u32 %v5267, 4294901760
        %v5269 = vsub.f32 %v5267, %v5268
        %v5270 = vand.u32 %v5269, 4294901760
        %5271 = vmatpush1.msra.mxu0 %v5270
        %5272 = vmatprep.subr.mxu0 0.0
        %v5273 = vand.u32 %v4571, 4294901760
        %v5274 = vsub.f32 %v4571, %v5273
        %v5275 = vand.u32 %v5274, 4294901760
        %v5276 = vsub.f32 %v5274, %v5275
        %v5277 = vand.u32 %v5276, 4294901760
        %5278 = vmatpush1.msra.mxu0 %v5277
        %5279 = vmatprep.subr.mxu0 0.0
        %v5280 = vand.u32 %v4574, 4294901760
        %v5281 = vsub.f32 %v4574, %v5280
        %v5282 = vand.u32 %v5281, 4294901760
        %v5283 = vsub.f32 %v5281, %v5282
        %v5284 = vand.u32 %v5283, 4294901760
        %5285 = vmatpush1.msra.mxu0 %v5284
        %5286 = vmatprep.subr.mxu0 0.0
        %v5287 = vand.u32 %v4577, 4294901760
        %v5288 = vsub.f32 %v4577, %v5287
        %v5289 = vand.u32 %v5288, 4294901760
        %v5290 = vsub.f32 %v5288, %v5289
        %v5291 = vand.u32 %v5290, 4294901760
        %5292 = vmatpush1.msra.mxu0 %v5291
        %5293 = vmatprep.subr.mxu0 0.0
        %5294 = vmatpush1.msra.mxu0 0.0
        %5295 = vmatprep.subr.mxu0 0.0
        %5296 = vmatpush1.msra.mxu0 0.0
        %5297 = vmatprep.subr.mxu0 0.0
        %5298 = vmatpush1.msra.mxu0 0.0
        %5299 = vmatprep.subr.mxu0 0.0
        %5300 = vmatpush1.msra.mxu0 0.0
        %5301 = vmatprep.subr.mxu0 0.0
        %5302 = vmatpush1.msra.mxu0 0.0
        %5303 = vmatprep.subr.mxu0 0.0
        %5304 = vmatpush1.msra.mxu0 0.0
        %5305 = vmatprep.subr.mxu0 0.0
        %5306 = vmatpush1.msra.mxu0 0.0
        %5307 = vmatprep.subr.mxu0 0.0
        %5308 = vmatpush1.msra.mxu0 0.0
        %5309 = vmatprep.subr.mxu0 0.0
        %5310 = vmatpush1.msra.mxu0 0.0
        %5311 = vmatprep.subr.mxu0 0.0
        %5312 = vmatpush1.msra.mxu0 0.0
        %5313 = vmatprep.subr.mxu0 0.0
        %5314 = vmatpush1.msra.mxu0 0.0
        %5315 = vmatprep.subr.mxu0 0.0
        %5316 = vmatpush1.msra.mxu0 0.0
        %5317 = vmatprep.subr.mxu0 0.0
        %5318 = vmatpush1.msra.mxu0 0.0
        %5319 = vmatprep.subr.mxu0 0.0
        %5320 = vmatpush1.msra.mxu0 0.0
        %5321 = vmatprep.subr.mxu0 0.0
        %5322 = vmatpush1.msra.mxu0 0.0
        %5323 = vmatprep.subr.mxu0 0.0
        %5324 = vmatpush1.msra.mxu0 0.0
        %5325 = vmatprep.subr.mxu0 0.0
        %5326 = vmatpush1.msra.mxu0 0.0
        %5327 = vmatprep.subr.mxu0 0.0
        %5328 = vmatpush1.msra.mxu0 0.0
        %5329 = vmatprep.subr.mxu0 0.0
        %5330 = vmatpush1.msra.mxu0 0.0
        %5331 = vmatprep.subr.mxu0 0.0
        %5332 = vmatpush1.msra.mxu0 0.0
        %5333 = vmatprep.subr.mxu0 0.0
        %5334 = vmatpush1.msra.mxu0 0.0
        %5335 = vmatprep.subr.mxu0 0.0
        %5336 = vmatpush1.msra.mxu0 0.0
        %5337 = vmatprep.subr.mxu0 0.0
        %5338 = vmatpush1.msra.mxu0 0.0
        %5339 = vmatprep.subr.mxu0 0.0
        %5340 = vmatpush1.msra.mxu0 0.0
        %5341 = vmatprep.subr.mxu0 0.0
        %5342 = vmatpush1.msra.mxu0 0.0
        %5343 = vmatprep.subr.mxu0 0.0
        %5344 = vmatpush1.msra.mxu0 0.0
        %5345 = vmatprep.subr.mxu0 0.0
        %5346 = vmatpush1.msra.mxu0 0.0
        %5347 = vmatprep.subr.mxu0 0.0
        %5348 = vmatpush1.msra.mxu0 0.0
        %5349 = vmatprep.mubr.f32.mxu0 0.0
        %v5350 = vand.u32 %v4579, 4294901760
        %5351 = vmatmul.mubr.f32.gmra.mrb[0].mxu0 %v5350
        %v5352 = vpop.f32.mrb[0].mxu0
        %v5353 = vadd.f32 %v5252, %v5352
        %v5354 = vpop.f32.mrb[0].mxu0
        %5355 = vmatprep.mubr.f32.mxu0 0.0
        %v5356 = vand.u32 %v4582, 4294901760
        %5357 = vmatmul.mubr.f32.gmra.mrb[0].mxu0 %v5356
        %v5358 = vpop.f32.mrb[0].mxu0
        %v5359 = vadd.f32 %v5262, %v5358
        %v5360 = vpop.f32.mrb[0].mxu0
        %5361 = vdwg.mxu0
        %5362 = vmatprep.subr.mxu0 0.0
        %v5363 = vand.u32 %v4568, 4294901760
        %v5364 = vsub.f32 %v4568, %v5363
        %5365 = vmatpush1.msra.mxu0 %v5364
        %5366 = vmatprep.subr.mxu0 0.0
        %v5367 = vand.u32 %v4571, 4294901760
        %v5368 = vsub.f32 %v4571, %v5367
        %5369 = vmatpush1.msra.mxu0 %v5368
        %5370 = vmatprep.subr.mxu0 0.0
        %v5371 = vand.u32 %v4574, 4294901760
        %v5372 = vsub.f32 %v4574, %v5371
        %5373 = vmatpush1.msra.mxu0 %v5372
        %5374 = vmatprep.subr.mxu0 0.0
        %v5375 = vand.u32 %v4577, 4294901760
        %v5376 = vsub.f32 %v4577, %v5375
        %5377 = vmatpush1.msra.mxu0 %v5376
        %5378 = vmatprep.subr.mxu0 0.0
        %5379 = vmatpush1.msra.mxu0 0.0
        %5380 = vmatprep.subr.mxu0 0.0
        %5381 = vmatpush1.msra.mxu0 0.0
        %5382 = vmatprep.subr.mxu0 0.0
        %5383 = vmatpush1.msra.mxu0 0.0
        %5384 = vmatprep.subr.mxu0 0.0
        %5385 = vmatpush1.msra.mxu0 0.0
        %5386 = vmatprep.subr.mxu0 0.0
        %5387 = vmatpush1.msra.mxu0 0.0
        %5388 = vmatprep.subr.mxu0 0.0
        %5389 = vmatpush1.msra.mxu0 0.0
        %5390 = vmatprep.subr.mxu0 0.0
        %5391 = vmatpush1.msra.mxu0 0.0
        %5392 = vmatprep.subr.mxu0 0.0
        %5393 = vmatpush1.msra.mxu0 0.0
        %5394 = vmatprep.subr.mxu0 0.0
        %5395 = vmatpush1.msra.mxu0 0.0
        %5396 = vmatprep.subr.mxu0 0.0
        %5397 = vmatpush1.msra.mxu0 0.0
        %5398 = vmatprep.subr.mxu0 0.0
        %5399 = vmatpush1.msra.mxu0 0.0
        %5400 = vmatprep.subr.mxu0 0.0
        %5401 = vmatpush1.msra.mxu0 0.0
        %5402 = vmatprep.subr.mxu0 0.0
        %5403 = vmatpush1.msra.mxu0 0.0
        %5404 = vmatprep.subr.mxu0 0.0
        %5405 = vmatpush1.msra.mxu0 0.0
        %5406 = vmatprep.subr.mxu0 0.0
        %5407 = vmatpush1.msra.mxu0 0.0
        %5408 = vmatprep.subr.mxu0 0.0
        %5409 = vmatpush1.msra.mxu0 0.0
        %5410 = vmatprep.subr.mxu0 0.0
        %5411 = vmatpush1.msra.mxu0 0.0
        %5412 = vmatprep.subr.mxu0 0.0
        %5413 = vmatpush1.msra.mxu0 0.0
        %5414 = vmatprep.subr.mxu0 0.0
        %5415 = vmatpush1.msra.mxu0 0.0
        %5416 = vmatprep.subr.mxu0 0.0
        %5417 = vmatpush1.msra.mxu0 0.0
        %5418 = vmatprep.subr.mxu0 0.0
        %5419 = vmatpush1.msra.mxu0 0.0
        %5420 = vmatprep.subr.mxu0 0.0
        %5421 = vmatpush1.msra.mxu0 0.0
        %5422 = vmatprep.subr.mxu0 0.0
        %5423 = vmatpush1.msra.mxu0 0.0
        %5424 = vmatprep.subr.mxu0 0.0
        %5425 = vmatpush1.msra.mxu0 0.0
        %5426 = vmatprep.subr.mxu0 0.0
        %5427 = vmatpush1.msra.mxu0 0.0
        %5428 = vmatprep.subr.mxu0 0.0
        %5429 = vmatpush1.msra.mxu0 0.0
        %5430 = vmatprep.subr.mxu0 0.0
        %5431 = vmatpush1.msra.mxu0 0.0
        %5432 = vmatprep.subr.mxu0 0.0
        %5433 = vmatpush1.msra.mxu0 0.0
        %5434 = vmatprep.mubr.f32.mxu0 0.0
        %v5435 = vand.u32 %v4579, 4294901760
        %v5436 = vsub.f32 %v4579, %v5435
        %5437 = vmatmul.mubr.f32.gmra.mrb[0].mxu0 %v5436
        %v5438 = vpop.f32.mrb[0].mxu0
        %v5439 = vadd.f32 %v5353, %v5438
        %v5440 = vpop.f32.mrb[0].mxu0
        %5441 = vmatprep.mubr.f32.mxu0 0.0
        %v5442 = vand.u32 %v4582, 4294901760
        %v5443 = vsub.f32 %v4582, %v5442
        %5444 = vmatmul.mubr.f32.gmra.mrb[0].mxu0 %v5443
        %v5445 = vpop.f32.mrb[0].mxu0
        %v5446 = vadd.f32 %v5359, %v5445
        %v5447 = vpop.f32.mrb[0].mxu0
        %5448 = vdwg.mxu0
        %5449 = vmatprep.subr.mxu0 0.0
        %v5450 = vand.u32 %v4568, 4294901760
        %5451 = vmatpush1.msra.mxu0 %v5450
        %5452 = vmatprep.subr.mxu0 0.0
        %v5453 = vand.u32 %v4571, 4294901760
        %5454 = vmatpush1.msra.mxu0 %v5453
        %5455 = vmatprep.subr.mxu0 0.0
        %v5456 = vand.u32 %v4574, 4294901760
        %5457 = vmatpush1.msra.mxu0 %v5456
        %5458 = vmatprep.subr.mxu0 0.0
        %v5459 = vand.u32 %v4577, 4294901760
        %5460 = vmatpush1.msra.mxu0 %v5459
        %5461 = vmatprep.subr.mxu0 0.0
        %5462 = vmatpush1.msra.mxu0 0.0
        %5463 = vmatprep.subr.mxu0 0.0
        %5464 = vmatpush1.msra.mxu0 0.0
        %5465 = vmatprep.subr.mxu0 0.0
        %5466 = vmatpush1.msra.mxu0 0.0
        %5467 = vmatprep.subr.mxu0 0.0
        %5468 = vmatpush1.msra.mxu0 0.0
        %5469 = vmatprep.subr.mxu0 0.0
        %5470 = vmatpush1.msra.mxu0 0.0
        %5471 = vmatprep.subr.mxu0 0.0
        %5472 = vmatpush1.msra.mxu0 0.0
        %5473 = vmatprep.subr.mxu0 0.0
        %5474 = vmatpush1.msra.mxu0 0.0
        %5475 = vmatprep.subr.mxu0 0.0
        %5476 = vmatpush1.msra.mxu0 0.0
        %5477 = vmatprep.subr.mxu0 0.0
        %5478 = vmatpush1.msra.mxu0 0.0
        %5479 = vmatprep.subr.mxu0 0.0
        %5480 = vmatpush1.msra.mxu0 0.0
        %5481 = vmatprep.subr.mxu0 0.0
        %5482 = vmatpush1.msra.mxu0 0.0
        %5483 = vmatprep.subr.mxu0 0.0
        %5484 = vmatpush1.msra.mxu0 0.0
        %5485 = vmatprep.subr.mxu0 0.0
        %5486 = vmatpush1.msra.mxu0 0.0
        %5487 = vmatprep.subr.mxu0 0.0
        %5488 = vmatpush1.msra.mxu0 0.0
        %5489 = vmatprep.subr.mxu0 0.0
        %5490 = vmatpush1.msra.mxu0 0.0
        %5491 = vmatprep.subr.mxu0 0.0
        %5492 = vmatpush1.msra.mxu0 0.0
        %5493 = vmatprep.subr.mxu0 0.0
        %5494 = vmatpush1.msra.mxu0 0.0
        %5495 = vmatprep.subr.mxu0 0.0
        %5496 = vmatpush1.msra.mxu0 0.0
        %5497 = vmatprep.subr.mxu0 0.0
        %5498 = vmatpush1.msra.mxu0 0.0
        %5499 = vmatprep.subr.mxu0 0.0
        %5500 = vmatpush1.msra.mxu0 0.0
        %5501 = vmatprep.subr.mxu0 0.0
        %5502 = vmatpush1.msra.mxu0 0.0
        %5503 = vmatprep.subr.mxu0 0.0
        %5504 = vmatpush1.msra.mxu0 0.0
        %5505 = vmatprep.subr.mxu0 0.0
        %5506 = vmatpush1.msra.mxu0 0.0
        %5507 = vmatprep.subr.mxu0 0.0
        %5508 = vmatpush1.msra.mxu0 0.0
        %5509 = vmatprep.subr.mxu0 0.0
        %5510 = vmatpush1.msra.mxu0 0.0
        %5511 = vmatprep.subr.mxu0 0.0
        %5512 = vmatpush1.msra.mxu0 0.0
        %5513 = vmatprep.subr.mxu0 0.0
        %5514 = vmatpush1.msra.mxu0 0.0
        %5515 = vmatprep.subr.mxu0 0.0
        %5516 = vmatpush1.msra.mxu0 0.0
        %5517 = vmatprep.mubr.f32.mxu0 0.0
        %v5518 = vand.u32 %v4579, 4294901760
        %v5519 = vsub.f32 %v4579, %v5518
        %v5520 = vand.u32 %v5519, 4294901760
        %5521 = vmatmul.mubr.f32.gmra.mrb[0].mxu0 %v5520
        %v5522 = vpop.f32.mrb[0].mxu0
        %v5523 = vadd.f32 %v5439, %v5522
        %v5524 = vpop.f32.mrb[0].mxu0
        %5525 = vmatprep.mubr.f32.mxu0 0.0
        %v5526 = vand.u32 %v4582, 4294901760
        %v5527 = vsub.f32 %v4582, %v5526
        %v5528 = vand.u32 %v5527, 4294901760
        %5529 = vmatmul.mubr.f32.gmra.mrb[0].mxu0 %v5528
        %v5530 = vpop.f32.mrb[0].mxu0
        %v5531 = vadd.f32 %v5446, %v5530
        %v5532 = vpop.f32.mrb[0].mxu0
        %5533 = vdwg.mxu0
        %5534 = vmatprep.subr.mxu0 0.0
        %v5535 = vand.u32 %v4568, 4294901760
        %v5536 = vsub.f32 %v4568, %v5535
        %v5537 = vand.u32 %v5536, 4294901760
        %5538 = vmatpush1.msra.mxu0 %v5537
        %5539 = vmatprep.subr.mxu0 0.0
        %v5540 = vand.u32 %v4571, 4294901760
        %v5541 = vsub.f32 %v4571, %v5540
        %v5542 = vand.u32 %v5541, 4294901760
        %5543 = vmatpush1.msra.mxu0 %v5542
        %5544 = vmatprep.subr.mxu0 0.0
        %v5545 = vand.u32 %v4574, 4294901760
        %v5546 = vsub.f32 %v4574, %v5545
        %v5547 = vand.u32 %v5546, 4294901760
        %5548 = vmatpush1.msra.mxu0 %v5547
        %5549 = vmatprep.subr.mxu0 0.0
        %v5550 = vand.u32 %v4577, 4294901760
        %v5551 = vsub.f32 %v4577, %v5550
        %v5552 = vand.u32 %v5551, 4294901760
        %5553 = vmatpush1.msra.mxu0 %v5552
        %5554 = vmatprep.subr.mxu0 0.0
        %5555 = vmatpush1.msra.mxu0 0.0
        %5556 = vmatprep.subr.mxu0 0.0
        %5557 = vmatpush1.msra.mxu0 0.0
        %5558 = vmatprep.subr.mxu0 0.0
        %5559 = vmatpush1.msra.mxu0 0.0
        %5560 = vmatprep.subr.mxu0 0.0
        %5561 = vmatpush1.msra.mxu0 0.0
        %5562 = vmatprep.subr.mxu0 0.0
        %5563 = vmatpush1.msra.mxu0 0.0
        %5564 = vmatprep.subr.mxu0 0.0
        %5565 = vmatpush1.msra.mxu0 0.0
        %5566 = vmatprep.subr.mxu0 0.0
        %5567 = vmatpush1.msra.mxu0 0.0
        %5568 = vmatprep.subr.mxu0 0.0
        %5569 = vmatpush1.msra.mxu0 0.0
        %5570 = vmatprep.subr.mxu0 0.0
        %5571 = vmatpush1.msra.mxu0 0.0
        %5572 = vmatprep.subr.mxu0 0.0
        %5573 = vmatpush1.msra.mxu0 0.0
        %5574 = vmatprep.subr.mxu0 0.0
        %5575 = vmatpush1.msra.mxu0 0.0
        %5576 = vmatprep.subr.mxu0 0.0
        %5577 = vmatpush1.msra.mxu0 0.0
        %5578 = vmatprep.subr.mxu0 0.0
        %5579 = vmatpush1.msra.mxu0 0.0
        %5580 = vmatprep.subr.mxu0 0.0
        %5581 = vmatpush1.msra.mxu0 0.0
        %5582 = vmatprep.subr.mxu0 0.0
        %5583 = vmatpush1.msra.mxu0 0.0
        %5584 = vmatprep.subr.mxu0 0.0
        %5585 = vmatpush1.msra.mxu0 0.0
        %5586 = vmatprep.subr.mxu0 0.0
        %5587 = vmatpush1.msra.mxu0 0.0
        %5588 = vmatprep.subr.mxu0 0.0
        %5589 = vmatpush1.msra.mxu0 0.0
        %5590 = vmatprep.subr.mxu0 0.0
        %5591 = vmatpush1.msra.mxu0 0.0
        %5592 = vmatprep.subr.mxu0 0.0
        %5593 = vmatpush1.msra.mxu0 0.0
        %5594 = vmatprep.subr.mxu0 0.0
        %5595 = vmatpush1.msra.mxu0 0.0
        %5596 = vmatprep.subr.mxu0 0.0
        %5597 = vmatpush1.msra.mxu0 0.0
        %5598 = vmatprep.subr.mxu0 0.0
        %5599 = vmatpush1.msra.mxu0 0.0
        %5600 = vmatprep.subr.mxu0 0.0
        %5601 = vmatpush1.msra.mxu0 0.0
        %5602 = vmatprep.subr.mxu0 0.0
        %5603 = vmatpush1.msra.mxu0 0.0
        %5604 = vmatprep.subr.mxu0 0.0
        %5605 = vmatpush1.msra.mxu0 0.0
        %5606 = vmatprep.subr.mxu0 0.0
        %5607 = vmatpush1.msra.mxu0 0.0
        %5608 = vmatprep.subr.mxu0 0.0
        %5609 = vmatpush1.msra.mxu0 0.0
        %5610 = vmatprep.mubr.f32.mxu0 0.0
        %v5611 = vand.u32 %v4579, 4294901760
        %5612 = vmatmul.mubr.f32.gmra.mrb[0].mxu0 %v5611
        %v5613 = vpop.f32.mrb[0].mxu0
        %v5614 = vadd.f32 %v5523, %v5613
        %v5615 = vpop.f32.mrb[0].mxu0
        %5616 = vmatprep.mubr.f32.mxu0 0.0
        %v5617 = vand.u32 %v4582, 4294901760
        %5618 = vmatmul.mubr.f32.gmra.mrb[0].mxu0 %v5617
        %v5619 = vpop.f32.mrb[0].mxu0
        %v5620 = vadd.f32 %v5531, %v5619
        %v5621 = vpop.f32.mrb[0].mxu0
        %5622 = vdwg.mxu0
        %5623 = vmatprep.subr.mxu0 0.0
        %v5624 = vand.u32 %v4568, 4294901760
        %5625 = vmatpush1.msra.mxu0 %v5624
        %5626 = vmatprep.subr.mxu0 0.0
        %v5627 = vand.u32 %v4571, 4294901760
        %5628 = vmatpush1.msra.mxu0 %v5627
        %5629 = vmatprep.subr.mxu0 0.0
        %v5630 = vand.u32 %v4574, 4294901760
        %5631 = vmatpush1.msra.mxu0 %v5630
        %5632 = vmatprep.subr.mxu0 0.0
        %v5633 = vand.u32 %v4577, 4294901760
        %5634 = vmatpush1.msra.mxu0 %v5633
        %5635 = vmatprep.subr.mxu0 0.0
        %5636 = vmatpush1.msra.mxu0 0.0
        %5637 = vmatprep.subr.mxu0 0.0
        %5638 = vmatpush1.msra.mxu0 0.0
        %5639 = vmatprep.subr.mxu0 0.0
        %5640 = vmatpush1.msra.mxu0 0.0
        %5641 = vmatprep.subr.mxu0 0.0
        %5642 = vmatpush1.msra.mxu0 0.0
        %5643 = vmatprep.subr.mxu0 0.0
        %5644 = vmatpush1.msra.mxu0 0.0
        %5645 = vmatprep.subr.mxu0 0.0
        %5646 = vmatpush1.msra.mxu0 0.0
        %5647 = vmatprep.subr.mxu0 0.0
        %5648 = vmatpush1.msra.mxu0 0.0
        %5649 = vmatprep.subr.mxu0 0.0
        %5650 = vmatpush1.msra.mxu0 0.0
        %5651 = vmatprep.subr.mxu0 0.0
        %5652 = vmatpush1.msra.mxu0 0.0
        %5653 = vmatprep.subr.mxu0 0.0
        %5654 = vmatpush1.msra.mxu0 0.0
        %5655 = vmatprep.subr.mxu0 0.0
        %5656 = vmatpush1.msra.mxu0 0.0
        %5657 = vmatprep.subr.mxu0 0.0
        %5658 = vmatpush1.msra.mxu0 0.0
        %5659 = vmatprep.subr.mxu0 0.0
        %5660 = vmatpush1.msra.mxu0 0.0
        %5661 = vmatprep.subr.mxu0 0.0
        %5662 = vmatpush1.msra.mxu0 0.0
        %5663 = vmatprep.subr.mxu0 0.0
        %5664 = vmatpush1.msra.mxu0 0.0
        %5665 = vmatprep.subr.mxu0 0.0
        %5666 = vmatpush1.msra.mxu0 0.0
        %5667 = vmatprep.subr.mxu0 0.0
        %5668 = vmatpush1.msra.mxu0 0.0
        %5669 = vmatprep.subr.mxu0 0.0
        %5670 = vmatpush1.msra.mxu0 0.0
        %5671 = vmatprep.subr.mxu0 0.0
        %5672 = vmatpush1.msra.mxu0 0.0
        %5673 = vmatprep.subr.mxu0 0.0
        %5674 = vmatpush1.msra.mxu0 0.0
        %5675 = vmatprep.subr.mxu0 0.0
        %5676 = vmatpush1.msra.mxu0 0.0
        %5677 = vmatprep.subr.mxu0 0.0
        %5678 = vmatpush1.msra.mxu0 0.0
        %5679 = vmatprep.subr.mxu0 0.0
        %5680 = vmatpush1.msra.mxu0 0.0
        %5681 = vmatprep.subr.mxu0 0.0
        %5682 = vmatpush1.msra.mxu0 0.0
        %5683 = vmatprep.subr.mxu0 0.0
        %5684 = vmatpush1.msra.mxu0 0.0
        %5685 = vmatprep.subr.mxu0 0.0
        %5686 = vmatpush1.msra.mxu0 0.0
        %5687 = vmatprep.subr.mxu0 0.0
        %5688 = vmatpush1.msra.mxu0 0.0
        %5689 = vmatprep.subr.mxu0 0.0
        %5690 = vmatpush1.msra.mxu0 0.0
        %5691 = vmatprep.mubr.f32.mxu0 0.0
        %v5692 = vand.u32 %v4579, 4294901760
        %5693 = vmatmul.mubr.f32.gmra.mrb[0].mxu0 %v5692
        %v5694 = vpop.f32.mrb[0].mxu0
        %v5695 = vadd.f32 %v5614, %v5694
        %v5696 = vpop.f32.mrb[0].mxu0
        %5697 = vmatprep.mubr.f32.mxu0 0.0
        %v5698 = vand.u32 %v4582, 4294901760
        %5699 = vmatmul.mubr.f32.gmra.mrb[0].mxu0 %v5698
        %v5700 = vpop.f32.mrb[0].mxu0
        %v5701 = vadd.f32 %v5620, %v5700
        %v5702 = vpop.f32.mrb[0].mxu0
        %5703 = vdwg.mxu0
        %v5704 = vadd.f32 %v4559, %v5165
        %v5705 = vadd.f32 %v4560, %v5167
        %v5706 = vadd.f32 %v4561, %v5695
        %v5707 = vadd.f32 %v4562, %v5172
        %v5708 = vadd.f32 %v4563, %v5174
        %v5709 = vadd.f32 %v4564, %v5701
        %s5710 = scalar_lea.vmem [#allocation2], 288
        %v5711 = vld [vmem:[%s5710] sm:$0xff]
        %v5712 = vld [vmem:[%s5710 + $0x8] sm:$0xff]
        %v5713 = vld [vmem:[%s5710 + $0x10] sm:$0xff]
        %v5714 = vld [vmem:[%s5710 + $0x18] sm:$0xff]
        %v5715 = vld [vmem:[%s5710 + $0x20] sm:$0xff]
        %v5716 = vld [vmem:[%s5710 + $0x28] sm:$0xff]
        %v5717 = vld [vmem:[%s5710 + $0x30] sm:$0xff]
        %v5718 = vld [vmem:[%s5710 + $0x38] sm:$0xff]
        %v5719 = vld [vmem:[%s5710 + $0x40] sm:$0xff]
        %v5720 = vld [vmem:[%s5710 + $0x48] sm:$0xff]
        %v5721 = vld [vmem:[%s5710 + $0x50] sm:$0xff]
        %v5722 = vld [vmem:[%s5710 + $0x58] sm:$0xff]
        %v5724 = vsel %vm1167, %v1133, 0
        %v5727 = vsel %vm1167, %v1139, 0
        %v5729 = vand.u32 %v5712, 4294901760
        %5730 = vmatprep.subr.mxu0 %v5729
        %v5731 = vand.u32 %v5711, 4294901760
        %5732 = vmatpush1.msra.mxu0 %v5731
        %v5733 = vand.u32 %v5715, 4294901760
        %5734 = vmatprep.subr.mxu0 %v5733
        %v5735 = vand.u32 %v5714, 4294901760
        %5736 = vmatpush1.msra.mxu0 %v5735
        %v5737 = vand.u32 %v5718, 4294901760
        %5738 = vmatprep.subr.mxu0 %v5737
        %v5739 = vand.u32 %v5717, 4294901760
        %5740 = vmatpush1.msra.mxu0 %v5739
        %v5741 = vand.u32 %v5721, 4294901760
        %5742 = vmatprep.subr.mxu0 %v5741
        %v5743 = vand.u32 %v5720, 4294901760
        %5744 = vmatpush1.msra.mxu0 %v5743
        %5745 = vmatprep.subr.mxu0 0.0
        %5746 = vmatpush1.msra.mxu0 0.0
        %5747 = vmatprep.subr.mxu0 0.0
        %5748 = vmatpush1.msra.mxu0 0.0
        %5749 = vmatprep.subr.mxu0 0.0
        %5750 = vmatpush1.msra.mxu0 0.0
        %5751 = vmatprep.subr.mxu0 0.0
        %5752 = vmatpush1.msra.mxu0 0.0
        %5753 = vmatprep.subr.mxu0 0.0
        %5754 = vmatpush1.msra.mxu0 0.0
        %5755 = vmatprep.subr.mxu0 0.0
        %5756 = vmatpush1.msra.mxu0 0.0
        %5757 = vmatprep.subr.mxu0 0.0
        %5758 = vmatpush1.msra.mxu0 0.0
        %5759 = vmatprep.subr.mxu0 0.0
        %5760 = vmatpush1.msra.mxu0 0.0
        %5761 = vmatprep.subr.mxu0 0.0
        %5762 = vmatpush1.msra.mxu0 0.0
        %5763 = vmatprep.subr.mxu0 0.0
        %5764 = vmatpush1.msra.mxu0 0.0
        %5765 = vmatprep.subr.mxu0 0.0
        %5766 = vmatpush1.msra.mxu0 0.0
        %5767 = vmatprep.subr.mxu0 0.0
        %5768 = vmatpush1.msra.mxu0 0.0
        %5769 = vmatprep.subr.mxu0 0.0
        %5770 = vmatpush1.msra.mxu0 0.0
        %5771 = vmatprep.subr.mxu0 0.0
        %5772 = vmatpush1.msra.mxu0 0.0
        %5773 = vmatprep.subr.mxu0 0.0
        %5774 = vmatpush1.msra.mxu0 0.0
        %5775 = vmatprep.subr.mxu0 0.0
        %5776 = vmatpush1.msra.mxu0 0.0
        %5777 = vmatprep.subr.mxu0 0.0
        %5778 = vmatpush1.msra.mxu0 0.0
        %5779 = vmatprep.subr.mxu0 0.0
        %5780 = vmatpush1.msra.mxu0 0.0
        %5781 = vmatprep.subr.mxu0 0.0
        %5782 = vmatpush1.msra.mxu0 0.0
        %5783 = vmatprep.subr.mxu0 0.0
        %5784 = vmatpush1.msra.mxu0 0.0
        %5785 = vmatprep.subr.mxu0 0.0
        %5786 = vmatpush1.msra.mxu0 0.0
        %5787 = vmatprep.subr.mxu0 0.0
        %5788 = vmatpush1.msra.mxu0 0.0
        %5789 = vmatprep.subr.mxu0 0.0
        %5790 = vmatpush1.msra.mxu0 0.0
        %5791 = vmatprep.subr.mxu0 0.0
        %5792 = vmatpush1.msra.mxu0 0.0
        %5793 = vmatprep.subr.mxu0 0.0
        %5794 = vmatpush1.msra.mxu0 0.0
        %5795 = vmatprep.subr.mxu0 0.0
        %5796 = vmatpush1.msra.mxu0 0.0
        %5797 = vmatprep.subr.mxu0 0.0
        %5798 = vmatpush1.msra.mxu0 0.0
        %5799 = vmatprep.subr.mxu0 0.0
        %5800 = vmatpush1.msra.mxu0 0.0
        %5801 = vmatprep.mubr.f32.mxu0 0.0
        %v5802 = vand.u32 %v5724, 4294901760
        %v5803 = vsub.f32 %v5724, %v5802
        %v5804 = vand.u32 %v5803, 4294901760
        %v5805 = vsub.f32 %v5803, %v5804
        %v5806 = vand.u32 %v5805, 4294901760
        %5807 = vmatmul.mubr.f32.gmra.mrb[0].mxu0 %v5806
        %v5808 = vpop.f32.mrb[0].mxu0
        %v5809 = vadd.f32 0.0, %v5808
        %v5810 = vpop.f32.mrb[0].mxu0
        %v5811 = vadd.f32 0.0, %v5810
        %5812 = vmatprep.mubr.f32.mxu0 0.0
        %v5813 = vand.u32 %v5727, 4294901760
        %v5814 = vsub.f32 %v5727, %v5813
        %v5815 = vand.u32 %v5814, 4294901760
        %v5816 = vsub.f32 %v5814, %v5815
        %v5817 = vand.u32 %v5816, 4294901760
        %5818 = vmatmul.mubr.f32.gmra.mrb[0].mxu0 %v5817
        %v5819 = vpop.f32.mrb[0].mxu0
        %v5820 = vadd.f32 0.0, %v5819
        %v5821 = vpop.f32.mrb[0].mxu0
        %v5822 = vadd.f32 0.0, %v5821
        %5823 = vdwg.mxu0
        %v5824 = vand.u32 %v5712, 4294901760
        %v5825 = vsub.f32 %v5712, %v5824
        %v5826 = vand.u32 %v5825, 4294901760
        %v5827 = vsub.f32 %v5825, %v5826
        %v5828 = vand.u32 %v5827, 4294901760
        %5829 = vmatprep.subr.mxu0 %v5828
        %v5830 = vand.u32 %v5711, 4294901760
        %v5831 = vsub.f32 %v5711, %v5830
        %v5832 = vand.u32 %v5831, 4294901760
        %v5833 = vsub.f32 %v5831, %v5832
        %v5834 = vand.u32 %v5833, 4294901760
        %5835 = vmatpush1.msra.mxu0 %v5834
        %v5836 = vand.u32 %v5715, 4294901760
        %v5837 = vsub.f32 %v5715, %v5836
        %v5838 = vand.u32 %v5837, 4294901760
        %v5839 = vsub.f32 %v5837, %v5838
        %v5840 = vand.u32 %v5839, 4294901760
        %5841 = vmatprep.subr.mxu0 %v5840
        %v5842 = vand.u32 %v5714, 4294901760
        %v5843 = vsub.f32 %v5714, %v5842
        %v5844 = vand.u32 %v5843, 4294901760
        %v5845 = vsub.f32 %v5843, %v5844
        %v5846 = vand.u32 %v5845, 4294901760
        %5847 = vmatpush1.msra.mxu0 %v5846
        %v5848 = vand.u32 %v5718, 4294901760
        %v5849 = vsub.f32 %v5718, %v5848
        %v5850 = vand.u32 %v5849, 4294901760
        %v5851 = vsub.f32 %v5849, %v5850
        %v5852 = vand.u32 %v5851, 4294901760
        %5853 = vmatprep.subr.mxu0 %v5852
        %v5854 = vand.u32 %v5717, 4294901760
        %v5855 = vsub.f32 %v5717, %v5854
        %v5856 = vand.u32 %v5855, 4294901760
        %v5857 = vsub.f32 %v5855, %v5856
        %v5858 = vand.u32 %v5857, 4294901760
        %5859 = vmatpush1.msra.mxu0 %v5858
        %v5860 = vand.u32 %v5721, 4294901760
        %v5861 = vsub.f32 %v5721, %v5860
        %v5862 = vand.u32 %v5861, 4294901760
        %v5863 = vsub.f32 %v5861, %v5862
        %v5864 = vand.u32 %v5863, 4294901760
        %5865 = vmatprep.subr.mxu0 %v5864
        %v5866 = vand.u32 %v5720, 4294901760
        %v5867 = vsub.f32 %v5720, %v5866
        %v5868 = vand.u32 %v5867, 4294901760
        %v5869 = vsub.f32 %v5867, %v5868
        %v5870 = vand.u32 %v5869, 4294901760
        %5871 = vmatpush1.msra.mxu0 %v5870
        %5872 = vmatprep.subr.mxu0 0.0
        %5873 = vmatpush1.msra.mxu0 0.0
        %5874 = vmatprep.subr.mxu0 0.0
        %5875 = vmatpush1.msra.mxu0 0.0
        %5876 = vmatprep.subr.mxu0 0.0
        %5877 = vmatpush1.msra.mxu0 0.0
        %5878 = vmatprep.subr.mxu0 0.0
        %5879 = vmatpush1.msra.mxu0 0.0
        %5880 = vmatprep.subr.mxu0 0.0
        %5881 = vmatpush1.msra.mxu0 0.0
        %5882 = vmatprep.subr.mxu0 0.0
        %5883 = vmatpush1.msra.mxu0 0.0
        %5884 = vmatprep.subr.mxu0 0.0
        %5885 = vmatpush1.msra.mxu0 0.0
        %5886 = vmatprep.subr.mxu0 0.0
        %5887 = vmatpush1.msra.mxu0 0.0
        %5888 = vmatprep.subr.mxu0 0.0
        %5889 = vmatpush1.msra.mxu0 0.0
        %5890 = vmatprep.subr.mxu0 0.0
        %5891 = vmatpush1.msra.mxu0 0.0
        %5892 = vmatprep.subr.mxu0 0.0
        %5893 = vmatpush1.msra.mxu0 0.0
        %5894 = vmatprep.subr.mxu0 0.0
        %5895 = vmatpush1.msra.mxu0 0.0
        %5896 = vmatprep.subr.mxu0 0.0
        %5897 = vmatpush1.msra.mxu0 0.0
        %5898 = vmatprep.subr.mxu0 0.0
        %5899 = vmatpush1.msra.mxu0 0.0
        %5900 = vmatprep.subr.mxu0 0.0
        %5901 = vmatpush1.msra.mxu0 0.0
        %5902 = vmatprep.subr.mxu0 0.0
        %5903 = vmatpush1.msra.mxu0 0.0
        %5904 = vmatprep.subr.mxu0 0.0
        %5905 = vmatpush1.msra.mxu0 0.0
        %5906 = vmatprep.subr.mxu0 0.0
        %5907 = vmatpush1.msra.mxu0 0.0
        %5908 = vmatprep.subr.mxu0 0.0
        %5909 = vmatpush1.msra.mxu0 0.0
        %5910 = vmatprep.subr.mxu0 0.0
        %5911 = vmatpush1.msra.mxu0 0.0
        %5912 = vmatprep.subr.mxu0 0.0
        %5913 = vmatpush1.msra.mxu0 0.0
        %5914 = vmatprep.subr.mxu0 0.0
        %5915 = vmatpush1.msra.mxu0 0.0
        %5916 = vmatprep.subr.mxu0 0.0
        %5917 = vmatpush1.msra.mxu0 0.0
        %5918 = vmatprep.subr.mxu0 0.0
        %5919 = vmatpush1.msra.mxu0 0.0
        %5920 = vmatprep.subr.mxu0 0.0
        %5921 = vmatpush1.msra.mxu0 0.0
        %5922 = vmatprep.subr.mxu0 0.0
        %5923 = vmatpush1.msra.mxu0 0.0
        %5924 = vmatprep.subr.mxu0 0.0
        %5925 = vmatpush1.msra.mxu0 0.0
        %5926 = vmatprep.subr.mxu0 0.0
        %5927 = vmatpush1.msra.mxu0 0.0
        %5928 = vmatprep.mubr.f32.mxu0 0.0
        %v5929 = vand.u32 %v5724, 4294901760
        %5930 = vmatmul.mubr.f32.gmra.mrb[0].mxu0 %v5929
        %v5931 = vpop.f32.mrb[0].mxu0
        %v5932 = vadd.f32 %v5809, %v5931
        %v5933 = vpop.f32.mrb[0].mxu0
        %v5934 = vadd.f32 %v5811, %v5933
        %5935 = vmatprep.mubr.f32.mxu0 0.0
        %v5936 = vand.u32 %v5727, 4294901760
        %5937 = vmatmul.mubr.f32.gmra.mrb[0].mxu0 %v5936
        %v5938 = vpop.f32.mrb[0].mxu0
        %v5939 = vadd.f32 %v5820, %v5938
        %v5940 = vpop.f32.mrb[0].mxu0
        %v5941 = vadd.f32 %v5822, %v5940
        %5942 = vdwg.mxu0
        %v5943 = vand.u32 %v5712, 4294901760
        %v5944 = vsub.f32 %v5712, %v5943
        %5945 = vmatprep.subr.mxu0 %v5944
        %v5946 = vand.u32 %v5711, 4294901760
        %v5947 = vsub.f32 %v5711, %v5946
        %5948 = vmatpush1.msra.mxu0 %v5947
        %v5949 = vand.u32 %v5715, 4294901760
        %v5950 = vsub.f32 %v5715, %v5949
        %5951 = vmatprep.subr.mxu0 %v5950
        %v5952 = vand.u32 %v5714, 4294901760
        %v5953 = vsub.f32 %v5714, %v5952
        %5954 = vmatpush1.msra.mxu0 %v5953
        %v5955 = vand.u32 %v5718, 4294901760
        %v5956 = vsub.f32 %v5718, %v5955
        %5957 = vmatprep.subr.mxu0 %v5956
        %v5958 = vand.u32 %v5717, 4294901760
        %v5959 = vsub.f32 %v5717, %v5958
        %5960 = vmatpush1.msra.mxu0 %v5959
        %v5961 = vand.u32 %v5721, 4294901760
        %v5962 = vsub.f32 %v5721, %v5961
        %5963 = vmatprep.subr.mxu0 %v5962
        %v5964 = vand.u32 %v5720, 4294901760
        %v5965 = vsub.f32 %v5720, %v5964
        %5966 = vmatpush1.msra.mxu0 %v5965
        %5967 = vmatprep.subr.mxu0 0.0
        %5968 = vmatpush1.msra.mxu0 0.0
        %5969 = vmatprep.subr.mxu0 0.0
        %5970 = vmatpush1.msra.mxu0 0.0
        %5971 = vmatprep.subr.mxu0 0.0
        %5972 = vmatpush1.msra.mxu0 0.0
        %5973 = vmatprep.subr.mxu0 0.0
        %5974 = vmatpush1.msra.mxu0 0.0
        %5975 = vmatprep.subr.mxu0 0.0
        %5976 = vmatpush1.msra.mxu0 0.0
        %5977 = vmatprep.subr.mxu0 0.0
        %5978 = vmatpush1.msra.mxu0 0.0
        %5979 = vmatprep.subr.mxu0 0.0
        %5980 = vmatpush1.msra.mxu0 0.0
        %5981 = vmatprep.subr.mxu0 0.0
        %5982 = vmatpush1.msra.mxu0 0.0
        %5983 = vmatprep.subr.mxu0 0.0
        %5984 = vmatpush1.msra.mxu0 0.0
        %5985 = vmatprep.subr.mxu0 0.0
        %5986 = vmatpush1.msra.mxu0 0.0
        %5987 = vmatprep.subr.mxu0 0.0
        %5988 = vmatpush1.msra.mxu0 0.0
        %5989 = vmatprep.subr.mxu0 0.0
        %5990 = vmatpush1.msra.mxu0 0.0
        %5991 = vmatprep.subr.mxu0 0.0
        %5992 = vmatpush1.msra.mxu0 0.0
        %5993 = vmatprep.subr.mxu0 0.0
        %5994 = vmatpush1.msra.mxu0 0.0
        %5995 = vmatprep.subr.mxu0 0.0
        %5996 = vmatpush1.msra.mxu0 0.0
        %5997 = vmatprep.subr.mxu0 0.0
        %5998 = vmatpush1.msra.mxu0 0.0
        %5999 = vmatprep.subr.mxu0 0.0
        %6000 = vmatpush1.msra.mxu0 0.0
        %6001 = vmatprep.subr.mxu0 0.0
        %6002 = vmatpush1.msra.mxu0 0.0
        %6003 = vmatprep.subr.mxu0 0.0
        %6004 = vmatpush1.msra.mxu0 0.0
        %6005 = vmatprep.subr.mxu0 0.0
        %6006 = vmatpush1.msra.mxu0 0.0
        %6007 = vmatprep.subr.mxu0 0.0
        %6008 = vmatpush1.msra.mxu0 0.0
        %6009 = vmatprep.subr.mxu0 0.0
        %6010 = vmatpush1.msra.mxu0 0.0
        %6011 = vmatprep.subr.mxu0 0.0
        %6012 = vmatpush1.msra.mxu0 0.0
        %6013 = vmatprep.subr.mxu0 0.0
        %6014 = vmatpush1.msra.mxu0 0.0
        %6015 = vmatprep.subr.mxu0 0.0
        %6016 = vmatpush1.msra.mxu0 0.0
        %6017 = vmatprep.subr.mxu0 0.0
        %6018 = vmatpush1.msra.mxu0 0.0
        %6019 = vmatprep.subr.mxu0 0.0
        %6020 = vmatpush1.msra.mxu0 0.0
        %6021 = vmatprep.subr.mxu0 0.0
        %6022 = vmatpush1.msra.mxu0 0.0
        %6023 = vmatprep.mubr.f32.mxu0 0.0
        %v6024 = vand.u32 %v5724, 4294901760
        %v6025 = vsub.f32 %v5724, %v6024
        %6026 = vmatmul.mubr.f32.gmra.mrb[0].mxu0 %v6025
        %v6027 = vpop.f32.mrb[0].mxu0
        %v6028 = vadd.f32 %v5932, %v6027
        %v6029 = vpop.f32.mrb[0].mxu0
        %v6030 = vadd.f32 %v5934, %v6029
        %6031 = vmatprep.mubr.f32.mxu0 0.0
        %v6032 = vand.u32 %v5727, 4294901760
        %v6033 = vsub.f32 %v5727, %v6032
        %6034 = vmatmul.mubr.f32.gmra.mrb[0].mxu0 %v6033
        %v6035 = vpop.f32.mrb[0].mxu0
        %v6036 = vadd.f32 %v5939, %v6035
        %v6037 = vpop.f32.mrb[0].mxu0
        %v6038 = vadd.f32 %v5941, %v6037
        %6039 = vdwg.mxu0
        %v6040 = vand.u32 %v5712, 4294901760
        %6041 = vmatprep.subr.mxu0 %v6040
        %v6042 = vand.u32 %v5711, 4294901760
        %6043 = vmatpush1.msra.mxu0 %v6042
        %v6044 = vand.u32 %v5715, 4294901760
        %6045 = vmatprep.subr.mxu0 %v6044
        %v6046 = vand.u32 %v5714, 4294901760
        %6047 = vmatpush1.msra.mxu0 %v6046
        %v6048 = vand.u32 %v5718, 4294901760
        %6049 = vmatprep.subr.mxu0 %v6048
        %v6050 = vand.u32 %v5717, 4294901760
        %6051 = vmatpush1.msra.mxu0 %v6050
        %v6052 = vand.u32 %v5721, 4294901760
        %6053 = vmatprep.subr.mxu0 %v6052
        %v6054 = vand.u32 %v5720, 4294901760
        %6055 = vmatpush1.msra.mxu0 %v6054
        %6056 = vmatprep.subr.mxu0 0.0
        %6057 = vmatpush1.msra.mxu0 0.0
        %6058 = vmatprep.subr.mxu0 0.0
        %6059 = vmatpush1.msra.mxu0 0.0
        %6060 = vmatprep.subr.mxu0 0.0
        %6061 = vmatpush1.msra.mxu0 0.0
        %6062 = vmatprep.subr.mxu0 0.0
        %6063 = vmatpush1.msra.mxu0 0.0
        %6064 = vmatprep.subr.mxu0 0.0
        %6065 = vmatpush1.msra.mxu0 0.0
        %6066 = vmatprep.subr.mxu0 0.0
        %6067 = vmatpush1.msra.mxu0 0.0
        %6068 = vmatprep.subr.mxu0 0.0
        %6069 = vmatpush1.msra.mxu0 0.0
        %6070 = vmatprep.subr.mxu0 0.0
        %6071 = vmatpush1.msra.mxu0 0.0
        %6072 = vmatprep.subr.mxu0 0.0
        %6073 = vmatpush1.msra.mxu0 0.0
        %6074 = vmatprep.subr.mxu0 0.0
        %6075 = vmatpush1.msra.mxu0 0.0
        %6076 = vmatprep.subr.mxu0 0.0
        %6077 = vmatpush1.msra.mxu0 0.0
        %6078 = vmatprep.subr.mxu0 0.0
        %6079 = vmatpush1.msra.mxu0 0.0
        %6080 = vmatprep.subr.mxu0 0.0
        %6081 = vmatpush1.msra.mxu0 0.0
        %6082 = vmatprep.subr.mxu0 0.0
        %6083 = vmatpush1.msra.mxu0 0.0
        %6084 = vmatprep.subr.mxu0 0.0
        %6085 = vmatpush1.msra.mxu0 0.0
        %6086 = vmatprep.subr.mxu0 0.0
        %6087 = vmatpush1.msra.mxu0 0.0
        %6088 = vmatprep.subr.mxu0 0.0
        %6089 = vmatpush1.msra.mxu0 0.0
        %6090 = vmatprep.subr.mxu0 0.0
        %6091 = vmatpush1.msra.mxu0 0.0
        %6092 = vmatprep.subr.mxu0 0.0
        %6093 = vmatpush1.msra.mxu0 0.0
        %6094 = vmatprep.subr.mxu0 0.0
        %6095 = vmatpush1.msra.mxu0 0.0
        %6096 = vmatprep.subr.mxu0 0.0
        %6097 = vmatpush1.msra.mxu0 0.0
        %6098 = vmatprep.subr.mxu0 0.0
        %6099 = vmatpush1.msra.mxu0 0.0
        %6100 = vmatprep.subr.mxu0 0.0
        %6101 = vmatpush1.msra.mxu0 0.0
        %6102 = vmatprep.subr.mxu0 0.0
        %6103 = vmatpush1.msra.mxu0 0.0
        %6104 = vmatprep.subr.mxu0 0.0
        %6105 = vmatpush1.msra.mxu0 0.0
        %6106 = vmatprep.subr.mxu0 0.0
        %6107 = vmatpush1.msra.mxu0 0.0
        %6108 = vmatprep.subr.mxu0 0.0
        %6109 = vmatpush1.msra.mxu0 0.0
        %6110 = vmatprep.subr.mxu0 0.0
        %6111 = vmatpush1.msra.mxu0 0.0
        %6112 = vmatprep.mubr.f32.mxu0 0.0
        %v6113 = vand.u32 %v5724, 4294901760
        %v6114 = vsub.f32 %v5724, %v6113
        %v6115 = vand.u32 %v6114, 4294901760
        %6116 = vmatmul.mubr.f32.gmra.mrb[0].mxu0 %v6115
        %v6117 = vpop.f32.mrb[0].mxu0
        %v6118 = vadd.f32 %v6028, %v6117
        %v6119 = vpop.f32.mrb[0].mxu0
        %v6120 = vadd.f32 %v6030, %v6119
        %6121 = vmatprep.mubr.f32.mxu0 0.0
        %v6122 = vand.u32 %v5727, 4294901760
        %v6123 = vsub.f32 %v5727, %v6122
        %v6124 = vand.u32 %v6123, 4294901760
        %6125 = vmatmul.mubr.f32.gmra.mrb[0].mxu0 %v6124
        %v6126 = vpop.f32.mrb[0].mxu0
        %v6127 = vadd.f32 %v6036, %v6126
        %v6128 = vpop.f32.mrb[0].mxu0
        %v6129 = vadd.f32 %v6038, %v6128
        %6130 = vdwg.mxu0
        %v6131 = vand.u32 %v5712, 4294901760
        %v6132 = vsub.f32 %v5712, %v6131
        %v6133 = vand.u32 %v6132, 4294901760
        %6134 = vmatprep.subr.mxu0 %v6133
        %v6135 = vand.u32 %v5711, 4294901760
        %v6136 = vsub.f32 %v5711, %v6135
        %v6137 = vand.u32 %v6136, 4294901760
        %6138 = vmatpush1.msra.mxu0 %v6137
        %v6139 = vand.u32 %v5715, 4294901760
        %v6140 = vsub.f32 %v5715, %v6139
        %v6141 = vand.u32 %v6140, 4294901760
        %6142 = vmatprep.subr.mxu0 %v6141
        %v6143 = vand.u32 %v5714, 4294901760
        %v6144 = vsub.f32 %v5714, %v6143
        %v6145 = vand.u32 %v6144, 4294901760
        %6146 = vmatpush1.msra.mxu0 %v6145
        %v6147 = vand.u32 %v5718, 4294901760
        %v6148 = vsub.f32 %v5718, %v6147
        %v6149 = vand.u32 %v6148, 4294901760
        %6150 = vmatprep.subr.mxu0 %v6149
        %v6151 = vand.u32 %v5717, 4294901760
        %v6152 = vsub.f32 %v5717, %v6151
        %v6153 = vand.u32 %v6152, 4294901760
        %6154 = vmatpush1.msra.mxu0 %v6153
        %v6155 = vand.u32 %v5721, 4294901760
        %v6156 = vsub.f32 %v5721, %v6155
        %v6157 = vand.u32 %v6156, 4294901760
        %6158 = vmatprep.subr.mxu0 %v6157
        %v6159 = vand.u32 %v5720, 4294901760
        %v6160 = vsub.f32 %v5720, %v6159
        %v6161 = vand.u32 %v6160, 4294901760
        %6162 = vmatpush1.msra.mxu0 %v6161
        %6163 = vmatprep.subr.mxu0 0.0
        %6164 = vmatpush1.msra.mxu0 0.0
        %6165 = vmatprep.subr.mxu0 0.0
        %6166 = vmatpush1.msra.mxu0 0.0
        %6167 = vmatprep.subr.mxu0 0.0
        %6168 = vmatpush1.msra.mxu0 0.0
        %6169 = vmatprep.subr.mxu0 0.0
        %6170 = vmatpush1.msra.mxu0 0.0
        %6171 = vmatprep.subr.mxu0 0.0
        %6172 = vmatpush1.msra.mxu0 0.0
        %6173 = vmatprep.subr.mxu0 0.0
        %6174 = vmatpush1.msra.mxu0 0.0
        %6175 = vmatprep.subr.mxu0 0.0
        %6176 = vmatpush1.msra.mxu0 0.0
        %6177 = vmatprep.subr.mxu0 0.0
        %6178 = vmatpush1.msra.mxu0 0.0
        %6179 = vmatprep.subr.mxu0 0.0
        %6180 = vmatpush1.msra.mxu0 0.0
        %6181 = vmatprep.subr.mxu0 0.0
        %6182 = vmatpush1.msra.mxu0 0.0
        %6183 = vmatprep.subr.mxu0 0.0
        %6184 = vmatpush1.msra.mxu0 0.0
        %6185 = vmatprep.subr.mxu0 0.0
        %6186 = vmatpush1.msra.mxu0 0.0
        %6187 = vmatprep.subr.mxu0 0.0
        %6188 = vmatpush1.msra.mxu0 0.0
        %6189 = vmatprep.subr.mxu0 0.0
        %6190 = vmatpush1.msra.mxu0 0.0
        %6191 = vmatprep.subr.mxu0 0.0
        %6192 = vmatpush1.msra.mxu0 0.0
        %6193 = vmatprep.subr.mxu0 0.0
        %6194 = vmatpush1.msra.mxu0 0.0
        %6195 = vmatprep.subr.mxu0 0.0
        %6196 = vmatpush1.msra.mxu0 0.0
        %6197 = vmatprep.subr.mxu0 0.0
        %6198 = vmatpush1.msra.mxu0 0.0
        %6199 = vmatprep.subr.mxu0 0.0
        %6200 = vmatpush1.msra.mxu0 0.0
        %6201 = vmatprep.subr.mxu0 0.0
        %6202 = vmatpush1.msra.mxu0 0.0
        %6203 = vmatprep.subr.mxu0 0.0
        %6204 = vmatpush1.msra.mxu0 0.0
        %6205 = vmatprep.subr.mxu0 0.0
        %6206 = vmatpush1.msra.mxu0 0.0
        %6207 = vmatprep.subr.mxu0 0.0
        %6208 = vmatpush1.msra.mxu0 0.0
        %6209 = vmatprep.subr.mxu0 0.0
        %6210 = vmatpush1.msra.mxu0 0.0
        %6211 = vmatprep.subr.mxu0 0.0
        %6212 = vmatpush1.msra.mxu0 0.0
        %6213 = vmatprep.subr.mxu0 0.0
        %6214 = vmatpush1.msra.mxu0 0.0
        %6215 = vmatprep.subr.mxu0 0.0
        %6216 = vmatpush1.msra.mxu0 0.0
        %6217 = vmatprep.subr.mxu0 0.0
        %6218 = vmatpush1.msra.mxu0 0.0
        %6219 = vmatprep.mubr.f32.mxu0 0.0
        %v6220 = vand.u32 %v5724, 4294901760
        %6221 = vmatmul.mubr.f32.gmra.mrb[0].mxu0 %v6220
        %v6222 = vpop.f32.mrb[0].mxu0
        %v6223 = vadd.f32 %v6118, %v6222
        %v6224 = vpop.f32.mrb[0].mxu0
        %v6225 = vadd.f32 %v6120, %v6224
        %6226 = vmatprep.mubr.f32.mxu0 0.0
        %v6227 = vand.u32 %v5727, 4294901760
        %6228 = vmatmul.mubr.f32.gmra.mrb[0].mxu0 %v6227
        %v6229 = vpop.f32.mrb[0].mxu0
        %v6230 = vadd.f32 %v6127, %v6229
        %v6231 = vpop.f32.mrb[0].mxu0
        %v6232 = vadd.f32 %v6129, %v6231
        %6233 = vdwg.mxu0
        %v6234 = vand.u32 %v5712, 4294901760
        %6235 = vmatprep.subr.mxu0 %v6234
        %v6236 = vand.u32 %v5711, 4294901760
        %6237 = vmatpush1.msra.mxu0 %v6236
        %v6238 = vand.u32 %v5715, 4294901760
        %6239 = vmatprep.subr.mxu0 %v6238
        %v6240 = vand.u32 %v5714, 4294901760
        %6241 = vmatpush1.msra.mxu0 %v6240
        %v6242 = vand.u32 %v5718, 4294901760
        %6243 = vmatprep.subr.mxu0 %v6242
        %v6244 = vand.u32 %v5717, 4294901760
        %6245 = vmatpush1.msra.mxu0 %v6244
        %v6246 = vand.u32 %v5721, 4294901760
        %6247 = vmatprep.subr.mxu0 %v6246
        %v6248 = vand.u32 %v5720, 4294901760
        %6249 = vmatpush1.msra.mxu0 %v6248
        %6250 = vmatprep.subr.mxu0 0.0
        %6251 = vmatpush1.msra.mxu0 0.0
        %6252 = vmatprep.subr.mxu0 0.0
        %6253 = vmatpush1.msra.mxu0 0.0
        %6254 = vmatprep.subr.mxu0 0.0
        %6255 = vmatpush1.msra.mxu0 0.0
        %6256 = vmatprep.subr.mxu0 0.0
        %6257 = vmatpush1.msra.mxu0 0.0
        %6258 = vmatprep.subr.mxu0 0.0
        %6259 = vmatpush1.msra.mxu0 0.0
        %6260 = vmatprep.subr.mxu0 0.0
        %6261 = vmatpush1.msra.mxu0 0.0
        %6262 = vmatprep.subr.mxu0 0.0
        %6263 = vmatpush1.msra.mxu0 0.0
        %6264 = vmatprep.subr.mxu0 0.0
        %6265 = vmatpush1.msra.mxu0 0.0
        %6266 = vmatprep.subr.mxu0 0.0
        %6267 = vmatpush1.msra.mxu0 0.0
        %6268 = vmatprep.subr.mxu0 0.0
        %6269 = vmatpush1.msra.mxu0 0.0
        %6270 = vmatprep.subr.mxu0 0.0
        %6271 = vmatpush1.msra.mxu0 0.0
        %6272 = vmatprep.subr.mxu0 0.0
        %6273 = vmatpush1.msra.mxu0 0.0
        %6274 = vmatprep.subr.mxu0 0.0
        %6275 = vmatpush1.msra.mxu0 0.0
        %6276 = vmatprep.subr.mxu0 0.0
        %6277 = vmatpush1.msra.mxu0 0.0
        %6278 = vmatprep.subr.mxu0 0.0
        %6279 = vmatpush1.msra.mxu0 0.0
        %6280 = vmatprep.subr.mxu0 0.0
        %6281 = vmatpush1.msra.mxu0 0.0
        %6282 = vmatprep.subr.mxu0 0.0
        %6283 = vmatpush1.msra.mxu0 0.0
        %6284 = vmatprep.subr.mxu0 0.0
        %6285 = vmatpush1.msra.mxu0 0.0
        %6286 = vmatprep.subr.mxu0 0.0
        %6287 = vmatpush1.msra.mxu0 0.0
        %6288 = vmatprep.subr.mxu0 0.0
        %6289 = vmatpush1.msra.mxu0 0.0
        %6290 = vmatprep.subr.mxu0 0.0
        %6291 = vmatpush1.msra.mxu0 0.0
        %6292 = vmatprep.subr.mxu0 0.0
        %6293 = vmatpush1.msra.mxu0 0.0
        %6294 = vmatprep.subr.mxu0 0.0
        %6295 = vmatpush1.msra.mxu0 0.0
        %6296 = vmatprep.subr.mxu0 0.0
        %6297 = vmatpush1.msra.mxu0 0.0
        %6298 = vmatprep.subr.mxu0 0.0
        %6299 = vmatpush1.msra.mxu0 0.0
        %6300 = vmatprep.subr.mxu0 0.0
        %6301 = vmatpush1.msra.mxu0 0.0
        %6302 = vmatprep.subr.mxu0 0.0
        %6303 = vmatpush1.msra.mxu0 0.0
        %6304 = vmatprep.subr.mxu0 0.0
        %6305 = vmatpush1.msra.mxu0 0.0
        %6306 = vmatprep.mubr.f32.mxu0 0.0
        %v6307 = vand.u32 %v5724, 4294901760
        %6308 = vmatmul.mubr.f32.gmra.mrb[0].mxu0 %v6307
        %v6309 = vpop.f32.mrb[0].mxu0
        %v6310 = vadd.f32 %v6223, %v6309
        %v6311 = vpop.f32.mrb[0].mxu0
        %v6312 = vadd.f32 %v6225, %v6311
        %6313 = vmatprep.mubr.f32.mxu0 0.0
        %v6314 = vand.u32 %v5727, 4294901760
        %6315 = vmatmul.mubr.f32.gmra.mrb[0].mxu0 %v6314
        %v6316 = vpop.f32.mrb[0].mxu0
        %v6317 = vadd.f32 %v6230, %v6316
        %v6318 = vpop.f32.mrb[0].mxu0
        %v6319 = vadd.f32 %v6232, %v6318
        %6320 = vdwg.mxu0
        %6321 = vmatprep.subr.mxu0 0.0
        %v6322 = vand.u32 %v5713, 4294901760
        %6323 = vmatpush1.msra.mxu0 %v6322
        %6324 = vmatprep.subr.mxu0 0.0
        %v6325 = vand.u32 %v5716, 4294901760
        %6326 = vmatpush1.msra.mxu0 %v6325
        %6327 = vmatprep.subr.mxu0 0.0
        %v6328 = vand.u32 %v5719, 4294901760
        %6329 = vmatpush1.msra.mxu0 %v6328
        %6330 = vmatprep.subr.mxu0 0.0
        %v6331 = vand.u32 %v5722, 4294901760
        %6332 = vmatpush1.msra.mxu0 %v6331
        %6333 = vmatprep.subr.mxu0 0.0
        %6334 = vmatpush1.msra.mxu0 0.0
        %6335 = vmatprep.subr.mxu0 0.0
        %6336 = vmatpush1.msra.mxu0 0.0
        %6337 = vmatprep.subr.mxu0 0.0
        %6338 = vmatpush1.msra.mxu0 0.0
        %6339 = vmatprep.subr.mxu0 0.0
        %6340 = vmatpush1.msra.mxu0 0.0
        %6341 = vmatprep.subr.mxu0 0.0
        %6342 = vmatpush1.msra.mxu0 0.0
        %6343 = vmatprep.subr.mxu0 0.0
        %6344 = vmatpush1.msra.mxu0 0.0
        %6345 = vmatprep.subr.mxu0 0.0
        %6346 = vmatpush1.msra.mxu0 0.0
        %6347 = vmatprep.subr.mxu0 0.0
        %6348 = vmatpush1.msra.mxu0 0.0
        %6349 = vmatprep.subr.mxu0 0.0
        %6350 = vmatpush1.msra.mxu0 0.0
        %6351 = vmatprep.subr.mxu0 0.0
        %6352 = vmatpush1.msra.mxu0 0.0
        %6353 = vmatprep.subr.mxu0 0.0
        %6354 = vmatpush1.msra.mxu0 0.0
        %6355 = vmatprep.subr.mxu0 0.0
        %6356 = vmatpush1.msra.mxu0 0.0
        %6357 = vmatprep.subr.mxu0 0.0
        %6358 = vmatpush1.msra.mxu0 0.0
        %6359 = vmatprep.subr.mxu0 0.0
        %6360 = vmatpush1.msra.mxu0 0.0
        %6361 = vmatprep.subr.mxu0 0.0
        %6362 = vmatpush1.msra.mxu0 0.0
        %6363 = vmatprep.subr.mxu0 0.0
        %6364 = vmatpush1.msra.mxu0 0.0
        %6365 = vmatprep.subr.mxu0 0.0
        %6366 = vmatpush1.msra.mxu0 0.0
        %6367 = vmatprep.subr.mxu0 0.0
        %6368 = vmatpush1.msra.mxu0 0.0
        %6369 = vmatprep.subr.mxu0 0.0
        %6370 = vmatpush1.msra.mxu0 0.0
        %6371 = vmatprep.subr.mxu0 0.0
        %6372 = vmatpush1.msra.mxu0 0.0
        %6373 = vmatprep.subr.mxu0 0.0
        %6374 = vmatpush1.msra.mxu0 0.0
        %6375 = vmatprep.subr.mxu0 0.0
        %6376 = vmatpush1.msra.mxu0 0.0
        %6377 = vmatprep.subr.mxu0 0.0
        %6378 = vmatpush1.msra.mxu0 0.0
        %6379 = vmatprep.subr.mxu0 0.0
        %6380 = vmatpush1.msra.mxu0 0.0
        %6381 = vmatprep.subr.mxu0 0.0
        %6382 = vmatpush1.msra.mxu0 0.0
        %6383 = vmatprep.subr.mxu0 0.0
        %6384 = vmatpush1.msra.mxu0 0.0
        %6385 = vmatprep.subr.mxu0 0.0
        %6386 = vmatpush1.msra.mxu0 0.0
        %6387 = vmatprep.subr.mxu0 0.0
        %6388 = vmatpush1.msra.mxu0 0.0
        %6389 = vmatprep.mubr.f32.mxu0 0.0
        %v6390 = vand.u32 %v5724, 4294901760
        %v6391 = vsub.f32 %v5724, %v6390
        %v6392 = vand.u32 %v6391, 4294901760
        %v6393 = vsub.f32 %v6391, %v6392
        %v6394 = vand.u32 %v6393, 4294901760
        %6395 = vmatmul.mubr.f32.gmra.mrb[0].mxu0 %v6394
        %v6396 = vpop.f32.mrb[0].mxu0
        %v6397 = vadd.f32 0.0, %v6396
        %v6398 = vpop.f32.mrb[0].mxu0
        %6399 = vmatprep.mubr.f32.mxu0 0.0
        %v6400 = vand.u32 %v5727, 4294901760
        %v6401 = vsub.f32 %v5727, %v6400
        %v6402 = vand.u32 %v6401, 4294901760
        %v6403 = vsub.f32 %v6401, %v6402
        %v6404 = vand.u32 %v6403, 4294901760
        %6405 = vmatmul.mubr.f32.gmra.mrb[0].mxu0 %v6404
        %v6406 = vpop.f32.mrb[0].mxu0
        %v6407 = vadd.f32 0.0, %v6406
        %v6408 = vpop.f32.mrb[0].mxu0
        %6409 = vdwg.mxu0
        %6410 = vmatprep.subr.mxu0 0.0
        %v6411 = vand.u32 %v5713, 4294901760
        %v6412 = vsub.f32 %v5713, %v6411
        %v6413 = vand.u32 %v6412, 4294901760
        %v6414 = vsub.f32 %v6412, %v6413
        %v6415 = vand.u32 %v6414, 4294901760
        %6416 = vmatpush1.msra.mxu0 %v6415
        %6417 = vmatprep.subr.mxu0 0.0
        %v6418 = vand.u32 %v5716, 4294901760
        %v6419 = vsub.f32 %v5716, %v6418
        %v6420 = vand.u32 %v6419, 4294901760
        %v6421 = vsub.f32 %v6419, %v6420
        %v6422 = vand.u32 %v6421, 4294901760
        %6423 = vmatpush1.msra.mxu0 %v6422
        %6424 = vmatprep.subr.mxu0 0.0
        %v6425 = vand.u32 %v5719, 4294901760
        %v6426 = vsub.f32 %v5719, %v6425
        %v6427 = vand.u32 %v6426, 4294901760
        %v6428 = vsub.f32 %v6426, %v6427
        %v6429 = vand.u32 %v6428, 4294901760
        %6430 = vmatpush1.msra.mxu0 %v6429
        %6431 = vmatprep.subr.mxu0 0.0
        %v6432 = vand.u32 %v5722, 4294901760
        %v6433 = vsub.f32 %v5722, %v6432
        %v6434 = vand.u32 %v6433, 4294901760
        %v6435 = vsub.f32 %v6433, %v6434
        %v6436 = vand.u32 %v6435, 4294901760
        %6437 = vmatpush1.msra.mxu0 %v6436
        %6438 = vmatprep.subr.mxu0 0.0
        %6439 = vmatpush1.msra.mxu0 0.0
        %6440 = vmatprep.subr.mxu0 0.0
        %6441 = vmatpush1.msra.mxu0 0.0
        %6442 = vmatprep.subr.mxu0 0.0
        %6443 = vmatpush1.msra.mxu0 0.0
        %6444 = vmatprep.subr.mxu0 0.0
        %6445 = vmatpush1.msra.mxu0 0.0
        %6446 = vmatprep.subr.mxu0 0.0
        %6447 = vmatpush1.msra.mxu0 0.0
        %6448 = vmatprep.subr.mxu0 0.0
        %6449 = vmatpush1.msra.mxu0 0.0
        %6450 = vmatprep.subr.mxu0 0.0
        %6451 = vmatpush1.msra.mxu0 0.0
        %6452 = vmatprep.subr.mxu0 0.0
        %6453 = vmatpush1.msra.mxu0 0.0
        %6454 = vmatprep.subr.mxu0 0.0
        %6455 = vmatpush1.msra.mxu0 0.0
        %6456 = vmatprep.subr.mxu0 0.0
        %6457 = vmatpush1.msra.mxu0 0.0
        %6458 = vmatprep.subr.mxu0 0.0
        %6459 = vmatpush1.msra.mxu0 0.0
        %6460 = vmatprep.subr.mxu0 0.0
        %6461 = vmatpush1.msra.mxu0 0.0
        %6462 = vmatprep.subr.mxu0 0.0
        %6463 = vmatpush1.msra.mxu0 0.0
        %6464 = vmatprep.subr.mxu0 0.0
        %6465 = vmatpush1.msra.mxu0 0.0
        %6466 = vmatprep.subr.mxu0 0.0
        %6467 = vmatpush1.msra.mxu0 0.0
        %6468 = vmatprep.subr.mxu0 0.0
        %6469 = vmatpush1.msra.mxu0 0.0
        %6470 = vmatprep.subr.mxu0 0.0
        %6471 = vmatpush1.msra.mxu0 0.0
        %6472 = vmatprep.subr.mxu0 0.0
        %6473 = vmatpush1.msra.mxu0 0.0
        %6474 = vmatprep.subr.mxu0 0.0
        %6475 = vmatpush1.msra.mxu0 0.0
        %6476 = vmatprep.subr.mxu0 0.0
        %6477 = vmatpush1.msra.mxu0 0.0
        %6478 = vmatprep.subr.mxu0 0.0
        %6479 = vmatpush1.msra.mxu0 0.0
        %6480 = vmatprep.subr.mxu0 0.0
        %6481 = vmatpush1.msra.mxu0 0.0
        %6482 = vmatprep.subr.mxu0 0.0
        %6483 = vmatpush1.msra.mxu0 0.0
        %6484 = vmatprep.subr.mxu0 0.0
        %6485 = vmatpush1.msra.mxu0 0.0
        %6486 = vmatprep.subr.mxu0 0.0
        %6487 = vmatpush1.msra.mxu0 0.0
        %6488 = vmatprep.subr.mxu0 0.0
        %6489 = vmatpush1.msra.mxu0 0.0
        %6490 = vmatprep.subr.mxu0 0.0
        %6491 = vmatpush1.msra.mxu0 0.0
        %6492 = vmatprep.subr.mxu0 0.0
        %6493 = vmatpush1.msra.mxu0 0.0
        %6494 = vmatprep.mubr.f32.mxu0 0.0
        %v6495 = vand.u32 %v5724, 4294901760
        %6496 = vmatmul.mubr.f32.gmra.mrb[0].mxu0 %v6495
        %v6497 = vpop.f32.mrb[0].mxu0
        %v6498 = vadd.f32 %v6397, %v6497
        %v6499 = vpop.f32.mrb[0].mxu0
        %6500 = vmatprep.mubr.f32.mxu0 0.0
        %v6501 = vand.u32 %v5727, 4294901760
        %6502 = vmatmul.mubr.f32.gmra.mrb[0].mxu0 %v6501
        %v6503 = vpop.f32.mrb[0].mxu0
        %v6504 = vadd.f32 %v6407, %v6503
        %v6505 = vpop.f32.mrb[0].mxu0
        %6506 = vdwg.mxu0
        %6507 = vmatprep.subr.mxu0 0.0
        %v6508 = vand.u32 %v5713, 4294901760
        %v6509 = vsub.f32 %v5713, %v6508
        %6510 = vmatpush1.msra.mxu0 %v6509
        %6511 = vmatprep.subr.mxu0 0.0
        %v6512 = vand.u32 %v5716, 4294901760
        %v6513 = vsub.f32 %v5716, %v6512
        %6514 = vmatpush1.msra.mxu0 %v6513
        %6515 = vmatprep.subr.mxu0 0.0
        %v6516 = vand.u32 %v5719, 4294901760
        %v6517 = vsub.f32 %v5719, %v6516
        %6518 = vmatpush1.msra.mxu0 %v6517
        %6519 = vmatprep.subr.mxu0 0.0
        %v6520 = vand.u32 %v5722, 4294901760
        %v6521 = vsub.f32 %v5722, %v6520
        %6522 = vmatpush1.msra.mxu0 %v6521
        %6523 = vmatprep.subr.mxu0 0.0
        %6524 = vmatpush1.msra.mxu0 0.0
        %6525 = vmatprep.subr.mxu0 0.0
        %6526 = vmatpush1.msra.mxu0 0.0
        %6527 = vmatprep.subr.mxu0 0.0
        %6528 = vmatpush1.msra.mxu0 0.0
        %6529 = vmatprep.subr.mxu0 0.0
        %6530 = vmatpush1.msra.mxu0 0.0
        %6531 = vmatprep.subr.mxu0 0.0
        %6532 = vmatpush1.msra.mxu0 0.0
        %6533 = vmatprep.subr.mxu0 0.0
        %6534 = vmatpush1.msra.mxu0 0.0
        %6535 = vmatprep.subr.mxu0 0.0
        %6536 = vmatpush1.msra.mxu0 0.0
        %6537 = vmatprep.subr.mxu0 0.0
        %6538 = vmatpush1.msra.mxu0 0.0
        %6539 = vmatprep.subr.mxu0 0.0
        %6540 = vmatpush1.msra.mxu0 0.0
        %6541 = vmatprep.subr.mxu0 0.0
        %6542 = vmatpush1.msra.mxu0 0.0
        %6543 = vmatprep.subr.mxu0 0.0
        %6544 = vmatpush1.msra.mxu0 0.0
        %6545 = vmatprep.subr.mxu0 0.0
        %6546 = vmatpush1.msra.mxu0 0.0
        %6547 = vmatprep.subr.mxu0 0.0
        %6548 = vmatpush1.msra.mxu0 0.0
        %6549 = vmatprep.subr.mxu0 0.0
        %6550 = vmatpush1.msra.mxu0 0.0
        %6551 = vmatprep.subr.mxu0 0.0
        %6552 = vmatpush1.msra.mxu0 0.0
        %6553 = vmatprep.subr.mxu0 0.0
        %6554 = vmatpush1.msra.mxu0 0.0
        %6555 = vmatprep.subr.mxu0 0.0
        %6556 = vmatpush1.msra.mxu0 0.0
        %6557 = vmatprep.subr.mxu0 0.0
        %6558 = vmatpush1.msra.mxu0 0.0
        %6559 = vmatprep.subr.mxu0 0.0
        %6560 = vmatpush1.msra.mxu0 0.0
        %6561 = vmatprep.subr.mxu0 0.0
        %6562 = vmatpush1.msra.mxu0 0.0
        %6563 = vmatprep.subr.mxu0 0.0
        %6564 = vmatpush1.msra.mxu0 0.0
        %6565 = vmatprep.subr.mxu0 0.0
        %6566 = vmatpush1.msra.mxu0 0.0
        %6567 = vmatprep.subr.mxu0 0.0
        %6568 = vmatpush1.msra.mxu0 0.0
        %6569 = vmatprep.subr.mxu0 0.0
        %6570 = vmatpush1.msra.mxu0 0.0
        %6571 = vmatprep.subr.mxu0 0.0
        %6572 = vmatpush1.msra.mxu0 0.0
        %6573 = vmatprep.subr.mxu0 0.0
        %6574 = vmatpush1.msra.mxu0 0.0
        %6575 = vmatprep.subr.mxu0 0.0
        %6576 = vmatpush1.msra.mxu0 0.0
        %6577 = vmatprep.subr.mxu0 0.0
        %6578 = vmatpush1.msra.mxu0 0.0
        %6579 = vmatprep.mubr.f32.mxu0 0.0
        %v6580 = vand.u32 %v5724, 4294901760
        %v6581 = vsub.f32 %v5724, %v6580
        %6582 = vmatmul.mubr.f32.gmra.mrb[0].mxu0 %v6581
        %v6583 = vpop.f32.mrb[0].mxu0
        %v6584 = vadd.f32 %v6498, %v6583
        %v6585 = vpop.f32.mrb[0].mxu0
        %6586 = vmatprep.mubr.f32.mxu0 0.0
        %v6587 = vand.u32 %v5727, 4294901760
        %v6588 = vsub.f32 %v5727, %v6587
        %6589 = vmatmul.mubr.f32.gmra.mrb[0].mxu0 %v6588
        %v6590 = vpop.f32.mrb[0].mxu0
        %v6591 = vadd.f32 %v6504, %v6590
        %v6592 = vpop.f32.mrb[0].mxu0
        %6593 = vdwg.mxu0
        %6594 = vmatprep.subr.mxu0 0.0
        %v6595 = vand.u32 %v5713, 4294901760
        %6596 = vmatpush1.msra.mxu0 %v6595
        %6597 = vmatprep.subr.mxu0 0.0
        %v6598 = vand.u32 %v5716, 4294901760
        %6599 = vmatpush1.msra.mxu0 %v6598
        %6600 = vmatprep.subr.mxu0 0.0
        %v6601 = vand.u32 %v5719, 4294901760
        %6602 = vmatpush1.msra.mxu0 %v6601
        %6603 = vmatprep.subr.mxu0 0.0
        %v6604 = vand.u32 %v5722, 4294901760
        %6605 = vmatpush1.msra.mxu0 %v6604
        %6606 = vmatprep.subr.mxu0 0.0
        %6607 = vmatpush1.msra.mxu0 0.0
        %6608 = vmatprep.subr.mxu0 0.0
        %6609 = vmatpush1.msra.mxu0 0.0
        %6610 = vmatprep.subr.mxu0 0.0
        %6611 = vmatpush1.msra.mxu0 0.0
        %6612 = vmatprep.subr.mxu0 0.0
        %6613 = vmatpush1.msra.mxu0 0.0
        %6614 = vmatprep.subr.mxu0 0.0
        %6615 = vmatpush1.msra.mxu0 0.0
        %6616 = vmatprep.subr.mxu0 0.0
        %6617 = vmatpush1.msra.mxu0 0.0
        %6618 = vmatprep.subr.mxu0 0.0
        %6619 = vmatpush1.msra.mxu0 0.0
        %6620 = vmatprep.subr.mxu0 0.0
        %6621 = vmatpush1.msra.mxu0 0.0
        %6622 = vmatprep.subr.mxu0 0.0
        %6623 = vmatpush1.msra.mxu0 0.0
        %6624 = vmatprep.subr.mxu0 0.0
        %6625 = vmatpush1.msra.mxu0 0.0
        %6626 = vmatprep.subr.mxu0 0.0
        %6627 = vmatpush1.msra.mxu0 0.0
        %6628 = vmatprep.subr.mxu0 0.0
        %6629 = vmatpush1.msra.mxu0 0.0
        %6630 = vmatprep.subr.mxu0 0.0
        %6631 = vmatpush1.msra.mxu0 0.0
        %6632 = vmatprep.subr.mxu0 0.0
        %6633 = vmatpush1.msra.mxu0 0.0
        %6634 = vmatprep.subr.mxu0 0.0
        %6635 = vmatpush1.msra.mxu0 0.0
        %6636 = vmatprep.subr.mxu0 0.0
        %6637 = vmatpush1.msra.mxu0 0.0
        %6638 = vmatprep.subr.mxu0 0.0
        %6639 = vmatpush1.msra.mxu0 0.0
        %6640 = vmatprep.subr.mxu0 0.0
        %6641 = vmatpush1.msra.mxu0 0.0
        %6642 = vmatprep.subr.mxu0 0.0
        %6643 = vmatpush1.msra.mxu0 0.0
        %6644 = vmatprep.subr.mxu0 0.0
        %6645 = vmatpush1.msra.mxu0 0.0
        %6646 = vmatprep.subr.mxu0 0.0
        %6647 = vmatpush1.msra.mxu0 0.0
        %6648 = vmatprep.subr.mxu0 0.0
        %6649 = vmatpush1.msra.mxu0 0.0
        %6650 = vmatprep.subr.mxu0 0.0
        %6651 = vmatpush1.msra.mxu0 0.0
        %6652 = vmatprep.subr.mxu0 0.0
        %6653 = vmatpush1.msra.mxu0 0.0
        %6654 = vmatprep.subr.mxu0 0.0
        %6655 = vmatpush1.msra.mxu0 0.0
        %6656 = vmatprep.subr.mxu0 0.0
        %6657 = vmatpush1.msra.mxu0 0.0
        %6658 = vmatprep.subr.mxu0 0.0
        %6659 = vmatpush1.msra.mxu0 0.0
        %6660 = vmatprep.subr.mxu0 0.0
        %6661 = vmatpush1.msra.mxu0 0.0
        %6662 = vmatprep.mubr.f32.mxu0 0.0
        %v6663 = vand.u32 %v5724, 4294901760
        %v6664 = vsub.f32 %v5724, %v6663
        %v6665 = vand.u32 %v6664, 4294901760
        %6666 = vmatmul.mubr.f32.gmra.mrb[0].mxu0 %v6665
        %v6667 = vpop.f32.mrb[0].mxu0
        %v6668 = vadd.f32 %v6584, %v6667
        %v6669 = vpop.f32.mrb[0].mxu0
        %6670 = vmatprep.mubr.f32.mxu0 0.0
        %v6671 = vand.u32 %v5727, 4294901760
        %v6672 = vsub.f32 %v5727, %v6671
        %v6673 = vand.u32 %v6672, 4294901760
        %6674 = vmatmul.mubr.f32.gmra.mrb[0].mxu0 %v6673
        %v6675 = vpop.f32.mrb[0].mxu0
        %v6676 = vadd.f32 %v6591, %v6675
        %v6677 = vpop.f32.mrb[0].mxu0
        %6678 = vdwg.mxu0
        %6679 = vmatprep.subr.mxu0 0.0
        %v6680 = vand.u32 %v5713, 4294901760
        %v6681 = vsub.f32 %v5713, %v6680
        %v6682 = vand.u32 %v6681, 4294901760
        %6683 = vmatpush1.msra.mxu0 %v6682
        %6684 = vmatprep.subr.mxu0 0.0
        %v6685 = vand.u32 %v5716, 4294901760
        %v6686 = vsub.f32 %v5716, %v6685
        %v6687 = vand.u32 %v6686, 4294901760
        %6688 = vmatpush1.msra.mxu0 %v6687
        %6689 = vmatprep.subr.mxu0 0.0
        %v6690 = vand.u32 %v5719, 4294901760
        %v6691 = vsub.f32 %v5719, %v6690
        %v6692 = vand.u32 %v6691, 4294901760
        %6693 = vmatpush1.msra.mxu0 %v6692
        %6694 = vmatprep.subr.mxu0 0.0
        %v6695 = vand.u32 %v5722, 4294901760
        %v6696 = vsub.f32 %v5722, %v6695
        %v6697 = vand.u32 %v6696, 4294901760
        %6698 = vmatpush1.msra.mxu0 %v6697
        %6699 = vmatprep.subr.mxu0 0.0
        %6700 = vmatpush1.msra.mxu0 0.0
        %6701 = vmatprep.subr.mxu0 0.0
        %6702 = vmatpush1.msra.mxu0 0.0
        %6703 = vmatprep.subr.mxu0 0.0
        %6704 = vmatpush1.msra.mxu0 0.0
        %6705 = vmatprep.subr.mxu0 0.0
        %6706 = vmatpush1.msra.mxu0 0.0
        %6707 = vmatprep.subr.mxu0 0.0
        %6708 = vmatpush1.msra.mxu0 0.0
        %6709 = vmatprep.subr.mxu0 0.0
        %6710 = vmatpush1.msra.mxu0 0.0
        %6711 = vmatprep.subr.mxu0 0.0
        %6712 = vmatpush1.msra.mxu0 0.0
        %6713 = vmatprep.subr.mxu0 0.0
        %6714 = vmatpush1.msra.mxu0 0.0
        %6715 = vmatprep.subr.mxu0 0.0
        %6716 = vmatpush1.msra.mxu0 0.0
        %6717 = vmatprep.subr.mxu0 0.0
        %6718 = vmatpush1.msra.mxu0 0.0
        %6719 = vmatprep.subr.mxu0 0.0
        %6720 = vmatpush1.msra.mxu0 0.0
        %6721 = vmatprep.subr.mxu0 0.0
        %6722 = vmatpush1.msra.mxu0 0.0
        %6723 = vmatprep.subr.mxu0 0.0
        %6724 = vmatpush1.msra.mxu0 0.0
        %6725 = vmatprep.subr.mxu0 0.0
        %6726 = vmatpush1.msra.mxu0 0.0
        %6727 = vmatprep.subr.mxu0 0.0
        %6728 = vmatpush1.msra.mxu0 0.0
        %6729 = vmatprep.subr.mxu0 0.0
        %6730 = vmatpush1.msra.mxu0 0.0
        %6731 = vmatprep.subr.mxu0 0.0
        %6732 = vmatpush1.msra.mxu0 0.0
        %6733 = vmatprep.subr.mxu0 0.0
        %6734 = vmatpush1.msra.mxu0 0.0
        %6735 = vmatprep.subr.mxu0 0.0
        %6736 = vmatpush1.msra.mxu0 0.0
        %6737 = vmatprep.subr.mxu0 0.0
        %6738 = vmatpush1.msra.mxu0 0.0
        %6739 = vmatprep.subr.mxu0 0.0
        %6740 = vmatpush1.msra.mxu0 0.0
        %6741 = vmatprep.subr.mxu0 0.0
        %6742 = vmatpush1.msra.mxu0 0.0
        %6743 = vmatprep.subr.mxu0 0.0
        %6744 = vmatpush1.msra.mxu0 0.0
        %6745 = vmatprep.subr.mxu0 0.0
        %6746 = vmatpush1.msra.mxu0 0.0
        %6747 = vmatprep.subr.mxu0 0.0
        %6748 = vmatpush1.msra.mxu0 0.0
        %6749 = vmatprep.subr.mxu0 0.0
        %6750 = vmatpush1.msra.mxu0 0.0
        %6751 = vmatprep.subr.mxu0 0.0
        %6752 = vmatpush1.msra.mxu0 0.0
        %6753 = vmatprep.subr.mxu0 0.0
        %6754 = vmatpush1.msra.mxu0 0.0
        %6755 = vmatprep.mubr.f32.mxu0 0.0
        %v6756 = vand.u32 %v5724, 4294901760
        %6757 = vmatmul.mubr.f32.gmra.mrb[0].mxu0 %v6756
        %v6758 = vpop.f32.mrb[0].mxu0
        %v6759 = vadd.f32 %v6668, %v6758
        %v6760 = vpop.f32.mrb[0].mxu0
        %6761 = vmatprep.mubr.f32.mxu0 0.0
        %v6762 = vand.u32 %v5727, 4294901760
        %6763 = vmatmul.mubr.f32.gmra.mrb[0].mxu0 %v6762
        %v6764 = vpop.f32.mrb[0].mxu0
        %v6765 = vadd.f32 %v6676, %v6764
        %v6766 = vpop.f32.mrb[0].mxu0
        %6767 = vdwg.mxu0
        %6768 = vmatprep.subr.mxu0 0.0
        %v6769 = vand.u32 %v5713, 4294901760
        %6770 = vmatpush1.msra.mxu0 %v6769
        %6771 = vmatprep.subr.mxu0 0.0
        %v6772 = vand.u32 %v5716, 4294901760
        %6773 = vmatpush1.msra.mxu0 %v6772
        %6774 = vmatprep.subr.mxu0 0.0
        %v6775 = vand.u32 %v5719, 4294901760
        %6776 = vmatpush1.msra.mxu0 %v6775
        %6777 = vmatprep.subr.mxu0 0.0
        %v6778 = vand.u32 %v5722, 4294901760
        %6779 = vmatpush1.msra.mxu0 %v6778
        %6780 = vmatprep.subr.mxu0 0.0
        %6781 = vmatpush1.msra.mxu0 0.0
        %6782 = vmatprep.subr.mxu0 0.0
        %6783 = vmatpush1.msra.mxu0 0.0
        %6784 = vmatprep.subr.mxu0 0.0
        %6785 = vmatpush1.msra.mxu0 0.0
        %6786 = vmatprep.subr.mxu0 0.0
        %6787 = vmatpush1.msra.mxu0 0.0
        %6788 = vmatprep.subr.mxu0 0.0
        %6789 = vmatpush1.msra.mxu0 0.0
        %6790 = vmatprep.subr.mxu0 0.0
        %6791 = vmatpush1.msra.mxu0 0.0
        %6792 = vmatprep.subr.mxu0 0.0
        %6793 = vmatpush1.msra.mxu0 0.0
        %6794 = vmatprep.subr.mxu0 0.0
        %6795 = vmatpush1.msra.mxu0 0.0
        %6796 = vmatprep.subr.mxu0 0.0
        %6797 = vmatpush1.msra.mxu0 0.0
        %6798 = vmatprep.subr.mxu0 0.0
        %6799 = vmatpush1.msra.mxu0 0.0
        %6800 = vmatprep.subr.mxu0 0.0
        %6801 = vmatpush1.msra.mxu0 0.0
        %6802 = vmatprep.subr.mxu0 0.0
        %6803 = vmatpush1.msra.mxu0 0.0
        %6804 = vmatprep.subr.mxu0 0.0
        %6805 = vmatpush1.msra.mxu0 0.0
        %6806 = vmatprep.subr.mxu0 0.0
        %6807 = vmatpush1.msra.mxu0 0.0
        %6808 = vmatprep.subr.mxu0 0.0
        %6809 = vmatpush1.msra.mxu0 0.0
        %6810 = vmatprep.subr.mxu0 0.0
        %6811 = vmatpush1.msra.mxu0 0.0
        %6812 = vmatprep.subr.mxu0 0.0
        %6813 = vmatpush1.msra.mxu0 0.0
        %6814 = vmatprep.subr.mxu0 0.0
        %6815 = vmatpush1.msra.mxu0 0.0
        %6816 = vmatprep.subr.mxu0 0.0
        %6817 = vmatpush1.msra.mxu0 0.0
        %6818 = vmatprep.subr.mxu0 0.0
        %6819 = vmatpush1.msra.mxu0 0.0
        %6820 = vmatprep.subr.mxu0 0.0
        %6821 = vmatpush1.msra.mxu0 0.0
        %6822 = vmatprep.subr.mxu0 0.0
        %6823 = vmatpush1.msra.mxu0 0.0
        %6824 = vmatprep.subr.mxu0 0.0
        %6825 = vmatpush1.msra.mxu0 0.0
        %6826 = vmatprep.subr.mxu0 0.0
        %6827 = vmatpush1.msra.mxu0 0.0
        %6828 = vmatprep.subr.mxu0 0.0
        %6829 = vmatpush1.msra.mxu0 0.0
        %6830 = vmatprep.subr.mxu0 0.0
        %6831 = vmatpush1.msra.mxu0 0.0
        %6832 = vmatprep.subr.mxu0 0.0
        %6833 = vmatpush1.msra.mxu0 0.0
        %6834 = vmatprep.subr.mxu0 0.0
        %6835 = vmatpush1.msra.mxu0 0.0
        %6836 = vmatprep.mubr.f32.mxu0 0.0
        %v6837 = vand.u32 %v5724, 4294901760
        %6838 = vmatmul.mubr.f32.gmra.mrb[0].mxu0 %v6837
        %v6839 = vpop.f32.mrb[0].mxu0
        %v6840 = vadd.f32 %v6759, %v6839
        %v6841 = vpop.f32.mrb[0].mxu0
        %6842 = vmatprep.mubr.f32.mxu0 0.0
        %v6843 = vand.u32 %v5727, 4294901760
        %6844 = vmatmul.mubr.f32.gmra.mrb[0].mxu0 %v6843
        %v6845 = vpop.f32.mrb[0].mxu0
        %v6846 = vadd.f32 %v6765, %v6845
        %v6847 = vpop.f32.mrb[0].mxu0
        %6848 = vdwg.mxu0
        %v6849 = vadd.f32 %v5704, %v6310
        %v6850 = vadd.f32 %v5705, %v6312
        %v6851 = vadd.f32 %v5706, %v6840
        %v6852 = vadd.f32 %v5707, %v6317
        %v6853 = vadd.f32 %v5708, %v6319
        %v6854 = vadd.f32 %v5709, %v6846
        %vm6855 = vcmask 1042432
        %v6856 = vsel %vm6855, %v6852, 0.0
        %v6857 = vadd.f32 %v6849, %v6856
        %v6858 = vrot.slane %v6857, 4
        %v6859 = vadd.f32 %v6857, %v6858
        %v6860 = vrot.slane %v6859, 2
        %v6861 = vadd.f32 %v6859, %v6860
        %v6862 = vrot.slane %v6861, 1
        %v6863 = vadd.f32 %v6861, %v6862
        %v6864 = vrcp.pop 11.0
        %v6865 = vmul.f32 %v6863, %v6864
        %v6866 = vmul.f32 %v6849, %v6849
        %v6867 = vmul.f32 %v6852, %v6852
        %v6868 = vsel %vm6855, %v6867, 0.0
        %v6869 = vadd.f32 %v6866, %v6868
        %v6870 = vrot.slane %v6869, 4
        %v6871 = vadd.f32 %v6869, %v6870
        %v6872 = vrot.slane %v6871, 2
        %v6873 = vadd.f32 %v6871, %v6872
        %v6874 = vrot.slane %v6873, 1
        %v6875 = vadd.f32 %v6873, %v6874
        %v6876 = vmul.f32 %v6875, %v6864
        %v6877 = vmul.f32 %v6865, %v6865
        %v6878 = vsub.f32 %v6876, %v6877
        %v6879 = vsub.f32 %v6849, %v6865
        %v6880 = vsub.f32 %v6852, %v6865
        %v6881 = vadd.f32 %v6878, 1e-05
        %v6882 = vrsqrt.pop %v6881
        %v6883 = vmul.f32 %v6879, %v6882
        %v6884 = vmul.f32 %v6880, %v6882
        %v6885 = vmax.f32 %v6883, 0.0
        %v6886 = vmax.f32 %v6884, 0.0
        %v6887 = vld [vmem:[%s5 + $0x20] sm:$0xff]
        %v6888 = vld [vmem:[%s5 + $0x28] sm:$0xff]
        %v6889 = vld [vmem:[%s5 + $0x30] sm:$0xff]
        %v6890 = vld [vmem:[%s5 + $0x38] sm:$0xff]
        %v6891 = vld [vmem:[%s5 + $0x40] sm:$0xff]
        %v6892 = vld [vmem:[%s5 + $0x48] sm:$0xff]
        %v6893 = vld [vmem:[%s5 + $0x50] sm:$0xff]
        %v6894 = vld [vmem:[%s5 + $0x58] sm:$0xff]
        %v6895 = vld [vmem:[%s5 + $0x60] sm:$0xff]
        %v6896 = vld [vmem:[%s5 + $0x68] sm:$0xff]
        %v6897 = vld [vmem:[%s5 + $0x70] sm:$0xff]
        %v6898 = vld [vmem:[%s5 + $0x78] sm:$0xff]
        %v6899 = vld [vmem:[%s5 + $0x80] sm:$0xff]
        %v6900 = vld [vmem:[%s5 + $0x88] sm:$0xff]
        %v6901 = vld [vmem:[%s5 + $0x90] sm:$0xff]
        %v6902 = vld [vmem:[%s5 + $0x98] sm:$0xff]
        %6903 = vmatprep.subr.mxu0 0.0
        %v6904 = vand.u32 %v6887, 4294901760
        %6905 = vmatpush1.msra.mxu0 %v6904
        %6906 = vmatprep.subr.mxu0 0.0
        %v6907 = vand.u32 %v6888, 4294901760
        %6908 = vmatpush1.msra.mxu0 %v6907
        %6909 = vmatprep.subr.mxu0 0.0
        %v6910 = vand.u32 %v6889, 4294901760
        %6911 = vmatpush1.msra.mxu0 %v6910
        %6912 = vmatprep.subr.mxu0 0.0
        %v6913 = vand.u32 %v6890, 4294901760
        %6914 = vmatpush1.msra.mxu0 %v6913
        %6915 = vmatprep.subr.mxu0 0.0
        %v6916 = vand.u32 %v6891, 4294901760
        %6917 = vmatpush1.msra.mxu0 %v6916
        %6918 = vmatprep.subr.mxu0 0.0
        %v6919 = vand.u32 %v6892, 4294901760
        %6920 = vmatpush1.msra.mxu0 %v6919
        %6921 = vmatprep.subr.mxu0 0.0
        %v6922 = vand.u32 %v6893, 4294901760
        %6923 = vmatpush1.msra.mxu0 %v6922
        %6924 = vmatprep.subr.mxu0 0.0
        %v6925 = vand.u32 %v6894, 4294901760
        %6926 = vmatpush1.msra.mxu0 %v6925
        %6927 = vmatprep.subr.mxu0 0.0
        %v6928 = vand.u32 %v6895, 4294901760
        %6929 = vmatpush1.msra.mxu0 %v6928
        %6930 = vmatprep.subr.mxu0 0.0
        %v6931 = vand.u32 %v6896, 4294901760
        %6932 = vmatpush1.msra.mxu0 %v6931
        %6933 = vmatprep.subr.mxu0 0.0
        %v6934 = vand.u32 %v6897, 4294901760
        %6935 = vmatpush1.msra.mxu0 %v6934
        %6936 = vmatprep.subr.mxu0 0.0
        %v6937 = vand.u32 %v6898, 4294901760
        %6938 = vmatpush1.msra.mxu0 %v6937
        %6939 = vmatprep.subr.mxu0 0.0
        %v6940 = vand.u32 %v6899, 4294901760
        %6941 = vmatpush1.msra.mxu0 %v6940
        %6942 = vmatprep.subr.mxu0 0.0
        %v6943 = vand.u32 %v6900, 4294901760
        %6944 = vmatpush1.msra.mxu0 %v6943
        %6945 = vmatprep.subr.mxu0 0.0
        %v6946 = vand.u32 %v6901, 4294901760
        %6947 = vmatpush1.msra.mxu0 %v6946
        %6948 = vmatprep.subr.mxu0 0.0
        %v6949 = vand.u32 %v6902, 4294901760
        %6950 = vmatpush1.msra.mxu0 %v6949
        %6951 = vmatprep.subr.mxu0 0.0
        %6952 = vmatpush1.msra.mxu0 0.0
        %6953 = vmatprep.subr.mxu0 0.0
        %6954 = vmatpush1.msra.mxu0 0.0
        %6955 = vmatprep.subr.mxu0 0.0
        %6956 = vmatpush1.msra.mxu0 0.0
        %6957 = vmatprep.subr.mxu0 0.0
        %6958 = vmatpush1.msra.mxu0 0.0
        %6959 = vmatprep.subr.mxu0 0.0
        %6960 = vmatpush1.msra.mxu0 0.0
        %6961 = vmatprep.subr.mxu0 0.0
        %6962 = vmatpush1.msra.mxu0 0.0
        %6963 = vmatprep.subr.mxu0 0.0
        %6964 = vmatpush1.msra.mxu0 0.0
        %6965 = vmatprep.subr.mxu0 0.0
        %6966 = vmatpush1.msra.mxu0 0.0
        %6967 = vmatprep.subr.mxu0 0.0
        %6968 = vmatpush1.msra.mxu0 0.0
        %6969 = vmatprep.subr.mxu0 0.0
        %6970 = vmatpush1.msra.mxu0 0.0
        %6971 = vmatprep.subr.mxu0 0.0
        %6972 = vmatpush1.msra.mxu0 0.0
        %6973 = vmatprep.subr.mxu0 0.0
        %6974 = vmatpush1.msra.mxu0 0.0
        %6975 = vmatprep.subr.mxu0 0.0
        %6976 = vmatpush1.msra.mxu0 0.0
        %6977 = vmatprep.subr.mxu0 0.0
        %6978 = vmatpush1.msra.mxu0 0.0
        %6979 = vmatprep.subr.mxu0 0.0
        %6980 = vmatpush1.msra.mxu0 0.0
        %6981 = vmatprep.subr.mxu0 0.0
        %6982 = vmatpush1.msra.mxu0 0.0
        %6983 = vmatprep.mubr.f32.mxu0 0.0
        %v6984 = vand.u32 %v6885, 4294901760
        %v6985 = vsub.f32 %v6885, %v6984
        %v6986 = vand.u32 %v6985, 4294901760
        %v6987 = vsub.f32 %v6985, %v6986
        %v6988 = vand.u32 %v6987, 4294901760
        %6989 = vmatmul.mubr.f32.gmra.mrb[0].mxu0 %v6988
        %v6990 = vpop.f32.mrb[0].mxu0
        %v6991 = vadd.f32 0.0, %v6990
        %v6992 = vpop.f32.mrb[0].mxu0
        %6993 = vmatprep.mubr.f32.mxu0 0.0
        %v6994 = vand.u32 %v6886, 4294901760
        %v6995 = vsub.f32 %v6886, %v6994
        %v6996 = vand.u32 %v6995, 4294901760
        %v6997 = vsub.f32 %v6995, %v6996
        %v6998 = vand.u32 %v6997, 4294901760
        %6999 = vmatmul.mubr.f32.gmra.mrb[0].mxu0 %v6998
        %v7000 = vpop.f32.mrb[0].mxu0
        %v7001 = vadd.f32 0.0, %v7000
        %v7002 = vpop.f32.mrb[0].mxu0
        %7003 = vdwg.mxu0
        %7004 = vmatprep.subr.mxu0 0.0
        %v7005 = vand.u32 %v6887, 4294901760
        %v7006 = vsub.f32 %v6887, %v7005
        %v7007 = vand.u32 %v7006, 4294901760
        %v7008 = vsub.f32 %v7006, %v7007
        %v7009 = vand.u32 %v7008, 4294901760
        %7010 = vmatpush1.msra.mxu0 %v7009
        %7011 = vmatprep.subr.mxu0 0.0
        %v7012 = vand.u32 %v6888, 4294901760
        %v7013 = vsub.f32 %v6888, %v7012
        %v7014 = vand.u32 %v7013, 4294901760
        %v7015 = vsub.f32 %v7013, %v7014
        %v7016 = vand.u32 %v7015, 4294901760
        %7017 = vmatpush1.msra.mxu0 %v7016
        %7018 = vmatprep.subr.mxu0 0.0
        %v7019 = vand.u32 %v6889, 4294901760
        %v7020 = vsub.f32 %v6889, %v7019
        %v7021 = vand.u32 %v7020, 4294901760
        %v7022 = vsub.f32 %v7020, %v7021
        %v7023 = vand.u32 %v7022, 4294901760
        %7024 = vmatpush1.msra.mxu0 %v7023
        %7025 = vmatprep.subr.mxu0 0.0
        %v7026 = vand.u32 %v6890, 4294901760
        %v7027 = vsub.f32 %v6890, %v7026
        %v7028 = vand.u32 %v7027, 4294901760
        %v7029 = vsub.f32 %v7027, %v7028
        %v7030 = vand.u32 %v7029, 4294901760
        %7031 = vmatpush1.msra.mxu0 %v7030
        %7032 = vmatprep.subr.mxu0 0.0
        %v7033 = vand.u32 %v6891, 4294901760
        %v7034 = vsub.f32 %v6891, %v7033
        %v7035 = vand.u32 %v7034, 4294901760
        %v7036 = vsub.f32 %v7034, %v7035
        %v7037 = vand.u32 %v7036, 4294901760
        %7038 = vmatpush1.msra.mxu0 %v7037
        %7039 = vmatprep.subr.mxu0 0.0
        %v7040 = vand.u32 %v6892, 4294901760
        %v7041 = vsub.f32 %v6892, %v7040
        %v7042 = vand.u32 %v7041, 4294901760
        %v7043 = vsub.f32 %v7041, %v7042
        %v7044 = vand.u32 %v7043, 4294901760
        %7045 = vmatpush1.msra.mxu0 %v7044
        %7046 = vmatprep.subr.mxu0 0.0
        %v7047 = vand.u32 %v6893, 4294901760
        %v7048 = vsub.f32 %v6893, %v7047
        %v7049 = vand.u32 %v7048, 4294901760
        %v7050 = vsub.f32 %v7048, %v7049
        %v7051 = vand.u32 %v7050, 4294901760
        %7052 = vmatpush1.msra.mxu0 %v7051
        %7053 = vmatprep.subr.mxu0 0.0
        %v7054 = vand.u32 %v6894, 4294901760
        %v7055 = vsub.f32 %v6894, %v7054
        %v7056 = vand.u32 %v7055, 4294901760
        %v7057 = vsub.f32 %v7055, %v7056
        %v7058 = vand.u32 %v7057, 4294901760
        %7059 = vmatpush1.msra.mxu0 %v7058
        %7060 = vmatprep.subr.mxu0 0.0
        %v7061 = vand.u32 %v6895, 4294901760
        %v7062 = vsub.f32 %v6895, %v7061
        %v7063 = vand.u32 %v7062, 4294901760
        %v7064 = vsub.f32 %v7062, %v7063
        %v7065 = vand.u32 %v7064, 4294901760
        %7066 = vmatpush1.msra.mxu0 %v7065
        %7067 = vmatprep.subr.mxu0 0.0
        %v7068 = vand.u32 %v6896, 4294901760
        %v7069 = vsub.f32 %v6896, %v7068
        %v7070 = vand.u32 %v7069, 4294901760
        %v7071 = vsub.f32 %v7069, %v7070
        %v7072 = vand.u32 %v7071, 4294901760
        %7073 = vmatpush1.msra.mxu0 %v7072
        %7074 = vmatprep.subr.mxu0 0.0
        %v7075 = vand.u32 %v6897, 4294901760
        %v7076 = vsub.f32 %v6897, %v7075
        %v7077 = vand.u32 %v7076, 4294901760
        %v7078 = vsub.f32 %v7076, %v7077
        %v7079 = vand.u32 %v7078, 4294901760
        %7080 = vmatpush1.msra.mxu0 %v7079
        %7081 = vmatprep.subr.mxu0 0.0
        %v7082 = vand.u32 %v6898, 4294901760
        %v7083 = vsub.f32 %v6898, %v7082
        %v7084 = vand.u32 %v7083, 4294901760
        %v7085 = vsub.f32 %v7083, %v7084
        %v7086 = vand.u32 %v7085, 4294901760
        %7087 = vmatpush1.msra.mxu0 %v7086
        %7088 = vmatprep.subr.mxu0 0.0
        %v7089 = vand.u32 %v6899, 4294901760
        %v7090 = vsub.f32 %v6899, %v7089
        %v7091 = vand.u32 %v7090, 4294901760
        %v7092 = vsub.f32 %v7090, %v7091
        %v7093 = vand.u32 %v7092, 4294901760
        %7094 = vmatpush1.msra.mxu0 %v7093
        %7095 = vmatprep.subr.mxu0 0.0
        %v7096 = vand.u32 %v6900, 4294901760
        %v7097 = vsub.f32 %v6900, %v7096
        %v7098 = vand.u32 %v7097, 4294901760
        %v7099 = vsub.f32 %v7097, %v7098
        %v7100 = vand.u32 %v7099, 4294901760
        %7101 = vmatpush1.msra.mxu0 %v7100
        %7102 = vmatprep.subr.mxu0 0.0
        %v7103 = vand.u32 %v6901, 4294901760
        %v7104 = vsub.f32 %v6901, %v7103
        %v7105 = vand.u32 %v7104, 4294901760
        %v7106 = vsub.f32 %v7104, %v7105
        %v7107 = vand.u32 %v7106, 4294901760
        %7108 = vmatpush1.msra.mxu0 %v7107
        %7109 = vmatprep.subr.mxu0 0.0
        %v7110 = vand.u32 %v6902, 4294901760
        %v7111 = vsub.f32 %v6902, %v7110
        %v7112 = vand.u32 %v7111, 4294901760
        %v7113 = vsub.f32 %v7111, %v7112
        %v7114 = vand.u32 %v7113, 4294901760
        %7115 = vmatpush1.msra.mxu0 %v7114
        %7116 = vmatprep.subr.mxu0 0.0
        %7117 = vmatpush1.msra.mxu0 0.0
        %7118 = vmatprep.subr.mxu0 0.0
        %7119 = vmatpush1.msra.mxu0 0.0
        %7120 = vmatprep.subr.mxu0 0.0
        %7121 = vmatpush1.msra.mxu0 0.0
        %7122 = vmatprep.subr.mxu0 0.0
        %7123 = vmatpush1.msra.mxu0 0.0
        %7124 = vmatprep.subr.mxu0 0.0
        %7125 = vmatpush1.msra.mxu0 0.0
        %7126 = vmatprep.subr.mxu0 0.0
        %7127 = vmatpush1.msra.mxu0 0.0
        %7128 = vmatprep.subr.mxu0 0.0
        %7129 = vmatpush1.msra.mxu0 0.0
        %7130 = vmatprep.subr.mxu0 0.0
        %7131 = vmatpush1.msra.mxu0 0.0
        %7132 = vmatprep.subr.mxu0 0.0
        %7133 = vmatpush1.msra.mxu0 0.0
        %7134 = vmatprep.subr.mxu0 0.0
        %7135 = vmatpush1.msra.mxu0 0.0
        %7136 = vmatprep.subr.mxu0 0.0
        %7137 = vmatpush1.msra.mxu0 0.0
        %7138 = vmatprep.subr.mxu0 0.0
        %7139 = vmatpush1.msra.mxu0 0.0
        %7140 = vmatprep.subr.mxu0 0.0
        %7141 = vmatpush1.msra.mxu0 0.0
        %7142 = vmatprep.subr.mxu0 0.0
        %7143 = vmatpush1.msra.mxu0 0.0
        %7144 = vmatprep.subr.mxu0 0.0
        %7145 = vmatpush1.msra.mxu0 0.0
        %7146 = vmatprep.subr.mxu0 0.0
        %7147 = vmatpush1.msra.mxu0 0.0
        %7148 = vmatprep.mubr.f32.mxu0 0.0
        %v7149 = vand.u32 %v6885, 4294901760
        %7150 = vmatmul.mubr.f32.gmra.mrb[0].mxu0 %v7149
        %v7151 = vpop.f32.mrb[0].mxu0
        %v7152 = vadd.f32 %v6991, %v7151
        %v7153 = vpop.f32.mrb[0].mxu0
        %7154 = vmatprep.mubr.f32.mxu0 0.0
        %v7155 = vand.u32 %v6886, 4294901760
        %7156 = vmatmul.mubr.f32.gmra.mrb[0].mxu0 %v7155
        %v7157 = vpop.f32.mrb[0].mxu0
        %v7158 = vadd.f32 %v7001, %v7157
        %v7159 = vpop.f32.mrb[0].mxu0
        %7160 = vdwg.mxu0
        %7161 = vmatprep.subr.mxu0 0.0
        %v7162 = vand.u32 %v6887, 4294901760
        %v7163 = vsub.f32 %v6887, %v7162
        %7164 = vmatpush1.msra.mxu0 %v7163
        %7165 = vmatprep.subr.mxu0 0.0
        %v7166 = vand.u32 %v6888, 4294901760
        %v7167 = vsub.f32 %v6888, %v7166
        %7168 = vmatpush1.msra.mxu0 %v7167
        %7169 = vmatprep.subr.mxu0 0.0
        %v7170 = vand.u32 %v6889, 4294901760
        %v7171 = vsub.f32 %v6889, %v7170
        %7172 = vmatpush1.msra.mxu0 %v7171
        %7173 = vmatprep.subr.mxu0 0.0
        %v7174 = vand.u32 %v6890, 4294901760
        %v7175 = vsub.f32 %v6890, %v7174
        %7176 = vmatpush1.msra.mxu0 %v7175
        %7177 = vmatprep.subr.mxu0 0.0
        %v7178 = vand.u32 %v6891, 4294901760
        %v7179 = vsub.f32 %v6891, %v7178
        %7180 = vmatpush1.msra.mxu0 %v7179
        %7181 = vmatprep.subr.mxu0 0.0
        %v7182 = vand.u32 %v6892, 4294901760
        %v7183 = vsub.f32 %v6892, %v7182
        %7184 = vmatpush1.msra.mxu0 %v7183
        %7185 = vmatprep.subr.mxu0 0.0
        %v7186 = vand.u32 %v6893, 4294901760
        %v7187 = vsub.f32 %v6893, %v7186
        %7188 = vmatpush1.msra.mxu0 %v7187
        %7189 = vmatprep.subr.mxu0 0.0
        %v7190 = vand.u32 %v6894, 4294901760
        %v7191 = vsub.f32 %v6894, %v7190
        %7192 = vmatpush1.msra.mxu0 %v7191
        %7193 = vmatprep.subr.mxu0 0.0
        %v7194 = vand.u32 %v6895, 4294901760
        %v7195 = vsub.f32 %v6895, %v7194
        %7196 = vmatpush1.msra.mxu0 %v7195
        %7197 = vmatprep.subr.mxu0 0.0
        %v7198 = vand.u32 %v6896, 4294901760
        %v7199 = vsub.f32 %v6896, %v7198
        %7200 = vmatpush1.msra.mxu0 %v7199
        %7201 = vmatprep.subr.mxu0 0.0
        %v7202 = vand.u32 %v6897, 4294901760
        %v7203 = vsub.f32 %v6897, %v7202
        %7204 = vmatpush1.msra.mxu0 %v7203
        %7205 = vmatprep.subr.mxu0 0.0
        %v7206 = vand.u32 %v6898, 4294901760
        %v7207 = vsub.f32 %v6898, %v7206
        %7208 = vmatpush1.msra.mxu0 %v7207
        %7209 = vmatprep.subr.mxu0 0.0
        %v7210 = vand.u32 %v6899, 4294901760
        %v7211 = vsub.f32 %v6899, %v7210
        %7212 = vmatpush1.msra.mxu0 %v7211
        %7213 = vmatprep.subr.mxu0 0.0
        %v7214 = vand.u32 %v6900, 4294901760
        %v7215 = vsub.f32 %v6900, %v7214
        %7216 = vmatpush1.msra.mxu0 %v7215
        %7217 = vmatprep.subr.mxu0 0.0
        %v7218 = vand.u32 %v6901, 4294901760
        %v7219 = vsub.f32 %v6901, %v7218
        %7220 = vmatpush1.msra.mxu0 %v7219
        %7221 = vmatprep.subr.mxu0 0.0
        %v7222 = vand.u32 %v6902, 4294901760
        %v7223 = vsub.f32 %v6902, %v7222
        %7224 = vmatpush1.msra.mxu0 %v7223
        %7225 = vmatprep.subr.mxu0 0.0
        %7226 = vmatpush1.msra.mxu0 0.0
        %7227 = vmatprep.subr.mxu0 0.0
        %7228 = vmatpush1.msra.mxu0 0.0
        %7229 = vmatprep.subr.mxu0 0.0
        %7230 = vmatpush1.msra.mxu0 0.0
        %7231 = vmatprep.subr.mxu0 0.0
        %7232 = vmatpush1.msra.mxu0 0.0
        %7233 = vmatprep.subr.mxu0 0.0
        %7234 = vmatpush1.msra.mxu0 0.0
        %7235 = vmatprep.subr.mxu0 0.0
        %7236 = vmatpush1.msra.mxu0 0.0
        %7237 = vmatprep.subr.mxu0 0.0
        %7238 = vmatpush1.msra.mxu0 0.0
        %7239 = vmatprep.subr.mxu0 0.0
        %7240 = vmatpush1.msra.mxu0 0.0
        %7241 = vmatprep.subr.mxu0 0.0
        %7242 = vmatpush1.msra.mxu0 0.0
        %7243 = vmatprep.subr.mxu0 0.0
        %7244 = vmatpush1.msra.mxu0 0.0
        %7245 = vmatprep.subr.mxu0 0.0
        %7246 = vmatpush1.msra.mxu0 0.0
        %7247 = vmatprep.subr.mxu0 0.0
        %7248 = vmatpush1.msra.mxu0 0.0
        %7249 = vmatprep.subr.mxu0 0.0
        %7250 = vmatpush1.msra.mxu0 0.0
        %7251 = vmatprep.subr.mxu0 0.0
        %7252 = vmatpush1.msra.mxu0 0.0
        %7253 = vmatprep.subr.mxu0 0.0
        %7254 = vmatpush1.msra.mxu0 0.0
        %7255 = vmatprep.subr.mxu0 0.0
        %7256 = vmatpush1.msra.mxu0 0.0
        %7257 = vmatprep.mubr.f32.mxu0 0.0
        %v7258 = vand.u32 %v6885, 4294901760
        %v7259 = vsub.f32 %v6885, %v7258
        %7260 = vmatmul.mubr.f32.gmra.mrb[0].mxu0 %v7259
        %v7261 = vpop.f32.mrb[0].mxu0
        %v7262 = vadd.f32 %v7152, %v7261
        %v7263 = vpop.f32.mrb[0].mxu0
        %7264 = vmatprep.mubr.f32.mxu0 0.0
        %v7265 = vand.u32 %v6886, 4294901760
        %v7266 = vsub.f32 %v6886, %v7265
        %7267 = vmatmul.mubr.f32.gmra.mrb[0].mxu0 %v7266
        %v7268 = vpop.f32.mrb[0].mxu0
        %v7269 = vadd.f32 %v7158, %v7268
        %v7270 = vpop.f32.mrb[0].mxu0
        %7271 = vdwg.mxu0
        %7272 = vmatprep.subr.mxu0 0.0
        %v7273 = vand.u32 %v6887, 4294901760
        %7274 = vmatpush1.msra.mxu0 %v7273
        %7275 = vmatprep.subr.mxu0 0.0
        %v7276 = vand.u32 %v6888, 4294901760
        %7277 = vmatpush1.msra.mxu0 %v7276
        %7278 = vmatprep.subr.mxu0 0.0
        %v7279 = vand.u32 %v6889, 4294901760
        %7280 = vmatpush1.msra.mxu0 %v7279
        %7281 = vmatprep.subr.mxu0 0.0
        %v7282 = vand.u32 %v6890, 4294901760
        %7283 = vmatpush1.msra.mxu0 %v7282
        %7284 = vmatprep.subr.mxu0 0.0
        %v7285 = vand.u32 %v6891, 4294901760
        %7286 = vmatpush1.msra.mxu0 %v7285
        %7287 = vmatprep.subr.mxu0 0.0
        %v7288 = vand.u32 %v6892, 4294901760
        %7289 = vmatpush1.msra.mxu0 %v7288
        %7290 = vmatprep.subr.mxu0 0.0
        %v7291 = vand.u32 %v6893, 4294901760
        %7292 = vmatpush1.msra.mxu0 %v7291
        %7293 = vmatprep.subr.mxu0 0.0
        %v7294 = vand.u32 %v6894, 4294901760
        %7295 = vmatpush1.msra.mxu0 %v7294
        %7296 = vmatprep.subr.mxu0 0.0
        %v7297 = vand.u32 %v6895, 4294901760
        %7298 = vmatpush1.msra.mxu0 %v7297
        %7299 = vmatprep.subr.mxu0 0.0
        %v7300 = vand.u32 %v6896, 4294901760
        %7301 = vmatpush1.msra.mxu0 %v7300
        %7302 = vmatprep.subr.mxu0 0.0
        %v7303 = vand.u32 %v6897, 4294901760
        %7304 = vmatpush1.msra.mxu0 %v7303
        %7305 = vmatprep.subr.mxu0 0.0
        %v7306 = vand.u32 %v6898, 4294901760
        %7307 = vmatpush1.msra.mxu0 %v7306
        %7308 = vmatprep.subr.mxu0 0.0
        %v7309 = vand.u32 %v6899, 4294901760
        %7310 = vmatpush1.msra.mxu0 %v7309
        %7311 = vmatprep.subr.mxu0 0.0
        %v7312 = vand.u32 %v6900, 4294901760
        %7313 = vmatpush1.msra.mxu0 %v7312
        %7314 = vmatprep.subr.mxu0 0.0
        %v7315 = vand.u32 %v6901, 4294901760
        %7316 = vmatpush1.msra.mxu0 %v7315
        %7317 = vmatprep.subr.mxu0 0.0
        %v7318 = vand.u32 %v6902, 4294901760
        %7319 = vmatpush1.msra.mxu0 %v7318
        %7320 = vmatprep.subr.mxu0 0.0
        %7321 = vmatpush1.msra.mxu0 0.0
        %7322 = vmatprep.subr.mxu0 0.0
        %7323 = vmatpush1.msra.mxu0 0.0
        %7324 = vmatprep.subr.mxu0 0.0
        %7325 = vmatpush1.msra.mxu0 0.0
        %7326 = vmatprep.subr.mxu0 0.0
        %7327 = vmatpush1.msra.mxu0 0.0
        %7328 = vmatprep.subr.mxu0 0.0
        %7329 = vmatpush1.msra.mxu0 0.0
        %7330 = vmatprep.subr.mxu0 0.0
        %7331 = vmatpush1.msra.mxu0 0.0
        %7332 = vmatprep.subr.mxu0 0.0
        %7333 = vmatpush1.msra.mxu0 0.0
        %7334 = vmatprep.subr.mxu0 0.0
        %7335 = vmatpush1.msra.mxu0 0.0
        %7336 = vmatprep.subr.mxu0 0.0
        %7337 = vmatpush1.msra.mxu0 0.0
        %7338 = vmatprep.subr.mxu0 0.0
        %7339 = vmatpush1.msra.mxu0 0.0
        %7340 = vmatprep.subr.mxu0 0.0
        %7341 = vmatpush1.msra.mxu0 0.0
        %7342 = vmatprep.subr.mxu0 0.0
        %7343 = vmatpush1.msra.mxu0 0.0
        %7344 = vmatprep.subr.mxu0 0.0
        %7345 = vmatpush1.msra.mxu0 0.0
        %7346 = vmatprep.subr.mxu0 0.0
        %7347 = vmatpush1.msra.mxu0 0.0
        %7348 = vmatprep.subr.mxu0 0.0
        %7349 = vmatpush1.msra.mxu0 0.0
        %7350 = vmatprep.subr.mxu0 0.0
        %7351 = vmatpush1.msra.mxu0 0.0
        %7352 = vmatprep.mubr.f32.mxu0 0.0
        %v7353 = vand.u32 %v6885, 4294901760
        %v7354 = vsub.f32 %v6885, %v7353
        %v7355 = vand.u32 %v7354, 4294901760
        %7356 = vmatmul.mubr.f32.gmra.mrb[0].mxu0 %v7355
        %v7357 = vpop.f32.mrb[0].mxu0
        %v7358 = vadd.f32 %v7262, %v7357
        %v7359 = vpop.f32.mrb[0].mxu0
        %7360 = vmatprep.mubr.f32.mxu0 0.0
        %v7361 = vand.u32 %v6886, 4294901760
        %v7362 = vsub.f32 %v6886, %v7361
        %v7363 = vand.u32 %v7362, 4294901760
        %7364 = vmatmul.mubr.f32.gmra.mrb[0].mxu0 %v7363
        %v7365 = vpop.f32.mrb[0].mxu0
        %v7366 = vadd.f32 %v7269, %v7365
        %v7367 = vpop.f32.mrb[0].mxu0
        %7368 = vdwg.mxu0
        %7369 = vmatprep.subr.mxu0 0.0
        %v7370 = vand.u32 %v6887, 4294901760
        %v7371 = vsub.f32 %v6887, %v7370
        %v7372 = vand.u32 %v7371, 4294901760
        %7373 = vmatpush1.msra.mxu0 %v7372
        %7374 = vmatprep.subr.mxu0 0.0
        %v7375 = vand.u32 %v6888, 4294901760
        %v7376 = vsub.f32 %v6888, %v7375
        %v7377 = vand.u32 %v7376, 4294901760
        %7378 = vmatpush1.msra.mxu0 %v7377
        %7379 = vmatprep.subr.mxu0 0.0
        %v7380 = vand.u32 %v6889, 4294901760
        %v7381 = vsub.f32 %v6889, %v7380
        %v7382 = vand.u32 %v7381, 4294901760
        %7383 = vmatpush1.msra.mxu0 %v7382
        %7384 = vmatprep.subr.mxu0 0.0
        %v7385 = vand.u32 %v6890, 4294901760
        %v7386 = vsub.f32 %v6890, %v7385
        %v7387 = vand.u32 %v7386, 4294901760
        %7388 = vmatpush1.msra.mxu0 %v7387
        %7389 = vmatprep.subr.mxu0 0.0
        %v7390 = vand.u32 %v6891, 4294901760
        %v7391 = vsub.f32 %v6891, %v7390
        %v7392 = vand.u32 %v7391, 4294901760
        %7393 = vmatpush1.msra.mxu0 %v7392
        %7394 = vmatprep.subr.mxu0 0.0
        %v7395 = vand.u32 %v6892, 4294901760
        %v7396 = vsub.f32 %v6892, %v7395
        %v7397 = vand.u32 %v7396, 4294901760
        %7398 = vmatpush1.msra.mxu0 %v7397
        %7399 = vmatprep.subr.mxu0 0.0
        %v7400 = vand.u32 %v6893, 4294901760
        %v7401 = vsub.f32 %v6893, %v7400
        %v7402 = vand.u32 %v7401, 4294901760
        %7403 = vmatpush1.msra.mxu0 %v7402
        %7404 = vmatprep.subr.mxu0 0.0
        %v7405 = vand.u32 %v6894, 4294901760
        %v7406 = vsub.f32 %v6894, %v7405
        %v7407 = vand.u32 %v7406, 4294901760
        %7408 = vmatpush1.msra.mxu0 %v7407
        %7409 = vmatprep.subr.mxu0 0.0
        %v7410 = vand.u32 %v6895, 4294901760
        %v7411 = vsub.f32 %v6895, %v7410
        %v7412 = vand.u32 %v7411, 4294901760
        %7413 = vmatpush1.msra.mxu0 %v7412
        %7414 = vmatprep.subr.mxu0 0.0
        %v7415 = vand.u32 %v6896, 4294901760
        %v7416 = vsub.f32 %v6896, %v7415
        %v7417 = vand.u32 %v7416, 4294901760
        %7418 = vmatpush1.msra.mxu0 %v7417
        %7419 = vmatprep.subr.mxu0 0.0
        %v7420 = vand.u32 %v6897, 4294901760
        %v7421 = vsub.f32 %v6897, %v7420
        %v7422 = vand.u32 %v7421, 4294901760
        %7423 = vmatpush1.msra.mxu0 %v7422
        %7424 = vmatprep.subr.mxu0 0.0
        %v7425 = vand.u32 %v6898, 4294901760
        %v7426 = vsub.f32 %v6898, %v7425
        %v7427 = vand.u32 %v7426, 4294901760
        %7428 = vmatpush1.msra.mxu0 %v7427
        %7429 = vmatprep.subr.mxu0 0.0
        %v7430 = vand.u32 %v6899, 4294901760
        %v7431 = vsub.f32 %v6899, %v7430
        %v7432 = vand.u32 %v7431, 4294901760
        %7433 = vmatpush1.msra.mxu0 %v7432
        %7434 = vmatprep.subr.mxu0 0.0
        %v7435 = vand.u32 %v6900, 4294901760
        %v7436 = vsub.f32 %v6900, %v7435
        %v7437 = vand.u32 %v7436, 4294901760
        %7438 = vmatpush1.msra.mxu0 %v7437
        %7439 = vmatprep.subr.mxu0 0.0
        %v7440 = vand.u32 %v6901, 4294901760
        %v7441 = vsub.f32 %v6901, %v7440
        %v7442 = vand.u32 %v7441, 4294901760
        %7443 = vmatpush1.msra.mxu0 %v7442
        %7444 = vmatprep.subr.mxu0 0.0
        %v7445 = vand.u32 %v6902, 4294901760
        %v7446 = vsub.f32 %v6902, %v7445
        %v7447 = vand.u32 %v7446, 4294901760
        %7448 = vmatpush1.msra.mxu0 %v7447
        %7449 = vmatprep.subr.mxu0 0.0
        %7450 = vmatpush1.msra.mxu0 0.0
        %7451 = vmatprep.subr.mxu0 0.0
        %7452 = vmatpush1.msra.mxu0 0.0
        %7453 = vmatprep.subr.mxu0 0.0
        %7454 = vmatpush1.msra.mxu0 0.0
        %7455 = vmatprep.subr.mxu0 0.0
        %7456 = vmatpush1.msra.mxu0 0.0
        %7457 = vmatprep.subr.mxu0 0.0
        %7458 = vmatpush1.msra.mxu0 0.0
        %7459 = vmatprep.subr.mxu0 0.0
        %7460 = vmatpush1.msra.mxu0 0.0
        %7461 = vmatprep.subr.mxu0 0.0
        %7462 = vmatpush1.msra.mxu0 0.0
        %7463 = vmatprep.subr.mxu0 0.0
        %7464 = vmatpush1.msra.mxu0 0.0
        %7465 = vmatprep.subr.mxu0 0.0
        %7466 = vmatpush1.msra.mxu0 0.0
        %7467 = vmatprep.subr.mxu0 0.0
        %7468 = vmatpush1.msra.mxu0 0.0
        %7469 = vmatprep.subr.mxu0 0.0
        %7470 = vmatpush1.msra.mxu0 0.0
        %7471 = vmatprep.subr.mxu0 0.0
        %7472 = vmatpush1.msra.mxu0 0.0
        %7473 = vmatprep.subr.mxu0 0.0
        %7474 = vmatpush1.msra.mxu0 0.0
        %7475 = vmatprep.subr.mxu0 0.0
        %7476 = vmatpush1.msra.mxu0 0.0
        %7477 = vmatprep.subr.mxu0 0.0
        %7478 = vmatpush1.msra.mxu0 0.0
        %7479 = vmatprep.subr.mxu0 0.0
        %7480 = vmatpush1.msra.mxu0 0.0
        %7481 = vmatprep.mubr.f32.mxu0 0.0
        %v7482 = vand.u32 %v6885, 4294901760
        %7483 = vmatmul.mubr.f32.gmra.mrb[0].mxu0 %v7482
        %v7484 = vpop.f32.mrb[0].mxu0
        %v7485 = vadd.f32 %v7358, %v7484
        %v7486 = vpop.f32.mrb[0].mxu0
        %7487 = vmatprep.mubr.f32.mxu0 0.0
        %v7488 = vand.u32 %v6886, 4294901760
        %7489 = vmatmul.mubr.f32.gmra.mrb[0].mxu0 %v7488
        %v7490 = vpop.f32.mrb[0].mxu0
        %v7491 = vadd.f32 %v7366, %v7490
        %v7492 = vpop.f32.mrb[0].mxu0
        %7493 = vdwg.mxu0
        %7494 = vmatprep.subr.mxu0 0.0
        %v7495 = vand.u32 %v6887, 4294901760
        %7496 = vmatpush1.msra.mxu0 %v7495
        %7497 = vmatprep.subr.mxu0 0.0
        %v7498 = vand.u32 %v6888, 4294901760
        %7499 = vmatpush1.msra.mxu0 %v7498
        %7500 = vmatprep.subr.mxu0 0.0
        %v7501 = vand.u32 %v6889, 4294901760
        %7502 = vmatpush1.msra.mxu0 %v7501
        %7503 = vmatprep.subr.mxu0 0.0
        %v7504 = vand.u32 %v6890, 4294901760
        %7505 = vmatpush1.msra.mxu0 %v7504
        %7506 = vmatprep.subr.mxu0 0.0
        %v7507 = vand.u32 %v6891, 4294901760
        %7508 = vmatpush1.msra.mxu0 %v7507
        %7509 = vmatprep.subr.mxu0 0.0
        %v7510 = vand.u32 %v6892, 4294901760
        %7511 = vmatpush1.msra.mxu0 %v7510
        %7512 = vmatprep.subr.mxu0 0.0
        %v7513 = vand.u32 %v6893, 4294901760
        %7514 = vmatpush1.msra.mxu0 %v7513
        %7515 = vmatprep.subr.mxu0 0.0
        %v7516 = vand.u32 %v6894, 4294901760
        %7517 = vmatpush1.msra.mxu0 %v7516
        %7518 = vmatprep.subr.mxu0 0.0
        %v7519 = vand.u32 %v6895, 4294901760
        %7520 = vmatpush1.msra.mxu0 %v7519
        %7521 = vmatprep.subr.mxu0 0.0
        %v7522 = vand.u32 %v6896, 4294901760
        %7523 = vmatpush1.msra.mxu0 %v7522
        %7524 = vmatprep.subr.mxu0 0.0
        %v7525 = vand.u32 %v6897, 4294901760
        %7526 = vmatpush1.msra.mxu0 %v7525
        %7527 = vmatprep.subr.mxu0 0.0
        %v7528 = vand.u32 %v6898, 4294901760
        %7529 = vmatpush1.msra.mxu0 %v7528
        %7530 = vmatprep.subr.mxu0 0.0
        %v7531 = vand.u32 %v6899, 4294901760
        %7532 = vmatpush1.msra.mxu0 %v7531
        %7533 = vmatprep.subr.mxu0 0.0
        %v7534 = vand.u32 %v6900, 4294901760
        %7535 = vmatpush1.msra.mxu0 %v7534
        %7536 = vmatprep.subr.mxu0 0.0
        %v7537 = vand.u32 %v6901, 4294901760
        %7538 = vmatpush1.msra.mxu0 %v7537
        %7539 = vmatprep.subr.mxu0 0.0
        %v7540 = vand.u32 %v6902, 4294901760
        %7541 = vmatpush1.msra.mxu0 %v7540
        %7542 = vmatprep.subr.mxu0 0.0
        %7543 = vmatpush1.msra.mxu0 0.0
        %7544 = vmatprep.subr.mxu0 0.0
        %7545 = vmatpush1.msra.mxu0 0.0
        %7546 = vmatprep.subr.mxu0 0.0
        %7547 = vmatpush1.msra.mxu0 0.0
        %7548 = vmatprep.subr.mxu0 0.0
        %7549 = vmatpush1.msra.mxu0 0.0
        %7550 = vmatprep.subr.mxu0 0.0
        %7551 = vmatpush1.msra.mxu0 0.0
        %7552 = vmatprep.subr.mxu0 0.0
        %7553 = vmatpush1.msra.mxu0 0.0
        %7554 = vmatprep.subr.mxu0 0.0
        %7555 = vmatpush1.msra.mxu0 0.0
        %7556 = vmatprep.subr.mxu0 0.0
        %7557 = vmatpush1.msra.mxu0 0.0
        %7558 = vmatprep.subr.mxu0 0.0
        %7559 = vmatpush1.msra.mxu0 0.0
        %7560 = vmatprep.subr.mxu0 0.0
        %7561 = vmatpush1.msra.mxu0 0.0
        %7562 = vmatprep.subr.mxu0 0.0
        %7563 = vmatpush1.msra.mxu0 0.0
        %7564 = vmatprep.subr.mxu0 0.0
        %7565 = vmatpush1.msra.mxu0 0.0
        %7566 = vmatprep.subr.mxu0 0.0
        %7567 = vmatpush1.msra.mxu0 0.0
        %7568 = vmatprep.subr.mxu0 0.0
        %7569 = vmatpush1.msra.mxu0 0.0
        %7570 = vmatprep.subr.mxu0 0.0
        %7571 = vmatpush1.msra.mxu0 0.0
        %7572 = vmatprep.subr.mxu0 0.0
        %7573 = vmatpush1.msra.mxu0 0.0
        %7574 = vmatprep.mubr.f32.mxu0 0.0
        %v7575 = vand.u32 %v6885, 4294901760
        %7576 = vmatmul.mubr.f32.gmra.mrb[0].mxu0 %v7575
        %v7577 = vpop.f32.mrb[0].mxu0
        %v7578 = vadd.f32 %v7485, %v7577
        %v7579 = vpop.f32.mrb[0].mxu0
        %7580 = vmatprep.mubr.f32.mxu0 0.0
        %v7581 = vand.u32 %v6886, 4294901760
        %7582 = vmatmul.mubr.f32.gmra.mrb[0].mxu0 %v7581
        %v7583 = vpop.f32.mrb[0].mxu0
        %v7584 = vadd.f32 %v7491, %v7583
        %v7585 = vpop.f32.mrb[0].mxu0
        %7586 = vdwg.mxu0
        %v7587 = vsel %vm6855, %v7584, 0.0
        %v7588 = vadd.f32 %v7578, %v7587
        %v7589 = vrot.slane %v7588, 4
        %v7590 = vadd.f32 %v7588, %v7589
        %v7591 = vrot.slane %v7590, 2
        %v7592 = vadd.f32 %v7590, %v7591
        %v7593 = vrot.slane %v7592, 1
        %v7594 = vadd.f32 %v7592, %v7593
        %v7595 = vmul.f32 %v7594, %v6864
        %v7596 = vmul.f32 %v7578, %v7578
        %v7597 = vmul.f32 %v7584, %v7584
        %v7598 = vsel %vm6855, %v7597, 0.0
        %v7599 = vadd.f32 %v7596, %v7598
        %v7600 = vrot.slane %v7599, 4
        %v7601 = vadd.f32 %v7599, %v7600
        %v7602 = vrot.slane %v7601, 2
        %v7603 = vadd.f32 %v7601, %v7602
        %v7604 = vrot.slane %v7603, 1
        %v7605 = vadd.f32 %v7603, %v7604
        %v7606 = vmul.f32 %v7605, %v6864
        %v7607 = vmul.f32 %v7595, %v7595
        %v7608 = vsub.f32 %v7606, %v7607
        %v7609 = vsub.f32 %v7578, %v7595
        %v7610 = vsub.f32 %v7584, %v7595
        %v7611 = vadd.f32 %v7608, 1e-05
        %v7612 = vrsqrt.pop %v7611
        %v7613 = vmul.f32 %v7609, %v7612
        %v7614 = vmul.f32 %v7610, %v7612
        %v7615 = vmax.f32 %v7613, 0.0
        %v7616 = vmax.f32 %v7614, 0.0
        %7617 = vst [vmem:[%s326] sm:$0xff] %v7615
        %7618 = vst [vmem:[%s326 + $0x8] sm:$0x7] %v7616
        %v7619 = vld [vmem:[%s5] sm:$0xff]
        %v7620 = vld [vmem:[%s5 + $0x8] sm:$0xff]
        %v7621 = vld [vmem:[%s5 + $0x10] sm:$0xff]
        %v7622 = vld [vmem:[%s5 + $0x18] sm:$0xff]
        %v7623 = vld [vmem:[%s3] sm:$0xff]
        %v7624 = vld [vmem:[%s3 + $0x8] sm:$0xff]
        %v7625 = vld [vmem:[%s3 + $0x10] sm:$0xf]
        %vm7626 = vcmask 89088
        %v7628 = vsel %vm7626, %v7623, 0
        %v7631 = vsel %vm7626, %v7624, 0
        %v7634 = vsel %vm7626, %v7625, 0
        %v7637 = vsel %vm6855, %v6853, 0
        %7639 = vmatprep.subr.mxu0 0.0
        %v7640 = vand.u32 %v6850, 4294901760
        %7641 = vmatpush1.msra.mxu0 %v7640
        %7642 = vmatprep.subr.mxu0 0.0
        %v7643 = vand.u32 %v7637, 4294901760
        %7644 = vmatpush1.msra.mxu0 %v7643
        %7645 = vmatprep.subr.mxu0 0.0
        %7646 = vmatpush1.msra.mxu0 0.0
        %7647 = vmatprep.subr.mxu0 0.0
        %7648 = vmatpush1.msra.mxu0 0.0
        %7649 = vmatprep.subr.mxu0 0.0
        %7650 = vmatpush1.msra.mxu0 0.0
        %7651 = vmatprep.subr.mxu0 0.0
        %7652 = vmatpush1.msra.mxu0 0.0
        %7653 = vmatprep.subr.mxu0 0.0
        %7654 = vmatpush1.msra.mxu0 0.0
        %7655 = vmatprep.subr.mxu0 0.0
        %7656 = vmatpush1.msra.mxu0 0.0
        %7657 = vmatprep.subr.mxu0 0.0
        %7658 = vmatpush1.msra.mxu0 0.0
        %7659 = vmatprep.subr.mxu0 0.0
        %7660 = vmatpush1.msra.mxu0 0.0
        %7661 = vmatprep.subr.mxu0 0.0
        %7662 = vmatpush1.msra.mxu0 0.0
        %7663 = vmatprep.subr.mxu0 0.0
        %7664 = vmatpush1.msra.mxu0 0.0
        %7665 = vmatprep.subr.mxu0 0.0
        %7666 = vmatpush1.msra.mxu0 0.0
        %7667 = vmatprep.subr.mxu0 0.0
        %7668 = vmatpush1.msra.mxu0 0.0
        %7669 = vmatprep.subr.mxu0 0.0
        %7670 = vmatpush1.msra.mxu0 0.0
        %7671 = vmatprep.subr.mxu0 0.0
        %7672 = vmatpush1.msra.mxu0 0.0
        %7673 = vmatprep.subr.mxu0 0.0
        %7674 = vmatpush1.msra.mxu0 0.0
        %7675 = vmatprep.subr.mxu0 0.0
        %7676 = vmatpush1.msra.mxu0 0.0
        %7677 = vmatprep.subr.mxu0 0.0
        %7678 = vmatpush1.msra.mxu0 0.0
        %7679 = vmatprep.subr.mxu0 0.0
        %7680 = vmatpush1.msra.mxu0 0.0
        %7681 = vmatprep.subr.mxu0 0.0
        %7682 = vmatpush1.msra.mxu0 0.0
        %7683 = vmatprep.subr.mxu0 0.0
        %7684 = vmatpush1.msra.mxu0 0.0
        %7685 = vmatprep.subr.mxu0 0.0
        %7686 = vmatpush1.msra.mxu0 0.0
        %7687 = vmatprep.subr.mxu0 0.0
        %7688 = vmatpush1.msra.mxu0 0.0
        %7689 = vmatprep.subr.mxu0 0.0
        %7690 = vmatpush1.msra.mxu0 0.0
        %7691 = vmatprep.subr.mxu0 0.0
        %7692 = vmatpush1.msra.mxu0 0.0
        %7693 = vmatprep.subr.mxu0 0.0
        %7694 = vmatpush1.msra.mxu0 0.0
        %7695 = vmatprep.subr.mxu0 0.0
        %7696 = vmatpush1.msra.mxu0 0.0
        %7697 = vmatprep.subr.mxu0 0.0
        %7698 = vmatpush1.msra.mxu0 0.0
        %7699 = vmatprep.subr.mxu0 0.0
        %7700 = vmatpush1.msra.mxu0 0.0
        %7701 = vmatprep.subr.mxu0 0.0
        %7702 = vmatpush1.msra.mxu0 0.0
        %7703 = vmatprep.subr.mxu0 0.0
        %7704 = vmatpush1.msra.mxu0 0.0
        %7705 = vmatprep.mubr.f32.mxu0 0.0
        %v7706 = vand.u32 %v7628, 4294901760
        %v7707 = vsub.f32 %v7628, %v7706
        %v7708 = vand.u32 %v7707, 4294901760
        %v7709 = vsub.f32 %v7707, %v7708
        %v7710 = vand.u32 %v7709, 4294901760
        %7711 = vmatmul.mubr.f32.gmra.mrb[0].mxu0 %v7710
        %v7712 = vpop.f32.mrb[0].mxu0
        %v7713 = vadd.f32 0.0, %v7712
        %v7714 = vpop.f32.mrb[0].mxu0
        %7715 = vmatprep.mubr.f32.mxu0 0.0
        %v7716 = vand.u32 %v7631, 4294901760
        %v7717 = vsub.f32 %v7631, %v7716
        %v7718 = vand.u32 %v7717, 4294901760
        %v7719 = vsub.f32 %v7717, %v7718
        %v7720 = vand.u32 %v7719, 4294901760
        %7721 = vmatmul.mubr.f32.gmra.mrb[0].mxu0 %v7720
        %v7722 = vpop.f32.mrb[0].mxu0
        %v7723 = vadd.f32 0.0, %v7722
        %v7724 = vpop.f32.mrb[0].mxu0
        %7725 = vmatprep.mubr.f32.mxu0 0.0
        %v7726 = vand.u32 %v7634, 4294901760
        %v7727 = vsub.f32 %v7634, %v7726
        %v7728 = vand.u32 %v7727, 4294901760
        %v7729 = vsub.f32 %v7727, %v7728
        %v7730 = vand.u32 %v7729, 4294901760
        %7731 = vmatmul.mubr.f32.gmra.mrb[0].mxu0 %v7730
        %v7732 = vpop.f32.mrb[0].mxu0
        %v7733 = vadd.f32 0.0, %v7732
        %v7734 = vpop.f32.mrb[0].mxu0
        %7735 = vdwg.mxu0
        %7736 = vmatprep.subr.mxu0 0.0
        %v7737 = vand.u32 %v6850, 4294901760
        %v7738 = vsub.f32 %v6850, %v7737
        %v7739 = vand.u32 %v7738, 4294901760
        %v7740 = vsub.f32 %v7738, %v7739
        %v7741 = vand.u32 %v7740, 4294901760
        %7742 = vmatpush1.msra.mxu0 %v7741
        %7743 = vmatprep.subr.mxu0 0.0
        %v7744 = vand.u32 %v7637, 4294901760
        %v7745 = vsub.f32 %v7637, %v7744
        %v7746 = vand.u32 %v7745, 4294901760
        %v7747 = vsub.f32 %v7745, %v7746
        %v7748 = vand.u32 %v7747, 4294901760
        %7749 = vmatpush1.msra.mxu0 %v7748
        %7750 = vmatprep.subr.mxu0 0.0
        %7751 = vmatpush1.msra.mxu0 0.0
        %7752 = vmatprep.subr.mxu0 0.0
        %7753 = vmatpush1.msra.mxu0 0.0
        %7754 = vmatprep.subr.mxu0 0.0
        %7755 = vmatpush1.msra.mxu0 0.0
        %7756 = vmatprep.subr.mxu0 0.0
        %7757 = vmatpush1.msra.mxu0 0.0
        %7758 = vmatprep.subr.mxu0 0.0
        %7759 = vmatpush1.msra.mxu0 0.0
        %7760 = vmatprep.subr.mxu0 0.0
        %7761 = vmatpush1.msra.mxu0 0.0
        %7762 = vmatprep.subr.mxu0 0.0
        %7763 = vmatpush1.msra.mxu0 0.0
        %7764 = vmatprep.subr.mxu0 0.0
        %7765 = vmatpush1.msra.mxu0 0.0
        %7766 = vmatprep.subr.mxu0 0.0
        %7767 = vmatpush1.msra.mxu0 0.0
        %7768 = vmatprep.subr.mxu0 0.0
        %7769 = vmatpush1.msra.mxu0 0.0
        %7770 = vmatprep.subr.mxu0 0.0
        %7771 = vmatpush1.msra.mxu0 0.0
        %7772 = vmatprep.subr.mxu0 0.0
        %7773 = vmatpush1.msra.mxu0 0.0
        %7774 = vmatprep.subr.mxu0 0.0
        %7775 = vmatpush1.msra.mxu0 0.0
        %7776 = vmatprep.subr.mxu0 0.0
        %7777 = vmatpush1.msra.mxu0 0.0
        %7778 = vmatprep.subr.mxu0 0.0
        %7779 = vmatpush1.msra.mxu0 0.0
        %7780 = vmatprep.subr.mxu0 0.0
        %7781 = vmatpush1.msra.mxu0 0.0
        %7782 = vmatprep.subr.mxu0 0.0
        %7783 = vmatpush1.msra.mxu0 0.0
        %7784 = vmatprep.subr.mxu0 0.0
        %7785 = vmatpush1.msra.mxu0 0.0
        %7786 = vmatprep.subr.mxu0 0.0
        %7787 = vmatpush1.msra.mxu0 0.0
        %7788 = vmatprep.subr.mxu0 0.0
        %7789 = vmatpush1.msra.mxu0 0.0
        %7790 = vmatprep.subr.mxu0 0.0
        %7791 = vmatpush1.msra.mxu0 0.0
        %7792 = vmatprep.subr.mxu0 0.0
        %7793 = vmatpush1.msra.mxu0 0.0
        %7794 = vmatprep.subr.mxu0 0.0
        %7795 = vmatpush1.msra.mxu0 0.0
        %7796 = vmatprep.subr.mxu0 0.0
        %7797 = vmatpush1.msra.mxu0 0.0
        %7798 = vmatprep.subr.mxu0 0.0
        %7799 = vmatpush1.msra.mxu0 0.0
        %7800 = vmatprep.subr.mxu0 0.0
        %7801 = vmatpush1.msra.mxu0 0.0
        %7802 = vmatprep.subr.mxu0 0.0
        %7803 = vmatpush1.msra.mxu0 0.0
        %7804 = vmatprep.subr.mxu0 0.0
        %7805 = vmatpush1.msra.mxu0 0.0
        %7806 = vmatprep.subr.mxu0 0.0
        %7807 = vmatpush1.msra.mxu0 0.0
        %7808 = vmatprep.subr.mxu0 0.0
        %7809 = vmatpush1.msra.mxu0 0.0
        %7810 = vmatprep.mubr.f32.mxu0 0.0
        %v7811 = vand.u32 %v7628, 4294901760
        %7812 = vmatmul.mubr.f32.gmra.mrb[0].mxu0 %v7811
        %v7813 = vpop.f32.mrb[0].mxu0
        %v7814 = vadd.f32 %v7713, %v7813
        %v7815 = vpop.f32.mrb[0].mxu0
        %7816 = vmatprep.mubr.f32.mxu0 0.0
        %v7817 = vand.u32 %v7631, 4294901760
        %7818 = vmatmul.mubr.f32.gmra.mrb[0].mxu0 %v7817
        %v7819 = vpop.f32.mrb[0].mxu0
        %v7820 = vadd.f32 %v7723, %v7819
        %v7821 = vpop.f32.mrb[0].mxu0
        %7822 = vmatprep.mubr.f32.mxu0 0.0
        %v7823 = vand.u32 %v7634, 4294901760
        %7824 = vmatmul.mubr.f32.gmra.mrb[0].mxu0 %v7823
        %v7825 = vpop.f32.mrb[0].mxu0
        %v7826 = vadd.f32 %v7733, %v7825
        %v7827 = vpop.f32.mrb[0].mxu0
        %7828 = vdwg.mxu0
        %7829 = vmatprep.subr.mxu0 0.0
        %v7830 = vand.u32 %v6850, 4294901760
        %v7831 = vsub.f32 %v6850, %v7830
        %7832 = vmatpush1.msra.mxu0 %v7831
        %7833 = vmatprep.subr.mxu0 0.0
        %v7834 = vand.u32 %v7637, 4294901760
        %v7835 = vsub.f32 %v7637, %v7834
        %7836 = vmatpush1.msra.mxu0 %v7835
        %7837 = vmatprep.subr.mxu0 0.0
        %7838 = vmatpush1.msra.mxu0 0.0
        %7839 = vmatprep.subr.mxu0 0.0
        %7840 = vmatpush1.msra.mxu0 0.0
        %7841 = vmatprep.subr.mxu0 0.0
        %7842 = vmatpush1.msra.mxu0 0.0
        %7843 = vmatprep.subr.mxu0 0.0
        %7844 = vmatpush1.msra.mxu0 0.0
        %7845 = vmatprep.subr.mxu0 0.0
        %7846 = vmatpush1.msra.mxu0 0.0
        %7847 = vmatprep.subr.mxu0 0.0
        %7848 = vmatpush1.msra.mxu0 0.0
        %7849 = vmatprep.subr.mxu0 0.0
        %7850 = vmatpush1.msra.mxu0 0.0
        %7851 = vmatprep.subr.mxu0 0.0
        %7852 = vmatpush1.msra.mxu0 0.0
        %7853 = vmatprep.subr.mxu0 0.0
        %7854 = vmatpush1.msra.mxu0 0.0
        %7855 = vmatprep.subr.mxu0 0.0
        %7856 = vmatpush1.msra.mxu0 0.0
        %7857 = vmatprep.subr.mxu0 0.0
        %7858 = vmatpush1.msra.mxu0 0.0
        %7859 = vmatprep.subr.mxu0 0.0
        %7860 = vmatpush1.msra.mxu0 0.0
        %7861 = vmatprep.subr.mxu0 0.0
        %7862 = vmatpush1.msra.mxu0 0.0
        %7863 = vmatprep.subr.mxu0 0.0
        %7864 = vmatpush1.msra.mxu0 0.0
        %7865 = vmatprep.subr.mxu0 0.0
        %7866 = vmatpush1.msra.mxu0 0.0
        %7867 = vmatprep.subr.mxu0 0.0
        %7868 = vmatpush1.msra.mxu0 0.0
        %7869 = vmatprep.subr.mxu0 0.0
        %7870 = vmatpush1.msra.mxu0 0.0
        %7871 = vmatprep.subr.mxu0 0.0
        %7872 = vmatpush1.msra.mxu0 0.0
        %7873 = vmatprep.subr.mxu0 0.0
        %7874 = vmatpush1.msra.mxu0 0.0
        %7875 = vmatprep.subr.mxu0 0.0
        %7876 = vmatpush1.msra.mxu0 0.0
        %7877 = vmatprep.subr.mxu0 0.0
        %7878 = vmatpush1.msra.mxu0 0.0
        %7879 = vmatprep.subr.mxu0 0.0
        %7880 = vmatpush1.msra.mxu0 0.0
        %7881 = vmatprep.subr.mxu0 0.0
        %7882 = vmatpush1.msra.mxu0 0.0
        %7883 = vmatprep.subr.mxu0 0.0
        %7884 = vmatpush1.msra.mxu0 0.0
        %7885 = vmatprep.subr.mxu0 0.0
        %7886 = vmatpush1.msra.mxu0 0.0
        %7887 = vmatprep.subr.mxu0 0.0
        %7888 = vmatpush1.msra.mxu0 0.0
        %7889 = vmatprep.subr.mxu0 0.0
        %7890 = vmatpush1.msra.mxu0 0.0
        %7891 = vmatprep.subr.mxu0 0.0
        %7892 = vmatpush1.msra.mxu0 0.0
        %7893 = vmatprep.subr.mxu0 0.0
        %7894 = vmatpush1.msra.mxu0 0.0
        %7895 = vmatprep.subr.mxu0 0.0
        %7896 = vmatpush1.msra.mxu0 0.0
        %7897 = vmatprep.mubr.f32.mxu0 0.0
        %v7898 = vand.u32 %v7628, 4294901760
        %v7899 = vsub.f32 %v7628, %v7898
        %7900 = vmatmul.mubr.f32.gmra.mrb[0].mxu0 %v7899
        %v7901 = vpop.f32.mrb[0].mxu0
        %v7902 = vadd.f32 %v7814, %v7901
        %v7903 = vpop.f32.mrb[0].mxu0
        %7904 = vmatprep.mubr.f32.mxu0 0.0
        %v7905 = vand.u32 %v7631, 4294901760
        %v7906 = vsub.f32 %v7631, %v7905
        %7907 = vmatmul.mubr.f32.gmra.mrb[0].mxu0 %v7906
        %v7908 = vpop.f32.mrb[0].mxu0
        %v7909 = vadd.f32 %v7820, %v7908
        %v7910 = vpop.f32.mrb[0].mxu0
        %7911 = vmatprep.mubr.f32.mxu0 0.0
        %v7912 = vand.u32 %v7634, 4294901760
        %v7913 = vsub.f32 %v7634, %v7912
        %7914 = vmatmul.mubr.f32.gmra.mrb[0].mxu0 %v7913
        %v7915 = vpop.f32.mrb[0].mxu0
        %v7916 = vadd.f32 %v7826, %v7915
        %v7917 = vpop.f32.mrb[0].mxu0
        %7918 = vdwg.mxu0
        %7919 = vmatprep.subr.mxu0 0.0
        %v7920 = vand.u32 %v6850, 4294901760
        %7921 = vmatpush1.msra.mxu0 %v7920
        %7922 = vmatprep.subr.mxu0 0.0
        %v7923 = vand.u32 %v7637, 4294901760
        %7924 = vmatpush1.msra.mxu0 %v7923
        %7925 = vmatprep.subr.mxu0 0.0
        %7926 = vmatpush1.msra.mxu0 0.0
        %7927 = vmatprep.subr.mxu0 0.0
        %7928 = vmatpush1.msra.mxu0 0.0
        %7929 = vmatprep.subr.mxu0 0.0
        %7930 = vmatpush1.msra.mxu0 0.0
        %7931 = vmatprep.subr.mxu0 0.0
        %7932 = vmatpush1.msra.mxu0 0.0
        %7933 = vmatprep.subr.mxu0 0.0
        %7934 = vmatpush1.msra.mxu0 0.0
        %7935 = vmatprep.subr.mxu0 0.0
        %7936 = vmatpush1.msra.mxu0 0.0
        %7937 = vmatprep.subr.mxu0 0.0
        %7938 = vmatpush1.msra.mxu0 0.0
        %7939 = vmatprep.subr.mxu0 0.0
        %7940 = vmatpush1.msra.mxu0 0.0
        %7941 = vmatprep.subr.mxu0 0.0
        %7942 = vmatpush1.msra.mxu0 0.0
        %7943 = vmatprep.subr.mxu0 0.0
        %7944 = vmatpush1.msra.mxu0 0.0
        %7945 = vmatprep.subr.mxu0 0.0
        %7946 = vmatpush1.msra.mxu0 0.0
        %7947 = vmatprep.subr.mxu0 0.0
        %7948 = vmatpush1.msra.mxu0 0.0
        %7949 = vmatprep.subr.mxu0 0.0
        %7950 = vmatpush1.msra.mxu0 0.0
        %7951 = vmatprep.subr.mxu0 0.0
        %7952 = vmatpush1.msra.mxu0 0.0
        %7953 = vmatprep.subr.mxu0 0.0
        %7954 = vmatpush1.msra.mxu0 0.0
        %7955 = vmatprep.subr.mxu0 0.0
        %7956 = vmatpush1.msra.mxu0 0.0
        %7957 = vmatprep.subr.mxu0 0.0
        %7958 = vmatpush1.msra.mxu0 0.0
        %7959 = vmatprep.subr.mxu0 0.0
        %7960 = vmatpush1.msra.mxu0 0.0
        %7961 = vmatprep.subr.mxu0 0.0
        %7962 = vmatpush1.msra.mxu0 0.0
        %7963 = vmatprep.subr.mxu0 0.0
        %7964 = vmatpush1.msra.mxu0 0.0
        %7965 = vmatprep.subr.mxu0 0.0
        %7966 = vmatpush1.msra.mxu0 0.0
        %7967 = vmatprep.subr.mxu0 0.0
        %7968 = vmatpush1.msra.mxu0 0.0
        %7969 = vmatprep.subr.mxu0 0.0
        %7970 = vmatpush1.msra.mxu0 0.0
        %7971 = vmatprep.subr.mxu0 0.0
        %7972 = vmatpush1.msra.mxu0 0.0
        %7973 = vmatprep.subr.mxu0 0.0
        %7974 = vmatpush1.msra.mxu0 0.0
        %7975 = vmatprep.subr.mxu0 0.0
        %7976 = vmatpush1.msra.mxu0 0.0
        %7977 = vmatprep.subr.mxu0 0.0
        %7978 = vmatpush1.msra.mxu0 0.0
        %7979 = vmatprep.subr.mxu0 0.0
        %7980 = vmatpush1.msra.mxu0 0.0
        %7981 = vmatprep.subr.mxu0 0.0
        %7982 = vmatpush1.msra.mxu0 0.0
        %7983 = vmatprep.subr.mxu0 0.0
        %7984 = vmatpush1.msra.mxu0 0.0
        %7985 = vmatprep.mubr.f32.mxu0 0.0
        %v7986 = vand.u32 %v7628, 4294901760
        %v7987 = vsub.f32 %v7628, %v7986
        %v7988 = vand.u32 %v7987, 4294901760
        %7989 = vmatmul.mubr.f32.gmra.mrb[0].mxu0 %v7988
        %v7990 = vpop.f32.mrb[0].mxu0
        %v7991 = vadd.f32 %v7902, %v7990
        %v7992 = vpop.f32.mrb[0].mxu0
        %7993 = vmatprep.mubr.f32.mxu0 0.0
        %v7994 = vand.u32 %v7631, 4294901760
        %v7995 = vsub.f32 %v7631, %v7994
        %v7996 = vand.u32 %v7995, 4294901760
        %7997 = vmatmul.mubr.f32.gmra.mrb[0].mxu0 %v7996
        %v7998 = vpop.f32.mrb[0].mxu0
        %v7999 = vadd.f32 %v7909, %v7998
        %v8000 = vpop.f32.mrb[0].mxu0
        %8001 = vmatprep.mubr.f32.mxu0 0.0
        %v8002 = vand.u32 %v7634, 4294901760
        %v8003 = vsub.f32 %v7634, %v8002
        %v8004 = vand.u32 %v8003, 4294901760
        %8005 = vmatmul.mubr.f32.gmra.mrb[0].mxu0 %v8004
        %v8006 = vpop.f32.mrb[0].mxu0
        %v8007 = vadd.f32 %v7916, %v8006
        %v8008 = vpop.f32.mrb[0].mxu0
        %8009 = vdwg.mxu0
        %8010 = vmatprep.subr.mxu0 0.0
        %v8011 = vand.u32 %v6850, 4294901760
        %v8012 = vsub.f32 %v6850, %v8011
        %v8013 = vand.u32 %v8012, 4294901760
        %8014 = vmatpush1.msra.mxu0 %v8013
        %8015 = vmatprep.subr.mxu0 0.0
        %v8016 = vand.u32 %v7637, 4294901760
        %v8017 = vsub.f32 %v7637, %v8016
        %v8018 = vand.u32 %v8017, 4294901760
        %8019 = vmatpush1.msra.mxu0 %v8018
        %8020 = vmatprep.subr.mxu0 0.0
        %8021 = vmatpush1.msra.mxu0 0.0
        %8022 = vmatprep.subr.mxu0 0.0
        %8023 = vmatpush1.msra.mxu0 0.0
        %8024 = vmatprep.subr.mxu0 0.0
        %8025 = vmatpush1.msra.mxu0 0.0
        %8026 = vmatprep.subr.mxu0 0.0
        %8027 = vmatpush1.msra.mxu0 0.0
        %8028 = vmatprep.subr.mxu0 0.0
        %8029 = vmatpush1.msra.mxu0 0.0
        %8030 = vmatprep.subr.mxu0 0.0
        %8031 = vmatpush1.msra.mxu0 0.0
        %8032 = vmatprep.subr.mxu0 0.0
        %8033 = vmatpush1.msra.mxu0 0.0
        %8034 = vmatprep.subr.mxu0 0.0
        %8035 = vmatpush1.msra.mxu0 0.0
        %8036 = vmatprep.subr.mxu0 0.0
        %8037 = vmatpush1.msra.mxu0 0.0
        %8038 = vmatprep.subr.mxu0 0.0
        %8039 = vmatpush1.msra.mxu0 0.0
        %8040 = vmatprep.subr.mxu0 0.0
        %8041 = vmatpush1.msra.mxu0 0.0
        %8042 = vmatprep.subr.mxu0 0.0
        %8043 = vmatpush1.msra.mxu0 0.0
        %8044 = vmatprep.subr.mxu0 0.0
        %8045 = vmatpush1.msra.mxu0 0.0
        %8046 = vmatprep.subr.mxu0 0.0
        %8047 = vmatpush1.msra.mxu0 0.0
        %8048 = vmatprep.subr.mxu0 0.0
        %8049 = vmatpush1.msra.mxu0 0.0
        %8050 = vmatprep.subr.mxu0 0.0
        %8051 = vmatpush1.msra.mxu0 0.0
        %8052 = vmatprep.subr.mxu0 0.0
        %8053 = vmatpush1.msra.mxu0 0.0
        %8054 = vmatprep.subr.mxu0 0.0
        %8055 = vmatpush1.msra.mxu0 0.0
        %8056 = vmatprep.subr.mxu0 0.0
        %8057 = vmatpush1.msra.mxu0 0.0
        %8058 = vmatprep.subr.mxu0 0.0
        %8059 = vmatpush1.msra.mxu0 0.0
        %8060 = vmatprep.subr.mxu0 0.0
        %8061 = vmatpush1.msra.mxu0 0.0
        %8062 = vmatprep.subr.mxu0 0.0
        %8063 = vmatpush1.msra.mxu0 0.0
        %8064 = vmatprep.subr.mxu0 0.0
        %8065 = vmatpush1.msra.mxu0 0.0
        %8066 = vmatprep.subr.mxu0 0.0
        %8067 = vmatpush1.msra.mxu0 0.0
        %8068 = vmatprep.subr.mxu0 0.0
        %8069 = vmatpush1.msra.mxu0 0.0
        %8070 = vmatprep.subr.mxu0 0.0
        %8071 = vmatpush1.msra.mxu0 0.0
        %8072 = vmatprep.subr.mxu0 0.0
        %8073 = vmatpush1.msra.mxu0 0.0
        %8074 = vmatprep.subr.mxu0 0.0
        %8075 = vmatpush1.msra.mxu0 0.0
        %8076 = vmatprep.subr.mxu0 0.0
        %8077 = vmatpush1.msra.mxu0 0.0
        %8078 = vmatprep.subr.mxu0 0.0
        %8079 = vmatpush1.msra.mxu0 0.0
        %8080 = vmatprep.mubr.f32.mxu0 0.0
        %v8081 = vand.u32 %v7628, 4294901760
        %8082 = vmatmul.mubr.f32.gmra.mrb[0].mxu0 %v8081
        %v8083 = vpop.f32.mrb[0].mxu0
        %v8084 = vadd.f32 %v7991, %v8083
        %v8085 = vpop.f32.mrb[0].mxu0
        %8086 = vmatprep.mubr.f32.mxu0 0.0
        %v8087 = vand.u32 %v7631, 4294901760
        %8088 = vmatmul.mubr.f32.gmra.mrb[0].mxu0 %v8087
        %v8089 = vpop.f32.mrb[0].mxu0
        %v8090 = vadd.f32 %v7999, %v8089
        %v8091 = vpop.f32.mrb[0].mxu0
        %8092 = vmatprep.mubr.f32.mxu0 0.0
        %v8093 = vand.u32 %v7634, 4294901760
        %8094 = vmatmul.mubr.f32.gmra.mrb[0].mxu0 %v8093
        %v8095 = vpop.f32.mrb[0].mxu0
        %v8096 = vadd.f32 %v8007, %v8095
        %v8097 = vpop.f32.mrb[0].mxu0
        %8098 = vdwg.mxu0
        %8099 = vmatprep.subr.mxu0 0.0
        %v8100 = vand.u32 %v6850, 4294901760
        %8101 = vmatpush1.msra.mxu0 %v8100
        %8102 = vmatprep.subr.mxu0 0.0
        %v8103 = vand.u32 %v7637, 4294901760
        %8104 = vmatpush1.msra.mxu0 %v8103
        %8105 = vmatprep.subr.mxu0 0.0
        %8106 = vmatpush1.msra.mxu0 0.0
        %8107 = vmatprep.subr.mxu0 0.0
        %8108 = vmatpush1.msra.mxu0 0.0
        %8109 = vmatprep.subr.mxu0 0.0
        %8110 = vmatpush1.msra.mxu0 0.0
        %8111 = vmatprep.subr.mxu0 0.0
        %8112 = vmatpush1.msra.mxu0 0.0
        %8113 = vmatprep.subr.mxu0 0.0
        %8114 = vmatpush1.msra.mxu0 0.0
        %8115 = vmatprep.subr.mxu0 0.0
        %8116 = vmatpush1.msra.mxu0 0.0
        %8117 = vmatprep.subr.mxu0 0.0
        %8118 = vmatpush1.msra.mxu0 0.0
        %8119 = vmatprep.subr.mxu0 0.0
        %8120 = vmatpush1.msra.mxu0 0.0
        %8121 = vmatprep.subr.mxu0 0.0
        %8122 = vmatpush1.msra.mxu0 0.0
        %8123 = vmatprep.subr.mxu0 0.0
        %8124 = vmatpush1.msra.mxu0 0.0
        %8125 = vmatprep.subr.mxu0 0.0
        %8126 = vmatpush1.msra.mxu0 0.0
        %8127 = vmatprep.subr.mxu0 0.0
        %8128 = vmatpush1.msra.mxu0 0.0
        %8129 = vmatprep.subr.mxu0 0.0
        %8130 = vmatpush1.msra.mxu0 0.0
        %8131 = vmatprep.subr.mxu0 0.0
        %8132 = vmatpush1.msra.mxu0 0.0
        %8133 = vmatprep.subr.mxu0 0.0
        %8134 = vmatpush1.msra.mxu0 0.0
        %8135 = vmatprep.subr.mxu0 0.0
        %8136 = vmatpush1.msra.mxu0 0.0
        %8137 = vmatprep.subr.mxu0 0.0
        %8138 = vmatpush1.msra.mxu0 0.0
        %8139 = vmatprep.subr.mxu0 0.0
        %8140 = vmatpush1.msra.mxu0 0.0
        %8141 = vmatprep.subr.mxu0 0.0
        %8142 = vmatpush1.msra.mxu0 0.0
        %8143 = vmatprep.subr.mxu0 0.0
        %8144 = vmatpush1.msra.mxu0 0.0
        %8145 = vmatprep.subr.mxu0 0.0
        %8146 = vmatpush1.msra.mxu0 0.0
        %8147 = vmatprep.subr.mxu0 0.0
        %8148 = vmatpush1.msra.mxu0 0.0
        %8149 = vmatprep.subr.mxu0 0.0
        %8150 = vmatpush1.msra.mxu0 0.0
        %8151 = vmatprep.subr.mxu0 0.0
        %8152 = vmatpush1.msra.mxu0 0.0
        %8153 = vmatprep.subr.mxu0 0.0
        %8154 = vmatpush1.msra.mxu0 0.0
        %8155 = vmatprep.subr.mxu0 0.0
        %8156 = vmatpush1.msra.mxu0 0.0
        %8157 = vmatprep.subr.mxu0 0.0
        %8158 = vmatpush1.msra.mxu0 0.0
        %8159 = vmatprep.subr.mxu0 0.0
        %8160 = vmatpush1.msra.mxu0 0.0
        %8161 = vmatprep.subr.mxu0 0.0
        %8162 = vmatpush1.msra.mxu0 0.0
        %8163 = vmatprep.subr.mxu0 0.0
        %8164 = vmatpush1.msra.mxu0 0.0
        %8165 = vmatprep.mubr.f32.mxu0 0.0
        %v8166 = vand.u32 %v7628, 4294901760
        %8167 = vmatmul.mubr.f32.gmra.mrb[0].mxu0 %v8166
        %v8168 = vpop.f32.mrb[0].mxu0
        %v8169 = vadd.f32 %v8084, %v8168
        %v8170 = vpop.f32.mrb[0].mxu0
        %8171 = vmatprep.mubr.f32.mxu0 0.0
        %v8172 = vand.u32 %v7631, 4294901760
        %8173 = vmatmul.mubr.f32.gmra.mrb[0].mxu0 %v8172
        %v8174 = vpop.f32.mrb[0].mxu0
        %v8175 = vadd.f32 %v8090, %v8174
        %v8176 = vpop.f32.mrb[0].mxu0
        %8177 = vmatprep.mubr.f32.mxu0 0.0
        %v8178 = vand.u32 %v7634, 4294901760
        %8179 = vmatmul.mubr.f32.gmra.mrb[0].mxu0 %v8178
        %v8180 = vpop.f32.mrb[0].mxu0
        %v8181 = vadd.f32 %v8096, %v8180
        %v8182 = vpop.f32.mrb[0].mxu0
        %8183 = vdwg.mxu0
        %v8185 = vsel %vm1167, %v327, 0
        %v8188 = vsel %vm1167, %v328, 0
        %v8190 = vsel %vm1167, %v329, 0
        %8192 = vmatprep.subr.mxu0 0.0
        %v8193 = vand.u32 %v7619, 4294901760
        %8194 = vmatpush1.msra.mxu0 %v8193
        %8195 = vmatprep.subr.mxu0 0.0
        %v8196 = vand.u32 %v7620, 4294901760
        %8197 = vmatpush1.msra.mxu0 %v8196
        %8198 = vmatprep.subr.mxu0 0.0
        %v8199 = vand.u32 %v7621, 4294901760
        %8200 = vmatpush1.msra.mxu0 %v8199
        %8201 = vmatprep.subr.mxu0 0.0
        %v8202 = vand.u32 %v7622, 4294901760
        %8203 = vmatpush1.msra.mxu0 %v8202
        %8204 = vmatprep.subr.mxu0 0.0
        %8205 = vmatpush1.msra.mxu0 0.0
        %8206 = vmatprep.subr.mxu0 0.0
        %8207 = vmatpush1.msra.mxu0 0.0
        %8208 = vmatprep.subr.mxu0 0.0
        %8209 = vmatpush1.msra.mxu0 0.0
        %8210 = vmatprep.subr.mxu0 0.0
        %8211 = vmatpush1.msra.mxu0 0.0
        %8212 = vmatprep.subr.mxu0 0.0
        %8213 = vmatpush1.msra.mxu0 0.0
        %8214 = vmatprep.subr.mxu0 0.0
        %8215 = vmatpush1.msra.mxu0 0.0
        %8216 = vmatprep.subr.mxu0 0.0
        %8217 = vmatpush1.msra.mxu0 0.0
        %8218 = vmatprep.subr.mxu0 0.0
        %8219 = vmatpush1.msra.mxu0 0.0
        %8220 = vmatprep.subr.mxu0 0.0
        %8221 = vmatpush1.msra.mxu0 0.0
        %8222 = vmatprep.subr.mxu0 0.0
        %8223 = vmatpush1.msra.mxu0 0.0
        %8224 = vmatprep.subr.mxu0 0.0
        %8225 = vmatpush1.msra.mxu0 0.0
        %8226 = vmatprep.subr.mxu0 0.0
        %8227 = vmatpush1.msra.mxu0 0.0
        %8228 = vmatprep.subr.mxu0 0.0
        %8229 = vmatpush1.msra.mxu0 0.0
        %8230 = vmatprep.subr.mxu0 0.0
        %8231 = vmatpush1.msra.mxu0 0.0
        %8232 = vmatprep.subr.mxu0 0.0
        %8233 = vmatpush1.msra.mxu0 0.0
        %8234 = vmatprep.subr.mxu0 0.0
        %8235 = vmatpush1.msra.mxu0 0.0
        %8236 = vmatprep.subr.mxu0 0.0
        %8237 = vmatpush1.msra.mxu0 0.0
        %8238 = vmatprep.subr.mxu0 0.0
        %8239 = vmatpush1.msra.mxu0 0.0
        %8240 = vmatprep.subr.mxu0 0.0
        %8241 = vmatpush1.msra.mxu0 0.0
        %8242 = vmatprep.subr.mxu0 0.0
        %8243 = vmatpush1.msra.mxu0 0.0
        %8244 = vmatprep.subr.mxu0 0.0
        %8245 = vmatpush1.msra.mxu0 0.0
        %8246 = vmatprep.subr.mxu0 0.0
        %8247 = vmatpush1.msra.mxu0 0.0
        %8248 = vmatprep.subr.mxu0 0.0
        %8249 = vmatpush1.msra.mxu0 0.0
        %8250 = vmatprep.subr.mxu0 0.0
        %8251 = vmatpush1.msra.mxu0 0.0
        %8252 = vmatprep.subr.mxu0 0.0
        %8253 = vmatpush1.msra.mxu0 0.0
        %8254 = vmatprep.subr.mxu0 0.0
        %8255 = vmatpush1.msra.mxu0 0.0
        %8256 = vmatprep.subr.mxu0 0.0
        %8257 = vmatpush1.msra.mxu0 0.0
        %8258 = vmatprep.subr.mxu0 0.0
        %8259 = vmatpush1.msra.mxu0 0.0
        %8260 = vmatprep.mubr.f32.mxu0 0.0
        %v8261 = vand.u32 %v8185, 4294901760
        %v8262 = vsub.f32 %v8185, %v8261
        %v8263 = vand.u32 %v8262, 4294901760
        %v8264 = vsub.f32 %v8262, %v8263
        %v8265 = vand.u32 %v8264, 4294901760
        %8266 = vmatmul.mubr.f32.gmra.mrb[0].mxu0 %v8265
        %v8267 = vpop.f32.mrb[0].mxu0
        %v8268 = vadd.f32 %v8169, %v8267
        %v8269 = vpop.f32.mrb[0].mxu0
        %8270 = vmatprep.mubr.f32.mxu0 0.0
        %v8271 = vand.u32 %v8188, 4294901760
        %v8272 = vsub.f32 %v8188, %v8271
        %v8273 = vand.u32 %v8272, 4294901760
        %v8274 = vsub.f32 %v8272, %v8273
        %v8275 = vand.u32 %v8274, 4294901760
        %8276 = vmatmul.mubr.f32.gmra.mrb[0].mxu0 %v8275
        %v8277 = vpop.f32.mrb[0].mxu0
        %v8278 = vadd.f32 %v8175, %v8277
        %v8279 = vpop.f32.mrb[0].mxu0
        %8280 = vmatprep.mubr.f32.mxu0 0.0
        %v8281 = vand.u32 %v8190, 4294901760
        %v8282 = vsub.f32 %v8190, %v8281
        %v8283 = vand.u32 %v8282, 4294901760
        %v8284 = vsub.f32 %v8282, %v8283
        %v8285 = vand.u32 %v8284, 4294901760
        %8286 = vmatmul.mubr.f32.gmra.mrb[0].mxu0 %v8285
        %v8287 = vpop.f32.mrb[0].mxu0
        %v8288 = vadd.f32 %v8181, %v8287
        %v8289 = vpop.f32.mrb[0].mxu0
        %8290 = vdwg.mxu0
        %8291 = vmatprep.subr.mxu0 0.0
        %v8292 = vand.u32 %v7619, 4294901760
        %v8293 = vsub.f32 %v7619, %v8292
        %v8294 = vand.u32 %v8293, 4294901760
        %v8295 = vsub.f32 %v8293, %v8294
        %v8296 = vand.u32 %v8295, 4294901760
        %8297 = vmatpush1.msra.mxu0 %v8296
        %8298 = vmatprep.subr.mxu0 0.0
        %v8299 = vand.u32 %v7620, 4294901760
        %v8300 = vsub.f32 %v7620, %v8299
        %v8301 = vand.u32 %v8300, 4294901760
        %v8302 = vsub.f32 %v8300, %v8301
        %v8303 = vand.u32 %v8302, 4294901760
        %8304 = vmatpush1.msra.mxu0 %v8303
        %8305 = vmatprep.subr.mxu0 0.0
        %v8306 = vand.u32 %v7621, 4294901760
        %v8307 = vsub.f32 %v7621, %v8306
        %v8308 = vand.u32 %v8307, 4294901760
        %v8309 = vsub.f32 %v8307, %v8308
        %v8310 = vand.u32 %v8309, 4294901760
        %8311 = vmatpush1.msra.mxu0 %v8310
        %8312 = vmatprep.subr.mxu0 0.0
        %v8313 = vand.u32 %v7622, 4294901760
        %v8314 = vsub.f32 %v7622, %v8313
        %v8315 = vand.u32 %v8314, 4294901760
        %v8316 = vsub.f32 %v8314, %v8315
        %v8317 = vand.u32 %v8316, 4294901760
        %8318 = vmatpush1.msra.mxu0 %v8317
        %8319 = vmatprep.subr.mxu0 0.0
        %8320 = vmatpush1.msra.mxu0 0.0
        %8321 = vmatprep.subr.mxu0 0.0
        %8322 = vmatpush1.msra.mxu0 0.0
        %8323 = vmatprep.subr.mxu0 0.0
        %8324 = vmatpush1.msra.mxu0 0.0
        %8325 = vmatprep.subr.mxu0 0.0
        %8326 = vmatpush1.msra.mxu0 0.0
        %8327 = vmatprep.subr.mxu0 0.0
        %8328 = vmatpush1.msra.mxu0 0.0
        %8329 = vmatprep.subr.mxu0 0.0
        %8330 = vmatpush1.msra.mxu0 0.0
        %8331 = vmatprep.subr.mxu0 0.0
        %8332 = vmatpush1.msra.mxu0 0.0
        %8333 = vmatprep.subr.mxu0 0.0
        %8334 = vmatpush1.msra.mxu0 0.0
        %8335 = vmatprep.subr.mxu0 0.0
        %8336 = vmatpush1.msra.mxu0 0.0
        %8337 = vmatprep.subr.mxu0 0.0
        %8338 = vmatpush1.msra.mxu0 0.0
        %8339 = vmatprep.subr.mxu0 0.0
        %8340 = vmatpush1.msra.mxu0 0.0
        %8341 = vmatprep.subr.mxu0 0.0
        %8342 = vmatpush1.msra.mxu0 0.0
        %8343 = vmatprep.subr.mxu0 0.0
        %8344 = vmatpush1.msra.mxu0 0.0
        %8345 = vmatprep.subr.mxu0 0.0
        %8346 = vmatpush1.msra.mxu0 0.0
        %8347 = vmatprep.subr.mxu0 0.0
        %8348 = vmatpush1.msra.mxu0 0.0
        %8349 = vmatprep.subr.mxu0 0.0
        %8350 = vmatpush1.msra.mxu0 0.0
        %8351 = vmatprep.subr.mxu0 0.0
        %8352 = vmatpush1.msra.mxu0 0.0
        %8353 = vmatprep.subr.mxu0 0.0
        %8354 = vmatpush1.msra.mxu0 0.0
        %8355 = vmatprep.subr.mxu0 0.0
        %8356 = vmatpush1.msra.mxu0 0.0
        %8357 = vmatprep.subr.mxu0 0.0
        %8358 = vmatpush1.msra.mxu0 0.0
        %8359 = vmatprep.subr.mxu0 0.0
        %8360 = vmatpush1.msra.mxu0 0.0
        %8361 = vmatprep.subr.mxu0 0.0
        %8362 = vmatpush1.msra.mxu0 0.0
        %8363 = vmatprep.subr.mxu0 0.0
        %8364 = vmatpush1.msra.mxu0 0.0
        %8365 = vmatprep.subr.mxu0 0.0
        %8366 = vmatpush1.msra.mxu0 0.0
        %8367 = vmatprep.subr.mxu0 0.0
        %8368 = vmatpush1.msra.mxu0 0.0
        %8369 = vmatprep.subr.mxu0 0.0
        %8370 = vmatpush1.msra.mxu0 0.0
        %8371 = vmatprep.subr.mxu0 0.0
        %8372 = vmatpush1.msra.mxu0 0.0
        %8373 = vmatprep.subr.mxu0 0.0
        %8374 = vmatpush1.msra.mxu0 0.0
        %8375 = vmatprep.mubr.f32.mxu0 0.0
        %v8376 = vand.u32 %v8185, 4294901760
        %8377 = vmatmul.mubr.f32.gmra.mrb[0].mxu0 %v8376
        %v8378 = vpop.f32.mrb[0].mxu0
        %v8379 = vadd.f32 %v8268, %v8378
        %v8380 = vpop.f32.mrb[0].mxu0
        %8381 = vmatprep.mubr.f32.mxu0 0.0
        %v8382 = vand.u32 %v8188, 4294901760
        %8383 = vmatmul.mubr.f32.gmra.mrb[0].mxu0 %v8382
        %v8384 = vpop.f32.mrb[0].mxu0
        %v8385 = vadd.f32 %v8278, %v8384
        %v8386 = vpop.f32.mrb[0].mxu0
        %8387 = vmatprep.mubr.f32.mxu0 0.0
        %v8388 = vand.u32 %v8190, 4294901760
        %8389 = vmatmul.mubr.f32.gmra.mrb[0].mxu0 %v8388
        %v8390 = vpop.f32.mrb[0].mxu0
        %v8391 = vadd.f32 %v8288, %v8390
        %v8392 = vpop.f32.mrb[0].mxu0
        %8393 = vdwg.mxu0
        %8394 = vmatprep.subr.mxu0 0.0
        %v8395 = vand.u32 %v7619, 4294901760
        %v8396 = vsub.f32 %v7619, %v8395
        %8397 = vmatpush1.msra.mxu0 %v8396
        %8398 = vmatprep.subr.mxu0 0.0
        %v8399 = vand.u32 %v7620, 4294901760
        %v8400 = vsub.f32 %v7620, %v8399
        %8401 = vmatpush1.msra.mxu0 %v8400
        %8402 = vmatprep.subr.mxu0 0.0
        %v8403 = vand.u32 %v7621, 4294901760
        %v8404 = vsub.f32 %v7621, %v8403
        %8405 = vmatpush1.msra.mxu0 %v8404
        %8406 = vmatprep.subr.mxu0 0.0
        %v8407 = vand.u32 %v7622, 4294901760
        %v8408 = vsub.f32 %v7622, %v8407
        %8409 = vmatpush1.msra.mxu0 %v8408
        %8410 = vmatprep.subr.mxu0 0.0
        %8411 = vmatpush1.msra.mxu0 0.0
        %8412 = vmatprep.subr.mxu0 0.0
        %8413 = vmatpush1.msra.mxu0 0.0
        %8414 = vmatprep.subr.mxu0 0.0
        %8415 = vmatpush1.msra.mxu0 0.0
        %8416 = vmatprep.subr.mxu0 0.0
        %8417 = vmatpush1.msra.mxu0 0.0
        %8418 = vmatprep.subr.mxu0 0.0
        %8419 = vmatpush1.msra.mxu0 0.0
        %8420 = vmatprep.subr.mxu0 0.0
        %8421 = vmatpush1.msra.mxu0 0.0
        %8422 = vmatprep.subr.mxu0 0.0
        %8423 = vmatpush1.msra.mxu0 0.0
        %8424 = vmatprep.subr.mxu0 0.0
        %8425 = vmatpush1.msra.mxu0 0.0
        %8426 = vmatprep.subr.mxu0 0.0
        %8427 = vmatpush1.msra.mxu0 0.0
        %8428 = vmatprep.subr.mxu0 0.0
        %8429 = vmatpush1.msra.mxu0 0.0
        %8430 = vmatprep.subr.mxu0 0.0
        %8431 = vmatpush1.msra.mxu0 0.0
        %8432 = vmatprep.subr.mxu0 0.0
        %8433 = vmatpush1.msra.mxu0 0.0
        %8434 = vmatprep.subr.mxu0 0.0
        %8435 = vmatpush1.msra.mxu0 0.0
        %8436 = vmatprep.subr.mxu0 0.0
        %8437 = vmatpush1.msra.mxu0 0.0
        %8438 = vmatprep.subr.mxu0 0.0
        %8439 = vmatpush1.msra.mxu0 0.0
        %8440 = vmatprep.subr.mxu0 0.0
        %8441 = vmatpush1.msra.mxu0 0.0
        %8442 = vmatprep.subr.mxu0 0.0
        %8443 = vmatpush1.msra.mxu0 0.0
        %8444 = vmatprep.subr.mxu0 0.0
        %8445 = vmatpush1.msra.mxu0 0.0
        %8446 = vmatprep.subr.mxu0 0.0
        %8447 = vmatpush1.msra.mxu0 0.0
        %8448 = vmatprep.subr.mxu0 0.0
        %8449 = vmatpush1.msra.mxu0 0.0
        %8450 = vmatprep.subr.mxu0 0.0
        %8451 = vmatpush1.msra.mxu0 0.0
        %8452 = vmatprep.subr.mxu0 0.0
        %8453 = vmatpush1.msra.mxu0 0.0
        %8454 = vmatprep.subr.mxu0 0.0
        %8455 = vmatpush1.msra.mxu0 0.0
        %8456 = vmatprep.subr.mxu0 0.0
        %8457 = vmatpush1.msra.mxu0 0.0
        %8458 = vmatprep.subr.mxu0 0.0
        %8459 = vmatpush1.msra.mxu0 0.0
        %8460 = vmatprep.subr.mxu0 0.0
        %8461 = vmatpush1.msra.mxu0 0.0
        %8462 = vmatprep.subr.mxu0 0.0
        %8463 = vmatpush1.msra.mxu0 0.0
        %8464 = vmatprep.subr.mxu0 0.0
        %8465 = vmatpush1.msra.mxu0 0.0
        %8466 = vmatprep.mubr.f32.mxu0 0.0
        %v8467 = vand.u32 %v8185, 4294901760
        %v8468 = vsub.f32 %v8185, %v8467
        %8469 = vmatmul.mubr.f32.gmra.mrb[0].mxu0 %v8468
        %v8470 = vpop.f32.mrb[0].mxu0
        %v8471 = vadd.f32 %v8379, %v8470
        %v8472 = vpop.f32.mrb[0].mxu0
        %8473 = vmatprep.mubr.f32.mxu0 0.0
        %v8474 = vand.u32 %v8188, 4294901760
        %v8475 = vsub.f32 %v8188, %v8474
        %8476 = vmatmul.mubr.f32.gmra.mrb[0].mxu0 %v8475
        %v8477 = vpop.f32.mrb[0].mxu0
        %v8478 = vadd.f32 %v8385, %v8477
        %v8479 = vpop.f32.mrb[0].mxu0
        %8480 = vmatprep.mubr.f32.mxu0 0.0
        %v8481 = vand.u32 %v8190, 4294901760
        %v8482 = vsub.f32 %v8190, %v8481
        %8483 = vmatmul.mubr.f32.gmra.mrb[0].mxu0 %v8482
        %v8484 = vpop.f32.mrb[0].mxu0
        %v8485 = vadd.f32 %v8391, %v8484
        %v8486 = vpop.f32.mrb[0].mxu0
        %8487 = vdwg.mxu0
        %8488 = vmatprep.subr.mxu0 0.0
        %v8489 = vand.u32 %v7619, 4294901760
        %8490 = vmatpush1.msra.mxu0 %v8489
        %8491 = vmatprep.subr.mxu0 0.0
        %v8492 = vand.u32 %v7620, 4294901760
        %8493 = vmatpush1.msra.mxu0 %v8492
        %8494 = vmatprep.subr.mxu0 0.0
        %v8495 = vand.u32 %v7621, 4294901760
        %8496 = vmatpush1.msra.mxu0 %v8495
        %8497 = vmatprep.subr.mxu0 0.0
        %v8498 = vand.u32 %v7622, 4294901760
        %8499 = vmatpush1.msra.mxu0 %v8498
        %8500 = vmatprep.subr.mxu0 0.0
        %8501 = vmatpush1.msra.mxu0 0.0
        %8502 = vmatprep.subr.mxu0 0.0
        %8503 = vmatpush1.msra.mxu0 0.0
        %8504 = vmatprep.subr.mxu0 0.0
        %8505 = vmatpush1.msra.mxu0 0.0
        %8506 = vmatprep.subr.mxu0 0.0
        %8507 = vmatpush1.msra.mxu0 0.0
        %8508 = vmatprep.subr.mxu0 0.0
        %8509 = vmatpush1.msra.mxu0 0.0
        %8510 = vmatprep.subr.mxu0 0.0
        %8511 = vmatpush1.msra.mxu0 0.0
        %8512 = vmatprep.subr.mxu0 0.0
        %8513 = vmatpush1.msra.mxu0 0.0
        %8514 = vmatprep.subr.mxu0 0.0
        %8515 = vmatpush1.msra.mxu0 0.0
        %8516 = vmatprep.subr.mxu0 0.0
        %8517 = vmatpush1.msra.mxu0 0.0
        %8518 = vmatprep.subr.mxu0 0.0
        %8519 = vmatpush1.msra.mxu0 0.0
        %8520 = vmatprep.subr.mxu0 0.0
        %8521 = vmatpush1.msra.mxu0 0.0
        %8522 = vmatprep.subr.mxu0 0.0
        %8523 = vmatpush1.msra.mxu0 0.0
        %8524 = vmatprep.subr.mxu0 0.0
        %8525 = vmatpush1.msra.mxu0 0.0
        %8526 = vmatprep.subr.mxu0 0.0
        %8527 = vmatpush1.msra.mxu0 0.0
        %8528 = vmatprep.subr.mxu0 0.0
        %8529 = vmatpush1.msra.mxu0 0.0
        %8530 = vmatprep.subr.mxu0 0.0
        %8531 = vmatpush1.msra.mxu0 0.0
        %8532 = vmatprep.subr.mxu0 0.0
        %8533 = vmatpush1.msra.mxu0 0.0
        %8534 = vmatprep.subr.mxu0 0.0
        %8535 = vmatpush1.msra.mxu0 0.0
        %8536 = vmatprep.subr.mxu0 0.0
        %8537 = vmatpush1.msra.mxu0 0.0
        %8538 = vmatprep.subr.mxu0 0.0
        %8539 = vmatpush1.msra.mxu0 0.0
        %8540 = vmatprep.subr.mxu0 0.0
        %8541 = vmatpush1.msra.mxu0 0.0
        %8542 = vmatprep.subr.mxu0 0.0
        %8543 = vmatpush1.msra.mxu0 0.0
        %8544 = vmatprep.subr.mxu0 0.0
        %8545 = vmatpush1.msra.mxu0 0.0
        %8546 = vmatprep.subr.mxu0 0.0
        %8547 = vmatpush1.msra.mxu0 0.0
        %8548 = vmatprep.subr.mxu0 0.0
        %8549 = vmatpush1.msra.mxu0 0.0
        %8550 = vmatprep.subr.mxu0 0.0
        %8551 = vmatpush1.msra.mxu0 0.0
        %8552 = vmatprep.subr.mxu0 0.0
        %8553 = vmatpush1.msra.mxu0 0.0
        %8554 = vmatprep.subr.mxu0 0.0
        %8555 = vmatpush1.msra.mxu0 0.0
        %8556 = vmatprep.mubr.f32.mxu0 0.0
        %v8557 = vand.u32 %v8185, 4294901760
        %v8558 = vsub.f32 %v8185, %v8557
        %v8559 = vand.u32 %v8558, 4294901760
        %8560 = vmatmul.mubr.f32.gmra.mrb[0].mxu0 %v8559
        %v8561 = vpop.f32.mrb[0].mxu0
        %v8562 = vadd.f32 %v8471, %v8561
        %v8563 = vpop.f32.mrb[0].mxu0
        %8564 = vmatprep.mubr.f32.mxu0 0.0
        %v8565 = vand.u32 %v8188, 4294901760
        %v8566 = vsub.f32 %v8188, %v8565
        %v8567 = vand.u32 %v8566, 4294901760
        %8568 = vmatmul.mubr.f32.gmra.mrb[0].mxu0 %v8567
        %v8569 = vpop.f32.mrb[0].mxu0
        %v8570 = vadd.f32 %v8478, %v8569
        %v8571 = vpop.f32.mrb[0].mxu0
        %8572 = vmatprep.mubr.f32.mxu0 0.0
        %v8573 = vand.u32 %v8190, 4294901760
        %v8574 = vsub.f32 %v8190, %v8573
        %v8575 = vand.u32 %v8574, 4294901760
        %8576 = vmatmul.mubr.f32.gmra.mrb[0].mxu0 %v8575
        %v8577 = vpop.f32.mrb[0].mxu0
        %v8578 = vadd.f32 %v8485, %v8577
        %v8579 = vpop.f32.mrb[0].mxu0
        %8580 = vdwg.mxu0
        %8581 = vmatprep.subr.mxu0 0.0
        %v8582 = vand.u32 %v7619, 4294901760
        %v8583 = vsub.f32 %v7619, %v8582
        %v8584 = vand.u32 %v8583, 4294901760
        %8585 = vmatpush1.msra.mxu0 %v8584
        %8586 = vmatprep.subr.mxu0 0.0
        %v8587 = vand.u32 %v7620, 4294901760
        %v8588 = vsub.f32 %v7620, %v8587
        %v8589 = vand.u32 %v8588, 4294901760
        %8590 = vmatpush1.msra.mxu0 %v8589
        %8591 = vmatprep.subr.mxu0 0.0
        %v8592 = vand.u32 %v7621, 4294901760
        %v8593 = vsub.f32 %v7621, %v8592
        %v8594 = vand.u32 %v8593, 4294901760
        %8595 = vmatpush1.msra.mxu0 %v8594
        %8596 = vmatprep.subr.mxu0 0.0
        %v8597 = vand.u32 %v7622, 4294901760
        %v8598 = vsub.f32 %v7622, %v8597
        %v8599 = vand.u32 %v8598, 4294901760
        %8600 = vmatpush1.msra.mxu0 %v8599
        %8601 = vmatprep.subr.mxu0 0.0
        %8602 = vmatpush1.msra.mxu0 0.0
        %8603 = vmatprep.subr.mxu0 0.0
        %8604 = vmatpush1.msra.mxu0 0.0
        %8605 = vmatprep.subr.mxu0 0.0
        %8606 = vmatpush1.msra.mxu0 0.0
        %8607 = vmatprep.subr.mxu0 0.0
        %8608 = vmatpush1.msra.mxu0 0.0
        %8609 = vmatprep.subr.mxu0 0.0
        %8610 = vmatpush1.msra.mxu0 0.0
        %8611 = vmatprep.subr.mxu0 0.0
        %8612 = vmatpush1.msra.mxu0 0.0
        %8613 = vmatprep.subr.mxu0 0.0
        %8614 = vmatpush1.msra.mxu0 0.0
        %8615 = vmatprep.subr.mxu0 0.0
        %8616 = vmatpush1.msra.mxu0 0.0
        %8617 = vmatprep.subr.mxu0 0.0
        %8618 = vmatpush1.msra.mxu0 0.0
        %8619 = vmatprep.subr.mxu0 0.0
        %8620 = vmatpush1.msra.mxu0 0.0
        %8621 = vmatprep.subr.mxu0 0.0
        %8622 = vmatpush1.msra.mxu0 0.0
        %8623 = vmatprep.subr.mxu0 0.0
        %8624 = vmatpush1.msra.mxu0 0.0
        %8625 = vmatprep.subr.mxu0 0.0
        %8626 = vmatpush1.msra.mxu0 0.0
        %8627 = vmatprep.subr.mxu0 0.0
        %8628 = vmatpush1.msra.mxu0 0.0
        %8629 = vmatprep.subr.mxu0 0.0
        %8630 = vmatpush1.msra.mxu0 0.0
        %8631 = vmatprep.subr.mxu0 0.0
        %8632 = vmatpush1.msra.mxu0 0.0
        %8633 = vmatprep.subr.mxu0 0.0
        %8634 = vmatpush1.msra.mxu0 0.0
        %8635 = vmatprep.subr.mxu0 0.0
        %8636 = vmatpush1.msra.mxu0 0.0
        %8637 = vmatprep.subr.mxu0 0.0
        %8638 = vmatpush1.msra.mxu0 0.0
        %8639 = vmatprep.subr.mxu0 0.0
        %8640 = vmatpush1.msra.mxu0 0.0
        %8641 = vmatprep.subr.mxu0 0.0
        %8642 = vmatpush1.msra.mxu0 0.0
        %8643 = vmatprep.subr.mxu0 0.0
        %8644 = vmatpush1.msra.mxu0 0.0
        %8645 = vmatprep.subr.mxu0 0.0
        %8646 = vmatpush1.msra.mxu0 0.0
        %8647 = vmatprep.subr.mxu0 0.0
        %8648 = vmatpush1.msra.mxu0 0.0
        %8649 = vmatprep.subr.mxu0 0.0
        %8650 = vmatpush1.msra.mxu0 0.0
        %8651 = vmatprep.subr.mxu0 0.0
        %8652 = vmatpush1.msra.mxu0 0.0
        %8653 = vmatprep.subr.mxu0 0.0
        %8654 = vmatpush1.msra.mxu0 0.0
        %8655 = vmatprep.subr.mxu0 0.0
        %8656 = vmatpush1.msra.mxu0 0.0
        %8657 = vmatprep.mubr.f32.mxu0 0.0
        %v8658 = vand.u32 %v8185, 4294901760
        %8659 = vmatmul.mubr.f32.gmra.mrb[0].mxu0 %v8658
        %v8660 = vpop.f32.mrb[0].mxu0
        %v8661 = vadd.f32 %v8562, %v8660
        %v8662 = vpop.f32.mrb[0].mxu0
        %8663 = vmatprep.mubr.f32.mxu0 0.0
        %v8664 = vand.u32 %v8188, 4294901760
        %8665 = vmatmul.mubr.f32.gmra.mrb[0].mxu0 %v8664
        %v8666 = vpop.f32.mrb[0].mxu0
        %v8667 = vadd.f32 %v8570, %v8666
        %v8668 = vpop.f32.mrb[0].mxu0
        %8669 = vmatprep.mubr.f32.mxu0 0.0
        %v8670 = vand.u32 %v8190, 4294901760
        %8671 = vmatmul.mubr.f32.gmra.mrb[0].mxu0 %v8670
        %v8672 = vpop.f32.mrb[0].mxu0
        %v8673 = vadd.f32 %v8578, %v8672
        %v8674 = vpop.f32.mrb[0].mxu0
        %8675 = vdwg.mxu0
        %8676 = vmatprep.subr.mxu0 0.0
        %v8677 = vand.u32 %v7619, 4294901760
        %8678 = vmatpush1.msra.mxu0 %v8677
        %8679 = vmatprep.subr.mxu0 0.0
        %v8680 = vand.u32 %v7620, 4294901760
        %8681 = vmatpush1.msra.mxu0 %v8680
        %8682 = vmatprep.subr.mxu0 0.0
        %v8683 = vand.u32 %v7621, 4294901760
        %8684 = vmatpush1.msra.mxu0 %v8683
        %8685 = vmatprep.subr.mxu0 0.0
        %v8686 = vand.u32 %v7622, 4294901760
        %8687 = vmatpush1.msra.mxu0 %v8686
        %8688 = vmatprep.subr.mxu0 0.0
        %8689 = vmatpush1.msra.mxu0 0.0
        %8690 = vmatprep.subr.mxu0 0.0
        %8691 = vmatpush1.msra.mxu0 0.0
        %8692 = vmatprep.subr.mxu0 0.0
        %8693 = vmatpush1.msra.mxu0 0.0
        %8694 = vmatprep.subr.mxu0 0.0
        %8695 = vmatpush1.msra.mxu0 0.0
        %8696 = vmatprep.subr.mxu0 0.0
        %8697 = vmatpush1.msra.mxu0 0.0
        %8698 = vmatprep.subr.mxu0 0.0
        %8699 = vmatpush1.msra.mxu0 0.0
        %8700 = vmatprep.subr.mxu0 0.0
        %8701 = vmatpush1.msra.mxu0 0.0
        %8702 = vmatprep.subr.mxu0 0.0
        %8703 = vmatpush1.msra.mxu0 0.0
        %8704 = vmatprep.subr.mxu0 0.0
        %8705 = vmatpush1.msra.mxu0 0.0
        %8706 = vmatprep.subr.mxu0 0.0
        %8707 = vmatpush1.msra.mxu0 0.0
        %8708 = vmatprep.subr.mxu0 0.0
        %8709 = vmatpush1.msra.mxu0 0.0
        %8710 = vmatprep.subr.mxu0 0.0
        %8711 = vmatpush1.msra.mxu0 0.0
        %8712 = vmatprep.subr.mxu0 0.0
        %8713 = vmatpush1.msra.mxu0 0.0
        %8714 = vmatprep.subr.mxu0 0.0
        %8715 = vmatpush1.msra.mxu0 0.0
        %8716 = vmatprep.subr.mxu0 0.0
        %8717 = vmatpush1.msra.mxu0 0.0
        %8718 = vmatprep.subr.mxu0 0.0
        %8719 = vmatpush1.msra.mxu0 0.0
        %8720 = vmatprep.subr.mxu0 0.0
        %8721 = vmatpush1.msra.mxu0 0.0
        %8722 = vmatprep.subr.mxu0 0.0
        %8723 = vmatpush1.msra.mxu0 0.0
        %8724 = vmatprep.subr.mxu0 0.0
        %8725 = vmatpush1.msra.mxu0 0.0
        %8726 = vmatprep.subr.mxu0 0.0
        %8727 = vmatpush1.msra.mxu0 0.0
        %8728 = vmatprep.subr.mxu0 0.0
        %8729 = vmatpush1.msra.mxu0 0.0
        %8730 = vmatprep.subr.mxu0 0.0
        %8731 = vmatpush1.msra.mxu0 0.0
        %8732 = vmatprep.subr.mxu0 0.0
        %8733 = vmatpush1.msra.mxu0 0.0
        %8734 = vmatprep.subr.mxu0 0.0
        %8735 = vmatpush1.msra.mxu0 0.0
        %8736 = vmatprep.subr.mxu0 0.0
        %8737 = vmatpush1.msra.mxu0 0.0
        %8738 = vmatprep.subr.mxu0 0.0
        %8739 = vmatpush1.msra.mxu0 0.0
        %8740 = vmatprep.subr.mxu0 0.0
        %8741 = vmatpush1.msra.mxu0 0.0
        %8742 = vmatprep.subr.mxu0 0.0
        %8743 = vmatpush1.msra.mxu0 0.0
        %8744 = vmatprep.mubr.f32.mxu0 0.0
        %v8745 = vand.u32 %v8185, 4294901760
        %8746 = vmatmul.mubr.f32.gmra.mrb[0].mxu0 %v8745
        %v8747 = vpop.f32.mrb[0].mxu0
        %v8748 = vadd.f32 %v8661, %v8747
        %v8749 = vpop.f32.mrb[0].mxu0
        %8750 = vmatprep.mubr.f32.mxu0 0.0
        %v8751 = vand.u32 %v8188, 4294901760
        %8752 = vmatmul.mubr.f32.gmra.mrb[0].mxu0 %v8751
        %v8753 = vpop.f32.mrb[0].mxu0
        %v8754 = vadd.f32 %v8667, %v8753
        %v8755 = vpop.f32.mrb[0].mxu0
        %8756 = vmatprep.mubr.f32.mxu0 0.0
        %v8757 = vand.u32 %v8190, 4294901760
        %8758 = vmatmul.mubr.f32.gmra.mrb[0].mxu0 %v8757
        %v8759 = vpop.f32.mrb[0].mxu0
        %v8760 = vadd.f32 %v8673, %v8759
        %v8761 = vpop.f32.mrb[0].mxu0
        %8762 = vdwg.mxu0
        %s8763 = scalar_lea.vmem %s3, 24
        %v8764 = vld [vmem:[%s8763] sm:$0xff]
        %v8765 = vld [vmem:[%s8763 + $0x8] sm:$0xff]
        %v8766 = vld [vmem:[%s8763 + $0x10] sm:$0xf]
        %v8768 = vsel %vm7626, %v8764, 0
        %v8771 = vsel %vm7626, %v8765, 0
        %v8774 = vsel %vm7626, %v8766, 0
        %v8777 = vsel %vm6855, %v6854, 0
        %8779 = vmatprep.subr.mxu0 0.0
        %v8780 = vand.u32 %v6851, 4294901760
        %8781 = vmatpush1.msra.mxu0 %v8780
        %8782 = vmatprep.subr.mxu0 0.0
        %v8783 = vand.u32 %v8777, 4294901760
        %8784 = vmatpush1.msra.mxu0 %v8783
        %8785 = vmatprep.subr.mxu0 0.0
        %8786 = vmatpush1.msra.mxu0 0.0
        %8787 = vmatprep.subr.mxu0 0.0
        %8788 = vmatpush1.msra.mxu0 0.0
        %8789 = vmatprep.subr.mxu0 0.0
        %8790 = vmatpush1.msra.mxu0 0.0
        %8791 = vmatprep.subr.mxu0 0.0
        %8792 = vmatpush1.msra.mxu0 0.0
        %8793 = vmatprep.subr.mxu0 0.0
        %8794 = vmatpush1.msra.mxu0 0.0
        %8795 = vmatprep.subr.mxu0 0.0
        %8796 = vmatpush1.msra.mxu0 0.0
        %8797 = vmatprep.subr.mxu0 0.0
        %8798 = vmatpush1.msra.mxu0 0.0
        %8799 = vmatprep.subr.mxu0 0.0
        %8800 = vmatpush1.msra.mxu0 0.0
        %8801 = vmatprep.subr.mxu0 0.0
        %8802 = vmatpush1.msra.mxu0 0.0
        %8803 = vmatprep.subr.mxu0 0.0
        %8804 = vmatpush1.msra.mxu0 0.0
        %8805 = vmatprep.subr.mxu0 0.0
        %8806 = vmatpush1.msra.mxu0 0.0
        %8807 = vmatprep.subr.mxu0 0.0
        %8808 = vmatpush1.msra.mxu0 0.0
        %8809 = vmatprep.subr.mxu0 0.0
        %8810 = vmatpush1.msra.mxu0 0.0
        %8811 = vmatprep.subr.mxu0 0.0
        %8812 = vmatpush1.msra.mxu0 0.0
        %8813 = vmatprep.subr.mxu0 0.0
        %8814 = vmatpush1.msra.mxu0 0.0
        %8815 = vmatprep.subr.mxu0 0.0
        %8816 = vmatpush1.msra.mxu0 0.0
        %8817 = vmatprep.subr.mxu0 0.0
        %8818 = vmatpush1.msra.mxu0 0.0
        %8819 = vmatprep.subr.mxu0 0.0
        %8820 = vmatpush1.msra.mxu0 0.0
        %8821 = vmatprep.subr.mxu0 0.0
        %8822 = vmatpush1.msra.mxu0 0.0
        %8823 = vmatprep.subr.mxu0 0.0
        %8824 = vmatpush1.msra.mxu0 0.0
        %8825 = vmatprep.subr.mxu0 0.0
        %8826 = vmatpush1.msra.mxu0 0.0
        %8827 = vmatprep.subr.mxu0 0.0
        %8828 = vmatpush1.msra.mxu0 0.0
        %8829 = vmatprep.subr.mxu0 0.0
        %8830 = vmatpush1.msra.mxu0 0.0
        %8831 = vmatprep.subr.mxu0 0.0
        %8832 = vmatpush1.msra.mxu0 0.0
        %8833 = vmatprep.subr.mxu0 0.0
        %8834 = vmatpush1.msra.mxu0 0.0
        %8835 = vmatprep.subr.mxu0 0.0
        %8836 = vmatpush1.msra.mxu0 0.0
        %8837 = vmatprep.subr.mxu0 0.0
        %8838 = vmatpush1.msra.mxu0 0.0
        %8839 = vmatprep.subr.mxu0 0.0
        %8840 = vmatpush1.msra.mxu0 0.0
        %8841 = vmatprep.subr.mxu0 0.0
        %8842 = vmatpush1.msra.mxu0 0.0
        %8843 = vmatprep.subr.mxu0 0.0
        %8844 = vmatpush1.msra.mxu0 0.0
        %8845 = vmatprep.mubr.f32.mxu0 0.0
        %v8846 = vand.u32 %v8768, 4294901760
        %v8847 = vsub.f32 %v8768, %v8846
        %v8848 = vand.u32 %v8847, 4294901760
        %v8849 = vsub.f32 %v8847, %v8848
        %v8850 = vand.u32 %v8849, 4294901760
        %8851 = vmatmul.mubr.f32.gmra.mrb[0].mxu0 %v8850
        %v8852 = vpop.f32.mrb[0].mxu0
        %v8853 = vadd.f32 0.0, %v8852
        %v8854 = vpop.f32.mrb[0].mxu0
        %8855 = vmatprep.mubr.f32.mxu0 0.0
        %v8856 = vand.u32 %v8771, 4294901760
        %v8857 = vsub.f32 %v8771, %v8856
        %v8858 = vand.u32 %v8857, 4294901760
        %v8859 = vsub.f32 %v8857, %v8858
        %v8860 = vand.u32 %v8859, 4294901760
        %8861 = vmatmul.mubr.f32.gmra.mrb[0].mxu0 %v8860
        %v8862 = vpop.f32.mrb[0].mxu0
        %v8863 = vadd.f32 0.0, %v8862
        %v8864 = vpop.f32.mrb[0].mxu0
        %8865 = vmatprep.mubr.f32.mxu0 0.0
        %v8866 = vand.u32 %v8774, 4294901760
        %v8867 = vsub.f32 %v8774, %v8866
        %v8868 = vand.u32 %v8867, 4294901760
        %v8869 = vsub.f32 %v8867, %v8868
        %v8870 = vand.u32 %v8869, 4294901760
        %8871 = vmatmul.mubr.f32.gmra.mrb[0].mxu0 %v8870
        %v8872 = vpop.f32.mrb[0].mxu0
        %v8873 = vadd.f32 0.0, %v8872
        %v8874 = vpop.f32.mrb[0].mxu0
        %8875 = vdwg.mxu0
        %8876 = vmatprep.subr.mxu0 0.0
        %v8877 = vand.u32 %v6851, 4294901760
        %v8878 = vsub.f32 %v6851, %v8877
        %v8879 = vand.u32 %v8878, 4294901760
        %v8880 = vsub.f32 %v8878, %v8879
        %v8881 = vand.u32 %v8880, 4294901760
        %8882 = vmatpush1.msra.mxu0 %v8881
        %8883 = vmatprep.subr.mxu0 0.0
        %v8884 = vand.u32 %v8777, 4294901760
        %v8885 = vsub.f32 %v8777, %v8884
        %v8886 = vand.u32 %v8885, 4294901760
        %v8887 = vsub.f32 %v8885, %v8886
        %v8888 = vand.u32 %v8887, 4294901760
        %8889 = vmatpush1.msra.mxu0 %v8888
        %8890 = vmatprep.subr.mxu0 0.0
        %8891 = vmatpush1.msra.mxu0 0.0
        %8892 = vmatprep.subr.mxu0 0.0
        %8893 = vmatpush1.msra.mxu0 0.0
        %8894 = vmatprep.subr.mxu0 0.0
        %8895 = vmatpush1.msra.mxu0 0.0
        %8896 = vmatprep.subr.mxu0 0.0
        %8897 = vmatpush1.msra.mxu0 0.0
        %8898 = vmatprep.subr.mxu0 0.0
        %8899 = vmatpush1.msra.mxu0 0.0
        %8900 = vmatprep.subr.mxu0 0.0
        %8901 = vmatpush1.msra.mxu0 0.0
        %8902 = vmatprep.subr.mxu0 0.0
        %8903 = vmatpush1.msra.mxu0 0.0
        %8904 = vmatprep.subr.mxu0 0.0
        %8905 = vmatpush1.msra.mxu0 0.0
        %8906 = vmatprep.subr.mxu0 0.0
        %8907 = vmatpush1.msra.mxu0 0.0
        %8908 = vmatprep.subr.mxu0 0.0
        %8909 = vmatpush1.msra.mxu0 0.0
        %8910 = vmatprep.subr.mxu0 0.0
        %8911 = vmatpush1.msra.mxu0 0.0
        %8912 = vmatprep.subr.mxu0 0.0
        %8913 = vmatpush1.msra.mxu0 0.0
        %8914 = vmatprep.subr.mxu0 0.0
        %8915 = vmatpush1.msra.mxu0 0.0
        %8916 = vmatprep.subr.mxu0 0.0
        %8917 = vmatpush1.msra.mxu0 0.0
        %8918 = vmatprep.subr.mxu0 0.0
        %8919 = vmatpush1.msra.mxu0 0.0
        %8920 = vmatprep.subr.mxu0 0.0
        %8921 = vmatpush1.msra.mxu0 0.0
        %8922 = vmatprep.subr.mxu0 0.0
        %8923 = vmatpush1.msra.mxu0 0.0
        %8924 = vmatprep.subr.mxu0 0.0
        %8925 = vmatpush1.msra.mxu0 0.0
        %8926 = vmatprep.subr.mxu0 0.0
        %8927 = vmatpush1.msra.mxu0 0.0
        %8928 = vmatprep.subr.mxu0 0.0
        %8929 = vmatpush1.msra.mxu0 0.0
        %8930 = vmatprep.subr.mxu0 0.0
        %8931 = vmatpush1.msra.mxu0 0.0
        %8932 = vmatprep.subr.mxu0 0.0
        %8933 = vmatpush1.msra.mxu0 0.0
        %8934 = vmatprep.subr.mxu0 0.0
        %8935 = vmatpush1.msra.mxu0 0.0
        %8936 = vmatprep.subr.mxu0 0.0
        %8937 = vmatpush1.msra.mxu0 0.0
        %8938 = vmatprep.subr.mxu0 0.0
        %8939 = vmatpush1.msra.mxu0 0.0
        %8940 = vmatprep.subr.mxu0 0.0
        %8941 = vmatpush1.msra.mxu0 0.0
        %8942 = vmatprep.subr.mxu0 0.0
        %8943 = vmatpush1.msra.mxu0 0.0
        %8944 = vmatprep.subr.mxu0 0.0
        %8945 = vmatpush1.msra.mxu0 0.0
        %8946 = vmatprep.subr.mxu0 0.0
        %8947 = vmatpush1.msra.mxu0 0.0
        %8948 = vmatprep.subr.mxu0 0.0
        %8949 = vmatpush1.msra.mxu0 0.0
        %8950 = vmatprep.mubr.f32.mxu0 0.0
        %v8951 = vand.u32 %v8768, 4294901760
        %8952 = vmatmul.mubr.f32.gmra.mrb[0].mxu0 %v8951
        %v8953 = vpop.f32.mrb[0].mxu0
        %v8954 = vadd.f32 %v8853, %v8953
        %v8955 = vpop.f32.mrb[0].mxu0
        %8956 = vmatprep.mubr.f32.mxu0 0.0
        %v8957 = vand.u32 %v8771, 4294901760
        %8958 = vmatmul.mubr.f32.gmra.mrb[0].mxu0 %v8957
        %v8959 = vpop.f32.mrb[0].mxu0
        %v8960 = vadd.f32 %v8863, %v8959
        %v8961 = vpop.f32.mrb[0].mxu0
        %8962 = vmatprep.mubr.f32.mxu0 0.0
        %v8963 = vand.u32 %v8774, 4294901760
        %8964 = vmatmul.mubr.f32.gmra.mrb[0].mxu0 %v8963
        %v8965 = vpop.f32.mrb[0].mxu0
        %v8966 = vadd.f32 %v8873, %v8965
        %v8967 = vpop.f32.mrb[0].mxu0
        %8968 = vdwg.mxu0
        %8969 = vmatprep.subr.mxu0 0.0
        %v8970 = vand.u32 %v6851, 4294901760
        %v8971 = vsub.f32 %v6851, %v8970
        %8972 = vmatpush1.msra.mxu0 %v8971
        %8973 = vmatprep.subr.mxu0 0.0
        %v8974 = vand.u32 %v8777, 4294901760
        %v8975 = vsub.f32 %v8777, %v8974
        %8976 = vmatpush1.msra.mxu0 %v8975
        %8977 = vmatprep.subr.mxu0 0.0
        %8978 = vmatpush1.msra.mxu0 0.0
        %8979 = vmatprep.subr.mxu0 0.0
        %8980 = vmatpush1.msra.mxu0 0.0
        %8981 = vmatprep.subr.mxu0 0.0
        %8982 = vmatpush1.msra.mxu0 0.0
        %8983 = vmatprep.subr.mxu0 0.0
        %8984 = vmatpush1.msra.mxu0 0.0
        %8985 = vmatprep.subr.mxu0 0.0
        %8986 = vmatpush1.msra.mxu0 0.0
        %8987 = vmatprep.subr.mxu0 0.0
        %8988 = vmatpush1.msra.mxu0 0.0
        %8989 = vmatprep.subr.mxu0 0.0
        %8990 = vmatpush1.msra.mxu0 0.0
        %8991 = vmatprep.subr.mxu0 0.0
        %8992 = vmatpush1.msra.mxu0 0.0
        %8993 = vmatprep.subr.mxu0 0.0
        %8994 = vmatpush1.msra.mxu0 0.0
        %8995 = vmatprep.subr.mxu0 0.0
        %8996 = vmatpush1.msra.mxu0 0.0
        %8997 = vmatprep.subr.mxu0 0.0
        %8998 = vmatpush1.msra.mxu0 0.0
        %8999 = vmatprep.subr.mxu0 0.0
        %9000 = vmatpush1.msra.mxu0 0.0
        %9001 = vmatprep.subr.mxu0 0.0
        %9002 = vmatpush1.msra.mxu0 0.0
        %9003 = vmatprep.subr.mxu0 0.0
        %9004 = vmatpush1.msra.mxu0 0.0
        %9005 = vmatprep.subr.mxu0 0.0
        %9006 = vmatpush1.msra.mxu0 0.0
        %9007 = vmatprep.subr.mxu0 0.0
        %9008 = vmatpush1.msra.mxu0 0.0
        %9009 = vmatprep.subr.mxu0 0.0
        %9010 = vmatpush1.msra.mxu0 0.0
        %9011 = vmatprep.subr.mxu0 0.0
        %9012 = vmatpush1.msra.mxu0 0.0
        %9013 = vmatprep.subr.mxu0 0.0
        %9014 = vmatpush1.msra.mxu0 0.0
        %9015 = vmatprep.subr.mxu0 0.0
        %9016 = vmatpush1.msra.mxu0 0.0
        %9017 = vmatprep.subr.mxu0 0.0
        %9018 = vmatpush1.msra.mxu0 0.0
        %9019 = vmatprep.subr.mxu0 0.0
        %9020 = vmatpush1.msra.mxu0 0.0
        %9021 = vmatprep.subr.mxu0 0.0
        %9022 = vmatpush1.msra.mxu0 0.0
        %9023 = vmatprep.subr.mxu0 0.0
        %9024 = vmatpush1.msra.mxu0 0.0
        %9025 = vmatprep.subr.mxu0 0.0
        %9026 = vmatpush1.msra.mxu0 0.0
        %9027 = vmatprep.subr.mxu0 0.0
        %9028 = vmatpush1.msra.mxu0 0.0
        %9029 = vmatprep.subr.mxu0 0.0
        %9030 = vmatpush1.msra.mxu0 0.0
        %9031 = vmatprep.subr.mxu0 0.0
        %9032 = vmatpush1.msra.mxu0 0.0
        %9033 = vmatprep.subr.mxu0 0.0
        %9034 = vmatpush1.msra.mxu0 0.0
        %9035 = vmatprep.subr.mxu0 0.0
        %9036 = vmatpush1.msra.mxu0 0.0
        %9037 = vmatprep.mubr.f32.mxu0 0.0
        %v9038 = vand.u32 %v8768, 4294901760
        %v9039 = vsub.f32 %v8768, %v9038
        %9040 = vmatmul.mubr.f32.gmra.mrb[0].mxu0 %v9039
        %v9041 = vpop.f32.mrb[0].mxu0
        %v9042 = vadd.f32 %v8954, %v9041
        %v9043 = vpop.f32.mrb[0].mxu0
        %9044 = vmatprep.mubr.f32.mxu0 0.0
        %v9045 = vand.u32 %v8771, 4294901760
        %v9046 = vsub.f32 %v8771, %v9045
        %9047 = vmatmul.mubr.f32.gmra.mrb[0].mxu0 %v9046
        %v9048 = vpop.f32.mrb[0].mxu0
        %v9049 = vadd.f32 %v8960, %v9048
        %v9050 = vpop.f32.mrb[0].mxu0
        %9051 = vmatprep.mubr.f32.mxu0 0.0
        %v9052 = vand.u32 %v8774, 4294901760
        %v9053 = vsub.f32 %v8774, %v9052
        %9054 = vmatmul.mubr.f32.gmra.mrb[0].mxu0 %v9053
        %v9055 = vpop.f32.mrb[0].mxu0
        %v9056 = vadd.f32 %v8966, %v9055
        %v9057 = vpop.f32.mrb[0].mxu0
        %9058 = vdwg.mxu0
        %9059 = vmatprep.subr.mxu0 0.0
        %v9060 = vand.u32 %v6851, 4294901760
        %9061 = vmatpush1.msra.mxu0 %v9060
        %9062 = vmatprep.subr.mxu0 0.0
        %v9063 = vand.u32 %v8777, 4294901760
        %9064 = vmatpush1.msra.mxu0 %v9063
        %9065 = vmatprep.subr.mxu0 0.0
        %9066 = vmatpush1.msra.mxu0 0.0
        %9067 = vmatprep.subr.mxu0 0.0
        %9068 = vmatpush1.msra.mxu0 0.0
        %9069 = vmatprep.subr.mxu0 0.0
        %9070 = vmatpush1.msra.mxu0 0.0
        %9071 = vmatprep.subr.mxu0 0.0
        %9072 = vmatpush1.msra.mxu0 0.0
        %9073 = vmatprep.subr.mxu0 0.0
        %9074 = vmatpush1.msra.mxu0 0.0
        %9075 = vmatprep.subr.mxu0 0.0
        %9076 = vmatpush1.msra.mxu0 0.0
        %9077 = vmatprep.subr.mxu0 0.0
        %9078 = vmatpush1.msra.mxu0 0.0
        %9079 = vmatprep.subr.mxu0 0.0
        %9080 = vmatpush1.msra.mxu0 0.0
        %9081 = vmatprep.subr.mxu0 0.0
        %9082 = vmatpush1.msra.mxu0 0.0
        %9083 = vmatprep.subr.mxu0 0.0
        %9084 = vmatpush1.msra.mxu0 0.0
        %9085 = vmatprep.subr.mxu0 0.0
        %9086 = vmatpush1.msra.mxu0 0.0
        %9087 = vmatprep.subr.mxu0 0.0
        %9088 = vmatpush1.msra.mxu0 0.0
        %9089 = vmatprep.subr.mxu0 0.0
        %9090 = vmatpush1.msra.mxu0 0.0
        %9091 = vmatprep.subr.mxu0 0.0
        %9092 = vmatpush1.msra.mxu0 0.0
        %9093 = vmatprep.subr.mxu0 0.0
        %9094 = vmatpush1.msra.mxu0 0.0
        %9095 = vmatprep.subr.mxu0 0.0
        %9096 = vmatpush1.msra.mxu0 0.0
        %9097 = vmatprep.subr.mxu0 0.0
        %9098 = vmatpush1.msra.mxu0 0.0
        %9099 = vmatprep.subr.mxu0 0.0
        %9100 = vmatpush1.msra.mxu0 0.0
        %9101 = vmatprep.subr.mxu0 0.0
        %9102 = vmatpush1.msra.mxu0 0.0
        %9103 = vmatprep.subr.mxu0 0.0
        %9104 = vmatpush1.msra.mxu0 0.0
        %9105 = vmatprep.subr.mxu0 0.0
        %9106 = vmatpush1.msra.mxu0 0.0
        %9107 = vmatprep.subr.mxu0 0.0
        %9108 = vmatpush1.msra.mxu0 0.0
        %9109 = vmatprep.subr.mxu0 0.0
        %9110 = vmatpush1.msra.mxu0 0.0
        %9111 = vmatprep.subr.mxu0 0.0
        %9112 = vmatpush1.msra.mxu0 0.0
        %9113 = vmatprep.subr.mxu0 0.0
        %9114 = vmatpush1.msra.mxu0 0.0
        %9115 = vmatprep.subr.mxu0 0.0
        %9116 = vmatpush1.msra.mxu0 0.0
        %9117 = vmatprep.subr.mxu0 0.0
        %9118 = vmatpush1.msra.mxu0 0.0
        %9119 = vmatprep.subr.mxu0 0.0
        %9120 = vmatpush1.msra.mxu0 0.0
        %9121 = vmatprep.subr.mxu0 0.0
        %9122 = vmatpush1.msra.mxu0 0.0
        %9123 = vmatprep.subr.mxu0 0.0
        %9124 = vmatpush1.msra.mxu0 0.0
        %9125 = vmatprep.mubr.f32.mxu0 0.0
        %v9126 = vand.u32 %v8768, 4294901760
        %v9127 = vsub.f32 %v8768, %v9126
        %v9128 = vand.u32 %v9127, 4294901760
        %9129 = vmatmul.mubr.f32.gmra.mrb[0].mxu0 %v9128
        %v9130 = vpop.f32.mrb[0].mxu0
        %v9131 = vadd.f32 %v9042, %v9130
        %v9132 = vpop.f32.mrb[0].mxu0
        %9133 = vmatprep.mubr.f32.mxu0 0.0
        %v9134 = vand.u32 %v8771, 4294901760
        %v9135 = vsub.f32 %v8771, %v9134
        %v9136 = vand.u32 %v9135, 4294901760
        %9137 = vmatmul.mubr.f32.gmra.mrb[0].mxu0 %v9136
        %v9138 = vpop.f32.mrb[0].mxu0
        %v9139 = vadd.f32 %v9049, %v9138
        %v9140 = vpop.f32.mrb[0].mxu0
        %9141 = vmatprep.mubr.f32.mxu0 0.0
        %v9142 = vand.u32 %v8774, 4294901760
        %v9143 = vsub.f32 %v8774, %v9142
        %v9144 = vand.u32 %v9143, 4294901760
        %9145 = vmatmul.mubr.f32.gmra.mrb[0].mxu0 %v9144
        %v9146 = vpop.f32.mrb[0].mxu0
        %v9147 = vadd.f32 %v9056, %v9146
        %v9148 = vpop.f32.mrb[0].mxu0
        %9149 = vdwg.mxu0
        %9150 = vmatprep.subr.mxu0 0.0
        %v9151 = vand.u32 %v6851, 4294901760
        %v9152 = vsub.f32 %v6851, %v9151
        %v9153 = vand.u32 %v9152, 4294901760
        %9154 = vmatpush1.msra.mxu0 %v9153
        %9155 = vmatprep.subr.mxu0 0.0
        %v9156 = vand.u32 %v8777, 4294901760
        %v9157 = vsub.f32 %v8777, %v9156
        %v9158 = vand.u32 %v9157, 4294901760
        %9159 = vmatpush1.msra.mxu0 %v9158
        %9160 = vmatprep.subr.mxu0 0.0
        %9161 = vmatpush1.msra.mxu0 0.0
        %9162 = vmatprep.subr.mxu0 0.0
        %9163 = vmatpush1.msra.mxu0 0.0
        %9164 = vmatprep.subr.mxu0 0.0
        %9165 = vmatpush1.msra.mxu0 0.0
        %9166 = vmatprep.subr.mxu0 0.0
        %9167 = vmatpush1.msra.mxu0 0.0
        %9168 = vmatprep.subr.mxu0 0.0
        %9169 = vmatpush1.msra.mxu0 0.0
        %9170 = vmatprep.subr.mxu0 0.0
        %9171 = vmatpush1.msra.mxu0 0.0
        %9172 = vmatprep.subr.mxu0 0.0
        %9173 = vmatpush1.msra.mxu0 0.0
        %9174 = vmatprep.subr.mxu0 0.0
        %9175 = vmatpush1.msra.mxu0 0.0
        %9176 = vmatprep.subr.mxu0 0.0
        %9177 = vmatpush1.msra.mxu0 0.0
        %9178 = vmatprep.subr.mxu0 0.0
        %9179 = vmatpush1.msra.mxu0 0.0
        %9180 = vmatprep.subr.mxu0 0.0
        %9181 = vmatpush1.msra.mxu0 0.0
        %9182 = vmatprep.subr.mxu0 0.0
        %9183 = vmatpush1.msra.mxu0 0.0
        %9184 = vmatprep.subr.mxu0 0.0
        %9185 = vmatpush1.msra.mxu0 0.0
        %9186 = vmatprep.subr.mxu0 0.0
        %9187 = vmatpush1.msra.mxu0 0.0
        %9188 = vmatprep.subr.mxu0 0.0
        %9189 = vmatpush1.msra.mxu0 0.0
        %9190 = vmatprep.subr.mxu0 0.0
        %9191 = vmatpush1.msra.mxu0 0.0
        %9192 = vmatprep.subr.mxu0 0.0
        %9193 = vmatpush1.msra.mxu0 0.0
        %9194 = vmatprep.subr.mxu0 0.0
        %9195 = vmatpush1.msra.mxu0 0.0
        %9196 = vmatprep.subr.mxu0 0.0
        %9197 = vmatpush1.msra.mxu0 0.0
        %9198 = vmatprep.subr.mxu0 0.0
        %9199 = vmatpush1.msra.mxu0 0.0
        %9200 = vmatprep.subr.mxu0 0.0
        %9201 = vmatpush1.msra.mxu0 0.0
        %9202 = vmatprep.subr.mxu0 0.0
        %9203 = vmatpush1.msra.mxu0 0.0
        %9204 = vmatprep.subr.mxu0 0.0
        %9205 = vmatpush1.msra.mxu0 0.0
        %9206 = vmatprep.subr.mxu0 0.0
        %9207 = vmatpush1.msra.mxu0 0.0
        %9208 = vmatprep.subr.mxu0 0.0
        %9209 = vmatpush1.msra.mxu0 0.0
        %9210 = vmatprep.subr.mxu0 0.0
        %9211 = vmatpush1.msra.mxu0 0.0
        %9212 = vmatprep.subr.mxu0 0.0
        %9213 = vmatpush1.msra.mxu0 0.0
        %9214 = vmatprep.subr.mxu0 0.0
        %9215 = vmatpush1.msra.mxu0 0.0
        %9216 = vmatprep.subr.mxu0 0.0
        %9217 = vmatpush1.msra.mxu0 0.0
        %9218 = vmatprep.subr.mxu0 0.0
        %9219 = vmatpush1.msra.mxu0 0.0
        %9220 = vmatprep.mubr.f32.mxu0 0.0
        %v9221 = vand.u32 %v8768, 4294901760
        %9222 = vmatmul.mubr.f32.gmra.mrb[0].mxu0 %v9221
        %v9223 = vpop.f32.mrb[0].mxu0
        %v9224 = vadd.f32 %v9131, %v9223
        %v9225 = vpop.f32.mrb[0].mxu0
        %9226 = vmatprep.mubr.f32.mxu0 0.0
        %v9227 = vand.u32 %v8771, 4294901760
        %9228 = vmatmul.mubr.f32.gmra.mrb[0].mxu0 %v9227
        %v9229 = vpop.f32.mrb[0].mxu0
        %v9230 = vadd.f32 %v9139, %v9229
        %v9231 = vpop.f32.mrb[0].mxu0
        %9232 = vmatprep.mubr.f32.mxu0 0.0
        %v9233 = vand.u32 %v8774, 4294901760
        %9234 = vmatmul.mubr.f32.gmra.mrb[0].mxu0 %v9233
        %v9235 = vpop.f32.mrb[0].mxu0
        %v9236 = vadd.f32 %v9147, %v9235
        %v9237 = vpop.f32.mrb[0].mxu0
        %9238 = vdwg.mxu0
        %9239 = vmatprep.subr.mxu0 0.0
        %v9240 = vand.u32 %v6851, 4294901760
        %9241 = vmatpush1.msra.mxu0 %v9240
        %9242 = vmatprep.subr.mxu0 0.0
        %v9243 = vand.u32 %v8777, 4294901760
        %9244 = vmatpush1.msra.mxu0 %v9243
        %9245 = vmatprep.subr.mxu0 0.0
        %9246 = vmatpush1.msra.mxu0 0.0
        %9247 = vmatprep.subr.mxu0 0.0
        %9248 = vmatpush1.msra.mxu0 0.0
        %9249 = vmatprep.subr.mxu0 0.0
        %9250 = vmatpush1.msra.mxu0 0.0
        %9251 = vmatprep.subr.mxu0 0.0
        %9252 = vmatpush1.msra.mxu0 0.0
        %9253 = vmatprep.subr.mxu0 0.0
        %9254 = vmatpush1.msra.mxu0 0.0
        %9255 = vmatprep.subr.mxu0 0.0
        %9256 = vmatpush1.msra.mxu0 0.0
        %9257 = vmatprep.subr.mxu0 0.0
        %9258 = vmatpush1.msra.mxu0 0.0
        %9259 = vmatprep.subr.mxu0 0.0
        %9260 = vmatpush1.msra.mxu0 0.0
        %9261 = vmatprep.subr.mxu0 0.0
        %9262 = vmatpush1.msra.mxu0 0.0
        %9263 = vmatprep.subr.mxu0 0.0
        %9264 = vmatpush1.msra.mxu0 0.0
        %9265 = vmatprep.subr.mxu0 0.0
        %9266 = vmatpush1.msra.mxu0 0.0
        %9267 = vmatprep.subr.mxu0 0.0
        %9268 = vmatpush1.msra.mxu0 0.0
        %9269 = vmatprep.subr.mxu0 0.0
        %9270 = vmatpush1.msra.mxu0 0.0
        %9271 = vmatprep.subr.mxu0 0.0
        %9272 = vmatpush1.msra.mxu0 0.0
        %9273 = vmatprep.subr.mxu0 0.0
        %9274 = vmatpush1.msra.mxu0 0.0
        %9275 = vmatprep.subr.mxu0 0.0
        %9276 = vmatpush1.msra.mxu0 0.0
        %9277 = vmatprep.subr.mxu0 0.0
        %9278 = vmatpush1.msra.mxu0 0.0
        %9279 = vmatprep.subr.mxu0 0.0
        %9280 = vmatpush1.msra.mxu0 0.0
        %9281 = vmatprep.subr.mxu0 0.0
        %9282 = vmatpush1.msra.mxu0 0.0
        %9283 = vmatprep.subr.mxu0 0.0
        %9284 = vmatpush1.msra.mxu0 0.0
        %9285 = vmatprep.subr.mxu0 0.0
        %9286 = vmatpush1.msra.mxu0 0.0
        %9287 = vmatprep.subr.mxu0 0.0
        %9288 = vmatpush1.msra.mxu0 0.0
        %9289 = vmatprep.subr.mxu0 0.0
        %9290 = vmatpush1.msra.mxu0 0.0
        %9291 = vmatprep.subr.mxu0 0.0
        %9292 = vmatpush1.msra.mxu0 0.0
        %9293 = vmatprep.subr.mxu0 0.0
        %9294 = vmatpush1.msra.mxu0 0.0
        %9295 = vmatprep.subr.mxu0 0.0
        %9296 = vmatpush1.msra.mxu0 0.0
        %9297 = vmatprep.subr.mxu0 0.0
        %9298 = vmatpush1.msra.mxu0 0.0
        %9299 = vmatprep.subr.mxu0 0.0
        %9300 = vmatpush1.msra.mxu0 0.0
        %9301 = vmatprep.subr.mxu0 0.0
        %9302 = vmatpush1.msra.mxu0 0.0
        %9303 = vmatprep.subr.mxu0 0.0
        %9304 = vmatpush1.msra.mxu0 0.0
        %9305 = vmatprep.mubr.f32.mxu0 0.0
        %v9306 = vand.u32 %v8768, 4294901760
        %9307 = vmatmul.mubr.f32.gmra.mrb[0].mxu0 %v9306
        %v9308 = vpop.f32.mrb[0].mxu0
        %v9309 = vadd.f32 %v9224, %v9308
        %v9310 = vpop.f32.mrb[0].mxu0
        %9311 = vmatprep.mubr.f32.mxu0 0.0
        %v9312 = vand.u32 %v8771, 4294901760
        %9313 = vmatmul.mubr.f32.gmra.mrb[0].mxu0 %v9312
        %v9314 = vpop.f32.mrb[0].mxu0
        %v9315 = vadd.f32 %v9230, %v9314
        %v9316 = vpop.f32.mrb[0].mxu0
        %9317 = vmatprep.mubr.f32.mxu0 0.0
        %v9318 = vand.u32 %v8774, 4294901760
        %9319 = vmatmul.mubr.f32.gmra.mrb[0].mxu0 %v9318
        %v9320 = vpop.f32.mrb[0].mxu0
        %v9321 = vadd.f32 %v9236, %v9320
        %v9322 = vpop.f32.mrb[0].mxu0
        %9323 = vdwg.mxu0
        %v9324 = vadd.f32 %v8748, %v9309
        %v9325 = vadd.f32 %v8754, %v9315
        %v9326 = vadd.f32 %v8760, %v9321
        %v9327 = vadd.f32 %v9324, %v9325
        %v9328 = vsel %vm365, %v9326, 0.0
        %v9329 = vadd.f32 %v9327, %v9328
        %v9330 = vrot.slane %v9329, 4
        %v9331 = vadd.f32 %v9329, %v9330
        %v9332 = vrot.slane %v9331, 2
        %v9333 = vadd.f32 %v9331, %v9332
        %v9334 = vrot.slane %v9333, 1
        %v9335 = vadd.f32 %v9333, %v9334
        %v9336 = vrcp.pop 20.0
        %v9337 = vmul.f32 %v9335, %v9336
        %v9338 = vmul.f32 %v9324, %v9324
        %v9339 = vmul.f32 %v9325, %v9325
        %v9340 = vmul.f32 %v9326, %v9326
        %v9341 = vadd.f32 %v9338, %v9339
        %v9342 = vsel %vm365, %v9340, 0.0
        %v9343 = vadd.f32 %v9341, %v9342
        %v9344 = vrot.slane %v9343, 4
        %v9345 = vadd.f32 %v9343, %v9344
        %v9346 = vrot.slane %v9345, 2
        %v9347 = vadd.f32 %v9345, %v9346
        %v9348 = vrot.slane %v9347, 1
        %v9349 = vadd.f32 %v9347, %v9348
        %v9350 = vmul.f32 %v9349, %v9336
        %v9351 = vmul.f32 %v9337, %v9337
        %v9352 = vsub.f32 %v9350, %v9351
        %v9353 = vsub.f32 %v9324, %v9337
        %v9354 = vsub.f32 %v9325, %v9337
        %v9355 = vsub.f32 %v9326, %v9337
        %v9356 = vadd.f32 %v9352, 1e-05
        %v9357 = vrsqrt.pop %v9356
        %v9358 = vmul.f32 %v9353, %v9357
        %v9359 = vmul.f32 %v9354, %v9357
        %v9360 = vmul.f32 %v9355, %v9357
        %v9361 = vmax.f32 %v9358, 0.0
        %v9362 = vmax.f32 %v9359, 0.0
        %v9363 = vmax.f32 %v9360, 0.0
        %v9364 = vld [vmem:[%s5 + $0xa0] sm:$0xff]
        %v9365 = vld [vmem:[%s5 + $0xa8] sm:$0xff]
        %v9366 = vld [vmem:[%s5 + $0xb0] sm:$0xff]
        %v9367 = vld [vmem:[%s5 + $0xb8] sm:$0xff]
        %v9368 = vld [vmem:[%s5 + $0xc0] sm:$0xff]
        %v9369 = vld [vmem:[%s5 + $0xc8] sm:$0xff]
        %v9370 = vld [vmem:[%s5 + $0xd0] sm:$0xff]
        %v9371 = vld [vmem:[%s5 + $0xd8] sm:$0xff]
        %v9372 = vld [vmem:[%s5 + $0xe0] sm:$0xff]
        %v9373 = vld [vmem:[%s5 + $0xe8] sm:$0xff]
        %v9374 = vld [vmem:[%s5 + $0xf0] sm:$0xff]
        %v9375 = vld [vmem:[%s5 + $0xf8] sm:$0xff]
        %v9376 = vld [vmem:[%s5 + $0x100] sm:$0xff]
        %v9377 = vld [vmem:[%s5 + $0x108] sm:$0xff]
        %v9378 = vld [vmem:[%s5 + $0x110] sm:$0xff]
        %v9379 = vld [vmem:[%s5 + $0x118] sm:$0xff]
        %9380 = vmatprep.subr.mxu0 0.0
        %v9381 = vand.u32 %v9364, 4294901760
        %9382 = vmatpush1.msra.mxu0 %v9381
        %9383 = vmatprep.subr.mxu0 0.0
        %v9384 = vand.u32 %v9365, 4294901760
        %9385 = vmatpush1.msra.mxu0 %v9384
        %9386 = vmatprep.subr.mxu0 0.0
        %v9387 = vand.u32 %v9366, 4294901760
        %9388 = vmatpush1.msra.mxu0 %v9387
        %9389 = vmatprep.subr.mxu0 0.0
        %v9390 = vand.u32 %v9367, 4294901760
        %9391 = vmatpush1.msra.mxu0 %v9390
        %9392 = vmatprep.subr.mxu0 0.0
        %v9393 = vand.u32 %v9368, 4294901760
        %9394 = vmatpush1.msra.mxu0 %v9393
        %9395 = vmatprep.subr.mxu0 0.0
        %v9396 = vand.u32 %v9369, 4294901760
        %9397 = vmatpush1.msra.mxu0 %v9396
        %9398 = vmatprep.subr.mxu0 0.0
        %v9399 = vand.u32 %v9370, 4294901760
        %9400 = vmatpush1.msra.mxu0 %v9399
        %9401 = vmatprep.subr.mxu0 0.0
        %v9402 = vand.u32 %v9371, 4294901760
        %9403 = vmatpush1.msra.mxu0 %v9402
        %9404 = vmatprep.subr.mxu0 0.0
        %v9405 = vand.u32 %v9372, 4294901760
        %9406 = vmatpush1.msra.mxu0 %v9405
        %9407 = vmatprep.subr.mxu0 0.0
        %v9408 = vand.u32 %v9373, 4294901760
        %9409 = vmatpush1.msra.mxu0 %v9408
        %9410 = vmatprep.subr.mxu0 0.0
        %v9411 = vand.u32 %v9374, 4294901760
        %9412 = vmatpush1.msra.mxu0 %v9411
        %9413 = vmatprep.subr.mxu0 0.0
        %v9414 = vand.u32 %v9375, 4294901760
        %9415 = vmatpush1.msra.mxu0 %v9414
        %9416 = vmatprep.subr.mxu0 0.0
        %v9417 = vand.u32 %v9376, 4294901760
        %9418 = vmatpush1.msra.mxu0 %v9417
        %9419 = vmatprep.subr.mxu0 0.0
        %v9420 = vand.u32 %v9377, 4294901760
        %9421 = vmatpush1.msra.mxu0 %v9420
        %9422 = vmatprep.subr.mxu0 0.0
        %v9423 = vand.u32 %v9378, 4294901760
        %9424 = vmatpush1.msra.mxu0 %v9423
        %9425 = vmatprep.subr.mxu0 0.0
        %v9426 = vand.u32 %v9379, 4294901760
        %9427 = vmatpush1.msra.mxu0 %v9426
        %9428 = vmatprep.subr.mxu0 0.0
        %9429 = vmatpush1.msra.mxu0 0.0
        %9430 = vmatprep.subr.mxu0 0.0
        %9431 = vmatpush1.msra.mxu0 0.0
        %9432 = vmatprep.subr.mxu0 0.0
        %9433 = vmatpush1.msra.mxu0 0.0
        %9434 = vmatprep.subr.mxu0 0.0
        %9435 = vmatpush1.msra.mxu0 0.0
        %9436 = vmatprep.subr.mxu0 0.0
        %9437 = vmatpush1.msra.mxu0 0.0
        %9438 = vmatprep.subr.mxu0 0.0
        %9439 = vmatpush1.msra.mxu0 0.0
        %9440 = vmatprep.subr.mxu0 0.0
        %9441 = vmatpush1.msra.mxu0 0.0
        %9442 = vmatprep.subr.mxu0 0.0
        %9443 = vmatpush1.msra.mxu0 0.0
        %9444 = vmatprep.subr.mxu0 0.0
        %9445 = vmatpush1.msra.mxu0 0.0
        %9446 = vmatprep.subr.mxu0 0.0
        %9447 = vmatpush1.msra.mxu0 0.0
        %9448 = vmatprep.subr.mxu0 0.0
        %9449 = vmatpush1.msra.mxu0 0.0
        %9450 = vmatprep.subr.mxu0 0.0
        %9451 = vmatpush1.msra.mxu0 0.0
        %9452 = vmatprep.subr.mxu0 0.0
        %9453 = vmatpush1.msra.mxu0 0.0
        %9454 = vmatprep.subr.mxu0 0.0
        %9455 = vmatpush1.msra.mxu0 0.0
        %9456 = vmatprep.subr.mxu0 0.0
        %9457 = vmatpush1.msra.mxu0 0.0
        %9458 = vmatprep.subr.mxu0 0.0
        %9459 = vmatpush1.msra.mxu0 0.0
        %9460 = vmatprep.mubr.f32.mxu0 0.0
        %v9461 = vand.u32 %v9361, 4294901760
        %v9462 = vsub.f32 %v9361, %v9461
        %v9463 = vand.u32 %v9462, 4294901760
        %v9464 = vsub.f32 %v9462, %v9463
        %v9465 = vand.u32 %v9464, 4294901760
        %9466 = vmatmul.mubr.f32.gmra.mrb[0].mxu0 %v9465
        %v9467 = vpop.f32.mrb[0].mxu0
        %v9468 = vadd.f32 0.0, %v9467
        %v9469 = vpop.f32.mrb[0].mxu0
        %9470 = vmatprep.mubr.f32.mxu0 0.0
        %v9471 = vand.u32 %v9362, 4294901760
        %v9472 = vsub.f32 %v9362, %v9471
        %v9473 = vand.u32 %v9472, 4294901760
        %v9474 = vsub.f32 %v9472, %v9473
        %v9475 = vand.u32 %v9474, 4294901760
        %9476 = vmatmul.mubr.f32.gmra.mrb[0].mxu0 %v9475
        %v9477 = vpop.f32.mrb[0].mxu0
        %v9478 = vadd.f32 0.0, %v9477
        %v9479 = vpop.f32.mrb[0].mxu0
        %9480 = vmatprep.mubr.f32.mxu0 0.0
        %v9481 = vand.u32 %v9363, 4294901760
        %v9482 = vsub.f32 %v9363, %v9481
        %v9483 = vand.u32 %v9482, 4294901760
        %v9484 = vsub.f32 %v9482, %v9483
        %v9485 = vand.u32 %v9484, 4294901760
        %9486 = vmatmul.mubr.f32.gmra.mrb[0].mxu0 %v9485
        %v9487 = vpop.f32.mrb[0].mxu0
        %v9488 = vadd.f32 0.0, %v9487
        %v9489 = vpop.f32.mrb[0].mxu0
        %9490 = vdwg.mxu0
        %9491 = vmatprep.subr.mxu0 0.0
        %v9492 = vand.u32 %v9364, 4294901760
        %v9493 = vsub.f32 %v9364, %v9492
        %v9494 = vand.u32 %v9493, 4294901760
        %v9495 = vsub.f32 %v9493, %v9494
        %v9496 = vand.u32 %v9495, 4294901760
        %9497 = vmatpush1.msra.mxu0 %v9496
        %9498 = vmatprep.subr.mxu0 0.0
        %v9499 = vand.u32 %v9365, 4294901760
        %v9500 = vsub.f32 %v9365, %v9499
        %v9501 = vand.u32 %v9500, 4294901760
        %v9502 = vsub.f32 %v9500, %v9501
        %v9503 = vand.u32 %v9502, 4294901760
        %9504 = vmatpush1.msra.mxu0 %v9503
        %9505 = vmatprep.subr.mxu0 0.0
        %v9506 = vand.u32 %v9366, 4294901760
        %v9507 = vsub.f32 %v9366, %v9506
        %v9508 = vand.u32 %v9507, 4294901760
        %v9509 = vsub.f32 %v9507, %v9508
        %v9510 = vand.u32 %v9509, 4294901760
        %9511 = vmatpush1.msra.mxu0 %v9510
        %9512 = vmatprep.subr.mxu0 0.0
        %v9513 = vand.u32 %v9367, 4294901760
        %v9514 = vsub.f32 %v9367, %v9513
        %v9515 = vand.u32 %v9514, 4294901760
        %v9516 = vsub.f32 %v9514, %v9515
        %v9517 = vand.u32 %v9516, 4294901760
        %9518 = vmatpush1.msra.mxu0 %v9517
        %9519 = vmatprep.subr.mxu0 0.0
        %v9520 = vand.u32 %v9368, 4294901760
        %v9521 = vsub.f32 %v9368, %v9520
        %v9522 = vand.u32 %v9521, 4294901760
        %v9523 = vsub.f32 %v9521, %v9522
        %v9524 = vand.u32 %v9523, 4294901760
        %9525 = vmatpush1.msra.mxu0 %v9524
        %9526 = vmatprep.subr.mxu0 0.0
        %v9527 = vand.u32 %v9369, 4294901760
        %v9528 = vsub.f32 %v9369, %v9527
        %v9529 = vand.u32 %v9528, 4294901760
        %v9530 = vsub.f32 %v9528, %v9529
        %v9531 = vand.u32 %v9530, 4294901760
        %9532 = vmatpush1.msra.mxu0 %v9531
        %9533 = vmatprep.subr.mxu0 0.0
        %v9534 = vand.u32 %v9370, 4294901760
        %v9535 = vsub.f32 %v9370, %v9534
        %v9536 = vand.u32 %v9535, 4294901760
        %v9537 = vsub.f32 %v9535, %v9536
        %v9538 = vand.u32 %v9537, 4294901760
        %9539 = vmatpush1.msra.mxu0 %v9538
        %9540 = vmatprep.subr.mxu0 0.0
        %v9541 = vand.u32 %v9371, 4294901760
        %v9542 = vsub.f32 %v9371, %v9541
        %v9543 = vand.u32 %v9542, 4294901760
        %v9544 = vsub.f32 %v9542, %v9543
        %v9545 = vand.u32 %v9544, 4294901760
        %9546 = vmatpush1.msra.mxu0 %v9545
        %9547 = vmatprep.subr.mxu0 0.0
        %v9548 = vand.u32 %v9372, 4294901760
        %v9549 = vsub.f32 %v9372, %v9548
        %v9550 = vand.u32 %v9549, 4294901760
        %v9551 = vsub.f32 %v9549, %v9550
        %v9552 = vand.u32 %v9551, 4294901760
        %9553 = vmatpush1.msra.mxu0 %v9552
        %9554 = vmatprep.subr.mxu0 0.0
        %v9555 = vand.u32 %v9373, 4294901760
        %v9556 = vsub.f32 %v9373, %v9555
        %v9557 = vand.u32 %v9556, 4294901760
        %v9558 = vsub.f32 %v9556, %v9557
        %v9559 = vand.u32 %v9558, 4294901760
        %9560 = vmatpush1.msra.mxu0 %v9559
        %9561 = vmatprep.subr.mxu0 0.0
        %v9562 = vand.u32 %v9374, 4294901760
        %v9563 = vsub.f32 %v9374, %v9562
        %v9564 = vand.u32 %v9563, 4294901760
        %v9565 = vsub.f32 %v9563, %v9564
        %v9566 = vand.u32 %v9565, 4294901760
        %9567 = vmatpush1.msra.mxu0 %v9566
        %9568 = vmatprep.subr.mxu0 0.0
        %v9569 = vand.u32 %v9375, 4294901760
        %v9570 = vsub.f32 %v9375, %v9569
        %v9571 = vand.u32 %v9570, 4294901760
        %v9572 = vsub.f32 %v9570, %v9571
        %v9573 = vand.u32 %v9572, 4294901760
        %9574 = vmatpush1.msra.mxu0 %v9573
        %9575 = vmatprep.subr.mxu0 0.0
        %v9576 = vand.u32 %v9376, 4294901760
        %v9577 = vsub.f32 %v9376, %v9576
        %v9578 = vand.u32 %v9577, 4294901760
        %v9579 = vsub.f32 %v9577, %v9578
        %v9580 = vand.u32 %v9579, 4294901760
        %9581 = vmatpush1.msra.mxu0 %v9580
        %9582 = vmatprep.subr.mxu0 0.0
        %v9583 = vand.u32 %v9377, 4294901760
        %v9584 = vsub.f32 %v9377, %v9583
        %v9585 = vand.u32 %v9584, 4294901760
        %v9586 = vsub.f32 %v9584, %v9585
        %v9587 = vand.u32 %v9586, 4294901760
        %9588 = vmatpush1.msra.mxu0 %v9587
        %9589 = vmatprep.subr.mxu0 0.0
        %v9590 = vand.u32 %v9378, 4294901760
        %v9591 = vsub.f32 %v9378, %v9590
        %v9592 = vand.u32 %v9591, 4294901760
        %v9593 = vsub.f32 %v9591, %v9592
        %v9594 = vand.u32 %v9593, 4294901760
        %9595 = vmatpush1.msra.mxu0 %v9594
        %9596 = vmatprep.subr.mxu0 0.0
        %v9597 = vand.u32 %v9379, 4294901760
        %v9598 = vsub.f32 %v9379, %v9597
        %v9599 = vand.u32 %v9598, 4294901760
        %v9600 = vsub.f32 %v9598, %v9599
        %v9601 = vand.u32 %v9600, 4294901760
        %9602 = vmatpush1.msra.mxu0 %v9601
        %9603 = vmatprep.subr.mxu0 0.0
        %9604 = vmatpush1.msra.mxu0 0.0
        %9605 = vmatprep.subr.mxu0 0.0
        %9606 = vmatpush1.msra.mxu0 0.0
        %9607 = vmatprep.subr.mxu0 0.0
        %9608 = vmatpush1.msra.mxu0 0.0
        %9609 = vmatprep.subr.mxu0 0.0
        %9610 = vmatpush1.msra.mxu0 0.0
        %9611 = vmatprep.subr.mxu0 0.0
        %9612 = vmatpush1.msra.mxu0 0.0
        %9613 = vmatprep.subr.mxu0 0.0
        %9614 = vmatpush1.msra.mxu0 0.0
        %9615 = vmatprep.subr.mxu0 0.0
        %9616 = vmatpush1.msra.mxu0 0.0
        %9617 = vmatprep.subr.mxu0 0.0
        %9618 = vmatpush1.msra.mxu0 0.0
        %9619 = vmatprep.subr.mxu0 0.0
        %9620 = vmatpush1.msra.mxu0 0.0
        %9621 = vmatprep.subr.mxu0 0.0
        %9622 = vmatpush1.msra.mxu0 0.0
        %9623 = vmatprep.subr.mxu0 0.0
        %9624 = vmatpush1.msra.mxu0 0.0
        %9625 = vmatprep.subr.mxu0 0.0
        %9626 = vmatpush1.msra.mxu0 0.0
        %9627 = vmatprep.subr.mxu0 0.0
        %9628 = vmatpush1.msra.mxu0 0.0
        %9629 = vmatprep.subr.mxu0 0.0
        %9630 = vmatpush1.msra.mxu0 0.0
        %9631 = vmatprep.subr.mxu0 0.0
        %9632 = vmatpush1.msra.mxu0 0.0
        %9633 = vmatprep.subr.mxu0 0.0
        %9634 = vmatpush1.msra.mxu0 0.0
        %9635 = vmatprep.mubr.f32.mxu0 0.0
        %v9636 = vand.u32 %v9361, 4294901760
        %9637 = vmatmul.mubr.f32.gmra.mrb[0].mxu0 %v9636
        %v9638 = vpop.f32.mrb[0].mxu0
        %v9639 = vadd.f32 %v9468, %v9638
        %v9640 = vpop.f32.mrb[0].mxu0
        %9641 = vmatprep.mubr.f32.mxu0 0.0
        %v9642 = vand.u32 %v9362, 4294901760
        %9643 = vmatmul.mubr.f32.gmra.mrb[0].mxu0 %v9642
        %v9644 = vpop.f32.mrb[0].mxu0
        %v9645 = vadd.f32 %v9478, %v9644
        %v9646 = vpop.f32.mrb[0].mxu0
        %9647 = vmatprep.mubr.f32.mxu0 0.0
        %v9648 = vand.u32 %v9363, 4294901760
        %9649 = vmatmul.mubr.f32.gmra.mrb[0].mxu0 %v9648
        %v9650 = vpop.f32.mrb[0].mxu0
        %v9651 = vadd.f32 %v9488, %v9650
        %v9652 = vpop.f32.mrb[0].mxu0
        %9653 = vdwg.mxu0
        %9654 = vmatprep.subr.mxu0 0.0
        %v9655 = vand.u32 %v9364, 4294901760
        %v9656 = vsub.f32 %v9364, %v9655
        %9657 = vmatpush1.msra.mxu0 %v9656
        %9658 = vmatprep.subr.mxu0 0.0
        %v9659 = vand.u32 %v9365, 4294901760
        %v9660 = vsub.f32 %v9365, %v9659
        %9661 = vmatpush1.msra.mxu0 %v9660
        %9662 = vmatprep.subr.mxu0 0.0
        %v9663 = vand.u32 %v9366, 4294901760
        %v9664 = vsub.f32 %v9366, %v9663
        %9665 = vmatpush1.msra.mxu0 %v9664
        %9666 = vmatprep.subr.mxu0 0.0
        %v9667 = vand.u32 %v9367, 4294901760
        %v9668 = vsub.f32 %v9367, %v9667
        %9669 = vmatpush1.msra.mxu0 %v9668
        %9670 = vmatprep.subr.mxu0 0.0
        %v9671 = vand.u32 %v9368, 4294901760
        %v9672 = vsub.f32 %v9368, %v9671
        %9673 = vmatpush1.msra.mxu0 %v9672
        %9674 = vmatprep.subr.mxu0 0.0
        %v9675 = vand.u32 %v9369, 4294901760
        %v9676 = vsub.f32 %v9369, %v9675
        %9677 = vmatpush1.msra.mxu0 %v9676
        %9678 = vmatprep.subr.mxu0 0.0
        %v9679 = vand.u32 %v9370, 4294901760
        %v9680 = vsub.f32 %v9370, %v9679
        %9681 = vmatpush1.msra.mxu0 %v9680
        %9682 = vmatprep.subr.mxu0 0.0
        %v9683 = vand.u32 %v9371, 4294901760
        %v9684 = vsub.f32 %v9371, %v9683
        %9685 = vmatpush1.msra.mxu0 %v9684
        %9686 = vmatprep.subr.mxu0 0.0
        %v9687 = vand.u32 %v9372, 4294901760
        %v9688 = vsub.f32 %v9372, %v9687
        %9689 = vmatpush1.msra.mxu0 %v9688
        %9690 = vmatprep.subr.mxu0 0.0
        %v9691 = vand.u32 %v9373, 4294901760
        %v9692 = vsub.f32 %v9373, %v9691
        %9693 = vmatpush1.msra.mxu0 %v9692
        %9694 = vmatprep.subr.mxu0 0.0
        %v9695 = vand.u32 %v9374, 4294901760
        %v9696 = vsub.f32 %v9374, %v9695
        %9697 = vmatpush1.msra.mxu0 %v9696
        %9698 = vmatprep.subr.mxu0 0.0
        %v9699 = vand.u32 %v9375, 4294901760
        %v9700 = vsub.f32 %v9375, %v9699
        %9701 = vmatpush1.msra.mxu0 %v9700
        %9702 = vmatprep.subr.mxu0 0.0
        %v9703 = vand.u32 %v9376, 4294901760
        %v9704 = vsub.f32 %v9376, %v9703
        %9705 = vmatpush1.msra.mxu0 %v9704
        %9706 = vmatprep.subr.mxu0 0.0
        %v9707 = vand.u32 %v9377, 4294901760
        %v9708 = vsub.f32 %v9377, %v9707
        %9709 = vmatpush1.msra.mxu0 %v9708
        %9710 = vmatprep.subr.mxu0 0.0
        %v9711 = vand.u32 %v9378, 4294901760
        %v9712 = vsub.f32 %v9378, %v9711
        %9713 = vmatpush1.msra.mxu0 %v9712
        %9714 = vmatprep.subr.mxu0 0.0
        %v9715 = vand.u32 %v9379, 4294901760
        %v9716 = vsub.f32 %v9379, %v9715
        %9717 = vmatpush1.msra.mxu0 %v9716
        %9718 = vmatprep.subr.mxu0 0.0
        %9719 = vmatpush1.msra.mxu0 0.0
        %9720 = vmatprep.subr.mxu0 0.0
        %9721 = vmatpush1.msra.mxu0 0.0
        %9722 = vmatprep.subr.mxu0 0.0
        %9723 = vmatpush1.msra.mxu0 0.0
        %9724 = vmatprep.subr.mxu0 0.0
        %9725 = vmatpush1.msra.mxu0 0.0
        %9726 = vmatprep.subr.mxu0 0.0
        %9727 = vmatpush1.msra.mxu0 0.0
        %9728 = vmatprep.subr.mxu0 0.0
        %9729 = vmatpush1.msra.mxu0 0.0
        %9730 = vmatprep.subr.mxu0 0.0
        %9731 = vmatpush1.msra.mxu0 0.0
        %9732 = vmatprep.subr.mxu0 0.0
        %9733 = vmatpush1.msra.mxu0 0.0
        %9734 = vmatprep.subr.mxu0 0.0
        %9735 = vmatpush1.msra.mxu0 0.0
        %9736 = vmatprep.subr.mxu0 0.0
        %9737 = vmatpush1.msra.mxu0 0.0
        %9738 = vmatprep.subr.mxu0 0.0
        %9739 = vmatpush1.msra.mxu0 0.0
        %9740 = vmatprep.subr.mxu0 0.0
        %9741 = vmatpush1.msra.mxu0 0.0
        %9742 = vmatprep.subr.mxu0 0.0
        %9743 = vmatpush1.msra.mxu0 0.0
        %9744 = vmatprep.subr.mxu0 0.0
        %9745 = vmatpush1.msra.mxu0 0.0
        %9746 = vmatprep.subr.mxu0 0.0
        %9747 = vmatpush1.msra.mxu0 0.0
        %9748 = vmatprep.subr.mxu0 0.0
        %9749 = vmatpush1.msra.mxu0 0.0
        %9750 = vmatprep.mubr.f32.mxu0 0.0
        %v9751 = vand.u32 %v9361, 4294901760
        %v9752 = vsub.f32 %v9361, %v9751
        %9753 = vmatmul.mubr.f32.gmra.mrb[0].mxu0 %v9752
        %v9754 = vpop.f32.mrb[0].mxu0
        %v9755 = vadd.f32 %v9639, %v9754
        %v9756 = vpop.f32.mrb[0].mxu0
        %9757 = vmatprep.mubr.f32.mxu0 0.0
        %v9758 = vand.u32 %v9362, 4294901760
        %v9759 = vsub.f32 %v9362, %v9758
        %9760 = vmatmul.mubr.f32.gmra.mrb[0].mxu0 %v9759
        %v9761 = vpop.f32.mrb[0].mxu0
        %v9762 = vadd.f32 %v9645, %v9761
        %v9763 = vpop.f32.mrb[0].mxu0
        %9764 = vmatprep.mubr.f32.mxu0 0.0
        %v9765 = vand.u32 %v9363, 4294901760
        %v9766 = vsub.f32 %v9363, %v9765
        %9767 = vmatmul.mubr.f32.gmra.mrb[0].mxu0 %v9766
        %v9768 = vpop.f32.mrb[0].mxu0
        %v9769 = vadd.f32 %v9651, %v9768
        %v9770 = vpop.f32.mrb[0].mxu0
        %9771 = vdwg.mxu0
        %9772 = vmatprep.subr.mxu0 0.0
        %v9773 = vand.u32 %v9364, 4294901760
        %9774 = vmatpush1.msra.mxu0 %v9773
        %9775 = vmatprep.subr.mxu0 0.0
        %v9776 = vand.u32 %v9365, 4294901760
        %9777 = vmatpush1.msra.mxu0 %v9776
        %9778 = vmatprep.subr.mxu0 0.0
        %v9779 = vand.u32 %v9366, 4294901760
        %9780 = vmatpush1.msra.mxu0 %v9779
        %9781 = vmatprep.subr.mxu0 0.0
        %v9782 = vand.u32 %v9367, 4294901760
        %9783 = vmatpush1.msra.mxu0 %v9782
        %9784 = vmatprep.subr.mxu0 0.0
        %v9785 = vand.u32 %v9368, 4294901760
        %9786 = vmatpush1.msra.mxu0 %v9785
        %9787 = vmatprep.subr.mxu0 0.0
        %v9788 = vand.u32 %v9369, 4294901760
        %9789 = vmatpush1.msra.mxu0 %v9788
        %9790 = vmatprep.subr.mxu0 0.0
        %v9791 = vand.u32 %v9370, 4294901760
        %9792 = vmatpush1.msra.mxu0 %v9791
        %9793 = vmatprep.subr.mxu0 0.0
        %v9794 = vand.u32 %v9371, 4294901760
        %9795 = vmatpush1.msra.mxu0 %v9794
        %9796 = vmatprep.subr.mxu0 0.0
        %v9797 = vand.u32 %v9372, 4294901760
        %9798 = vmatpush1.msra.mxu0 %v9797
        %9799 = vmatprep.subr.mxu0 0.0
        %v9800 = vand.u32 %v9373, 4294901760
        %9801 = vmatpush1.msra.mxu0 %v9800
        %9802 = vmatprep.subr.mxu0 0.0
        %v9803 = vand.u32 %v9374, 4294901760
        %9804 = vmatpush1.msra.mxu0 %v9803
        %9805 = vmatprep.subr.mxu0 0.0
        %v9806 = vand.u32 %v9375, 4294901760
        %9807 = vmatpush1.msra.mxu0 %v9806
        %9808 = vmatprep.subr.mxu0 0.0
        %v9809 = vand.u32 %v9376, 4294901760
        %9810 = vmatpush1.msra.mxu0 %v9809
        %9811 = vmatprep.subr.mxu0 0.0
        %v9812 = vand.u32 %v9377, 4294901760
        %9813 = vmatpush1.msra.mxu0 %v9812
        %9814 = vmatprep.subr.mxu0 0.0
        %v9815 = vand.u32 %v9378, 4294901760
        %9816 = vmatpush1.msra.mxu0 %v9815
        %9817 = vmatprep.subr.mxu0 0.0
        %v9818 = vand.u32 %v9379, 4294901760
        %9819 = vmatpush1.msra.mxu0 %v9818
        %9820 = vmatprep.subr.mxu0 0.0
        %9821 = vmatpush1.msra.mxu0 0.0
        %9822 = vmatprep.subr.mxu0 0.0
        %9823 = vmatpush1.msra.mxu0 0.0
        %9824 = vmatprep.subr.mxu0 0.0
        %9825 = vmatpush1.msra.mxu0 0.0
        %9826 = vmatprep.subr.mxu0 0.0
        %9827 = vmatpush1.msra.mxu0 0.0
        %9828 = vmatprep.subr.mxu0 0.0
        %9829 = vmatpush1.msra.mxu0 0.0
        %9830 = vmatprep.subr.mxu0 0.0
        %9831 = vmatpush1.msra.mxu0 0.0
        %9832 = vmatprep.subr.mxu0 0.0
        %9833 = vmatpush1.msra.mxu0 0.0
        %9834 = vmatprep.subr.mxu0 0.0
        %9835 = vmatpush1.msra.mxu0 0.0
        %9836 = vmatprep.subr.mxu0 0.0
        %9837 = vmatpush1.msra.mxu0 0.0
        %9838 = vmatprep.subr.mxu0 0.0
        %9839 = vmatpush1.msra.mxu0 0.0
        %9840 = vmatprep.subr.mxu0 0.0
        %9841 = vmatpush1.msra.mxu0 0.0
        %9842 = vmatprep.subr.mxu0 0.0
        %9843 = vmatpush1.msra.mxu0 0.0
        %9844 = vmatprep.subr.mxu0 0.0
        %9845 = vmatpush1.msra.mxu0 0.0
        %9846 = vmatprep.subr.mxu0 0.0
        %9847 = vmatpush1.msra.mxu0 0.0
        %9848 = vmatprep.subr.mxu0 0.0
        %9849 = vmatpush1.msra.mxu0 0.0
        %9850 = vmatprep.subr.mxu0 0.0
        %9851 = vmatpush1.msra.mxu0 0.0
        %9852 = vmatprep.mubr.f32.mxu0 0.0
        %v9853 = vand.u32 %v9361, 4294901760
        %v9854 = vsub.f32 %v9361, %v9853
        %v9855 = vand.u32 %v9854, 4294901760
        %9856 = vmatmul.mubr.f32.gmra.mrb[0].mxu0 %v9855
        %v9857 = vpop.f32.mrb[0].mxu0
        %v9858 = vadd.f32 %v9755, %v9857
        %v9859 = vpop.f32.mrb[0].mxu0
        %9860 = vmatprep.mubr.f32.mxu0 0.0
        %v9861 = vand.u32 %v9362, 4294901760
        %v9862 = vsub.f32 %v9362, %v9861
        %v9863 = vand.u32 %v9862, 4294901760
        %9864 = vmatmul.mubr.f32.gmra.mrb[0].mxu0 %v9863
        %v9865 = vpop.f32.mrb[0].mxu0
        %v9866 = vadd.f32 %v9762, %v9865
        %v9867 = vpop.f32.mrb[0].mxu0
        %9868 = vmatprep.mubr.f32.mxu0 0.0
        %v9869 = vand.u32 %v9363, 4294901760
        %v9870 = vsub.f32 %v9363, %v9869
        %v9871 = vand.u32 %v9870, 4294901760
        %9872 = vmatmul.mubr.f32.gmra.mrb[0].mxu0 %v9871
        %v9873 = vpop.f32.mrb[0].mxu0
        %v9874 = vadd.f32 %v9769, %v9873
        %v9875 = vpop.f32.mrb[0].mxu0
        %9876 = vdwg.mxu0
        %9877 = vmatprep.subr.mxu0 0.0
        %v9878 = vand.u32 %v9364, 4294901760
        %v9879 = vsub.f32 %v9364, %v9878
        %v9880 = vand.u32 %v9879, 4294901760
        %9881 = vmatpush1.msra.mxu0 %v9880
        %9882 = vmatprep.subr.mxu0 0.0
        %v9883 = vand.u32 %v9365, 4294901760
        %v9884 = vsub.f32 %v9365, %v9883
        %v9885 = vand.u32 %v9884, 4294901760
        %9886 = vmatpush1.msra.mxu0 %v9885
        %9887 = vmatprep.subr.mxu0 0.0
        %v9888 = vand.u32 %v9366, 4294901760
        %v9889 = vsub.f32 %v9366, %v9888
        %v9890 = vand.u32 %v9889, 4294901760
        %9891 = vmatpush1.msra.mxu0 %v9890
        %9892 = vmatprep.subr.mxu0 0.0
        %v9893 = vand.u32 %v9367, 4294901760
        %v9894 = vsub.f32 %v9367, %v9893
        %v9895 = vand.u32 %v9894, 4294901760
        %9896 = vmatpush1.msra.mxu0 %v9895
        %9897 = vmatprep.subr.mxu0 0.0
        %v9898 = vand.u32 %v9368, 4294901760
        %v9899 = vsub.f32 %v9368, %v9898
        %v9900 = vand.u32 %v9899, 4294901760
        %9901 = vmatpush1.msra.mxu0 %v9900
        %9902 = vmatprep.subr.mxu0 0.0
        %v9903 = vand.u32 %v9369, 4294901760
        %v9904 = vsub.f32 %v9369, %v9903
        %v9905 = vand.u32 %v9904, 4294901760
        %9906 = vmatpush1.msra.mxu0 %v9905
        %9907 = vmatprep.subr.mxu0 0.0
        %v9908 = vand.u32 %v9370, 4294901760
        %v9909 = vsub.f32 %v9370, %v9908
        %v9910 = vand.u32 %v9909, 4294901760
        %9911 = vmatpush1.msra.mxu0 %v9910
        %9912 = vmatprep.subr.mxu0 0.0
        %v9913 = vand.u32 %v9371, 4294901760
        %v9914 = vsub.f32 %v9371, %v9913
        %v9915 = vand.u32 %v9914, 4294901760
        %9916 = vmatpush1.msra.mxu0 %v9915
        %9917 = vmatprep.subr.mxu0 0.0
        %v9918 = vand.u32 %v9372, 4294901760
        %v9919 = vsub.f32 %v9372, %v9918
        %v9920 = vand.u32 %v9919, 4294901760
        %9921 = vmatpush1.msra.mxu0 %v9920
        %9922 = vmatprep.subr.mxu0 0.0
        %v9923 = vand.u32 %v9373, 4294901760
        %v9924 = vsub.f32 %v9373, %v9923
        %v9925 = vand.u32 %v9924, 4294901760
        %9926 = vmatpush1.msra.mxu0 %v9925
        %9927 = vmatprep.subr.mxu0 0.0
        %v9928 = vand.u32 %v9374, 4294901760
        %v9929 = vsub.f32 %v9374, %v9928
        %v9930 = vand.u32 %v9929, 4294901760
        %9931 = vmatpush1.msra.mxu0 %v9930
        %9932 = vmatprep.subr.mxu0 0.0
        %v9933 = vand.u32 %v9375, 4294901760
        %v9934 = vsub.f32 %v9375, %v9933
        %v9935 = vand.u32 %v9934, 4294901760
        %9936 = vmatpush1.msra.mxu0 %v9935
        %9937 = vmatprep.subr.mxu0 0.0
        %v9938 = vand.u32 %v9376, 4294901760
        %v9939 = vsub.f32 %v9376, %v9938
        %v9940 = vand.u32 %v9939, 4294901760
        %9941 = vmatpush1.msra.mxu0 %v9940
        %9942 = vmatprep.subr.mxu0 0.0
        %v9943 = vand.u32 %v9377, 4294901760
        %v9944 = vsub.f32 %v9377, %v9943
        %v9945 = vand.u32 %v9944, 4294901760
        %9946 = vmatpush1.msra.mxu0 %v9945
        %9947 = vmatprep.subr.mxu0 0.0
        %v9948 = vand.u32 %v9378, 4294901760
        %v9949 = vsub.f32 %v9378, %v9948
        %v9950 = vand.u32 %v9949, 4294901760
        %9951 = vmatpush1.msra.mxu0 %v9950
        %9952 = vmatprep.subr.mxu0 0.0
        %v9953 = vand.u32 %v9379, 4294901760
        %v9954 = vsub.f32 %v9379, %v9953
        %v9955 = vand.u32 %v9954, 4294901760
        %9956 = vmatpush1.msra.mxu0 %v9955
        %9957 = vmatprep.subr.mxu0 0.0
        %9958 = vmatpush1.msra.mxu0 0.0
        %9959 = vmatprep.subr.mxu0 0.0
        %9960 = vmatpush1.msra.mxu0 0.0
        %9961 = vmatprep.subr.mxu0 0.0
        %9962 = vmatpush1.msra.mxu0 0.0
        %9963 = vmatprep.subr.mxu0 0.0
        %9964 = vmatpush1.msra.mxu0 0.0
        %9965 = vmatprep.subr.mxu0 0.0
        %9966 = vmatpush1.msra.mxu0 0.0
        %9967 = vmatprep.subr.mxu0 0.0
        %9968 = vmatpush1.msra.mxu0 0.0
        %9969 = vmatprep.subr.mxu0 0.0
        %9970 = vmatpush1.msra.mxu0 0.0
        %9971 = vmatprep.subr.mxu0 0.0
        %9972 = vmatpush1.msra.mxu0 0.0
        %9973 = vmatprep.subr.mxu0 0.0
        %9974 = vmatpush1.msra.mxu0 0.0
        %9975 = vmatprep.subr.mxu0 0.0
        %9976 = vmatpush1.msra.mxu0 0.0
        %9977 = vmatprep.subr.mxu0 0.0
        %9978 = vmatpush1.msra.mxu0 0.0
        %9979 = vmatprep.subr.mxu0 0.0
        %9980 = vmatpush1.msra.mxu0 0.0
        %9981 = vmatprep.subr.mxu0 0.0
        %9982 = vmatpush1.msra.mxu0 0.0
        %9983 = vmatprep.subr.mxu0 0.0
        %9984 = vmatpush1.msra.mxu0 0.0
        %9985 = vmatprep.subr.mxu0 0.0
        %9986 = vmatpush1.msra.mxu0 0.0
        %9987 = vmatprep.subr.mxu0 0.0
        %9988 = vmatpush1.msra.mxu0 0.0
        %9989 = vmatprep.mubr.f32.mxu0 0.0
        %v9990 = vand.u32 %v9361, 4294901760
        %9991 = vmatmul.mubr.f32.gmra.mrb[0].mxu0 %v9990
        %v9992 = vpop.f32.mrb[0].mxu0
        %v9993 = vadd.f32 %v9858, %v9992
        %v9994 = vpop.f32.mrb[0].mxu0
        %9995 = vmatprep.mubr.f32.mxu0 0.0
        %v9996 = vand.u32 %v9362, 4294901760
        %9997 = vmatmul.mubr.f32.gmra.mrb[0].mxu0 %v9996
        %v9998 = vpop.f32.mrb[0].mxu0
        %v9999 = vadd.f32 %v9866, %v9998
        %v10000 = vpop.f32.mrb[0].mxu0
        %10001 = vmatprep.mubr.f32.mxu0 0.0
        %v10002 = vand.u32 %v9363, 4294901760
        %10003 = vmatmul.mubr.f32.gmra.mrb[0].mxu0 %v10002
        %v10004 = vpop.f32.mrb[0].mxu0
        %v10005 = vadd.f32 %v9874, %v10004
        %v10006 = vpop.f32.mrb[0].mxu0
        %10007 = vdwg.mxu0
        %10008 = vmatprep.subr.mxu0 0.0
        %v10009 = vand.u32 %v9364, 4294901760
        %10010 = vmatpush1.msra.mxu0 %v10009
        %10011 = vmatprep.subr.mxu0 0.0
        %v10012 = vand.u32 %v9365, 4294901760
        %10013 = vmatpush1.msra.mxu0 %v10012
        %10014 = vmatprep.subr.mxu0 0.0
        %v10015 = vand.u32 %v9366, 4294901760
        %10016 = vmatpush1.msra.mxu0 %v10015
        %10017 = vmatprep.subr.mxu0 0.0
        %v10018 = vand.u32 %v9367, 4294901760
        %10019 = vmatpush1.msra.mxu0 %v10018
        %10020 = vmatprep.subr.mxu0 0.0
        %v10021 = vand.u32 %v9368, 4294901760
        %10022 = vmatpush1.msra.mxu0 %v10021
        %10023 = vmatprep.subr.mxu0 0.0
        %v10024 = vand.u32 %v9369, 4294901760
        %10025 = vmatpush1.msra.mxu0 %v10024
        %10026 = vmatprep.subr.mxu0 0.0
        %v10027 = vand.u32 %v9370, 4294901760
        %10028 = vmatpush1.msra.mxu0 %v10027
        %10029 = vmatprep.subr.mxu0 0.0
        %v10030 = vand.u32 %v9371, 4294901760
        %10031 = vmatpush1.msra.mxu0 %v10030
        %10032 = vmatprep.subr.mxu0 0.0
        %v10033 = vand.u32 %v9372, 4294901760
        %10034 = vmatpush1.msra.mxu0 %v10033
        %10035 = vmatprep.subr.mxu0 0.0
        %v10036 = vand.u32 %v9373, 4294901760
        %10037 = vmatpush1.msra.mxu0 %v10036
        %10038 = vmatprep.subr.mxu0 0.0
        %v10039 = vand.u32 %v9374, 4294901760
        %10040 = vmatpush1.msra.mxu0 %v10039
        %10041 = vmatprep.subr.mxu0 0.0
        %v10042 = vand.u32 %v9375, 4294901760
        %10043 = vmatpush1.msra.mxu0 %v10042
        %10044 = vmatprep.subr.mxu0 0.0
        %v10045 = vand.u32 %v9376, 4294901760
        %10046 = vmatpush1.msra.mxu0 %v10045
        %10047 = vmatprep.subr.mxu0 0.0
        %v10048 = vand.u32 %v9377, 4294901760
        %10049 = vmatpush1.msra.mxu0 %v10048
        %10050 = vmatprep.subr.mxu0 0.0
        %v10051 = vand.u32 %v9378, 4294901760
        %10052 = vmatpush1.msra.mxu0 %v10051
        %10053 = vmatprep.subr.mxu0 0.0
        %v10054 = vand.u32 %v9379, 4294901760
        %10055 = vmatpush1.msra.mxu0 %v10054
        %10056 = vmatprep.subr.mxu0 0.0
        %10057 = vmatpush1.msra.mxu0 0.0
        %10058 = vmatprep.subr.mxu0 0.0
        %10059 = vmatpush1.msra.mxu0 0.0
        %10060 = vmatprep.subr.mxu0 0.0
        %10061 = vmatpush1.msra.mxu0 0.0
        %10062 = vmatprep.subr.mxu0 0.0
        %10063 = vmatpush1.msra.mxu0 0.0
        %10064 = vmatprep.subr.mxu0 0.0
        %10065 = vmatpush1.msra.mxu0 0.0
        %10066 = vmatprep.subr.mxu0 0.0
        %10067 = vmatpush1.msra.mxu0 0.0
        %10068 = vmatprep.subr.mxu0 0.0
        %10069 = vmatpush1.msra.mxu0 0.0
        %10070 = vmatprep.subr.mxu0 0.0
        %10071 = vmatpush1.msra.mxu0 0.0
        %10072 = vmatprep.subr.mxu0 0.0
        %10073 = vmatpush1.msra.mxu0 0.0
        %10074 = vmatprep.subr.mxu0 0.0
        %10075 = vmatpush1.msra.mxu0 0.0
        %10076 = vmatprep.subr.mxu0 0.0
        %10077 = vmatpush1.msra.mxu0 0.0
        %10078 = vmatprep.subr.mxu0 0.0
        %10079 = vmatpush1.msra.mxu0 0.0
        %10080 = vmatprep.subr.mxu0 0.0
        %10081 = vmatpush1.msra.mxu0 0.0
        %10082 = vmatprep.subr.mxu0 0.0
        %10083 = vmatpush1.msra.mxu0 0.0
        %10084 = vmatprep.subr.mxu0 0.0
        %10085 = vmatpush1.msra.mxu0 0.0
        %10086 = vmatprep.subr.mxu0 0.0
        %10087 = vmatpush1.msra.mxu0 0.0
        %10088 = vmatprep.mubr.f32.mxu0 0.0
        %v10089 = vand.u32 %v9361, 4294901760
        %10090 = vmatmul.mubr.f32.gmra.mrb[0].mxu0 %v10089
        %v10091 = vpop.f32.mrb[0].mxu0
        %v10092 = vadd.f32 %v9993, %v10091
        %v10093 = vpop.f32.mrb[0].mxu0
        %10094 = vmatprep.mubr.f32.mxu0 0.0
        %v10095 = vand.u32 %v9362, 4294901760
        %10096 = vmatmul.mubr.f32.gmra.mrb[0].mxu0 %v10095
        %v10097 = vpop.f32.mrb[0].mxu0
        %v10098 = vadd.f32 %v9999, %v10097
        %v10099 = vpop.f32.mrb[0].mxu0
        %10100 = vmatprep.mubr.f32.mxu0 0.0
        %v10101 = vand.u32 %v9363, 4294901760
        %10102 = vmatmul.mubr.f32.gmra.mrb[0].mxu0 %v10101
        %v10103 = vpop.f32.mrb[0].mxu0
        %v10104 = vadd.f32 %v10005, %v10103
        %v10105 = vpop.f32.mrb[0].mxu0
        %10106 = vdwg.mxu0
        %v10107 = vadd.f32 %v10092, %v10098
        %v10108 = vsel %vm365, %v10104, 0.0
        %v10109 = vadd.f32 %v10107, %v10108
        %v10110 = vrot.slane %v10109, 4
        %v10111 = vadd.f32 %v10109, %v10110
        %v10112 = vrot.slane %v10111, 2
        %v10113 = vadd.f32 %v10111, %v10112
        %v10114 = vrot.slane %v10113, 1
        %v10115 = vadd.f32 %v10113, %v10114
        %v10116 = vmul.f32 %v10115, %v9336
        %v10117 = vmul.f32 %v10092, %v10092
        %v10118 = vmul.f32 %v10098, %v10098
        %v10119 = vmul.f32 %v10104, %v10104
        %v10120 = vadd.f32 %v10117, %v10118
        %v10121 = vsel %vm365, %v10119, 0.0
        %v10122 = vadd.f32 %v10120, %v10121
        %v10123 = vrot.slane %v10122, 4
        %v10124 = vadd.f32 %v10122, %v10123
        %v10125 = vrot.slane %v10124, 2
        %v10126 = vadd.f32 %v10124, %v10125
        %v10127 = vrot.slane %v10126, 1
        %v10128 = vadd.f32 %v10126, %v10127
        %v10129 = vmul.f32 %v10128, %v9336
        %v10130 = vmul.f32 %v10116, %v10116
        %v10131 = vsub.f32 %v10129, %v10130
        %v10132 = vsub.f32 %v10092, %v10116
        %v10133 = vsub.f32 %v10098, %v10116
        %v10134 = vsub.f32 %v10104, %v10116
        %v10135 = vadd.f32 %v10131, 1e-05
        %v10136 = vrsqrt.pop %v10135
        %v10137 = vmul.f32 %v10132, %v10136
        %v10138 = vmul.f32 %v10133, %v10136
        %v10139 = vmul.f32 %v10134, %v10136
        %v10140 = vmax.f32 %v10137, 0.0
        %v10141 = vmax.f32 %v10138, 0.0
        %v10142 = vmax.f32 %v10139, 0.0
        %10143 = vst [vmem:[%s321] sm:$0xff] %v10140
        %10144 = vst [vmem:[%s321 + $0x8] sm:$0xff] %v10141
        %10145 = vst [vmem:[%s321 + $0x10] sm:$0xf] %v10142
        %p10146 = scmp.lt.s32.totalorder %s20, 1
        %s10147 = scalar_select %p10146, %s20, 1
        %s10148 = smul.addr %s10147, 3
        %s10149 = smul.addr %s10148, 8
        %s10150 = scalar_lea.vmem %s6, %s10149
        %p10151 = scmp.lt.s32.totalorder %s20, 1
        %s10152 = scalar_select %p10151, %s20, 1
        %s10153 = smul.addr %s10152, 2
        %s10154 = smul.addr %s10153, 8
        %s10155 = scalar_lea.vmem %s7, %s10154
        // Predicated region
        $region49: #{edge_cycle_forward.1} parent=43 // pred_check
          %p10156 = pneg %p174
        $region50: #{edge_cycle_forward.1} parent=43 // pred_check_branch
          %10158 = sbr.rel (%p10156) target = $region52
        $region51: #{edge_cycle_forward.1} parent=43 // pred_region
          _
        $region52: #{edge_cycle_forward.1} parent=43 // pred_fallthru
          _
        // Predicated region
        $region53: #{edge_cycle_forward.1} parent=43 // pred_check
          %p10159 = pneg %p200
        $region54: #{edge_cycle_forward.1} parent=43 // pred_check_branch
          %10161 = sbr.rel (%p10159) target = $region56
        $region55: #{edge_cycle_forward.1} parent=43 // pred_region
          _
        $region56: #{edge_cycle_forward.1} parent=43 // pred_fallthru
          _
      $region44: #{edge_cycle_forward.1} parent=5 // pred_fallthru
        _
      %p10162 = scmp.le.s32.totalorder 2, %s15
      // Predicated region
      $region57: #{edge_cycle_forward.1} parent=5 // pred_check
        %p10163 = pneg %p10162
      $region58: #{edge_cycle_forward.1} parent=5 // pred_check_branch
        %10165 = sbr.rel (%p10163) target = $region60
      $region59: #{edge_cycle_forward.1} parent=5 // pred_region
        %s10166 = ssub.s32 %s15, 2
        // Predicated region
        $region61: #{edge_cycle_forward.1} parent=59 // pred_check
          %p10167 = pneg %p180
        $region62: #{edge_cycle_forward.1} parent=59 // pred_check_branch
          %10169 = sbr.rel (%p10167) target = $region64
        $region63: #{edge_cycle_forward.1} parent=59 // pred_region
          %p10170 = scmp.lt.s32.totalorder %s21, 1
          %s10171 = scalar_select %p10170, %s21, 1
          %s10172 = smul.addr %s10171, 3
          %s10173 = smul.addr %s10172, 8
          %s10174 = scalar_lea.vmem %s6, %s10173
        $region64: #{edge_cycle_forward.1} parent=59 // pred_fallthru
          _
        // Predicated region
        $region65: #{edge_cycle_forward.1} parent=59 // pred_check
          %p10175 = pneg %p206
        $region66: #{edge_cycle_forward.1} parent=59 // pred_check_branch
          %10177 = sbr.rel (%p10175) target = $region68
        $region67: #{edge_cycle_forward.1} parent=59 // pred_region
          %p10178 = scmp.lt.s32.totalorder %s21, 1
          %s10179 = scalar_select %p10178, %s21, 1
          %s10180 = smul.addr %s10179, 2
          %s10181 = smul.addr %s10180, 8
          %s10182 = scalar_lea.vmem %s7, %s10181
        $region68: #{edge_cycle_forward.1} parent=59 // pred_fallthru
          _
      $region60: #{edge_cycle_forward.1} parent=5 // pred_fallthru
        _
    $region6: #{edge_cycle_forward.1} parent=1 // loop_footer
      %s19 = sadd.s32 1, %s15
    $region7: #{edge_cycle_forward.1} parent=1 // loop_footer_branch
      %14 = sbr.rel target = $region3
    $region8: #{edge_cycle_forward.1} parent=1 // loop_exit
      _
    %10183 = vsyncpa [#allocation3], 1
    %s10184 = scalar_lea.sflag [#allocation3], 1
    %10185 = vsyncpa %s10184, 1

</llo_original>
